<compile_context>
chip_gen: v7x
topology: tpu7x:2x2x1
jax: 0.10.0
libtpu: 0.0.40
codegen_flags: <defaults>
</compile_context>

<pallas_src>
import functools

import jax
import jax.numpy as jnp
from jax import lax
from jax.experimental import pallas as pl
from jax.experimental.pallas import tpu as pltpu

LANE = 128  # pad hidden / label feature dims to a full lane tile


def _round_up(v, m):
    return ((v + m - 1) // m) * m


def _cdiv(a, b):
    return -(-a // b)


def _ggnn_block_kernel(
    x_ref,      # [B, n, in_dim]     f32   node features of B graphs
    adj_ref,    # [B, E, n, n]       bf16  per-graph A[e, dst, src]
    w_in_ref,   # [in_dim, Hp]       bf16
    b_in_ref,   # [1, Hp]            f32
    w_e_ref,    # [Hp, E*Hp]         bf16  fused per-etype message weights
    b_e_ref,    # [1, E*Hp]          f32
    w_i_ref,    # [Hp, 3*Hp]         bf16  GRU input weights  (gate order r|z|n)
    b_i_ref,    # [1, 3*Hp]          f32
    w_h_ref,    # [Hp, 3*Hp]         bf16  GRU hidden weights (gate order r|z|n)
    b_h_ref,    # [1, 3*Hp]          f32
    w_c1_ref,   # [Hp, H2p]          bf16
    b_c1_ref,   # [1, H2p]           f32
    w_c2_ref,   # [H2p, Lp]          bf16
    b_c2_ref,   # [1, Lp]            f32
    out_ref,    # [B, Lp]            f32   lane-dense logits slab
    *,
    n_steps: int,
    n_etypes: int,
    hp: int,
):
    f32 = jnp.float32
    bf16 = jnp.bfloat16
    B, n, in_dim = x_ref.shape
    bn = B * n  # all node rows of this block, flattened for dense matmuls

    # ---- linear_in on all B*n node rows at once: h = x @ W_in + b_in ----
    x = x_ref[...].reshape(bn, in_dim).astype(bf16)
    h = jnp.dot(x, w_in_ref[...], preferred_element_type=f32) + b_in_ref[...]

    adj = adj_ref[...]                                    # [B, E, n, n] bf16

    # ---- step-invariant terms, hoisted out of the propagation loop ----
    # Each incoming edge of etype e contributes b_e once (DGL edge-wise linear),
    # so the aggregated bias is deg_e(dst) * b_e and never changes across steps.
    bias_agg = jnp.zeros((B, n, hp), dtype=f32)
    for e in range(n_etypes):
        deg_e = jnp.sum(adj[:, e].astype(f32), axis=2, keepdims=True)  # [B,n,1]
        bias_agg = bias_agg + deg_e * b_e_ref[:, e * hp:(e + 1) * hp].reshape(
            1, 1, hp)
    b_i_b = jnp.broadcast_to(b_i_ref[...], (bn, 3 * hp))
    b_h_b = jnp.broadcast_to(b_h_ref[...], (bn, 3 * hp))

    w_e = w_e_ref[...]
    w_i = w_i_ref[...]
    w_h = w_h_ref[...]

    # ---- GatedGraphConv: n_steps of typed message passing + GRUCell ----
    def step(_, h):
        h_b = h.astype(bf16)
        # all E message linears as ONE wide matmul on [bn, Hp] rows
        msg = jnp.dot(h_b, w_e, preferred_element_type=f32).astype(bf16)
        msg3 = msg.reshape(B, n, n_etypes * hp)
        a3 = bias_agg
        for e in range(n_etypes):          # per-graph SpMM, 128-aligned slices
            a3 = a3 + jnp.einsum(
                "bds,bsh->bdh", adj[:, e], msg3[:, :, e * hp:(e + 1) * hp],
                preferred_element_type=f32)
        a = a3.reshape(bn, hp)

        # fused GRUCell: 2 matmuls instead of 6 (PyTorch gate order r, z, n)
        gi = jnp.dot(a.astype(bf16), w_i, preferred_element_type=f32) + b_i_b
        gh = jnp.dot(h_b, w_h, preferred_element_type=f32) + b_h_b
        r = jax.nn.sigmoid(gi[:, :hp] + gh[:, :hp])
        z = jax.nn.sigmoid(gi[:, hp:2 * hp] + gh[:, hp:2 * hp])
        ng = jnp.tanh(gi[:, 2 * hp:] + r * gh[:, 2 * hp:])
        return (1.0 - z) * ng + z * h

    h = lax.fori_loop(0, n_steps, step, h)

    # ---- dgl.mean_nodes: every graph in this block has exactly n nodes ----
    hg = jnp.mean(h.reshape(B, n, hp), axis=1)            # [B, Hp]

    # ---- classifier: Linear -> ReLU -> Linear (lane-dense [B, Lp] output) ----
    hidden = jnp.dot(hg.astype(bf16), w_c1_ref[...],
                     preferred_element_type=f32) + b_c1_ref[...]
    hidden = jnp.maximum(hidden, 0.0)
    logits = jnp.dot(hidden.astype(bf16), w_c2_ref[...],
                     preferred_element_type=f32) + b_c2_ref[...]
    out_ref[...] = logits.astype(out_ref.dtype)


def _pad2(a, rows, cols, dtype):
    a = jnp.asarray(a, jnp.float32)
    out = jnp.zeros((rows, cols), jnp.float32)
    out = out.at[:a.shape[0], :a.shape[1]].set(a)
    return out.astype(dtype)


def _pack_operands(params, hid_dim, n_etypes, num_labels):
    """Zero-pad hidden/label dims to 128 lanes, fuse GRU / per-etype weights."""
    bf16, f32 = jnp.bfloat16, jnp.float32
    hp = _round_up(hid_dim, LANE)
    h2 = hid_dim // 2
    h2p = _round_up(h2, LANE)
    lp = _round_up(num_labels, LANE)          # lane-dense logits slab
    in_dim = params["w_in"].shape[0]

    w_e_cat = jnp.concatenate(
        [_pad2(params["w_e"][e], hp, hp, bf16) for e in range(n_etypes)], axis=1)
    b_e_cat = jnp.concatenate(
        [_pad2(params["b_e"][e][None, :], 1, hp, f32) for e in range(n_etypes)],
        axis=1)
    w_i_cat = jnp.concatenate(
        [_pad2(params["w_i"][k], hp, hp, bf16) for k in range(3)], axis=1)
    b_i_cat = jnp.concatenate(
        [_pad2(params["b_i"][k][None, :], 1, hp, f32) for k in range(3)], axis=1)
    w_h_cat = jnp.concatenate(
        [_pad2(params["w_h"][k], hp, hp, bf16) for k in range(3)], axis=1)
    b_h_cat = jnp.concatenate(
        [_pad2(params["b_h"][k][None, :], 1, hp, f32) for k in range(3)], axis=1)

    w_ops = (
        _pad2(params["w_in"], in_dim, hp, bf16),     # K kept at true in_dim
        _pad2(params["b_in"][None, :], 1, hp, f32),
        w_e_cat, b_e_cat,
        w_i_cat, b_i_cat,
        w_h_cat, b_h_cat,
        _pad2(params["w_c1"], hp, h2p, bf16),
        _pad2(params["b_c1"][None, :], 1, h2p, f32),
        _pad2(params["w_c2"], h2p, lp, bf16),
        _pad2(params["b_c2"][None, :], 1, lp, f32),
    )
    return hp, lp, w_ops


def _build_call(kernel, *, num_blocks, B, n, in_dim, n_etypes, w_ops, g_pad, lp,
                weight_mode):
    weight_kwargs = {} if weight_mode is None else {"pipeline_mode": weight_mode}
    in_specs = [
        pl.BlockSpec((B, n, in_dim), lambda g: (g, 0, 0)),
        pl.BlockSpec((B, n_etypes, n, n), lambda g: (g, 0, 0, 0)),
    ]
    # grid-invariant weights/biases: whole arrays, resident for every grid step
    in_specs += [
        pl.BlockSpec(w.shape, lambda g: (0, 0), **weight_kwargs) for w in w_ops
    ]
    return pl.pallas_call(
        kernel,
        out_shape=jax.ShapeDtypeStruct((g_pad, lp), jnp.float32),
        grid=(num_blocks,),
        in_specs=in_specs,
        out_specs=pl.BlockSpec((B, lp), lambda g: (g, 0)),
        compiler_params=pltpu.CompilerParams(
            dimension_semantics=("parallel",),
            vmem_limit_bytes=48 * 1024 * 1024),
    )


def ggnn_classifier_forward(params, x, adj, *, n_steps, n_etypes, num_labels,
                            graphs_per_block=None):
    """x: [G, n, in_dim] f32, adj: [G, E, n, n] 0/1, params: PyTorch-shaped."""
    num_graphs, n, in_dim = x.shape
    hid_dim = params["w_in"].shape[1]
    hp, lp, w_ops = _pack_operands(params, hid_dim, n_etypes, num_labels)

    # Batch graphs per grid step so dense matmuls see ~128 node rows, while
    # keeping >= 2 grid steps so both v7x TensorCores have work.
    if graphs_per_block is None:
        graphs_per_block = max(1, min(_cdiv(128, n), _cdiv(num_graphs, 2)))
    B = int(graphs_per_block)
    g_pad = _round_up(num_graphs, B)
    if g_pad != num_graphs:
        pad = g_pad - num_graphs
        x = jnp.concatenate([x, jnp.zeros((pad, n, in_dim), x.dtype)], axis=0)
        adj = jnp.concatenate(
            [adj, jnp.zeros((pad,) + adj.shape[1:], adj.dtype)], axis=0)
    num_blocks = g_pad // B

    kernel = functools.partial(_ggnn_block_kernel, n_steps=n_steps,
                               n_etypes=n_etypes, hp=hp)
    operands = (x, adj.astype(jnp.bfloat16)) + w_ops

    common = dict(num_blocks=num_blocks, B=B, n=n, in_dim=in_dim,
                  n_etypes=n_etypes, w_ops=w_ops, g_pad=g_pad, lp=lp)
    try:
        # single-buffer the grid-invariant weights (index_map is constant)
        out = _build_call(kernel, weight_mode=pl.Buffered(1), **common)(*operands)
    except Exception:
        # fall back to default double-buffering if Buffered(1) is unsupported
        out = _build_call(kernel, weight_mode=None, **common)(*operands)

    return out[:num_graphs, :num_labels]


def ggnn_reference(params, x, adj, *, n_steps, n_etypes):
    """Pure-JAX f32 reference matching the PyTorch/DGL module's forward."""
    h = x @ params["w_in"] + params["b_in"]                 # [G, n, H]
    A = adj.astype(jnp.float32)
    for _ in range(n_steps):
        a = jnp.zeros_like(h)
        for e in range(n_etypes):
            msg = h @ params["w_e"][e] + params["b_e"][e]
            a = a + jnp.einsum("gds,gsh->gdh", A[:, e], msg)
        gi_r = a @ params["w_i"][0] + params["b_i"][0]
        gi_z = a @ params["w_i"][1] + params["b_i"][1]
        gi_n = a @ params["w_i"][2] + params["b_i"][2]
        gh_r = h @ params["w_h"][0] + params["b_h"][0]
        gh_z = h @ params["w_h"][1] + params["b_h"][1]
        gh_n = h @ params["w_h"][2] + params["b_h"][2]
        r = jax.nn.sigmoid(gi_r + gh_r)
        z = jax.nn.sigmoid(gi_z + gh_z)
        ng = jnp.tanh(gi_n + r * gh_n)
        h = (1.0 - z) * ng + z * h
    hg = h.mean(axis=1)                                     # dgl.mean_nodes
    hidden = jax.nn.relu(hg @ params["w_c1"] + params["b_c1"])
    return hidden @ params["w_c2"] + params["b_c2"]


def init_params(key, in_dim, hid_dim, n_etypes, num_labels):
    """Deterministic synthetic parameters (shapes mirror the PyTorch module)."""
    ks = jax.random.split(key, 12)

    def lin(k, fan_in, shape):
        bound = 1.0 / jnp.sqrt(jnp.float32(fan_in))
        return jax.random.uniform(k, shape, jnp.float32, -bound, bound)

    h2 = hid_dim // 2
    return {
        "w_in": lin(ks[0], in_dim, (in_dim, hid_dim)),
        "b_in": lin(ks[1], in_dim, (hid_dim,)),
        "w_e": lin(ks[2], hid_dim, (n_etypes, hid_dim, hid_dim)),
        "b_e": lin(ks[3], hid_dim, (n_etypes, hid_dim)),
        "w_i": lin(ks[4], hid_dim, (3, hid_dim, hid_dim)),
        "b_i": lin(ks[5], hid_dim, (3, hid_dim)),
        "w_h": lin(ks[6], hid_dim, (3, hid_dim, hid_dim)),
        "b_h": lin(ks[7], hid_dim, (3, hid_dim)),
        "w_c1": lin(ks[8], hid_dim, (hid_dim, h2)),
        "b_c1": lin(ks[9], hid_dim, (h2,)),
        "w_c2": lin(ks[10], h2, (h2, num_labels)),
        "b_c2": lin(ks[11], h2, (num_labels,)),
    }


def build_graph(key, num_graphs, nodes_per_graph, n_etypes):
    """Per-graph, per-etype 0/1 adjacency blocks A[g, e, dst, src].
    (Exploits dgl.batch's block-diagonal structure: no cross-graph edges.)"""
    ke, kt = jax.random.split(key)
    edge_mask = jax.random.uniform(
        ke, (num_graphs, nodes_per_graph, nodes_per_graph)) < 0.4
    etypes = jax.random.randint(
        kt, (num_graphs, nodes_per_graph, nodes_per_graph), 0, n_etypes)
    adj = (edge_mask[:, None] &
           (etypes[:, None] == jnp.arange(n_etypes)[None, :, None, None]))
    return adj.astype(jnp.float32)                          # [G, E, n, n]


if __name__ == "__main__":
    # small shapes consistent with the module; 32 graphs of 8 nodes -> two
    # grid blocks of 16 graphs = 128 node rows per block.
    in_dim, hid_dim = 8, 32
    n_steps, n_etypes, num_labels = 4, 3, 5
    num_graphs, nodes_per_graph = 32, 8

    root = jax.random.PRNGKey(0)
    k_param, k_graph, k_feat = jax.random.split(root, 3)

    params = init_params(k_param, in_dim, hid_dim, n_etypes, num_labels)
    adj = build_graph(k_graph, num_graphs, nodes_per_graph, n_etypes)
    x = jax.random.normal(k_feat, (num_graphs, nodes_per_graph, in_dim),
                          jnp.float32)

    logits = ggnn_classifier_forward(
        params, x, adj,
        n_steps=n_steps, n_etypes=n_etypes, num_labels=num_labels)
    logits = jax.block_until_ready(logits)

    ref = ggnn_reference(params, x, adj, n_steps=n_steps, n_etypes=n_etypes)

    assert logits.shape == (num_graphs, num_labels)
    assert bool(jnp.all(jnp.isfinite(logits)))
    # bf16 MXU operands vs f32 reference -> loose tolerance
    assert bool(jnp.allclose(logits, ref, atol=5e-2, rtol=5e-2))
    print("KERNEL_OK")
</pallas_src>

<mosaic_0001>
module attributes {stable_mosaic.version = 11 : i64} {
  func.func @_ggnn_block_kernel(%arg0: i32, %arg1: memref<16x8x8xf32, #tpu.memory_space<vmem>>, %arg2: memref<16x3x8x8xbf16, #tpu.memory_space<vmem>>, %arg3: memref<8x128xbf16, #tpu.memory_space<vmem>>, %arg4: memref<1x128xf32, #tpu.memory_space<vmem>>, %arg5: memref<128x384xbf16, #tpu.memory_space<vmem>>, %arg6: memref<1x384xf32, #tpu.memory_space<vmem>>, %arg7: memref<128x384xbf16, #tpu.memory_space<vmem>>, %arg8: memref<1x384xf32, #tpu.memory_space<vmem>>, %arg9: memref<128x384xbf16, #tpu.memory_space<vmem>>, %arg10: memref<1x384xf32, #tpu.memory_space<vmem>>, %arg11: memref<128x128xbf16, #tpu.memory_space<vmem>>, %arg12: memref<1x128xf32, #tpu.memory_space<vmem>>, %arg13: memref<128x128xbf16, #tpu.memory_space<vmem>>, %arg14: memref<1x128xf32, #tpu.memory_space<vmem>>, %arg15: memref<16x128xf32, #tpu.memory_space<vmem>>) attributes {dimension_semantics = [#tpu.dimension_semantics<parallel>], iteration_bounds = array<i64: 2>, scalar_prefetch = 0 : i64, scratch_operands = 0 : i64, tpu.core_type = #tpu.core_type<tc>, window_params = [{transform_indices = @transform_0, window_bounds = array<i64: 16, 8, 8>}, {transform_indices = @transform_1, window_bounds = array<i64: 16, 3, 8, 8>}, {pipeline_mode = #tpu.pipeline_mode<synchronous>, transform_indices = @transform_2, window_bounds = array<i64: 8, 128>}, {pipeline_mode = #tpu.pipeline_mode<synchronous>, transform_indices = @transform_3, window_bounds = array<i64: 1, 128>}, {pipeline_mode = #tpu.pipeline_mode<synchronous>, transform_indices = @transform_4, window_bounds = array<i64: 128, 384>}, {pipeline_mode = #tpu.pipeline_mode<synchronous>, transform_indices = @transform_5, window_bounds = array<i64: 1, 384>}, {pipeline_mode = #tpu.pipeline_mode<synchronous>, transform_indices = @transform_6, window_bounds = array<i64: 128, 384>}, {pipeline_mode = #tpu.pipeline_mode<synchronous>, transform_indices = @transform_7, window_bounds = array<i64: 1, 384>}, {pipeline_mode = #tpu.pipeline_mode<synchronous>, transform_indices = @transform_8, window_bounds = array<i64: 128, 384>}, {pipeline_mode = #tpu.pipeline_mode<synchronous>, transform_indices = @transform_9, window_bounds = array<i64: 1, 384>}, {pipeline_mode = #tpu.pipeline_mode<synchronous>, transform_indices = @transform_10, window_bounds = array<i64: 128, 128>}, {pipeline_mode = #tpu.pipeline_mode<synchronous>, transform_indices = @transform_11, window_bounds = array<i64: 1, 128>}, {pipeline_mode = #tpu.pipeline_mode<synchronous>, transform_indices = @transform_12, window_bounds = array<i64: 128, 128>}, {pipeline_mode = #tpu.pipeline_mode<synchronous>, transform_indices = @transform_13, window_bounds = array<i64: 1, 128>}, {transform_indices = @transform_14, window_bounds = array<i64: 16, 128>}]} {
    %c0 = arith.constant 0 : index
    %c0_0 = arith.constant 0 : index
    %c0_1 = arith.constant 0 : index
    %0 = vector.load %arg1[%c0, %c0_0, %c0_1] : memref<16x8x8xf32, #tpu.memory_space<vmem>>, vector<16x8x8xf32>
    %1 = vector.shape_cast %0 : vector<16x8x8xf32> to vector<128x8xf32>
    %2 = arith.truncf %1 : vector<128x8xf32> to vector<128x8xbf16>
    %c0_2 = arith.constant 0 : index
    %c0_3 = arith.constant 0 : index
    %3 = vector.load %arg3[%c0_2, %c0_3] : memref<8x128xbf16, #tpu.memory_space<vmem>>, vector<8x128xbf16>
    %cst = arith.constant dense<0.000000e+00> : vector<128x128xf32>
    %4 = tpu.matmul %2, %3, %cst {dimension_numbers = #tpu.dot_dimension_numbers<[1], [0], [0], [1], [0, 0, 1, 1], [], []>} : vector<128x8xbf16>, vector<8x128xbf16>, vector<128x128xf32> -> vector<128x128xf32>
    %c0_4 = arith.constant 0 : index
    %c0_5 = arith.constant 0 : index
    %5 = vector.load %arg4[%c0_4, %c0_5] : memref<1x128xf32, #tpu.memory_space<vmem>>, vector<1x128xf32>
    %6 = vector.broadcast %5 : vector<1x128xf32> to vector<128x128xf32>
    %7 = arith.addf %4, %6 : vector<128x128xf32>
    %c0_6 = arith.constant 0 : index
    %c0_7 = arith.constant 0 : index
    %c0_8 = arith.constant 0 : index
    %c0_9 = arith.constant 0 : index
    %8 = vector.load %arg2[%c0_6, %c0_7, %c0_8, %c0_9] : memref<16x3x8x8xbf16, #tpu.memory_space<vmem>>, vector<16x3x8x8xbf16>
    %cst_10 = arith.constant 0.000000e+00 : f32
    %9 = vector.broadcast %cst_10 : f32 to vector<16x8x128xf32>
    %10 = vector.extract_strided_slice %8 {offsets = [0, 0, 0, 0], sizes = [16, 1, 8, 8], strides = [1, 1, 1, 1]} : vector<16x3x8x8xbf16> to vector<16x1x8x8xbf16>
    %11 = vector.shape_cast %10 : vector<16x1x8x8xbf16> to vector<16x8x8xbf16>
    %12 = arith.extf %11 : vector<16x8x8xbf16> to vector<16x8x8xf32>
    %cst_11 = arith.constant dense<0.000000e+00> : vector<16x8xf32>
    %13 = vector.multi_reduction <add>, %12, %cst_11 [2] : vector<16x8x8xf32> to vector<16x8xf32>
    %14 = vector.shape_cast %13 : vector<16x8xf32> to vector<16x8x1xf32>
    %c0_12 = arith.constant 0 : index
    %c0_13 = arith.constant 0 : index
    %15 = vector.load %arg6[%c0_12, %c0_13] : memref<1x384xf32, #tpu.memory_space<vmem>>, vector<1x128xf32>
    %16 = vector.shape_cast %15 : vector<1x128xf32> to vector<1x1x128xf32>
    %17 = vector.broadcast %14 : vector<16x8x1xf32> to vector<16x8x128xf32>
    %18 = vector.broadcast %16 : vector<1x1x128xf32> to vector<16x8x128xf32>
    %19 = arith.mulf %17, %18 : vector<16x8x128xf32>
    %20 = arith.addf %9, %19 : vector<16x8x128xf32>
    %21 = vector.extract_strided_slice %8 {offsets = [0, 1, 0, 0], sizes = [16, 1, 8, 8], strides = [1, 1, 1, 1]} : vector<16x3x8x8xbf16> to vector<16x1x8x8xbf16>
    %22 = vector.shape_cast %21 : vector<16x1x8x8xbf16> to vector<16x8x8xbf16>
    %23 = arith.extf %22 : vector<16x8x8xbf16> to vector<16x8x8xf32>
    %cst_14 = arith.constant dense<0.000000e+00> : vector<16x8xf32>
    %24 = vector.multi_reduction <add>, %23, %cst_14 [2] : vector<16x8x8xf32> to vector<16x8xf32>
    %25 = vector.shape_cast %24 : vector<16x8xf32> to vector<16x8x1xf32>
    %c0_15 = arith.constant 0 : index
    %c128 = arith.constant 128 : index
    %26 = vector.load %arg6[%c0_15, %c128] : memref<1x384xf32, #tpu.memory_space<vmem>>, vector<1x128xf32>
    %27 = vector.shape_cast %26 : vector<1x128xf32> to vector<1x1x128xf32>
    %28 = vector.broadcast %25 : vector<16x8x1xf32> to vector<16x8x128xf32>
    %29 = vector.broadcast %27 : vector<1x1x128xf32> to vector<16x8x128xf32>
    %30 = arith.mulf %28, %29 : vector<16x8x128xf32>
    %31 = arith.addf %20, %30 : vector<16x8x128xf32>
    %32 = vector.extract_strided_slice %8 {offsets = [0, 2, 0, 0], sizes = [16, 1, 8, 8], strides = [1, 1, 1, 1]} : vector<16x3x8x8xbf16> to vector<16x1x8x8xbf16>
    %33 = vector.shape_cast %32 : vector<16x1x8x8xbf16> to vector<16x8x8xbf16>
    %34 = arith.extf %33 : vector<16x8x8xbf16> to vector<16x8x8xf32>
    %cst_16 = arith.constant dense<0.000000e+00> : vector<16x8xf32>
    %35 = vector.multi_reduction <add>, %34, %cst_16 [2] : vector<16x8x8xf32> to vector<16x8xf32>
    %36 = vector.shape_cast %35 : vector<16x8xf32> to vector<16x8x1xf32>
    %c0_17 = arith.constant 0 : index
    %c256 = arith.constant 256 : index
    %37 = vector.load %arg6[%c0_17, %c256] : memref<1x384xf32, #tpu.memory_space<vmem>>, vector<1x128xf32>
    %38 = vector.shape_cast %37 : vector<1x128xf32> to vector<1x1x128xf32>
    %39 = vector.broadcast %36 : vector<16x8x1xf32> to vector<16x8x128xf32>
    %40 = vector.broadcast %38 : vector<1x1x128xf32> to vector<16x8x128xf32>
    %41 = arith.mulf %39, %40 : vector<16x8x128xf32>
    %42 = arith.addf %31, %41 : vector<16x8x128xf32>
    %c0_18 = arith.constant 0 : index
    %c0_19 = arith.constant 0 : index
    %43 = vector.load %arg8[%c0_18, %c0_19] : memref<1x384xf32, #tpu.memory_space<vmem>>, vector<1x384xf32>
    %44 = vector.shape_cast %43 : vector<1x384xf32> to vector<1x384xf32>
    %45 = vector.broadcast %44 : vector<1x384xf32> to vector<128x384xf32>
    %c0_20 = arith.constant 0 : index
    %c0_21 = arith.constant 0 : index
    %46 = vector.load %arg10[%c0_20, %c0_21] : memref<1x384xf32, #tpu.memory_space<vmem>>, vector<1x384xf32>
    %47 = vector.shape_cast %46 : vector<1x384xf32> to vector<1x384xf32>
    %48 = vector.broadcast %47 : vector<1x384xf32> to vector<128x384xf32>
    %c0_22 = arith.constant 0 : index
    %c0_23 = arith.constant 0 : index
    %49 = vector.load %arg5[%c0_22, %c0_23] : memref<128x384xbf16, #tpu.memory_space<vmem>>, vector<128x384xbf16>
    %c0_24 = arith.constant 0 : index
    %c0_25 = arith.constant 0 : index
    %50 = vector.load %arg7[%c0_24, %c0_25] : memref<128x384xbf16, #tpu.memory_space<vmem>>, vector<128x384xbf16>
    %c0_26 = arith.constant 0 : index
    %c0_27 = arith.constant 0 : index
    %51 = vector.load %arg9[%c0_26, %c0_27] : memref<128x384xbf16, #tpu.memory_space<vmem>>, vector<128x384xbf16>
    %c0_i32 = arith.constant 0 : i32
    %c4_i32 = arith.constant 4 : i32
    %52 = arith.addi %c0_i32, %c4_i32 : i32
    %c1_i32 = arith.constant 1 : i32
    %53 = scf.for %arg16 = %c0_i32 to %52 step %c1_i32 iter_args(%arg17 = %7) -> (vector<128x128xf32>)  : i32 {
      %73 = arith.truncf %arg17 : vector<128x128xf32> to vector<128x128xbf16>
      %cst_43 = arith.constant dense<0.000000e+00> : vector<128x384xf32>
      %74 = tpu.matmul %73, %49, %cst_43 {dimension_numbers = #tpu.dot_dimension_numbers<[1], [0], [0], [1], [0, 0, 1, 1], [], []>} : vector<128x128xbf16>, vector<128x384xbf16>, vector<128x384xf32> -> vector<128x384xf32>
      %75 = arith.truncf %74 : vector<128x384xf32> to vector<128x384xbf16>
      %76 = vector.shape_cast %75 : vector<128x384xbf16> to vector<16x8x384xbf16>
      %77 = vector.extract_strided_slice %8 {offsets = [0, 0, 0, 0], sizes = [16, 1, 8, 8], strides = [1, 1, 1, 1]} : vector<16x3x8x8xbf16> to vector<16x1x8x8xbf16>
      %78 = vector.shape_cast %77 : vector<16x1x8x8xbf16> to vector<16x8x8xbf16>
      %79 = vector.extract_strided_slice %76 {offsets = [0, 0, 0], sizes = [16, 8, 128], strides = [1, 1, 1]} : vector<16x8x384xbf16> to vector<16x8x128xbf16>
      "tpu.trace_start"() <{level = 10 : i32, message = "bds,bsh->bdh"}> : () -> ()
      %cst_44 = arith.constant dense<0.000000e+00> : vector<16x8x128xf32>
      %80 = tpu.matmul %78, %79, %cst_44 {dimension_numbers = #tpu.dot_dimension_numbers<[2], [1], [1], [2], [0, 0, 0, 1, 1, 2], [0], [0]>} : vector<16x8x8xbf16>, vector<16x8x128xbf16>, vector<16x8x128xf32> -> vector<16x8x128xf32>
      "tpu.trace_stop"() : () -> ()
      %81 = arith.addf %42, %80 : vector<16x8x128xf32>
      %82 = vector.extract_strided_slice %8 {offsets = [0, 1, 0, 0], sizes = [16, 1, 8, 8], strides = [1, 1, 1, 1]} : vector<16x3x8x8xbf16> to vector<16x1x8x8xbf16>
      %83 = vector.shape_cast %82 : vector<16x1x8x8xbf16> to vector<16x8x8xbf16>
      %84 = vector.extract_strided_slice %76 {offsets = [0, 0, 128], sizes = [16, 8, 128], strides = [1, 1, 1]} : vector<16x8x384xbf16> to vector<16x8x128xbf16>
      "tpu.trace_start"() <{level = 10 : i32, message = "bds,bsh->bdh"}> : () -> ()
      %cst_45 = arith.constant dense<0.000000e+00> : vector<16x8x128xf32>
      %85 = tpu.matmul %83, %84, %cst_45 {dimension_numbers = #tpu.dot_dimension_numbers<[2], [1], [1], [2], [0, 0, 0, 1, 1, 2], [0], [0]>} : vector<16x8x8xbf16>, vector<16x8x128xbf16>, vector<16x8x128xf32> -> vector<16x8x128xf32>
      "tpu.trace_stop"() : () -> ()
      %86 = arith.addf %81, %85 : vector<16x8x128xf32>
      %87 = vector.extract_strided_slice %8 {offsets = [0, 2, 0, 0], sizes = [16, 1, 8, 8], strides = [1, 1, 1, 1]} : vector<16x3x8x8xbf16> to vector<16x1x8x8xbf16>
      %88 = vector.shape_cast %87 : vector<16x1x8x8xbf16> to vector<16x8x8xbf16>
      %89 = vector.extract_strided_slice %76 {offsets = [0, 0, 256], sizes = [16, 8, 128], strides = [1, 1, 1]} : vector<16x8x384xbf16> to vector<16x8x128xbf16>
      "tpu.trace_start"() <{level = 10 : i32, message = "bds,bsh->bdh"}> : () -> ()
      %cst_46 = arith.constant dense<0.000000e+00> : vector<16x8x128xf32>
      %90 = tpu.matmul %88, %89, %cst_46 {dimension_numbers = #tpu.dot_dimension_numbers<[2], [1], [1], [2], [0, 0, 0, 1, 1, 2], [0], [0]>} : vector<16x8x8xbf16>, vector<16x8x128xbf16>, vector<16x8x128xf32> -> vector<16x8x128xf32>
      "tpu.trace_stop"() : () -> ()
      %91 = arith.addf %86, %90 : vector<16x8x128xf32>
      %92 = vector.shape_cast %91 : vector<16x8x128xf32> to vector<128x128xf32>
      %93 = arith.truncf %92 : vector<128x128xf32> to vector<128x128xbf16>
      %cst_47 = arith.constant dense<0.000000e+00> : vector<128x384xf32>
      %94 = tpu.matmul %93, %50, %cst_47 {dimension_numbers = #tpu.dot_dimension_numbers<[1], [0], [0], [1], [0, 0, 1, 1], [], []>} : vector<128x128xbf16>, vector<128x384xbf16>, vector<128x384xf32> -> vector<128x384xf32>
      %95 = arith.addf %94, %45 : vector<128x384xf32>
      %cst_48 = arith.constant dense<0.000000e+00> : vector<128x384xf32>
      %96 = tpu.matmul %73, %51, %cst_48 {dimension_numbers = #tpu.dot_dimension_numbers<[1], [0], [0], [1], [0, 0, 1, 1], [], []>} : vector<128x128xbf16>, vector<128x384xbf16>, vector<128x384xf32> -> vector<128x384xf32>
      %97 = arith.addf %96, %48 : vector<128x384xf32>
      %98 = vector.extract_strided_slice %95 {offsets = [0, 0], sizes = [128, 128], strides = [1, 1]} : vector<128x384xf32> to vector<128x128xf32>
      %99 = vector.extract_strided_slice %97 {offsets = [0, 0], sizes = [128, 128], strides = [1, 1]} : vector<128x384xf32> to vector<128x128xf32>
      %100 = arith.addf %98, %99 : vector<128x128xf32>
      %101 = arith.negf %100 : vector<128x128xf32>
      %102 = math.exp %101 : vector<128x128xf32>
      %cst_49 = arith.constant 1.000000e+00 : f32
      %103 = vector.broadcast %cst_49 : f32 to vector<128x128xf32>
      %104 = arith.addf %103, %102 : vector<128x128xf32>
      %105 = arith.divf %103, %104 : vector<128x128xf32>
      %106 = vector.extract_strided_slice %95 {offsets = [0, 128], sizes = [128, 128], strides = [1, 1]} : vector<128x384xf32> to vector<128x128xf32>
      %107 = vector.extract_strided_slice %97 {offsets = [0, 128], sizes = [128, 128], strides = [1, 1]} : vector<128x384xf32> to vector<128x128xf32>
      %108 = arith.addf %106, %107 : vector<128x128xf32>
      %109 = arith.negf %108 : vector<128x128xf32>
      %110 = math.exp %109 : vector<128x128xf32>
      %cst_50 = arith.constant 1.000000e+00 : f32
      %111 = vector.broadcast %cst_50 : f32 to vector<128x128xf32>
      %112 = arith.addf %111, %110 : vector<128x128xf32>
      %113 = arith.divf %111, %112 : vector<128x128xf32>
      %114 = vector.extract_strided_slice %95 {offsets = [0, 256], sizes = [128, 128], strides = [1, 1]} : vector<128x384xf32> to vector<128x128xf32>
      %115 = vector.extract_strided_slice %97 {offsets = [0, 256], sizes = [128, 128], strides = [1, 1]} : vector<128x384xf32> to vector<128x128xf32>
      %116 = arith.mulf %105, %115 : vector<128x128xf32>
      %117 = arith.addf %114, %116 : vector<128x128xf32>
      %118 = math.tanh %117 : vector<128x128xf32>
      %cst_51 = arith.constant 1.000000e+00 : f32
      %119 = vector.broadcast %cst_51 : f32 to vector<128x128xf32>
      %120 = arith.subf %119, %113 : vector<128x128xf32>
      %121 = arith.mulf %120, %118 : vector<128x128xf32>
      %122 = arith.mulf %113, %arg17 : vector<128x128xf32>
      %123 = arith.addf %121, %122 : vector<128x128xf32>
      scf.yield %123 : vector<128x128xf32>
    }
    %54 = vector.shape_cast %53 : vector<128x128xf32> to vector<16x8x128xf32>
    %cst_28 = arith.constant dense<0.000000e+00> : vector<16x128xf32>
    %55 = vector.multi_reduction <add>, %54, %cst_28 [1] : vector<16x8x128xf32> to vector<16x128xf32>
    %cst_29 = arith.constant 8.000000e+00 : f32
    %56 = vector.broadcast %cst_29 : f32 to vector<16x128xf32>
    %57 = arith.divf %55, %56 : vector<16x128xf32>
    %58 = arith.truncf %57 : vector<16x128xf32> to vector<16x128xbf16>
    %c0_30 = arith.constant 0 : index
    %c0_31 = arith.constant 0 : index
    %59 = vector.load %arg11[%c0_30, %c0_31] : memref<128x128xbf16, #tpu.memory_space<vmem>>, vector<128x128xbf16>
    %cst_32 = arith.constant dense<0.000000e+00> : vector<16x128xf32>
    %60 = tpu.matmul %58, %59, %cst_32 {dimension_numbers = #tpu.dot_dimension_numbers<[1], [0], [0], [1], [0, 0, 1, 1], [], []>} : vector<16x128xbf16>, vector<128x128xbf16>, vector<16x128xf32> -> vector<16x128xf32>
    %c0_33 = arith.constant 0 : index
    %c0_34 = arith.constant 0 : index
    %61 = vector.load %arg12[%c0_33, %c0_34] : memref<1x128xf32, #tpu.memory_space<vmem>>, vector<1x128xf32>
    %62 = vector.broadcast %61 : vector<1x128xf32> to vector<16x128xf32>
    %63 = arith.addf %60, %62 : vector<16x128xf32>
    %cst_35 = arith.constant 0.000000e+00 : f32
    %64 = vector.broadcast %cst_35 : f32 to vector<16x128xf32>
    %65 = arith.maximumf %63, %64 : vector<16x128xf32>
    %66 = arith.truncf %65 : vector<16x128xf32> to vector<16x128xbf16>
    %c0_36 = arith.constant 0 : index
    %c0_37 = arith.constant 0 : index
    %67 = vector.load %arg13[%c0_36, %c0_37] : memref<128x128xbf16, #tpu.memory_space<vmem>>, vector<128x128xbf16>
    %cst_38 = arith.constant dense<0.000000e+00> : vector<16x128xf32>
    %68 = tpu.matmul %66, %67, %cst_38 {dimension_numbers = #tpu.dot_dimension_numbers<[1], [0], [0], [1], [0, 0, 1, 1], [], []>} : vector<16x128xbf16>, vector<128x128xbf16>, vector<16x128xf32> -> vector<16x128xf32>
    %c0_39 = arith.constant 0 : index
    %c0_40 = arith.constant 0 : index
    %69 = vector.load %arg14[%c0_39, %c0_40] : memref<1x128xf32, #tpu.memory_space<vmem>>, vector<1x128xf32>
    %70 = vector.broadcast %69 : vector<1x128xf32> to vector<16x128xf32>
    %71 = arith.addf %68, %70 : vector<16x128xf32>
    %c0_41 = arith.constant 0 : index
    %c0_42 = arith.constant 0 : index
    %72 = vector.load %arg15[%c0_41, %c0_42] : memref<16x128xf32, #tpu.memory_space<vmem>>, vector<16x128xf32>
    tpu.vector_store %arg15[%c0_41, %c0_42], %71 {strides = array<i32>} : memref<16x128xf32, #tpu.memory_space<vmem>>, vector<16x128xf32>,
    return
  }
  func.func @transform_0(%arg0: i32) -> (i32, i32, i32) {
    %c0_i32 = arith.constant 0 : i32
    %c0_i32_0 = arith.constant 0 : i32
    %c0_i32_1 = arith.constant 0 : i32
    return %arg0, %c0_i32, %c0_i32_0 : i32, i32, i32
  }
  func.func @transform_1(%arg0: i32) -> (i32, i32, i32, i32) {
    %c0_i32 = arith.constant 0 : i32
    %c0_i32_0 = arith.constant 0 : i32
    %c0_i32_1 = arith.constant 0 : i32
    %c0_i32_2 = arith.constant 0 : i32
    return %arg0, %c0_i32, %c0_i32_0, %c0_i32_1 : i32, i32, i32, i32
  }
  func.func @transform_2(%arg0: i32) -> (i32, i32) {
    %c0_i32 = arith.constant 0 : i32
    %c0_i32_0 = arith.constant 0 : i32
    %c0_i32_1 = arith.constant 0 : i32
    return %c0_i32, %c0_i32_0 : i32, i32
  }
  func.func @transform_3(%arg0: i32) -> (i32, i32) {
    %c0_i32 = arith.constant 0 : i32
    %c0_i32_0 = arith.constant 0 : i32
    %c0_i32_1 = arith.constant 0 : i32
    return %c0_i32, %c0_i32_0 : i32, i32
  }
  func.func @transform_4(%arg0: i32) -> (i32, i32) {
    %c0_i32 = arith.constant 0 : i32
    %c0_i32_0 = arith.constant 0 : i32
    %c0_i32_1 = arith.constant 0 : i32
    return %c0_i32, %c0_i32_0 : i32, i32
  }
  func.func @transform_5(%arg0: i32) -> (i32, i32) {
    %c0_i32 = arith.constant 0 : i32
    %c0_i32_0 = arith.constant 0 : i32
    %c0_i32_1 = arith.constant 0 : i32
    return %c0_i32, %c0_i32_0 : i32, i32
  }
  func.func @transform_6(%arg0: i32) -> (i32, i32) {
    %c0_i32 = arith.constant 0 : i32
    %c0_i32_0 = arith.constant 0 : i32
    %c0_i32_1 = arith.constant 0 : i32
    return %c0_i32, %c0_i32_0 : i32, i32
  }
  func.func @transform_7(%arg0: i32) -> (i32, i32) {
    %c0_i32 = arith.constant 0 : i32
    %c0_i32_0 = arith.constant 0 : i32
    %c0_i32_1 = arith.constant 0 : i32
    return %c0_i32, %c0_i32_0 : i32, i32
  }
  func.func @transform_8(%arg0: i32) -> (i32, i32) {
    %c0_i32 = arith.constant 0 : i32
    %c0_i32_0 = arith.constant 0 : i32
    %c0_i32_1 = arith.constant 0 : i32
    return %c0_i32, %c0_i32_0 : i32, i32
  }
  func.func @transform_9(%arg0: i32) -> (i32, i32) {
    %c0_i32 = arith.constant 0 : i32
    %c0_i32_0 = arith.constant 0 : i32
    %c0_i32_1 = arith.constant 0 : i32
    return %c0_i32, %c0_i32_0 : i32, i32
  }
  func.func @transform_10(%arg0: i32) -> (i32, i32) {
    %c0_i32 = arith.constant 0 : i32
    %c0_i32_0 = arith.constant 0 : i32
    %c0_i32_1 = arith.constant 0 : i32
    return %c0_i32, %c0_i32_0 : i32, i32
  }
  func.func @transform_11(%arg0: i32) -> (i32, i32) {
    %c0_i32 = arith.constant 0 : i32
    %c0_i32_0 = arith.constant 0 : i32
    %c0_i32_1 = arith.constant 0 : i32
    return %c0_i32, %c0_i32_0 : i32, i32
  }
  func.func @transform_12(%arg0: i32) -> (i32, i32) {
    %c0_i32 = arith.constant 0 : i32
    %c0_i32_0 = arith.constant 0 : i32
    %c0_i32_1 = arith.constant 0 : i32
    return %c0_i32, %c0_i32_0 : i32, i32
  }
  func.func @transform_13(%arg0: i32) -> (i32, i32) {
    %c0_i32 = arith.constant 0 : i32
    %c0_i32_0 = arith.constant 0 : i32
    %c0_i32_1 = arith.constant 0 : i32
    return %c0_i32, %c0_i32_0 : i32, i32
  }
  func.func @transform_14(%arg0: i32) -> (i32, i32) {
    %c0_i32 = arith.constant 0 : i32
    %c0_i32_0 = arith.constant 0 : i32
    return %arg0, %c0_i32 : i32, i32
  }
}

module attributes {stable_mosaic.version = 11 : i64} {
  func.func @_ggnn_block_kernel(%arg0: i32, %arg1: memref<16x8x8xf32, #tpu.memory_space<vmem>>, %arg2: memref<16x3x8x8xbf16, #tpu.memory_space<vmem>>, %arg3: memref<8x128xbf16, #tpu.memory_space<vmem>>, %arg4: memref<1x128xf32, #tpu.memory_space<vmem>>, %arg5: memref<128x384xbf16, #tpu.memory_space<vmem>>, %arg6: memref<1x384xf32, #tpu.memory_space<vmem>>, %arg7: memref<128x384xbf16, #tpu.memory_space<vmem>>, %arg8: memref<1x384xf32, #tpu.memory_space<vmem>>, %arg9: memref<128x384xbf16, #tpu.memory_space<vmem>>, %arg10: memref<1x384xf32, #tpu.memory_space<vmem>>, %arg11: memref<128x128xbf16, #tpu.memory_space<vmem>>, %arg12: memref<1x128xf32, #tpu.memory_space<vmem>>, %arg13: memref<128x128xbf16, #tpu.memory_space<vmem>>, %arg14: memref<1x128xf32, #tpu.memory_space<vmem>>, %arg15: memref<16x128xf32, #tpu.memory_space<vmem>>) attributes {dimension_semantics = [#tpu.dimension_semantics<parallel>], iteration_bounds = array<i64: 2>, scalar_prefetch = 0 : i64, scratch_operands = 0 : i64, tpu.core_type = #tpu.core_type<tc>, window_params = [{transform_indices = @transform_0, window_bounds = array<i64: 16, 8, 8>}, {transform_indices = @transform_1, window_bounds = array<i64: 16, 3, 8, 8>}, {pipeline_mode = #tpu.pipeline_mode<synchronous>, transform_indices = @transform_2, window_bounds = array<i64: 8, 128>}, {pipeline_mode = #tpu.pipeline_mode<synchronous>, transform_indices = @transform_3, window_bounds = array<i64: 1, 128>}, {pipeline_mode = #tpu.pipeline_mode<synchronous>, transform_indices = @transform_4, window_bounds = array<i64: 128, 384>}, {pipeline_mode = #tpu.pipeline_mode<synchronous>, transform_indices = @transform_5, window_bounds = array<i64: 1, 384>}, {pipeline_mode = #tpu.pipeline_mode<synchronous>, transform_indices = @transform_6, window_bounds = array<i64: 128, 384>}, {pipeline_mode = #tpu.pipeline_mode<synchronous>, transform_indices = @transform_7, window_bounds = array<i64: 1, 384>}, {pipeline_mode = #tpu.pipeline_mode<synchronous>, transform_indices = @transform_8, window_bounds = array<i64: 128, 384>}, {pipeline_mode = #tpu.pipeline_mode<synchronous>, transform_indices = @transform_9, window_bounds = array<i64: 1, 384>}, {pipeline_mode = #tpu.pipeline_mode<synchronous>, transform_indices = @transform_10, window_bounds = array<i64: 128, 128>}, {pipeline_mode = #tpu.pipeline_mode<synchronous>, transform_indices = @transform_11, window_bounds = array<i64: 1, 128>}, {pipeline_mode = #tpu.pipeline_mode<synchronous>, transform_indices = @transform_12, window_bounds = array<i64: 128, 128>}, {pipeline_mode = #tpu.pipeline_mode<synchronous>, transform_indices = @transform_13, window_bounds = array<i64: 1, 128>}, {transform_indices = @transform_14, window_bounds = array<i64: 16, 128>}]} {
    %c0 = arith.constant 0 : index
    %c0_0 = arith.constant 0 : index
    %c0_1 = arith.constant 0 : index
    %0 = vector.load %arg1[%c0, %c0_0, %c0_1] : memref<16x8x8xf32, #tpu.memory_space<vmem>>, vector<16x8x8xf32>
    %1 = vector.shape_cast %0 : vector<16x8x8xf32> to vector<128x8xf32>
    %2 = arith.truncf %1 : vector<128x8xf32> to vector<128x8xbf16>
    %c0_2 = arith.constant 0 : index
    %c0_3 = arith.constant 0 : index
    %3 = vector.load %arg3[%c0_2, %c0_3] : memref<8x128xbf16, #tpu.memory_space<vmem>>, vector<8x128xbf16>
    %cst = arith.constant dense<0.000000e+00> : vector<128x128xf32>
    %4 = tpu.matmul %2, %3, %cst {dimension_numbers = #tpu.dot_dimension_numbers<[1], [0], [0], [1], [0, 0, 1, 1], [], []>} : vector<128x8xbf16>, vector<8x128xbf16>, vector<128x128xf32> -> vector<128x128xf32>
    %c0_4 = arith.constant 0 : index
    %c0_5 = arith.constant 0 : index
    %5 = vector.load %arg4[%c0_4, %c0_5] : memref<1x128xf32, #tpu.memory_space<vmem>>, vector<1x128xf32>
    %6 = vector.broadcast %5 : vector<1x128xf32> to vector<128x128xf32>
    %7 = arith.addf %4, %6 : vector<128x128xf32>
    %c0_6 = arith.constant 0 : index
    %c0_7 = arith.constant 0 : index
    %c0_8 = arith.constant 0 : index
    %c0_9 = arith.constant 0 : index
    %8 = vector.load %arg2[%c0_6, %c0_7, %c0_8, %c0_9] : memref<16x3x8x8xbf16, #tpu.memory_space<vmem>>, vector<16x3x8x8xbf16>
    %cst_10 = arith.constant 0.000000e+00 : f32
    %9 = vector.broadcast %cst_10 : f32 to vector<16x8x128xf32>
    %10 = vector.extract_strided_slice %8 {offsets = [0, 0, 0, 0], sizes = [16, 1, 8, 8], strides = [1, 1, 1, 1]} : vector<16x3x8x8xbf16> to vector<16x1x8x8xbf16>
    %11 = vector.shape_cast %10 : vector<16x1x8x8xbf16> to vector<16x8x8xbf16>
    %12 = arith.extf %11 : vector<16x8x8xbf16> to vector<16x8x8xf32>
    %cst_11 = arith.constant dense<0.000000e+00> : vector<16x8xf32>
    %13 = vector.multi_reduction <add>, %12, %cst_11 [2] : vector<16x8x8xf32> to vector<16x8xf32>
    %14 = vector.shape_cast %13 : vector<16x8xf32> to vector<16x8x1xf32>
    %c0_12 = arith.constant 0 : index
    %c0_13 = arith.constant 0 : index
    %15 = vector.load %arg6[%c0_12, %c0_13] : memref<1x384xf32, #tpu.memory_space<vmem>>, vector<1x128xf32>
    %16 = vector.shape_cast %15 : vector<1x128xf32> to vector<1x1x128xf32>
    %17 = vector.broadcast %14 : vector<16x8x1xf32> to vector<16x8x128xf32>
    %18 = vector.broadcast %16 : vector<1x1x128xf32> to vector<16x8x128xf32>
    %19 = arith.mulf %17, %18 : vector<16x8x128xf32>
    %20 = arith.addf %9, %19 : vector<16x8x128xf32>
    %21 = vector.extract_strided_slice %8 {offsets = [0, 1, 0, 0], sizes = [16, 1, 8, 8], strides = [1, 1, 1, 1]} : vector<16x3x8x8xbf16> to vector<16x1x8x8xbf16>
    %22 = vector.shape_cast %21 : vector<16x1x8x8xbf16> to vector<16x8x8xbf16>
    %23 = arith.extf %22 : vector<16x8x8xbf16> to vector<16x8x8xf32>
    %cst_14 = arith.constant dense<0.000000e+00> : vector<16x8xf32>
    %24 = vector.multi_reduction <add>, %23, %cst_14 [2] : vector<16x8x8xf32> to vector<16x8xf32>
    %25 = vector.shape_cast %24 : vector<16x8xf32> to vector<16x8x1xf32>
    %c0_15 = arith.constant 0 : index
    %c128 = arith.constant 128 : index
    %26 = vector.load %arg6[%c0_15, %c128] : memref<1x384xf32, #tpu.memory_space<vmem>>, vector<1x128xf32>
    %27 = vector.shape_cast %26 : vector<1x128xf32> to vector<1x1x128xf32>
    %28 = vector.broadcast %25 : vector<16x8x1xf32> to vector<16x8x128xf32>
    %29 = vector.broadcast %27 : vector<1x1x128xf32> to vector<16x8x128xf32>
    %30 = arith.mulf %28, %29 : vector<16x8x128xf32>
    %31 = arith.addf %20, %30 : vector<16x8x128xf32>
    %32 = vector.extract_strided_slice %8 {offsets = [0, 2, 0, 0], sizes = [16, 1, 8, 8], strides = [1, 1, 1, 1]} : vector<16x3x8x8xbf16> to vector<16x1x8x8xbf16>
    %33 = vector.shape_cast %32 : vector<16x1x8x8xbf16> to vector<16x8x8xbf16>
    %34 = arith.extf %33 : vector<16x8x8xbf16> to vector<16x8x8xf32>
    %cst_16 = arith.constant dense<0.000000e+00> : vector<16x8xf32>
    %35 = vector.multi_reduction <add>, %34, %cst_16 [2] : vector<16x8x8xf32> to vector<16x8xf32>
    %36 = vector.shape_cast %35 : vector<16x8xf32> to vector<16x8x1xf32>
    %c0_17 = arith.constant 0 : index
    %c256 = arith.constant 256 : index
    %37 = vector.load %arg6[%c0_17, %c256] : memref<1x384xf32, #tpu.memory_space<vmem>>, vector<1x128xf32>
    %38 = vector.shape_cast %37 : vector<1x128xf32> to vector<1x1x128xf32>
    %39 = vector.broadcast %36 : vector<16x8x1xf32> to vector<16x8x128xf32>
    %40 = vector.broadcast %38 : vector<1x1x128xf32> to vector<16x8x128xf32>
    %41 = arith.mulf %39, %40 : vector<16x8x128xf32>
    %42 = arith.addf %31, %41 : vector<16x8x128xf32>
    %c0_18 = arith.constant 0 : index
    %c0_19 = arith.constant 0 : index
    %43 = vector.load %arg8[%c0_18, %c0_19] : memref<1x384xf32, #tpu.memory_space<vmem>>, vector<1x384xf32>
    %44 = vector.shape_cast %43 : vector<1x384xf32> to vector<1x384xf32>
    %45 = vector.broadcast %44 : vector<1x384xf32> to vector<128x384xf32>
    %c0_20 = arith.constant 0 : index
    %c0_21 = arith.constant 0 : index
    %46 = vector.load %arg10[%c0_20, %c0_21] : memref<1x384xf32, #tpu.memory_space<vmem>>, vector<1x384xf32>
    %47 = vector.shape_cast %46 : vector<1x384xf32> to vector<1x384xf32>
    %48 = vector.broadcast %47 : vector<1x384xf32> to vector<128x384xf32>
    %c0_22 = arith.constant 0 : index
    %c0_23 = arith.constant 0 : index
    %49 = vector.load %arg5[%c0_22, %c0_23] : memref<128x384xbf16, #tpu.memory_space<vmem>>, vector<128x384xbf16>
    %c0_24 = arith.constant 0 : index
    %c0_25 = arith.constant 0 : index
    %50 = vector.load %arg7[%c0_24, %c0_25] : memref<128x384xbf16, #tpu.memory_space<vmem>>, vector<128x384xbf16>
    %c0_26 = arith.constant 0 : index
    %c0_27 = arith.constant 0 : index
    %51 = vector.load %arg9[%c0_26, %c0_27] : memref<128x384xbf16, #tpu.memory_space<vmem>>, vector<128x384xbf16>
    %c0_i32 = arith.constant 0 : i32
    %c4_i32 = arith.constant 4 : i32
    %52 = arith.addi %c0_i32, %c4_i32 : i32
    %c1_i32 = arith.constant 1 : i32
    %53 = scf.for %arg16 = %c0_i32 to %52 step %c1_i32 iter_args(%arg17 = %7) -> (vector<128x128xf32>)  : i32 {
      %73 = arith.truncf %arg17 : vector<128x128xf32> to vector<128x128xbf16>
      %cst_43 = arith.constant dense<0.000000e+00> : vector<128x384xf32>
      %74 = tpu.matmul %73, %49, %cst_43 {dimension_numbers = #tpu.dot_dimension_numbers<[1], [0], [0], [1], [0, 0, 1, 1], [], []>} : vector<128x128xbf16>, vector<128x384xbf16>, vector<128x384xf32> -> vector<128x384xf32>
      %75 = arith.truncf %74 : vector<128x384xf32> to vector<128x384xbf16>
      %76 = vector.shape_cast %75 : vector<128x384xbf16> to vector<16x8x384xbf16>
      %77 = vector.extract_strided_slice %8 {offsets = [0, 0, 0, 0], sizes = [16, 1, 8, 8], strides = [1, 1, 1, 1]} : vector<16x3x8x8xbf16> to vector<16x1x8x8xbf16>
      %78 = vector.shape_cast %77 : vector<16x1x8x8xbf16> to vector<16x8x8xbf16>
      %79 = vector.extract_strided_slice %76 {offsets = [0, 0, 0], sizes = [16, 8, 128], strides = [1, 1, 1]} : vector<16x8x384xbf16> to vector<16x8x128xbf16>
      "tpu.trace_start"() <{level = 10 : i32, message = "bds,bsh->bdh"}> : () -> ()
      %cst_44 = arith.constant dense<0.000000e+00> : vector<16x8x128xf32>
      %80 = tpu.matmul %78, %79, %cst_44 {dimension_numbers = #tpu.dot_dimension_numbers<[2], [1], [1], [2], [0, 0, 0, 1, 1, 2], [0], [0]>} : vector<16x8x8xbf16>, vector<16x8x128xbf16>, vector<16x8x128xf32> -> vector<16x8x128xf32>
      "tpu.trace_stop"() : () -> ()
      %81 = arith.addf %42, %80 : vector<16x8x128xf32>
      %82 = vector.extract_strided_slice %8 {offsets = [0, 1, 0, 0], sizes = [16, 1, 8, 8], strides = [1, 1, 1, 1]} : vector<16x3x8x8xbf16> to vector<16x1x8x8xbf16>
      %83 = vector.shape_cast %82 : vector<16x1x8x8xbf16> to vector<16x8x8xbf16>
      %84 = vector.extract_strided_slice %76 {offsets = [0, 0, 128], sizes = [16, 8, 128], strides = [1, 1, 1]} : vector<16x8x384xbf16> to vector<16x8x128xbf16>
      "tpu.trace_start"() <{level = 10 : i32, message = "bds,bsh->bdh"}> : () -> ()
      %cst_45 = arith.constant dense<0.000000e+00> : vector<16x8x128xf32>
      %85 = tpu.matmul %83, %84, %cst_45 {dimension_numbers = #tpu.dot_dimension_numbers<[2], [1], [1], [2], [0, 0, 0, 1, 1, 2], [0], [0]>} : vector<16x8x8xbf16>, vector<16x8x128xbf16>, vector<16x8x128xf32> -> vector<16x8x128xf32>
      "tpu.trace_stop"() : () -> ()
      %86 = arith.addf %81, %85 : vector<16x8x128xf32>
      %87 = vector.extract_strided_slice %8 {offsets = [0, 2, 0, 0], sizes = [16, 1, 8, 8], strides = [1, 1, 1, 1]} : vector<16x3x8x8xbf16> to vector<16x1x8x8xbf16>
      %88 = vector.shape_cast %87 : vector<16x1x8x8xbf16> to vector<16x8x8xbf16>
      %89 = vector.extract_strided_slice %76 {offsets = [0, 0, 256], sizes = [16, 8, 128], strides = [1, 1, 1]} : vector<16x8x384xbf16> to vector<16x8x128xbf16>
      "tpu.trace_start"() <{level = 10 : i32, message = "bds,bsh->bdh"}> : () -> ()
      %cst_46 = arith.constant dense<0.000000e+00> : vector<16x8x128xf32>
      %90 = tpu.matmul %88, %89, %cst_46 {dimension_numbers = #tpu.dot_dimension_numbers<[2], [1], [1], [2], [0, 0, 0, 1, 1, 2], [0], [0]>} : vector<16x8x8xbf16>, vector<16x8x128xbf16>, vector<16x8x128xf32> -> vector<16x8x128xf32>
      "tpu.trace_stop"() : () -> ()
      %91 = arith.addf %86, %90 : vector<16x8x128xf32>
      %92 = vector.shape_cast %91 : vector<16x8x128xf32> to vector<128x128xf32>
      %93 = arith.truncf %92 : vector<128x128xf32> to vector<128x128xbf16>
      %cst_47 = arith.constant dense<0.000000e+00> : vector<128x384xf32>
      %94 = tpu.matmul %93, %50, %cst_47 {dimension_numbers = #tpu.dot_dimension_numbers<[1], [0], [0], [1], [0, 0, 1, 1], [], []>} : vector<128x128xbf16>, vector<128x384xbf16>, vector<128x384xf32> -> vector<128x384xf32>
      %95 = arith.addf %94, %45 : vector<128x384xf32>
      %cst_48 = arith.constant dense<0.000000e+00> : vector<128x384xf32>
      %96 = tpu.matmul %73, %51, %cst_48 {dimension_numbers = #tpu.dot_dimension_numbers<[1], [0], [0], [1], [0, 0, 1, 1], [], []>} : vector<128x128xbf16>, vector<128x384xbf16>, vector<128x384xf32> -> vector<128x384xf32>
      %97 = arith.addf %96, %48 : vector<128x384xf32>
      %98 = vector.extract_strided_slice %95 {offsets = [0, 0], sizes = [128, 128], strides = [1, 1]} : vector<128x384xf32> to vector<128x128xf32>
      %99 = vector.extract_strided_slice %97 {offsets = [0, 0], sizes = [128, 128], strides = [1, 1]} : vector<128x384xf32> to vector<128x128xf32>
      %100 = arith.addf %98, %99 : vector<128x128xf32>
      %101 = arith.negf %100 : vector<128x128xf32>
      %102 = math.exp %101 : vector<128x128xf32>
      %cst_49 = arith.constant 1.000000e+00 : f32
      %103 = vector.broadcast %cst_49 : f32 to vector<128x128xf32>
      %104 = arith.addf %103, %102 : vector<128x128xf32>
      %105 = arith.divf %103, %104 : vector<128x128xf32>
      %106 = vector.extract_strided_slice %95 {offsets = [0, 128], sizes = [128, 128], strides = [1, 1]} : vector<128x384xf32> to vector<128x128xf32>
      %107 = vector.extract_strided_slice %97 {offsets = [0, 128], sizes = [128, 128], strides = [1, 1]} : vector<128x384xf32> to vector<128x128xf32>
      %108 = arith.addf %106, %107 : vector<128x128xf32>
      %109 = arith.negf %108 : vector<128x128xf32>
      %110 = math.exp %109 : vector<128x128xf32>
      %cst_50 = arith.constant 1.000000e+00 : f32
      %111 = vector.broadcast %cst_50 : f32 to vector<128x128xf32>
      %112 = arith.addf %111, %110 : vector<128x128xf32>
      %113 = arith.divf %111, %112 : vector<128x128xf32>
      %114 = vector.extract_strided_slice %95 {offsets = [0, 256], sizes = [128, 128], strides = [1, 1]} : vector<128x384xf32> to vector<128x128xf32>
      %115 = vector.extract_strided_slice %97 {offsets = [0, 256], sizes = [128, 128], strides = [1, 1]} : vector<128x384xf32> to vector<128x128xf32>
      %116 = arith.mulf %105, %115 : vector<128x128xf32>
      %117 = arith.addf %114, %116 : vector<128x128xf32>
      %118 = math.tanh %117 : vector<128x128xf32>
      %cst_51 = arith.constant 1.000000e+00 : f32
      %119 = vector.broadcast %cst_51 : f32 to vector<128x128xf32>
      %120 = arith.subf %119, %113 : vector<128x128xf32>
      %121 = arith.mulf %120, %118 : vector<128x128xf32>
      %122 = arith.mulf %113, %arg17 : vector<128x128xf32>
      %123 = arith.addf %121, %122 : vector<128x128xf32>
      scf.yield %123 : vector<128x128xf32>
    }
    %54 = vector.shape_cast %53 : vector<128x128xf32> to vector<16x8x128xf32>
    %cst_28 = arith.constant dense<0.000000e+00> : vector<16x128xf32>
    %55 = vector.multi_reduction <add>, %54, %cst_28 [1] : vector<16x8x128xf32> to vector<16x128xf32>
    %cst_29 = arith.constant 8.000000e+00 : f32
    %56 = vector.broadcast %cst_29 : f32 to vector<16x128xf32>
    %57 = arith.divf %55, %56 : vector<16x128xf32>
    %58 = arith.truncf %57 : vector<16x128xf32> to vector<16x128xbf16>
    %c0_30 = arith.constant 0 : index
    %c0_31 = arith.constant 0 : index
    %59 = vector.load %arg11[%c0_30, %c0_31] : memref<128x128xbf16, #tpu.memory_space<vmem>>, vector<128x128xbf16>
    %cst_32 = arith.constant dense<0.000000e+00> : vector<16x128xf32>
    %60 = tpu.matmul %58, %59, %cst_32 {dimension_numbers = #tpu.dot_dimension_numbers<[1], [0], [0], [1], [0, 0, 1, 1], [], []>} : vector<16x128xbf16>, vector<128x128xbf16>, vector<16x128xf32> -> vector<16x128xf32>
    %c0_33 = arith.constant 0 : index
    %c0_34 = arith.constant 0 : index
    %61 = vector.load %arg12[%c0_33, %c0_34] : memref<1x128xf32, #tpu.memory_space<vmem>>, vector<1x128xf32>
    %62 = vector.broadcast %61 : vector<1x128xf32> to vector<16x128xf32>
    %63 = arith.addf %60, %62 : vector<16x128xf32>
    %cst_35 = arith.constant 0.000000e+00 : f32
    %64 = vector.broadcast %cst_35 : f32 to vector<16x128xf32>
    %65 = arith.maximumf %63, %64 : vector<16x128xf32>
    %66 = arith.truncf %65 : vector<16x128xf32> to vector<16x128xbf16>
    %c0_36 = arith.constant 0 : index
    %c0_37 = arith.constant 0 : index
    %67 = vector.load %arg13[%c0_36, %c0_37] : memref<128x128xbf16, #tpu.memory_space<vmem>>, vector<128x128xbf16>
    %cst_38 = arith.constant dense<0.000000e+00> : vector<16x128xf32>
    %68 = tpu.matmul %66, %67, %cst_38 {dimension_numbers = #tpu.dot_dimension_numbers<[1], [0], [0], [1], [0, 0, 1, 1], [], []>} : vector<16x128xbf16>, vector<128x128xbf16>, vector<16x128xf32> -> vector<16x128xf32>
    %c0_39 = arith.constant 0 : index
    %c0_40 = arith.constant 0 : index
    %69 = vector.load %arg14[%c0_39, %c0_40] : memref<1x128xf32, #tpu.memory_space<vmem>>, vector<1x128xf32>
    %70 = vector.broadcast %69 : vector<1x128xf32> to vector<16x128xf32>
    %71 = arith.addf %68, %70 : vector<16x128xf32>
    %c0_41 = arith.constant 0 : index
    %c0_42 = arith.constant 0 : index
    %72 = vector.load %arg15[%c0_41, %c0_42] : memref<16x128xf32, #tpu.memory_space<vmem>>, vector<16x128xf32>
    tpu.vector_store %arg15[%c0_41, %c0_42], %71 {strides = array<i32>} : memref<16x128xf32, #tpu.memory_space<vmem>>, vector<16x128xf32>,
    return
  }
  func.func @transform_0(%arg0: i32) -> (i32, i32, i32) {
    %c0_i32 = arith.constant 0 : i32
    %c0_i32_0 = arith.constant 0 : i32
    %c0_i32_1 = arith.constant 0 : i32
    return %arg0, %c0_i32, %c0_i32_0 : i32, i32, i32
  }
  func.func @transform_1(%arg0: i32) -> (i32, i32, i32, i32) {
    %c0_i32 = arith.constant 0 : i32
    %c0_i32_0 = arith.constant 0 : i32
    %c0_i32_1 = arith.constant 0 : i32
    %c0_i32_2 = arith.constant 0 : i32
    return %arg0, %c0_i32, %c0_i32_0, %c0_i32_1 : i32, i32, i32, i32
  }
  func.func @transform_2(%arg0: i32) -> (i32, i32) {
    %c0_i32 = arith.constant 0 : i32
    %c0_i32_0 = arith.constant 0 : i32
    %c0_i32_1 = arith.constant 0 : i32
    return %c0_i32, %c0_i32_0 : i32, i32
  }
  func.func @transform_3(%arg0: i32) -> (i32, i32) {
    %c0_i32 = arith.constant 0 : i32
    %c0_i32_0 = arith.constant 0 : i32
    %c0_i32_1 = arith.constant 0 : i32
    return %c0_i32, %c0_i32_0 : i32, i32
  }
  func.func @transform_4(%arg0: i32) -> (i32, i32) {
    %c0_i32 = arith.constant 0 : i32
    %c0_i32_0 = arith.constant 0 : i32
    %c0_i32_1 = arith.constant 0 : i32
    return %c0_i32, %c0_i32_0 : i32, i32
  }
  func.func @transform_5(%arg0: i32) -> (i32, i32) {
    %c0_i32 = arith.constant 0 : i32
    %c0_i32_0 = arith.constant 0 : i32
    %c0_i32_1 = arith.constant 0 : i32
    return %c0_i32, %c0_i32_0 : i32, i32
  }
  func.func @transform_6(%arg0: i32) -> (i32, i32) {
    %c0_i32 = arith.constant 0 : i32
    %c0_i32_0 = arith.constant 0 : i32
    %c0_i32_1 = arith.constant 0 : i32
    return %c0_i32, %c0_i32_0 : i32, i32
  }
  func.func @transform_7(%arg0: i32) -> (i32, i32) {
    %c0_i32 = arith.constant 0 : i32
    %c0_i32_0 = arith.constant 0 : i32
    %c0_i32_1 = arith.constant 0 : i32
    return %c0_i32, %c0_i32_0 : i32, i32
  }
  func.func @transform_8(%arg0: i32) -> (i32, i32) {
    %c0_i32 = arith.constant 0 : i32
    %c0_i32_0 = arith.constant 0 : i32
    %c0_i32_1 = arith.constant 0 : i32
    return %c0_i32, %c0_i32_0 : i32, i32
  }
  func.func @transform_9(%arg0: i32) -> (i32, i32) {
    %c0_i32 = arith.constant 0 : i32
    %c0_i32_0 = arith.constant 0 : i32
    %c0_i32_1 = arith.constant 0 : i32
    return %c0_i32, %c0_i32_0 : i32, i32
  }
  func.func @transform_10(%arg0: i32) -> (i32, i32) {
    %c0_i32 = arith.constant 0 : i32
    %c0_i32_0 = arith.constant 0 : i32
    %c0_i32_1 = arith.constant 0 : i32
    return %c0_i32, %c0_i32_0 : i32, i32
  }
  func.func @transform_11(%arg0: i32) -> (i32, i32) {
    %c0_i32 = arith.constant 0 : i32
    %c0_i32_0 = arith.constant 0 : i32
    %c0_i32_1 = arith.constant 0 : i32
    return %c0_i32, %c0_i32_0 : i32, i32
  }
  func.func @transform_12(%arg0: i32) -> (i32, i32) {
    %c0_i32 = arith.constant 0 : i32
    %c0_i32_0 = arith.constant 0 : i32
    %c0_i32_1 = arith.constant 0 : i32
    return %c0_i32, %c0_i32_0 : i32, i32
  }
  func.func @transform_13(%arg0: i32) -> (i32, i32) {
    %c0_i32 = arith.constant 0 : i32
    %c0_i32_0 = arith.constant 0 : i32
    %c0_i32_1 = arith.constant 0 : i32
    return %c0_i32, %c0_i32_0 : i32, i32
  }
  func.func @transform_14(%arg0: i32) -> (i32, i32) {
    %c0_i32 = arith.constant 0 : i32
    %c0_i32_0 = arith.constant 0 : i32
    return %arg0, %c0_i32 : i32, i32
  }
}

</mosaic_0001>

<llo_original>
// kernel: tpu_custom_call.1
$region0: #{tpu_custom_call.1}
  #allocation0 [shape = 'u32[]', space=smem, size = 0x4, offset = 0x4, fixed_abs, tag = 'smem constant byte address 0x4 - core index']
  #allocation1 [shape = 'u32[144,128]{1,0:T(1,128)}', space=vmem, size = 0x12000, scoped, tag = 'internal scratch']
  %s0 = inlined_call_operand.vmem [shape: f32[32,8,8], index: 0, kind: input, shape index: {}]
  %s1 = inlined_call_operand.vmem [shape: bf16[32,3,8,8], index: 1, kind: input, shape index: {}]
  %s2 = inlined_call_operand.hbm [shape: bf16[8,128], index: 2, kind: input, shape index: {}]
  %s3 = inlined_call_operand.vmem [shape: f32[1,128], index: 3, kind: input, shape index: {}]
  %s4 = inlined_call_operand.vmem [shape: bf16[128,384], index: 4, kind: input, shape index: {}]
  %s5 = inlined_call_operand.vmem [shape: f32[1,384], index: 5, kind: input, shape index: {}]
  %s6 = inlined_call_operand.vmem [shape: bf16[128,384], index: 6, kind: input, shape index: {}]
  %s7 = inlined_call_operand.vmem [shape: f32[1,384], index: 7, kind: input, shape index: {}]
  %s8 = inlined_call_operand.vmem [shape: bf16[128,384], index: 8, kind: input, shape index: {}]
  %s9 = inlined_call_operand.vmem [shape: f32[1,384], index: 9, kind: input, shape index: {}]
  %s10 = inlined_call_operand.vmem [shape: bf16[128,128], index: 10, kind: input, shape index: {}]
  %s11 = inlined_call_operand.vmem [shape: f32[1,128], index: 11, kind: input, shape index: {}]
  %s12 = inlined_call_operand.vmem [shape: bf16[128,128], index: 12, kind: input, shape index: {}]
  %s13 = inlined_call_operand.vmem [shape: f32[1,128], index: 13, kind: input, shape index: {}]
  %s14 = inlined_call_operand.hbm [shape: f32[32,128], index: 14, kind: output, shape index: {}]
  %s15 = sld [smem:[#allocation0]]
  $region100: #{tpu_custom_call.1} parent=0
    _
  %s17 = ssub.s32 1, %s15
  %s18 = scalar_select 0, %s17, %s15
  $region1: #{tpu_custom_call.1} parent=0
    #allocation2 [shape = 'u8[2048]{0}', space=vmem, size = 0x800, scoped, tag = 'input window, operand 2, single buffered']
    #allocation3 [shape = 's32[2]{0}', space=sflag, size = 0x8, scoped, tag = 'scoped memory for tpu_custom_call.1']
    #allocation4 [shape = 's32[2]{0}', space=sflag, size = 0x8, scoped, tag = 'scoped memory for tpu_custom_call.1']
    #allocation5 [shape = 'u8[16384]{0}', space=vmem, size = 0x4000, scoped, tag = 'output window, operand 0']
    %19 = vsyncpa [#allocation3], 0
    %20 = vsyncpa [#allocation4], 0
    %s21 = scalar_lea.sflag [#allocation4], 1
    %22 = vsyncpa %s21, 0
    loop: start=0, step=1, limit=4
    $region2: #{tpu_custom_call.1} parent=1 // loop_pre_header
      _
    $region3: #{tpu_custom_call.1} parent=1 // loop_header
      %s24 = sphi 0, %s28
      %p25 = scmp.ge.s32.totalorder %s24, 4
      %s34 = sphi 0, %s36
      %s37 = sphi 0, %s34
      %s38 = sphi 0, %s37
      %s54 = sphi 0, %s38
      %s60 = sphi 0, %s62
      %s63 = sphi 0, %s60
      %s64 = sphi 0, %s63
      %s80 = sphi 0, %s64
      %s84 = sphi 0, %s84
      %s86 = sphi 0, %s84
      %s87 = sphi 0, %s86
      %s101 = sphi 0, %s87
      %s105 = sphi 0, %s105
      %s107 = sphi 0, %s105
      %s108 = sphi 0, %s107
      %s122 = sphi 0, %s108
      %s126 = sphi 0, %s126
      %s128 = sphi 0, %s126
      %s129 = sphi 0, %s128
      %s143 = sphi 0, %s129
      %s147 = sphi 0, %s147
      %s149 = sphi 0, %s147
      %s150 = sphi 0, %s149
      %s164 = sphi 0, %s150
      %s168 = sphi 0, %s168
      %s170 = sphi 0, %s168
      %s171 = sphi 0, %s170
      %s185 = sphi 0, %s171
      %s189 = sphi 0, %s189
      %s191 = sphi 0, %s189
      %s192 = sphi 0, %s191
      %s206 = sphi 0, %s192
      %s210 = sphi 0, %s210
      %s212 = sphi 0, %s210
      %s213 = sphi 0, %s212
      %s227 = sphi 0, %s213
      %s231 = sphi 0, %s231
      %s233 = sphi 0, %s231
      %s234 = sphi 0, %s233
      %s248 = sphi 0, %s234
      %s252 = sphi 0, %s252
      %s254 = sphi 0, %s252
      %s255 = sphi 0, %s254
      %s269 = sphi 0, %s255
      %s273 = sphi 0, %s273
      %s275 = sphi 0, %s273
      %s276 = sphi 0, %s275
      %s290 = sphi 0, %s276
      %s294 = sphi 0, %s294
      %s296 = sphi 0, %s294
      %s297 = sphi 0, %s296
      %s311 = sphi 0, %s297
      %s315 = sphi 0, %s315
      %s317 = sphi 0, %s315
      %s318 = sphi 0, %s317
      %s332 = sphi 0, %s318
      %s338 = sphi 0, %s340
      %s341 = sphi 0, %s338
      %s342 = sphi 0, %s341
      %s358 = sphi 0, %s342
    $region4: #{tpu_custom_call.1} parent=1 // loop_header_branch
      %27 = sbr.rel (%p25) target = $region8
    $region5: #{tpu_custom_call.1} parent=1 // loop_body
      %s29 = ssub.s32 %s24, 1
      %s30 = ssub.s32 %s24, 2
      %s31 = sadd.s32 %s24, 1
      %s32 = ssub.s32 %s24, %s31
      %p33 = scmp.eq.s32.totalorder %s32, 0
      %s35 = sadd.s32 %s34, 1
      %s36 = scalar_select %p33, %s34, %s35
      %p39 = pneg %p33
      %p40 = scmp.eq.s32.totalorder %s24, 1
      %p41 = por %p39, %p40
      %p42 = scmp.ne.s32.totalorder %s34, %s37
      %p43 = scmp.eq.s32.totalorder %s24, 0
      %p44 = por %p42, %p43
      %p45 = scmp.ne.s32.totalorder %s34, %s37
      %p46 = scmp.eq.s32.totalorder %s29, 1
      %p47 = por %p45, %p46
      %p48 = scmp.ne.s32.totalorder %s37, %s38
      %p49 = scmp.eq.s32.totalorder %s29, 0
      %p50 = por %p48, %p49
      %p51 = scmp.ne.s32.totalorder %s37, %s38
      %p52 = scmp.eq.s32.totalorder %s30, 1
      %p53 = por %p51, %p52
      %p55 = scmp.ne.s32.totalorder %s38, %s54
      %p56 = scmp.eq.s32.totalorder %s30, 0
      %p57 = por %p55, %p56
      %s58 = ssub.s32 %s24, %s31
      %p59 = scmp.eq.s32.totalorder %s58, 0
      %s61 = sadd.s32 %s60, 1
      %s62 = scalar_select %p59, %s60, %s61
      %p65 = pneg %p59
      %p66 = scmp.eq.s32.totalorder %s24, 1
      %p67 = por %p65, %p66
      %p68 = scmp.ne.s32.totalorder %s60, %s63
      %p69 = scmp.eq.s32.totalorder %s24, 0
      %p70 = por %p68, %p69
      %p71 = scmp.ne.s32.totalorder %s60, %s63
      %p72 = scmp.eq.s32.totalorder %s29, 1
      %p73 = por %p71, %p72
      %p74 = scmp.ne.s32.totalorder %s63, %s64
      %p75 = scmp.eq.s32.totalorder %s29, 0
      %p76 = por %p74, %p75
      %p77 = scmp.ne.s32.totalorder %s63, %s64
      %p78 = scmp.eq.s32.totalorder %s30, 1
      %p79 = por %p77, %p78
      %p81 = scmp.ne.s32.totalorder %s64, %s80
      %p82 = scmp.eq.s32.totalorder %s30, 0
      %p83 = por %p81, %p82
      %s85 = sadd.s32 %s84, 1
      %p88 = scmp.eq.s32.totalorder %s24, 1
      %p89 = scmp.ne.s32.totalorder %s84, %s86
      %p90 = scmp.eq.s32.totalorder %s24, 0
      %p91 = por %p89, %p90
      %p92 = scmp.ne.s32.totalorder %s84, %s86
      %p93 = scmp.eq.s32.totalorder %s29, 1
      %p94 = por %p92, %p93
      %p95 = scmp.ne.s32.totalorder %s86, %s87
      %p96 = scmp.eq.s32.totalorder %s29, 0
      %p97 = por %p95, %p96
      %p98 = scmp.ne.s32.totalorder %s86, %s87
      %p99 = scmp.eq.s32.totalorder %s30, 1
      %p100 = por %p98, %p99
      %p102 = scmp.ne.s32.totalorder %s87, %s101
      %p103 = scmp.eq.s32.totalorder %s30, 0
      %p104 = por %p102, %p103
      %s106 = sadd.s32 %s105, 1
      %p109 = scmp.eq.s32.totalorder %s24, 1
      %p110 = scmp.ne.s32.totalorder %s105, %s107
      %p111 = scmp.eq.s32.totalorder %s24, 0
      %p112 = por %p110, %p111
      %p113 = scmp.ne.s32.totalorder %s105, %s107
      %p114 = scmp.eq.s32.totalorder %s29, 1
      %p115 = por %p113, %p114
      %p116 = scmp.ne.s32.totalorder %s107, %s108
      %p117 = scmp.eq.s32.totalorder %s29, 0
      %p118 = por %p116, %p117
      %p119 = scmp.ne.s32.totalorder %s107, %s108
      %p120 = scmp.eq.s32.totalorder %s30, 1
      %p121 = por %p119, %p120
      %p123 = scmp.ne.s32.totalorder %s108, %s122
      %p124 = scmp.eq.s32.totalorder %s30, 0
      %p125 = por %p123, %p124
      %s127 = sadd.s32 %s126, 1
      %p130 = scmp.eq.s32.totalorder %s24, 1
      %p131 = scmp.ne.s32.totalorder %s126, %s128
      %p132 = scmp.eq.s32.totalorder %s24, 0
      %p133 = por %p131, %p132
      %p134 = scmp.ne.s32.totalorder %s126, %s128
      %p135 = scmp.eq.s32.totalorder %s29, 1
      %p136 = por %p134, %p135
      %p137 = scmp.ne.s32.totalorder %s128, %s129
      %p138 = scmp.eq.s32.totalorder %s29, 0
      %p139 = por %p137, %p138
      %p140 = scmp.ne.s32.totalorder %s128, %s129
      %p141 = scmp.eq.s32.totalorder %s30, 1
      %p142 = por %p140, %p141
      %p144 = scmp.ne.s32.totalorder %s129, %s143
      %p145 = scmp.eq.s32.totalorder %s30, 0
      %p146 = por %p144, %p145
      %s148 = sadd.s32 %s147, 1
      %p151 = scmp.eq.s32.totalorder %s24, 1
      %p152 = scmp.ne.s32.totalorder %s147, %s149
      %p153 = scmp.eq.s32.totalorder %s24, 0
      %p154 = por %p152, %p153
      %p155 = scmp.ne.s32.totalorder %s147, %s149
      %p156 = scmp.eq.s32.totalorder %s29, 1
      %p157 = por %p155, %p156
      %p158 = scmp.ne.s32.totalorder %s149, %s150
      %p159 = scmp.eq.s32.totalorder %s29, 0
      %p160 = por %p158, %p159
      %p161 = scmp.ne.s32.totalorder %s149, %s150
      %p162 = scmp.eq.s32.totalorder %s30, 1
      %p163 = por %p161, %p162
      %p165 = scmp.ne.s32.totalorder %s150, %s164
      %p166 = scmp.eq.s32.totalorder %s30, 0
      %p167 = por %p165, %p166
      %s169 = sadd.s32 %s168, 1
      %p172 = scmp.eq.s32.totalorder %s24, 1
      %p173 = scmp.ne.s32.totalorder %s168, %s170
      %p174 = scmp.eq.s32.totalorder %s24, 0
      %p175 = por %p173, %p174
      %p176 = scmp.ne.s32.totalorder %s168, %s170
      %p177 = scmp.eq.s32.totalorder %s29, 1
      %p178 = por %p176, %p177
      %p179 = scmp.ne.s32.totalorder %s170, %s171
      %p180 = scmp.eq.s32.totalorder %s29, 0
      %p181 = por %p179, %p180
      %p182 = scmp.ne.s32.totalorder %s170, %s171
      %p183 = scmp.eq.s32.totalorder %s30, 1
      %p184 = por %p182, %p183
      %p186 = scmp.ne.s32.totalorder %s171, %s185
      %p187 = scmp.eq.s32.totalorder %s30, 0
      %p188 = por %p186, %p187
      %s190 = sadd.s32 %s189, 1
      %p193 = scmp.eq.s32.totalorder %s24, 1
      %p194 = scmp.ne.s32.totalorder %s189, %s191
      %p195 = scmp.eq.s32.totalorder %s24, 0
      %p196 = por %p194, %p195
      %p197 = scmp.ne.s32.totalorder %s189, %s191
      %p198 = scmp.eq.s32.totalorder %s29, 1
      %p199 = por %p197, %p198
      %p200 = scmp.ne.s32.totalorder %s191, %s192
      %p201 = scmp.eq.s32.totalorder %s29, 0
      %p202 = por %p200, %p201
      %p203 = scmp.ne.s32.totalorder %s191, %s192
      %p204 = scmp.eq.s32.totalorder %s30, 1
      %p205 = por %p203, %p204
      %p207 = scmp.ne.s32.totalorder %s192, %s206
      %p208 = scmp.eq.s32.totalorder %s30, 0
      %p209 = por %p207, %p208
      %s211 = sadd.s32 %s210, 1
      %p214 = scmp.eq.s32.totalorder %s24, 1
      %p215 = scmp.ne.s32.totalorder %s210, %s212
      %p216 = scmp.eq.s32.totalorder %s24, 0
      %p217 = por %p215, %p216
      %p218 = scmp.ne.s32.totalorder %s210, %s212
      %p219 = scmp.eq.s32.totalorder %s29, 1
      %p220 = por %p218, %p219
      %p221 = scmp.ne.s32.totalorder %s212, %s213
      %p222 = scmp.eq.s32.totalorder %s29, 0
      %p223 = por %p221, %p222
      %p224 = scmp.ne.s32.totalorder %s212, %s213
      %p225 = scmp.eq.s32.totalorder %s30, 1
      %p226 = por %p224, %p225
      %p228 = scmp.ne.s32.totalorder %s213, %s227
      %p229 = scmp.eq.s32.totalorder %s30, 0
      %p230 = por %p228, %p229
      %s232 = sadd.s32 %s231, 1
      %p235 = scmp.eq.s32.totalorder %s24, 1
      %p236 = scmp.ne.s32.totalorder %s231, %s233
      %p237 = scmp.eq.s32.totalorder %s24, 0
      %p238 = por %p236, %p237
      %p239 = scmp.ne.s32.totalorder %s231, %s233
      %p240 = scmp.eq.s32.totalorder %s29, 1
      %p241 = por %p239, %p240
      %p242 = scmp.ne.s32.totalorder %s233, %s234
      %p243 = scmp.eq.s32.totalorder %s29, 0
      %p244 = por %p242, %p243
      %p245 = scmp.ne.s32.totalorder %s233, %s234
      %p246 = scmp.eq.s32.totalorder %s30, 1
      %p247 = por %p245, %p246
      %p249 = scmp.ne.s32.totalorder %s234, %s248
      %p250 = scmp.eq.s32.totalorder %s30, 0
      %p251 = por %p249, %p250
      %s253 = sadd.s32 %s252, 1
      %p256 = scmp.eq.s32.totalorder %s24, 1
      %p257 = scmp.ne.s32.totalorder %s252, %s254
      %p258 = scmp.eq.s32.totalorder %s24, 0
      %p259 = por %p257, %p258
      %p260 = scmp.ne.s32.totalorder %s252, %s254
      %p261 = scmp.eq.s32.totalorder %s29, 1
      %p262 = por %p260, %p261
      %p263 = scmp.ne.s32.totalorder %s254, %s255
      %p264 = scmp.eq.s32.totalorder %s29, 0
      %p265 = por %p263, %p264
      %p266 = scmp.ne.s32.totalorder %s254, %s255
      %p267 = scmp.eq.s32.totalorder %s30, 1
      %p268 = por %p266, %p267
      %p270 = scmp.ne.s32.totalorder %s255, %s269
      %p271 = scmp.eq.s32.totalorder %s30, 0
      %p272 = por %p270, %p271
      %s274 = sadd.s32 %s273, 1
      %p277 = scmp.eq.s32.totalorder %s24, 1
      %p278 = scmp.ne.s32.totalorder %s273, %s275
      %p279 = scmp.eq.s32.totalorder %s24, 0
      %p280 = por %p278, %p279
      %p281 = scmp.ne.s32.totalorder %s273, %s275
      %p282 = scmp.eq.s32.totalorder %s29, 1
      %p283 = por %p281, %p282
      %p284 = scmp.ne.s32.totalorder %s275, %s276
      %p285 = scmp.eq.s32.totalorder %s29, 0
      %p286 = por %p284, %p285
      %p287 = scmp.ne.s32.totalorder %s275, %s276
      %p288 = scmp.eq.s32.totalorder %s30, 1
      %p289 = por %p287, %p288
      %p291 = scmp.ne.s32.totalorder %s276, %s290
      %p292 = scmp.eq.s32.totalorder %s30, 0
      %p293 = por %p291, %p292
      %s295 = sadd.s32 %s294, 1
      %p298 = scmp.eq.s32.totalorder %s24, 1
      %p299 = scmp.ne.s32.totalorder %s294, %s296
      %p300 = scmp.eq.s32.totalorder %s24, 0
      %p301 = por %p299, %p300
      %p302 = scmp.ne.s32.totalorder %s294, %s296
      %p303 = scmp.eq.s32.totalorder %s29, 1
      %p304 = por %p302, %p303
      %p305 = scmp.ne.s32.totalorder %s296, %s297
      %p306 = scmp.eq.s32.totalorder %s29, 0
      %p307 = por %p305, %p306
      %p308 = scmp.ne.s32.totalorder %s296, %s297
      %p309 = scmp.eq.s32.totalorder %s30, 1
      %p310 = por %p308, %p309
      %p312 = scmp.ne.s32.totalorder %s297, %s311
      %p313 = scmp.eq.s32.totalorder %s30, 0
      %p314 = por %p312, %p313
      %s316 = sadd.s32 %s315, 1
      %p319 = scmp.eq.s32.totalorder %s24, 1
      %p320 = scmp.ne.s32.totalorder %s315, %s317
      %p321 = scmp.eq.s32.totalorder %s24, 0
      %p322 = por %p320, %p321
      %p323 = scmp.ne.s32.totalorder %s315, %s317
      %p324 = scmp.eq.s32.totalorder %s29, 1
      %p325 = por %p323, %p324
      %p326 = scmp.ne.s32.totalorder %s317, %s318
      %p327 = scmp.eq.s32.totalorder %s29, 0
      %p328 = por %p326, %p327
      %p329 = scmp.ne.s32.totalorder %s317, %s318
      %p330 = scmp.eq.s32.totalorder %s30, 1
      %p331 = por %p329, %p330
      %p333 = scmp.ne.s32.totalorder %s318, %s332
      %p334 = scmp.eq.s32.totalorder %s30, 0
      %p335 = por %p333, %p334
      %s336 = ssub.s32 %s24, %s31
      %p337 = scmp.eq.s32.totalorder %s336, 0
      %s339 = sadd.s32 %s338, 1
      %s340 = scalar_select %p337, %s338, %s339
      %p343 = pneg %p337
      %p344 = scmp.eq.s32.totalorder %s24, 1
      %p345 = por %p343, %p344
      %p346 = scmp.ne.s32.totalorder %s338, %s341
      %p347 = scmp.eq.s32.totalorder %s24, 0
      %p348 = por %p346, %p347
      %p349 = scmp.ne.s32.totalorder %s338, %s341
      %p350 = scmp.eq.s32.totalorder %s29, 1
      %p351 = por %p349, %p350
      %p352 = scmp.ne.s32.totalorder %s341, %s342
      %p353 = scmp.eq.s32.totalorder %s29, 0
      %p354 = por %p352, %p353
      %p355 = scmp.ne.s32.totalorder %s341, %s342
      %p356 = scmp.eq.s32.totalorder %s30, 1
      %p357 = por %p355, %p356
      %p359 = scmp.ne.s32.totalorder %s342, %s358
      %p360 = scmp.eq.s32.totalorder %s30, 0
      %p361 = por %p359, %p360
      %p362 = scmp.le.s32.totalorder 1, %s24
      %p363 = scmp.lt.s32.totalorder %s24, 3
      %p364 = pnand %p362, %p363
      %p365 = pneg %p364
      // Predicated region
      $region9: #{tpu_custom_call.1} parent=5 // pred_check
        _
      $region10: #{tpu_custom_call.1} parent=5 // pred_check_branch
        %367 = sbr.rel (%p364) target = $region12
      $region11: #{tpu_custom_call.1} parent=5 // pred_region
        %s368 = ssub.s32 %s24, 1
        // Predicated region
        $region13: #{tpu_custom_call.1} parent=11 // pred_check
          %p369 = pneg %p97
        $region14: #{tpu_custom_call.1} parent=11 // pred_check_branch
          %371 = sbr.rel (%p369) target = $region16
        $region15: #{tpu_custom_call.1} parent=11 // pred_region
          %s373 = ssub.s32 64, 64
          %374 = vsyncadd [#allocation3], %s373
          %s376 = sshll.u32 [#allocation2], 4
          %s377 = int_to_ptr.vmem [resolvable:$true] %s376
          %379 = dma.hbm_to_vmem [thread:$0]  %s2, 64, %s377, [#allocation3]
        $region16: #{tpu_custom_call.1} parent=11 // pred_fallthru
          _
        // Predicated region
        $region17: #{tpu_custom_call.1} parent=11 // pred_check
          %p380 = pneg %p118
        $region18: #{tpu_custom_call.1} parent=11 // pred_check_branch
          %382 = sbr.rel (%p380) target = $region20
        $region19: #{tpu_custom_call.1} parent=11 // pred_region
          _
        $region20: #{tpu_custom_call.1} parent=11 // pred_fallthru
          _
        // Predicated region
        $region21: #{tpu_custom_call.1} parent=11 // pred_check
          %p383 = pneg %p139
        $region22: #{tpu_custom_call.1} parent=11 // pred_check_branch
          %385 = sbr.rel (%p383) target = $region24
        $region23: #{tpu_custom_call.1} parent=11 // pred_region
          _
        $region24: #{tpu_custom_call.1} parent=11 // pred_fallthru
          _
        // Predicated region
        $region25: #{tpu_custom_call.1} parent=11 // pred_check
          %p386 = pneg %p160
        $region26: #{tpu_custom_call.1} parent=11 // pred_check_branch
          %388 = sbr.rel (%p386) target = $region28
        $region27: #{tpu_custom_call.1} parent=11 // pred_region
          _
        $region28: #{tpu_custom_call.1} parent=11 // pred_fallthru
          _
        // Predicated region
        $region29: #{tpu_custom_call.1} parent=11 // pred_check
          %p389 = pneg %p181
        $region30: #{tpu_custom_call.1} parent=11 // pred_check_branch
          %391 = sbr.rel (%p389) target = $region32
        $region31: #{tpu_custom_call.1} parent=11 // pred_region
          _
        $region32: #{tpu_custom_call.1} parent=11 // pred_fallthru
          _
        // Predicated region
        $region33: #{tpu_custom_call.1} parent=11 // pred_check
          %p392 = pneg %p202
        $region34: #{tpu_custom_call.1} parent=11 // pred_check_branch
          %394 = sbr.rel (%p392) target = $region36
        $region35: #{tpu_custom_call.1} parent=11 // pred_region
          _
        $region36: #{tpu_custom_call.1} parent=11 // pred_fallthru
          _
        // Predicated region
        $region37: #{tpu_custom_call.1} parent=11 // pred_check
          %p395 = pneg %p223
        $region38: #{tpu_custom_call.1} parent=11 // pred_check_branch
          %397 = sbr.rel (%p395) target = $region40
        $region39: #{tpu_custom_call.1} parent=11 // pred_region
          _
        $region40: #{tpu_custom_call.1} parent=11 // pred_fallthru
          _
        // Predicated region
        $region41: #{tpu_custom_call.1} parent=11 // pred_check
          %p398 = pneg %p244
        $region42: #{tpu_custom_call.1} parent=11 // pred_check_branch
          %400 = sbr.rel (%p398) target = $region44
        $region43: #{tpu_custom_call.1} parent=11 // pred_region
          _
        $region44: #{tpu_custom_call.1} parent=11 // pred_fallthru
          _
        // Predicated region
        $region45: #{tpu_custom_call.1} parent=11 // pred_check
          %p401 = pneg %p265
        $region46: #{tpu_custom_call.1} parent=11 // pred_check_branch
          %403 = sbr.rel (%p401) target = $region48
        $region47: #{tpu_custom_call.1} parent=11 // pred_region
          _
        $region48: #{tpu_custom_call.1} parent=11 // pred_fallthru
          _
        // Predicated region
        $region49: #{tpu_custom_call.1} parent=11 // pred_check
          %p404 = pneg %p286
        $region50: #{tpu_custom_call.1} parent=11 // pred_check_branch
          %406 = sbr.rel (%p404) target = $region52
        $region51: #{tpu_custom_call.1} parent=11 // pred_region
          _
        $region52: #{tpu_custom_call.1} parent=11 // pred_fallthru
          _
        // Predicated region
        $region53: #{tpu_custom_call.1} parent=11 // pred_check
          %p407 = pneg %p307
        $region54: #{tpu_custom_call.1} parent=11 // pred_check_branch
          %409 = sbr.rel (%p407) target = $region56
        $region55: #{tpu_custom_call.1} parent=11 // pred_region
          _
        $region56: #{tpu_custom_call.1} parent=11 // pred_fallthru
          _
        // Predicated region
        $region57: #{tpu_custom_call.1} parent=11 // pred_check
          %p410 = pneg %p328
        $region58: #{tpu_custom_call.1} parent=11 // pred_check_branch
          %412 = sbr.rel (%p410) target = $region60
        $region59: #{tpu_custom_call.1} parent=11 // pred_region
          _
        $region60: #{tpu_custom_call.1} parent=11 // pred_fallthru
          _
      $region12: #{tpu_custom_call.1} parent=5 // pred_fallthru
        _
      %p413 = scmp.lt.s32.totalorder %s24, 2
      // Predicated region
      $region61: #{tpu_custom_call.1} parent=5 // pred_check
        %p414 = pneg %p413
      $region62: #{tpu_custom_call.1} parent=5 // pred_check_branch
        %416 = sbr.rel (%p414) target = $region64
      $region63: #{tpu_custom_call.1} parent=5 // pred_region
        // Predicated region
        $region65: #{tpu_custom_call.1} parent=63 // pred_check
          %p417 = pneg %p44
        $region66: #{tpu_custom_call.1} parent=63 // pred_check_branch
          %419 = sbr.rel (%p417) target = $region68
        $region67: #{tpu_custom_call.1} parent=63 // pred_region
          %s420 = smul.u32 16, %s24
          %p421 = scmp.lt.s32.totalorder %s420, 31
          %s422 = scalar_select %p421, %s420, 31
          %s423 = smul.addr %s422, 8
          %s424 = scalar_lea.vmem %s0, %s423
          %s425 = smul.u32 16, %s24
        $region68: #{tpu_custom_call.1} parent=63 // pred_fallthru
          _
        // Predicated region
        $region69: #{tpu_custom_call.1} parent=63 // pred_check
          %p426 = pneg %p70
        $region70: #{tpu_custom_call.1} parent=63 // pred_check_branch
          %428 = sbr.rel (%p426) target = $region72
        $region71: #{tpu_custom_call.1} parent=63 // pred_region
          %s429 = smul.u32 16, %s24
          %p430 = scmp.lt.s32.totalorder %s429, 31
          %s431 = scalar_select %p430, %s429, 31
          %s432 = smul.addr %s431, 3
          %s433 = smul.addr %s432, 4
          %s434 = scalar_lea.vmem %s1, %s433
          %s435 = smul.u32 16, %s24
        $region72: #{tpu_custom_call.1} parent=63 // pred_fallthru
          _
      $region64: #{tpu_custom_call.1} parent=5 // pred_fallthru
        _
      %p436 = scmp.le.s32.totalorder 1, %s24
      %p437 = scmp.lt.s32.totalorder %s24, 3
      %p438 = pnand %p436, %p437
      %p439 = pneg %p438
      // Predicated region
      $region73: #{tpu_custom_call.1} parent=5 // pred_check
        _
      $region74: #{tpu_custom_call.1} parent=5 // pred_check_branch
        %441 = sbr.rel (%p438) target = $region76
      $region75: #{tpu_custom_call.1} parent=5 // pred_region
        %s442 = ssub.s32 %s24, 1
        // Predicated region
        $region77: #{tpu_custom_call.1} parent=75 // pred_check
          %p443 = pneg %p97
        $region78: #{tpu_custom_call.1} parent=75 // pred_check_branch
          %445 = sbr.rel (%p443) target = $region80
        $region79: #{tpu_custom_call.1} parent=75 // pred_region
          %446 = dma.done [#allocation3], 64
        $region80: #{tpu_custom_call.1} parent=75 // pred_fallthru
          _
        %s447 = smul.u32 16, %s29
        %p448 = scmp.lt.s32.totalorder %s447, 31
        %s449 = scalar_select %p448, %s447, 31
        %s450 = smul.addr %s449, 8
        %s451 = scalar_lea.vmem %s0, %s450
        %p452 = pneg %p50
        %p453 = pneg %p47
        %s454 = smul.u32 16, %s29
        %p455 = scmp.lt.s32.totalorder %s454, 31
        %s456 = scalar_select %p455, %s454, 31
        %s457 = smul.addr %s456, 3
        %s458 = smul.addr %s457, 4
        %s459 = scalar_lea.vmem %s1, %s458
        %p460 = pneg %p76
        %p461 = pneg %p73
        %p462 = pneg %p97
        %p463 = pneg %p94
        %p464 = pneg %p118
        %p465 = pneg %p115
        %p466 = pneg %p139
        %p467 = pneg %p136
        %p468 = pneg %p160
        %p469 = pneg %p157
        %p470 = pneg %p181
        %p471 = pneg %p178
        %p472 = pneg %p202
        %p473 = pneg %p199
        %p474 = pneg %p223
        %p475 = pneg %p220
        %p476 = pneg %p244
        %p477 = pneg %p241
        %p478 = pneg %p265
        %p479 = pneg %p262
        %p480 = pneg %p286
        %p481 = pneg %p283
        %p482 = pneg %p307
        %p483 = pneg %p304
        %p484 = pneg %p328
        %p485 = pneg %p325
        %p486 = pneg %p354
        %p487 = pneg %p351
        %s488 = sand.u32 %s341, 1
        %s489 = scalar_lea.sflag [#allocation4], %s488
        %s490 = sand.u32 %s341, 1
        %s491 = smul.addr %s490, 16
        %s492 = scalar_lea.vmem [#allocation5], %s491
        %s493 = smul.u32 16, %s29
        %p494 = scmp.lt.s32.totalorder %s493, 31
        %s495 = scalar_select %p494, %s493, 31
        %s496 = smul.addr %s495, 8
        %s497 = scalar_lea.vmem %s0, %s496
        %s498 = smul.u32 16, %s29
        %s499 = smul.u32 16, %s29
        %p500 = scmp.lt.s32.totalorder %s499, 31
        %s501 = scalar_select %p500, %s499, 31
        %s502 = smul.addr %s501, 3
        %s503 = smul.addr %s502, 4
        %s504 = scalar_lea.vmem %s1, %s503
        %s505 = smul.u32 16, %s29
        %s506 = smul.u32 2, %s29
        %v508 = vld [vmem:[%s497] sm:$0xff]
        %v509 = vld [vmem:[%s497 + $0x8] sm:$0xff]
        %v510 = vld [vmem:[%s497 + $0x10] sm:$0xff]
        %v511 = vld [vmem:[%s497 + $0x18] sm:$0xff]
        %v512 = vld [vmem:[%s497 + $0x20] sm:$0xff]
        %v513 = vld [vmem:[%s497 + $0x28] sm:$0xff]
        %v514 = vld [vmem:[%s497 + $0x30] sm:$0xff]
        %v515 = vld [vmem:[%s497 + $0x38] sm:$0xff]
        %v516 = vld [vmem:[%s497 + $0x40] sm:$0xff]
        %v517 = vld [vmem:[%s497 + $0x48] sm:$0xff]
        %v518 = vld [vmem:[%s497 + $0x50] sm:$0xff]
        %v519 = vld [vmem:[%s497 + $0x58] sm:$0xff]
        %v520 = vld [vmem:[%s497 + $0x60] sm:$0xff]
        %v521 = vld [vmem:[%s497 + $0x68] sm:$0xff]
        %v522 = vld [vmem:[%s497 + $0x70] sm:$0xff]
        %v523 = vld [vmem:[%s497 + $0x78] sm:$0xff]
        %v524 = vpack.c.bf16 %v509, %v508
        %v525 = vpack.c.bf16 %v511, %v510
        %v526 = vpack.c.bf16 %v513, %v512
        %v527 = vpack.c.bf16 %v515, %v514
        %v528 = vpack.c.bf16 %v517, %v516
        %v529 = vpack.c.bf16 %v519, %v518
        %v530 = vpack.c.bf16 %v521, %v520
        %v531 = vpack.c.bf16 %v523, %v522
        %v532 = vld [vmem:[#allocation2] sm:$0xf]
        %v533 = vld [vmem:[%s3] sm:$0x1]
        %v535 = vlaneseq
        %v536 = vshrl.u32 %v535, 7
        %v537 = vsub.s32 0, %v536
        %v538 = vrot.slane %v533, %v537
        %vm540 = vcmask 64512
        %v542 = vsel %vm540, %v524, 0
        %v545 = vsel %vm540, %v525, 0
        %v548 = vsel %vm540, %v526, 0
        %v551 = vsel %vm540, %v527, 0
        %v554 = vsel %vm540, %v528, 0
        %v557 = vsel %vm540, %v529, 0
        %v560 = vsel %vm540, %v530, 0
        %v563 = vsel %vm540, %v531, 0
        %vm565 = vcmask 1043456
        %v567 = vsel %vm565, %v532, 0
        %569 = vmatprep.subr.bf16.mxu0 0
        %570 = vmatpush1.bf16.msra.mxu0 %v567
        %571 = vmatprep.subr.bf16.mxu0 0
        %572 = vmatpush1.bf16.msra.mxu0 0
        %573 = vmatprep.subr.bf16.mxu0 0
        %574 = vmatpush1.bf16.msra.mxu0 0
        %575 = vmatprep.subr.bf16.mxu0 0
        %576 = vmatpush1.bf16.msra.mxu0 0
        %577 = vmatprep.subr.bf16.mxu0 0
        %578 = vmatpush1.bf16.msra.mxu0 0
        %579 = vmatprep.subr.bf16.mxu0 0
        %580 = vmatpush1.bf16.msra.mxu0 0
        %581 = vmatprep.subr.bf16.mxu0 0
        %582 = vmatpush1.bf16.msra.mxu0 0
        %583 = vmatprep.subr.bf16.mxu0 0
        %584 = vmatpush1.bf16.msra.mxu0 0
        %585 = vmatprep.subr.bf16.mxu0 0
        %586 = vmatpush1.bf16.msra.mxu0 0
        %587 = vmatprep.subr.bf16.mxu0 0
        %588 = vmatpush1.bf16.msra.mxu0 0
        %589 = vmatprep.subr.bf16.mxu0 0
        %590 = vmatpush1.bf16.msra.mxu0 0
        %591 = vmatprep.subr.bf16.mxu0 0
        %592 = vmatpush1.bf16.msra.mxu0 0
        %593 = vmatprep.subr.bf16.mxu0 0
        %594 = vmatpush1.bf16.msra.mxu0 0
        %595 = vmatprep.subr.bf16.mxu0 0
        %596 = vmatpush1.bf16.msra.mxu0 0
        %597 = vmatprep.subr.bf16.mxu0 0
        %598 = vmatpush1.bf16.msra.mxu0 0
        %599 = vmatprep.subr.bf16.mxu0 0
        %600 = vmatpush1.bf16.msra.mxu0 0
        %601 = vmatprep.mubr.bf16.mxu0 0
        %602 = vmatmul.mubr.bf16.gmra.mrb[0].mxu0 %v542
        %v603 = vpop.f32.mrb[0].mxu0
        %v604 = vadd.f32 %v538, %v603
        %v605 = vpop.f32.mrb[0].mxu0
        %v606 = vpop.f32.mrb[0].mxu0
        %v607 = vadd.f32 %v538, %v606
        %v608 = vpop.f32.mrb[0].mxu0
        %609 = vmatprep.mubr.bf16.mxu0 0
        %610 = vmatmul.mubr.bf16.gmra.mrb[0].mxu0 %v545
        %v611 = vpop.f32.mrb[0].mxu0
        %v612 = vadd.f32 %v538, %v611
        %v613 = vpop.f32.mrb[0].mxu0
        %v614 = vpop.f32.mrb[0].mxu0
        %v615 = vadd.f32 %v538, %v614
        %v616 = vpop.f32.mrb[0].mxu0
        %617 = vmatprep.mubr.bf16.mxu0 0
        %618 = vmatmul.mubr.bf16.gmra.mrb[0].mxu0 %v548
        %v619 = vpop.f32.mrb[0].mxu0
        %v620 = vadd.f32 %v538, %v619
        %v621 = vpop.f32.mrb[0].mxu0
        %v622 = vpop.f32.mrb[0].mxu0
        %v623 = vadd.f32 %v538, %v622
        %v624 = vpop.f32.mrb[0].mxu0
        %625 = vmatprep.mubr.bf16.mxu0 0
        %626 = vmatmul.mubr.bf16.gmra.mrb[0].mxu0 %v551
        %v627 = vpop.f32.mrb[0].mxu0
        %v628 = vadd.f32 %v538, %v627
        %v629 = vpop.f32.mrb[0].mxu0
        %v630 = vpop.f32.mrb[0].mxu0
        %v631 = vadd.f32 %v538, %v630
        %v632 = vpop.f32.mrb[0].mxu0
        %633 = vmatprep.mubr.bf16.mxu0 0
        %634 = vmatmul.mubr.bf16.gmra.mrb[0].mxu0 %v554
        %v635 = vpop.f32.mrb[0].mxu0
        %v636 = vadd.f32 %v538, %v635
        %v637 = vpop.f32.mrb[0].mxu0
        %v638 = vpop.f32.mrb[0].mxu0
        %v639 = vadd.f32 %v538, %v638
        %v640 = vpop.f32.mrb[0].mxu0
        %641 = vmatprep.mubr.bf16.mxu0 0
        %642 = vmatmul.mubr.bf16.gmra.mrb[0].mxu0 %v557
        %v643 = vpop.f32.mrb[0].mxu0
        %v644 = vadd.f32 %v538, %v643
        %v645 = vpop.f32.mrb[0].mxu0
        %v646 = vpop.f32.mrb[0].mxu0
        %v647 = vadd.f32 %v538, %v646
        %v648 = vpop.f32.mrb[0].mxu0
        %649 = vmatprep.mubr.bf16.mxu0 0
        %650 = vmatmul.mubr.bf16.gmra.mrb[0].mxu0 %v560
        %v651 = vpop.f32.mrb[0].mxu0
        %v652 = vadd.f32 %v538, %v651
        %v653 = vpop.f32.mrb[0].mxu0
        %v654 = vpop.f32.mrb[0].mxu0
        %v655 = vadd.f32 %v538, %v654
        %v656 = vpop.f32.mrb[0].mxu0
        %657 = vmatprep.mubr.bf16.mxu0 0
        %658 = vmatmul.mubr.bf16.gmra.mrb[0].mxu0 %v563
        %v659 = vpop.f32.mrb[0].mxu0
        %v660 = vadd.f32 %v538, %v659
        %v661 = vpop.f32.mrb[0].mxu0
        %v662 = vpop.f32.mrb[0].mxu0
        %v663 = vadd.f32 %v538, %v662
        %v664 = vpop.f32.mrb[0].mxu0
        %665 = vdwg.mxu0
        %v666 = vld [vmem:[%s504] sm:$0xf]
        %v667 = vld [vmem:[%s504 + $0x4] sm:$0xf]
        %v668 = vld [vmem:[%s504 + $0x8] sm:$0xf]
        %v669 = vld [vmem:[%s504 + $0xc] sm:$0xf]
        %v670 = vld [vmem:[%s504 + $0x10] sm:$0xf]
        %v671 = vld [vmem:[%s504 + $0x14] sm:$0xf]
        %v672 = vld [vmem:[%s504 + $0x18] sm:$0xf]
        %v673 = vld [vmem:[%s504 + $0x1c] sm:$0xf]
        %v674 = vld [vmem:[%s504 + $0x20] sm:$0xf]
        %v675 = vld [vmem:[%s504 + $0x24] sm:$0xf]
        %v676 = vld [vmem:[%s504 + $0x28] sm:$0xf]
        %v677 = vld [vmem:[%s504 + $0x2c] sm:$0xf]
        %v678 = vld [vmem:[%s504 + $0x30] sm:$0xf]
        %v679 = vld [vmem:[%s504 + $0x34] sm:$0xf]
        %v680 = vld [vmem:[%s504 + $0x38] sm:$0xf]
        %v681 = vld [vmem:[%s504 + $0x3c] sm:$0xf]
        %v682 = vld [vmem:[%s504 + $0x40] sm:$0xf]
        %v683 = vld [vmem:[%s504 + $0x44] sm:$0xf]
        %v684 = vld [vmem:[%s504 + $0x48] sm:$0xf]
        %v685 = vld [vmem:[%s504 + $0x4c] sm:$0xf]
        %v686 = vld [vmem:[%s504 + $0x50] sm:$0xf]
        %v687 = vld [vmem:[%s504 + $0x54] sm:$0xf]
        %v688 = vld [vmem:[%s504 + $0x58] sm:$0xf]
        %v689 = vld [vmem:[%s504 + $0x5c] sm:$0xf]
        %v690 = vld [vmem:[%s504 + $0x60] sm:$0xf]
        %v691 = vld [vmem:[%s504 + $0x64] sm:$0xf]
        %v692 = vld [vmem:[%s504 + $0x68] sm:$0xf]
        %v693 = vld [vmem:[%s504 + $0x6c] sm:$0xf]
        %v694 = vld [vmem:[%s504 + $0x70] sm:$0xf]
        %v695 = vld [vmem:[%s504 + $0x74] sm:$0xf]
        %v696 = vld [vmem:[%s504 + $0x78] sm:$0xf]
        %v697 = vld [vmem:[%s504 + $0x7c] sm:$0xf]
        %v698 = vld [vmem:[%s504 + $0x80] sm:$0xf]
        %v699 = vld [vmem:[%s504 + $0x84] sm:$0xf]
        %v700 = vld [vmem:[%s504 + $0x88] sm:$0xf]
        %v701 = vld [vmem:[%s504 + $0x8c] sm:$0xf]
        %v702 = vld [vmem:[%s504 + $0x90] sm:$0xf]
        %v703 = vld [vmem:[%s504 + $0x94] sm:$0xf]
        %v704 = vld [vmem:[%s504 + $0x98] sm:$0xf]
        %v705 = vld [vmem:[%s504 + $0x9c] sm:$0xf]
        %v706 = vld [vmem:[%s504 + $0xa0] sm:$0xf]
        %v707 = vld [vmem:[%s504 + $0xa4] sm:$0xf]
        %v708 = vld [vmem:[%s504 + $0xa8] sm:$0xf]
        %v709 = vld [vmem:[%s504 + $0xac] sm:$0xf]
        %v710 = vld [vmem:[%s504 + $0xb0] sm:$0xf]
        %v711 = vld [vmem:[%s504 + $0xb4] sm:$0xf]
        %v712 = vld [vmem:[%s504 + $0xb8] sm:$0xf]
        %v713 = vld [vmem:[%s504 + $0xbc] sm:$0xf]
        %v714 = vunpack.c.l.bf16 %v666
        %v715 = vunpack.c.l.bf16 %v669
        %v716 = vunpack.c.l.bf16 %v672
        %v717 = vunpack.c.l.bf16 %v675
        %v718 = vunpack.c.l.bf16 %v678
        %v719 = vunpack.c.l.bf16 %v681
        %v720 = vunpack.c.l.bf16 %v684
        %v721 = vunpack.c.l.bf16 %v687
        %v722 = vunpack.c.l.bf16 %v690
        %v723 = vunpack.c.l.bf16 %v693
        %v724 = vunpack.c.l.bf16 %v696
        %v725 = vunpack.c.l.bf16 %v699
        %v726 = vunpack.c.l.bf16 %v702
        %v727 = vunpack.c.l.bf16 %v705
        %v728 = vunpack.c.l.bf16 %v708
        %v729 = vunpack.c.l.bf16 %v711
        %v730 = vsel %vm540, %v714, 0.0
        %731 = vadd.xlane.f32.xlu0 %v730
        %v732 = vpop.xlane.xlu0 %731
        %v733 = vsel %vm540, %v715, 0.0
        %734 = vadd.xlane.f32.xlu0 %v733
        %v735 = vpop.xlane.xlu0 %734
        %v736 = vsel %vm540, %v716, 0.0
        %737 = vadd.xlane.f32.xlu0 %v736
        %v738 = vpop.xlane.xlu0 %737
        %v739 = vsel %vm540, %v717, 0.0
        %740 = vadd.xlane.f32.xlu0 %v739
        %v741 = vpop.xlane.xlu0 %740
        %v742 = vsel %vm540, %v718, 0.0
        %743 = vadd.xlane.f32.xlu0 %v742
        %v744 = vpop.xlane.xlu0 %743
        %v745 = vsel %vm540, %v719, 0.0
        %746 = vadd.xlane.f32.xlu0 %v745
        %v747 = vpop.xlane.xlu0 %746
        %v748 = vsel %vm540, %v720, 0.0
        %749 = vadd.xlane.f32.xlu0 %v748
        %v750 = vpop.xlane.xlu0 %749
        %v751 = vsel %vm540, %v721, 0.0
        %752 = vadd.xlane.f32.xlu0 %v751
        %v753 = vpop.xlane.xlu0 %752
        %v754 = vsel %vm540, %v722, 0.0
        %755 = vadd.xlane.f32.xlu0 %v754
        %v756 = vpop.xlane.xlu0 %755
        %v757 = vsel %vm540, %v723, 0.0
        %758 = vadd.xlane.f32.xlu0 %v757
        %v759 = vpop.xlane.xlu0 %758
        %v760 = vsel %vm540, %v724, 0.0
        %761 = vadd.xlane.f32.xlu0 %v760
        %v762 = vpop.xlane.xlu0 %761
        %v763 = vsel %vm540, %v725, 0.0
        %764 = vadd.xlane.f32.xlu0 %v763
        %v765 = vpop.xlane.xlu0 %764
        %v766 = vsel %vm540, %v726, 0.0
        %767 = vadd.xlane.f32.xlu0 %v766
        %v768 = vpop.xlane.xlu0 %767
        %v769 = vsel %vm540, %v727, 0.0
        %770 = vadd.xlane.f32.xlu0 %v769
        %v771 = vpop.xlane.xlu0 %770
        %v772 = vsel %vm540, %v728, 0.0
        %773 = vadd.xlane.f32.xlu0 %v772
        %v774 = vpop.xlane.xlu0 %773
        %v775 = vsel %vm540, %v729, 0.0
        %776 = vadd.xlane.f32.xlu0 %v775
        %v777 = vpop.xlane.xlu0 %776
        %v778 = vld [vmem:[%s5] sm:$0x1]
        %v780 = vlaneseq
        %v781 = vshrl.u32 %v780, 7
        %v782 = vsub.s32 0, %v781
        %v783 = vrot.slane %v778, %v782
        %v785 = vmul.f32 %v732, %v783
        %v786 = vmul.f32 %v735, %v783
        %v787 = vmul.f32 %v738, %v783
        %v788 = vmul.f32 %v741, %v783
        %v789 = vmul.f32 %v744, %v783
        %v790 = vmul.f32 %v747, %v783
        %v791 = vmul.f32 %v750, %v783
        %v792 = vmul.f32 %v753, %v783
        %v793 = vmul.f32 %v756, %v783
        %v794 = vmul.f32 %v759, %v783
        %v795 = vmul.f32 %v762, %v783
        %v796 = vmul.f32 %v765, %v783
        %v797 = vmul.f32 %v768, %v783
        %v798 = vmul.f32 %v771, %v783
        %v799 = vmul.f32 %v774, %v783
        %v800 = vmul.f32 %v777, %v783
        %v801 = vadd.f32 %v785, 0.0
        %v802 = vadd.f32 %v786, 0.0
        %v803 = vadd.f32 %v787, 0.0
        %v804 = vadd.f32 %v788, 0.0
        %v805 = vadd.f32 %v789, 0.0
        %v806 = vadd.f32 %v790, 0.0
        %v807 = vadd.f32 %v791, 0.0
        %v808 = vadd.f32 %v792, 0.0
        %v809 = vadd.f32 %v793, 0.0
        %v810 = vadd.f32 %v794, 0.0
        %v811 = vadd.f32 %v795, 0.0
        %v812 = vadd.f32 %v796, 0.0
        %v813 = vadd.f32 %v797, 0.0
        %v814 = vadd.f32 %v798, 0.0
        %v815 = vadd.f32 %v799, 0.0
        %v816 = vadd.f32 %v800, 0.0
        %v817 = vunpack.c.l.bf16 %v667
        %v818 = vunpack.c.l.bf16 %v670
        %v819 = vunpack.c.l.bf16 %v673
        %v820 = vunpack.c.l.bf16 %v676
        %v821 = vunpack.c.l.bf16 %v679
        %v822 = vunpack.c.l.bf16 %v682
        %v823 = vunpack.c.l.bf16 %v685
        %v824 = vunpack.c.l.bf16 %v688
        %v825 = vunpack.c.l.bf16 %v691
        %v826 = vunpack.c.l.bf16 %v694
        %v827 = vunpack.c.l.bf16 %v697
        %v828 = vunpack.c.l.bf16 %v700
        %v829 = vunpack.c.l.bf16 %v703
        %v830 = vunpack.c.l.bf16 %v706
        %v831 = vunpack.c.l.bf16 %v709
        %v832 = vunpack.c.l.bf16 %v712
        %v833 = vsel %vm540, %v817, 0.0
        %834 = vadd.xlane.f32.xlu0 %v833
        %v835 = vpop.xlane.xlu0 %834
        %v836 = vsel %vm540, %v818, 0.0
        %837 = vadd.xlane.f32.xlu0 %v836
        %v838 = vpop.xlane.xlu0 %837
        %v839 = vsel %vm540, %v819, 0.0
        %840 = vadd.xlane.f32.xlu0 %v839
        %v841 = vpop.xlane.xlu0 %840
        %v842 = vsel %vm540, %v820, 0.0
        %843 = vadd.xlane.f32.xlu0 %v842
        %v844 = vpop.xlane.xlu0 %843
        %v845 = vsel %vm540, %v821, 0.0
        %846 = vadd.xlane.f32.xlu0 %v845
        %v847 = vpop.xlane.xlu0 %846
        %v848 = vsel %vm540, %v822, 0.0
        %849 = vadd.xlane.f32.xlu0 %v848
        %v850 = vpop.xlane.xlu0 %849
        %v851 = vsel %vm540, %v823, 0.0
        %852 = vadd.xlane.f32.xlu0 %v851
        %v853 = vpop.xlane.xlu0 %852
        %v854 = vsel %vm540, %v824, 0.0
        %855 = vadd.xlane.f32.xlu0 %v854
        %v856 = vpop.xlane.xlu0 %855
        %v857 = vsel %vm540, %v825, 0.0
        %858 = vadd.xlane.f32.xlu0 %v857
        %v859 = vpop.xlane.xlu0 %858
        %v860 = vsel %vm540, %v826, 0.0
        %861 = vadd.xlane.f32.xlu0 %v860
        %v862 = vpop.xlane.xlu0 %861
        %v863 = vsel %vm540, %v827, 0.0
        %864 = vadd.xlane.f32.xlu0 %v863
        %v865 = vpop.xlane.xlu0 %864
        %v866 = vsel %vm540, %v828, 0.0
        %867 = vadd.xlane.f32.xlu0 %v866
        %v868 = vpop.xlane.xlu0 %867
        %v869 = vsel %vm540, %v829, 0.0
        %870 = vadd.xlane.f32.xlu0 %v869
        %v871 = vpop.xlane.xlu0 %870
        %v872 = vsel %vm540, %v830, 0.0
        %873 = vadd.xlane.f32.xlu0 %v872
        %v874 = vpop.xlane.xlu0 %873
        %v875 = vsel %vm540, %v831, 0.0
        %876 = vadd.xlane.f32.xlu0 %v875
        %v877 = vpop.xlane.xlu0 %876
        %v878 = vsel %vm540, %v832, 0.0
        %879 = vadd.xlane.f32.xlu0 %v878
        %v880 = vpop.xlane.xlu0 %879
        %v881 = vld [vmem:[%s5 + $0x1] sm:$0x1]
        %v883 = vlaneseq
        %v884 = vshrl.u32 %v883, 7
        %v885 = vsub.s32 0, %v884
        %v886 = vrot.slane %v881, %v885
        %v888 = vmul.f32 %v835, %v886
        %v889 = vmul.f32 %v838, %v886
        %v890 = vmul.f32 %v841, %v886
        %v891 = vmul.f32 %v844, %v886
        %v892 = vmul.f32 %v847, %v886
        %v893 = vmul.f32 %v850, %v886
        %v894 = vmul.f32 %v853, %v886
        %v895 = vmul.f32 %v856, %v886
        %v896 = vmul.f32 %v859, %v886
        %v897 = vmul.f32 %v862, %v886
        %v898 = vmul.f32 %v865, %v886
        %v899 = vmul.f32 %v868, %v886
        %v900 = vmul.f32 %v871, %v886
        %v901 = vmul.f32 %v874, %v886
        %v902 = vmul.f32 %v877, %v886
        %v903 = vmul.f32 %v880, %v886
        %v904 = vadd.f32 %v801, %v888
        %v905 = vadd.f32 %v802, %v889
        %v906 = vadd.f32 %v803, %v890
        %v907 = vadd.f32 %v804, %v891
        %v908 = vadd.f32 %v805, %v892
        %v909 = vadd.f32 %v806, %v893
        %v910 = vadd.f32 %v807, %v894
        %v911 = vadd.f32 %v808, %v895
        %v912 = vadd.f32 %v809, %v896
        %v913 = vadd.f32 %v810, %v897
        %v914 = vadd.f32 %v811, %v898
        %v915 = vadd.f32 %v812, %v899
        %v916 = vadd.f32 %v813, %v900
        %v917 = vadd.f32 %v814, %v901
        %v918 = vadd.f32 %v815, %v902
        %v919 = vadd.f32 %v816, %v903
        %v920 = vunpack.c.l.bf16 %v668
        %v921 = vunpack.c.l.bf16 %v671
        %v922 = vunpack.c.l.bf16 %v674
        %v923 = vunpack.c.l.bf16 %v677
        %v924 = vunpack.c.l.bf16 %v680
        %v925 = vunpack.c.l.bf16 %v683
        %v926 = vunpack.c.l.bf16 %v686
        %v927 = vunpack.c.l.bf16 %v689
        %v928 = vunpack.c.l.bf16 %v692
        %v929 = vunpack.c.l.bf16 %v695
        %v930 = vunpack.c.l.bf16 %v698
        %v931 = vunpack.c.l.bf16 %v701
        %v932 = vunpack.c.l.bf16 %v704
        %v933 = vunpack.c.l.bf16 %v707
        %v934 = vunpack.c.l.bf16 %v710
        %v935 = vunpack.c.l.bf16 %v713
        %v936 = vsel %vm540, %v920, 0.0
        %937 = vadd.xlane.f32.xlu0 %v936
        %v938 = vpop.xlane.xlu0 %937
        %v939 = vsel %vm540, %v921, 0.0
        %940 = vadd.xlane.f32.xlu0 %v939
        %v941 = vpop.xlane.xlu0 %940
        %v942 = vsel %vm540, %v922, 0.0
        %943 = vadd.xlane.f32.xlu0 %v942
        %v944 = vpop.xlane.xlu0 %943
        %v945 = vsel %vm540, %v923, 0.0
        %946 = vadd.xlane.f32.xlu0 %v945
        %v947 = vpop.xlane.xlu0 %946
        %v948 = vsel %vm540, %v924, 0.0
        %949 = vadd.xlane.f32.xlu0 %v948
        %v950 = vpop.xlane.xlu0 %949
        %v951 = vsel %vm540, %v925, 0.0
        %952 = vadd.xlane.f32.xlu0 %v951
        %v953 = vpop.xlane.xlu0 %952
        %v954 = vsel %vm540, %v926, 0.0
        %955 = vadd.xlane.f32.xlu0 %v954
        %v956 = vpop.xlane.xlu0 %955
        %v957 = vsel %vm540, %v927, 0.0
        %958 = vadd.xlane.f32.xlu0 %v957
        %v959 = vpop.xlane.xlu0 %958
        %v960 = vsel %vm540, %v928, 0.0
        %961 = vadd.xlane.f32.xlu0 %v960
        %v962 = vpop.xlane.xlu0 %961
        %v963 = vsel %vm540, %v929, 0.0
        %964 = vadd.xlane.f32.xlu0 %v963
        %v965 = vpop.xlane.xlu0 %964
        %v966 = vsel %vm540, %v930, 0.0
        %967 = vadd.xlane.f32.xlu0 %v966
        %v968 = vpop.xlane.xlu0 %967
        %v969 = vsel %vm540, %v931, 0.0
        %970 = vadd.xlane.f32.xlu0 %v969
        %v971 = vpop.xlane.xlu0 %970
        %v972 = vsel %vm540, %v932, 0.0
        %973 = vadd.xlane.f32.xlu0 %v972
        %v974 = vpop.xlane.xlu0 %973
        %v975 = vsel %vm540, %v933, 0.0
        %976 = vadd.xlane.f32.xlu0 %v975
        %v977 = vpop.xlane.xlu0 %976
        %v978 = vsel %vm540, %v934, 0.0
        %979 = vadd.xlane.f32.xlu0 %v978
        %v980 = vpop.xlane.xlu0 %979
        %v981 = vsel %vm540, %v935, 0.0
        %982 = vadd.xlane.f32.xlu0 %v981
        %v983 = vpop.xlane.xlu0 %982
        %v984 = vld [vmem:[%s5 + $0x2] sm:$0x1]
        %v986 = vlaneseq
        %v987 = vshrl.u32 %v986, 7
        %v988 = vsub.s32 0, %v987
        %v989 = vrot.slane %v984, %v988
        %v991 = vmul.f32 %v938, %v989
        %v992 = vmul.f32 %v941, %v989
        %v993 = vmul.f32 %v944, %v989
        %v994 = vmul.f32 %v947, %v989
        %v995 = vmul.f32 %v950, %v989
        %v996 = vmul.f32 %v953, %v989
        %v997 = vmul.f32 %v956, %v989
        %v998 = vmul.f32 %v959, %v989
        %v999 = vmul.f32 %v962, %v989
        %v1000 = vmul.f32 %v965, %v989
        %v1001 = vmul.f32 %v968, %v989
        %v1002 = vmul.f32 %v971, %v989
        %v1003 = vmul.f32 %v974, %v989
        %v1004 = vmul.f32 %v977, %v989
        %v1005 = vmul.f32 %v980, %v989
        %v1006 = vmul.f32 %v983, %v989
        %v1007 = vadd.f32 %v904, %v991
        %v1008 = vadd.f32 %v905, %v992
        %v1009 = vadd.f32 %v906, %v993
        %v1010 = vadd.f32 %v907, %v994
        %v1011 = vadd.f32 %v908, %v995
        %v1012 = vadd.f32 %v909, %v996
        %v1013 = vadd.f32 %v910, %v997
        %v1014 = vadd.f32 %v911, %v998
        %v1015 = vadd.f32 %v912, %v999
        %v1016 = vadd.f32 %v913, %v1000
        %v1017 = vadd.f32 %v914, %v1001
        %v1018 = vadd.f32 %v915, %v1002
        %v1019 = vadd.f32 %v916, %v1003
        %v1020 = vadd.f32 %v917, %v1004
        %v1021 = vadd.f32 %v918, %v1005
        %v1022 = vadd.f32 %v919, %v1006
        %v1023 = vld [vmem:[%s7] sm:$0x7]
        %v1025 = vlaneseq
        %v1026 = vshrl.u32 %v1025, 7
        %v1027 = vsub.s32 0, %v1026
        %v1028 = vrot.slane %v1023, %v1027
        %v1029 = vlaneseq
        %v1030 = vshrl.u32 %v1029, 7
        %v1031 = vsub.s32 1, %v1030
        %v1032 = vrot.slane %v1023, %v1031
        %v1033 = vlaneseq
        %v1034 = vshrl.u32 %v1033, 7
        %v1035 = vsub.s32 2, %v1034
        %v1036 = vrot.slane %v1023, %v1035
        %v1040 = vld [vmem:[%s9] sm:$0x7]
        %v1042 = vlaneseq
        %v1043 = vshrl.u32 %v1042, 7
        %v1044 = vsub.s32 0, %v1043
        %v1045 = vrot.slane %v1040, %v1044
        %v1046 = vlaneseq
        %v1047 = vshrl.u32 %v1046, 7
        %v1048 = vsub.s32 1, %v1047
        %v1049 = vrot.slane %v1040, %v1048
        %v1050 = vlaneseq
        %v1051 = vshrl.u32 %v1050, 7
        %v1052 = vsub.s32 2, %v1051
        %v1053 = vrot.slane %v1040, %v1052
        %v1057 = vld [vmem:[%s4] sm:$0xff]
        %v1058 = vld [vmem:[%s4 + $0x8] sm:$0xf]
        %v1059 = vld [vmem:[%s4 + $0xc] sm:$0xff]
        %v1060 = vld [vmem:[%s4 + $0x14] sm:$0xf]
        %v1061 = vld [vmem:[%s4 + $0x18] sm:$0xff]
        %v1062 = vld [vmem:[%s4 + $0x20] sm:$0xf]
        %v1063 = vld [vmem:[%s4 + $0x24] sm:$0xff]
        %v1064 = vld [vmem:[%s4 + $0x2c] sm:$0xf]
        %v1065 = vld [vmem:[%s4 + $0x30] sm:$0xff]
        %v1066 = vld [vmem:[%s4 + $0x38] sm:$0xf]
        %v1067 = vld [vmem:[%s4 + $0x3c] sm:$0xff]
        %v1068 = vld [vmem:[%s4 + $0x44] sm:$0xf]
        %v1069 = vld [vmem:[%s4 + $0x48] sm:$0xff]
        %v1070 = vld [vmem:[%s4 + $0x50] sm:$0xf]
        %v1071 = vld [vmem:[%s4 + $0x54] sm:$0xff]
        %v1072 = vld [vmem:[%s4 + $0x5c] sm:$0xf]
        %v1073 = vld [vmem:[%s4 + $0x60] sm:$0xff]
        %v1074 = vld [vmem:[%s4 + $0x68] sm:$0xf]
        %v1075 = vld [vmem:[%s4 + $0x6c] sm:$0xff]
        %v1076 = vld [vmem:[%s4 + $0x74] sm:$0xf]
        %v1077 = vld [vmem:[%s4 + $0x78] sm:$0xff]
        %v1078 = vld [vmem:[%s4 + $0x80] sm:$0xf]
        %v1079 = vld [vmem:[%s4 + $0x84] sm:$0xff]
        %v1080 = vld [vmem:[%s4 + $0x8c] sm:$0xf]
        %v1081 = vld [vmem:[%s4 + $0x90] sm:$0xff]
        %v1082 = vld [vmem:[%s4 + $0x98] sm:$0xf]
        %v1083 = vld [vmem:[%s4 + $0x9c] sm:$0xff]
        %v1084 = vld [vmem:[%s4 + $0xa4] sm:$0xf]
        %v1085 = vld [vmem:[%s4 + $0xa8] sm:$0xff]
        %v1086 = vld [vmem:[%s4 + $0xb0] sm:$0xf]
        %v1087 = vld [vmem:[%s4 + $0xb4] sm:$0xff]
        %v1088 = vld [vmem:[%s4 + $0xbc] sm:$0xf]
        %v1089 = vld [vmem:[%s6] sm:$0xff]
        %v1090 = vld [vmem:[%s6 + $0x8] sm:$0xf]
        %v1091 = vld [vmem:[%s6 + $0xc] sm:$0xff]
        %v1092 = vld [vmem:[%s6 + $0x14] sm:$0xf]
        %v1093 = vld [vmem:[%s6 + $0x18] sm:$0xff]
        %v1094 = vld [vmem:[%s6 + $0x20] sm:$0xf]
        %v1095 = vld [vmem:[%s6 + $0x24] sm:$0xff]
        %v1096 = vld [vmem:[%s6 + $0x2c] sm:$0xf]
        %v1097 = vld [vmem:[%s6 + $0x30] sm:$0xff]
        %v1098 = vld [vmem:[%s6 + $0x38] sm:$0xf]
        %v1099 = vld [vmem:[%s6 + $0x3c] sm:$0xff]
        %v1100 = vld [vmem:[%s6 + $0x44] sm:$0xf]
        %v1101 = vld [vmem:[%s6 + $0x48] sm:$0xff]
        %v1102 = vld [vmem:[%s6 + $0x50] sm:$0xf]
        %v1103 = vld [vmem:[%s6 + $0x54] sm:$0xff]
        %v1104 = vld [vmem:[%s6 + $0x5c] sm:$0xf]
        %v1105 = vld [vmem:[%s6 + $0x60] sm:$0xff]
        %v1106 = vld [vmem:[%s6 + $0x68] sm:$0xf]
        %v1107 = vld [vmem:[%s6 + $0x6c] sm:$0xff]
        %v1108 = vld [vmem:[%s6 + $0x74] sm:$0xf]
        %v1109 = vld [vmem:[%s6 + $0x78] sm:$0xff]
        %v1110 = vld [vmem:[%s6 + $0x80] sm:$0xf]
        %v1111 = vld [vmem:[%s6 + $0x84] sm:$0xff]
        %v1112 = vld [vmem:[%s6 + $0x8c] sm:$0xf]
        %v1113 = vld [vmem:[%s6 + $0x90] sm:$0xff]
        %v1114 = vld [vmem:[%s6 + $0x98] sm:$0xf]
        %v1115 = vld [vmem:[%s6 + $0x9c] sm:$0xff]
        %v1116 = vld [vmem:[%s6 + $0xa4] sm:$0xf]
        %v1117 = vld [vmem:[%s6 + $0xa8] sm:$0xff]
        %v1118 = vld [vmem:[%s6 + $0xb0] sm:$0xf]
        %v1119 = vld [vmem:[%s6 + $0xb4] sm:$0xff]
        %v1120 = vld [vmem:[%s6 + $0xbc] sm:$0xf]
        %v1121 = vld [vmem:[%s8] sm:$0xff]
        %v1122 = vld [vmem:[%s8 + $0x8] sm:$0xf]
        %v1123 = vld [vmem:[%s8 + $0xc] sm:$0xff]
        %v1124 = vld [vmem:[%s8 + $0x14] sm:$0xf]
        %v1125 = vld [vmem:[%s8 + $0x18] sm:$0xff]
        %v1126 = vld [vmem:[%s8 + $0x20] sm:$0xf]
        %v1127 = vld [vmem:[%s8 + $0x24] sm:$0xff]
        %v1128 = vld [vmem:[%s8 + $0x2c] sm:$0xf]
        %v1129 = vld [vmem:[%s8 + $0x30] sm:$0xff]
        %v1130 = vld [vmem:[%s8 + $0x38] sm:$0xf]
        %v1131 = vld [vmem:[%s8 + $0x3c] sm:$0xff]
        %v1132 = vld [vmem:[%s8 + $0x44] sm:$0xf]
        %v1133 = vld [vmem:[%s8 + $0x48] sm:$0xff]
        %v1134 = vld [vmem:[%s8 + $0x50] sm:$0xf]
        %v1135 = vld [vmem:[%s8 + $0x54] sm:$0xff]
        %v1136 = vld [vmem:[%s8 + $0x5c] sm:$0xf]
        %v1137 = vld [vmem:[%s8 + $0x60] sm:$0xff]
        %v1138 = vld [vmem:[%s8 + $0x68] sm:$0xf]
        %v1139 = vld [vmem:[%s8 + $0x6c] sm:$0xff]
        %v1140 = vld [vmem:[%s8 + $0x74] sm:$0xf]
        %v1141 = vld [vmem:[%s8 + $0x78] sm:$0xff]
        %v1142 = vld [vmem:[%s8 + $0x80] sm:$0xf]
        %v1143 = vld [vmem:[%s8 + $0x84] sm:$0xff]
        %v1144 = vld [vmem:[%s8 + $0x8c] sm:$0xf]
        %v1145 = vld [vmem:[%s8 + $0x90] sm:$0xff]
        %v1146 = vld [vmem:[%s8 + $0x98] sm:$0xf]
        %v1147 = vld [vmem:[%s8 + $0x9c] sm:$0xff]
        %v1148 = vld [vmem:[%s8 + $0xa4] sm:$0xf]
        %v1149 = vld [vmem:[%s8 + $0xa8] sm:$0xff]
        %v1150 = vld [vmem:[%s8 + $0xb0] sm:$0xf]
        %v1151 = vld [vmem:[%s8 + $0xb4] sm:$0xff]
        %v1152 = vld [vmem:[%s8 + $0xbc] sm:$0xf]
        loop: start=0, step=1, limit=4
        $region81: #{tpu_custom_call.1} parent=75 // loop_pre_header
          _
        $region82: #{tpu_custom_call.1} parent=75 // loop_header
          %s1154 = sphi 0, %s1158
          %p1155 = scmp.ge.s32.totalorder %s1154, 4
          %v1159 = vphi %v604, %v4925
          %v1160 = vphi %v607, %v4926
          %v1161 = vphi %v612, %v4927
          %v1162 = vphi %v615, %v4928
          %v1163 = vphi %v620, %v4929
          %v1164 = vphi %v623, %v4930
          %v1165 = vphi %v628, %v4931
          %v1166 = vphi %v631, %v4932
          %v1167 = vphi %v636, %v4933
          %v1168 = vphi %v639, %v4934
          %v1169 = vphi %v644, %v4935
          %v1170 = vphi %v647, %v4936
          %v1171 = vphi %v652, %v4937
          %v1172 = vphi %v655, %v4938
          %v1173 = vphi %v660, %v4939
          %v1174 = vphi %v663, %v4940
        $region83: #{tpu_custom_call.1} parent=75 // loop_header_branch
          %1157 = sbr.rel (%p1155) target = $region87
        $region84: #{tpu_custom_call.1} parent=75 // loop_body
          %v1175 = vpack.c.bf16 %v1160, %v1159
          %v1176 = vpack.c.bf16 %v1162, %v1161
          %v1177 = vpack.c.bf16 %v1164, %v1163
          %v1178 = vpack.c.bf16 %v1166, %v1165
          %v1179 = vpack.c.bf16 %v1168, %v1167
          %v1180 = vpack.c.bf16 %v1170, %v1169
          %v1181 = vpack.c.bf16 %v1172, %v1171
          %v1182 = vpack.c.bf16 %v1174, %v1173
          %v1215 = vunpack.c.l.b16 %v1057
          %v1216 = vunpack.c.h.b16 %v1057
          %v1217 = vunpack.c.l.b16 %v1058
          %v1218 = vunpack.c.l.b16 %v1059
          %v1219 = vunpack.c.h.b16 %v1059
          %v1220 = vunpack.c.l.b16 %v1060
          %v1221 = vunpack.c.l.b16 %v1061
          %v1222 = vunpack.c.h.b16 %v1061
          %v1223 = vunpack.c.l.b16 %v1062
          %v1224 = vunpack.c.l.b16 %v1063
          %v1225 = vunpack.c.h.b16 %v1063
          %v1226 = vunpack.c.l.b16 %v1064
          %v1227 = vunpack.c.l.b16 %v1065
          %v1228 = vunpack.c.h.b16 %v1065
          %v1229 = vunpack.c.l.b16 %v1066
          %v1230 = vunpack.c.l.b16 %v1067
          %v1231 = vunpack.c.h.b16 %v1067
          %v1232 = vunpack.c.l.b16 %v1068
          %v1233 = vunpack.c.l.b16 %v1069
          %v1234 = vunpack.c.h.b16 %v1069
          %v1235 = vunpack.c.l.b16 %v1070
          %v1236 = vunpack.c.l.b16 %v1071
          %v1237 = vunpack.c.h.b16 %v1071
          %v1238 = vunpack.c.l.b16 %v1072
          %v1239 = vunpack.c.l.b16 %v1073
          %v1240 = vunpack.c.h.b16 %v1073
          %v1241 = vunpack.c.l.b16 %v1074
          %v1242 = vunpack.c.l.b16 %v1075
          %v1243 = vunpack.c.h.b16 %v1075
          %v1244 = vunpack.c.l.b16 %v1076
          %v1245 = vunpack.c.l.b16 %v1077
          %v1246 = vunpack.c.h.b16 %v1077
          %v1247 = vunpack.c.l.b16 %v1078
          %v1248 = vunpack.c.l.b16 %v1079
          %v1249 = vunpack.c.h.b16 %v1079
          %v1250 = vunpack.c.l.b16 %v1080
          %v1251 = vunpack.c.l.b16 %v1081
          %v1252 = vunpack.c.h.b16 %v1081
          %v1253 = vunpack.c.l.b16 %v1082
          %v1254 = vunpack.c.l.b16 %v1083
          %v1255 = vunpack.c.h.b16 %v1083
          %v1256 = vunpack.c.l.b16 %v1084
          %v1257 = vunpack.c.l.b16 %v1085
          %v1258 = vunpack.c.h.b16 %v1085
          %v1259 = vunpack.c.l.b16 %v1086
          %v1260 = vunpack.c.l.b16 %v1087
          %v1261 = vunpack.c.h.b16 %v1087
          %v1262 = vunpack.c.l.b16 %v1088
          %v1263 = vpack.c.b16 %v1218, %v1215
          %v1264 = vpack.c.b16 %v1219, %v1216
          %v1265 = vpack.c.b16 %v1220, %v1217
          %v1266 = vpack.c.b16 %v1224, %v1221
          %v1267 = vpack.c.b16 %v1225, %v1222
          %v1268 = vpack.c.b16 %v1226, %v1223
          %v1269 = vpack.c.b16 %v1230, %v1227
          %v1270 = vpack.c.b16 %v1231, %v1228
          %v1271 = vpack.c.b16 %v1232, %v1229
          %v1272 = vpack.c.b16 %v1236, %v1233
          %v1273 = vpack.c.b16 %v1237, %v1234
          %v1274 = vpack.c.b16 %v1238, %v1235
          %v1275 = vpack.c.b16 %v1242, %v1239
          %v1276 = vpack.c.b16 %v1243, %v1240
          %v1277 = vpack.c.b16 %v1244, %v1241
          %v1278 = vpack.c.b16 %v1248, %v1245
          %v1279 = vpack.c.b16 %v1249, %v1246
          %v1280 = vpack.c.b16 %v1250, %v1247
          %v1281 = vpack.c.b16 %v1254, %v1251
          %v1282 = vpack.c.b16 %v1255, %v1252
          %v1283 = vpack.c.b16 %v1256, %v1253
          %v1284 = vpack.c.b16 %v1260, %v1257
          %v1285 = vpack.c.b16 %v1261, %v1258
          %v1286 = vpack.c.b16 %v1262, %v1259
          %1311 = vmatprep.subr.bf16.mxu0 %v1264
          %1312 = vmatpush1.bf16.msra.mxu0 %v1263
          %1313 = vmatprep.subr.bf16.mxu0 %v1267
          %1314 = vmatpush1.bf16.msra.mxu0 %v1266
          %1315 = vmatprep.subr.bf16.mxu0 %v1270
          %1316 = vmatpush1.bf16.msra.mxu0 %v1269
          %1317 = vmatprep.subr.bf16.mxu0 %v1273
          %1318 = vmatpush1.bf16.msra.mxu0 %v1272
          %1319 = vmatprep.subr.bf16.mxu0 %v1276
          %1320 = vmatpush1.bf16.msra.mxu0 %v1275
          %1321 = vmatprep.subr.bf16.mxu0 %v1279
          %1322 = vmatpush1.bf16.msra.mxu0 %v1278
          %1323 = vmatprep.subr.bf16.mxu0 %v1282
          %1324 = vmatpush1.bf16.msra.mxu0 %v1281
          %1325 = vmatprep.subr.bf16.mxu0 %v1285
          %1326 = vmatpush1.bf16.msra.mxu0 %v1284
          %1327 = vmatprep.subr.bf16.mxu0 0
          %1328 = vmatpush1.bf16.msra.mxu0 0
          %1329 = vmatprep.subr.bf16.mxu0 0
          %1330 = vmatpush1.bf16.msra.mxu0 0
          %1331 = vmatprep.subr.bf16.mxu0 0
          %1332 = vmatpush1.bf16.msra.mxu0 0
          %1333 = vmatprep.subr.bf16.mxu0 0
          %1334 = vmatpush1.bf16.msra.mxu0 0
          %1335 = vmatprep.subr.bf16.mxu0 0
          %1336 = vmatpush1.bf16.msra.mxu0 0
          %1337 = vmatprep.subr.bf16.mxu0 0
          %1338 = vmatpush1.bf16.msra.mxu0 0
          %1339 = vmatprep.subr.bf16.mxu0 0
          %1340 = vmatpush1.bf16.msra.mxu0 0
          %1341 = vmatprep.subr.bf16.mxu0 0
          %1342 = vmatpush1.bf16.msra.mxu0 0
          %1343 = vmatprep.mubr.bf16.mxu0 0
          %1344 = vmatmul.mubr.bf16.gmra.mrb[0].mxu0 %v1175
          %v1345 = vpop.f32.mrb[0].mxu0
          %v1346 = vadd.f32 0.0, %v1345
          %v1347 = vpop.f32.mrb[0].mxu0
          %v1348 = vadd.f32 0.0, %v1347
          %v1349 = vpop.f32.mrb[0].mxu0
          %v1350 = vadd.f32 0.0, %v1349
          %v1351 = vpop.f32.mrb[0].mxu0
          %v1352 = vadd.f32 0.0, %v1351
          %1353 = vmatprep.mubr.bf16.mxu0 0
          %1354 = vmatmul.mubr.bf16.gmra.mrb[0].mxu0 %v1176
          %v1355 = vpop.f32.mrb[0].mxu0
          %v1356 = vadd.f32 0.0, %v1355
          %v1357 = vpop.f32.mrb[0].mxu0
          %v1358 = vadd.f32 0.0, %v1357
          %v1359 = vpop.f32.mrb[0].mxu0
          %v1360 = vadd.f32 0.0, %v1359
          %v1361 = vpop.f32.mrb[0].mxu0
          %v1362 = vadd.f32 0.0, %v1361
          %1363 = vmatprep.mubr.bf16.mxu0 0
          %1364 = vmatmul.mubr.bf16.gmra.mrb[0].mxu0 %v1177
          %v1365 = vpop.f32.mrb[0].mxu0
          %v1366 = vadd.f32 0.0, %v1365
          %v1367 = vpop.f32.mrb[0].mxu0
          %v1368 = vadd.f32 0.0, %v1367
          %v1369 = vpop.f32.mrb[0].mxu0
          %v1370 = vadd.f32 0.0, %v1369
          %v1371 = vpop.f32.mrb[0].mxu0
          %v1372 = vadd.f32 0.0, %v1371
          %1373 = vmatprep.mubr.bf16.mxu0 0
          %1374 = vmatmul.mubr.bf16.gmra.mrb[0].mxu0 %v1178
          %v1375 = vpop.f32.mrb[0].mxu0
          %v1376 = vadd.f32 0.0, %v1375
          %v1377 = vpop.f32.mrb[0].mxu0
          %v1378 = vadd.f32 0.0, %v1377
          %v1379 = vpop.f32.mrb[0].mxu0
          %v1380 = vadd.f32 0.0, %v1379
          %v1381 = vpop.f32.mrb[0].mxu0
          %v1382 = vadd.f32 0.0, %v1381
          %1383 = vmatprep.mubr.bf16.mxu0 0
          %1384 = vmatmul.mubr.bf16.gmra.mrb[0].mxu0 %v1179
          %v1385 = vpop.f32.mrb[0].mxu0
          %v1386 = vadd.f32 0.0, %v1385
          %v1387 = vpop.f32.mrb[0].mxu0
          %v1388 = vadd.f32 0.0, %v1387
          %v1389 = vpop.f32.mrb[0].mxu0
          %v1390 = vadd.f32 0.0, %v1389
          %v1391 = vpop.f32.mrb[0].mxu0
          %v1392 = vadd.f32 0.0, %v1391
          %1393 = vmatprep.mubr.bf16.mxu0 0
          %1394 = vmatmul.mubr.bf16.gmra.mrb[0].mxu0 %v1180
          %v1395 = vpop.f32.mrb[0].mxu0
          %v1396 = vadd.f32 0.0, %v1395
          %v1397 = vpop.f32.mrb[0].mxu0
          %v1398 = vadd.f32 0.0, %v1397
          %v1399 = vpop.f32.mrb[0].mxu0
          %v1400 = vadd.f32 0.0, %v1399
          %v1401 = vpop.f32.mrb[0].mxu0
          %v1402 = vadd.f32 0.0, %v1401
          %1403 = vmatprep.mubr.bf16.mxu0 0
          %1404 = vmatmul.mubr.bf16.gmra.mrb[0].mxu0 %v1181
          %v1405 = vpop.f32.mrb[0].mxu0
          %v1406 = vadd.f32 0.0, %v1405
          %v1407 = vpop.f32.mrb[0].mxu0
          %v1408 = vadd.f32 0.0, %v1407
          %v1409 = vpop.f32.mrb[0].mxu0
          %v1410 = vadd.f32 0.0, %v1409
          %v1411 = vpop.f32.mrb[0].mxu0
          %v1412 = vadd.f32 0.0, %v1411
          %1413 = vmatprep.mubr.bf16.mxu0 0
          %1414 = vmatmul.mubr.bf16.gmra.mrb[0].mxu0 %v1182
          %v1415 = vpop.f32.mrb[0].mxu0
          %v1416 = vadd.f32 0.0, %v1415
          %v1417 = vpop.f32.mrb[0].mxu0
          %v1418 = vadd.f32 0.0, %v1417
          %v1419 = vpop.f32.mrb[0].mxu0
          %v1420 = vadd.f32 0.0, %v1419
          %v1421 = vpop.f32.mrb[0].mxu0
          %v1422 = vadd.f32 0.0, %v1421
          %1423 = vdwg.mxu0
          %1424 = vmatprep.subr.bf16.mxu0 0
          %1425 = vmatpush1.bf16.msra.mxu0 %v1265
          %1426 = vmatprep.subr.bf16.mxu0 0
          %1427 = vmatpush1.bf16.msra.mxu0 %v1268
          %1428 = vmatprep.subr.bf16.mxu0 0
          %1429 = vmatpush1.bf16.msra.mxu0 %v1271
          %1430 = vmatprep.subr.bf16.mxu0 0
          %1431 = vmatpush1.bf16.msra.mxu0 %v1274
          %1432 = vmatprep.subr.bf16.mxu0 0
          %1433 = vmatpush1.bf16.msra.mxu0 %v1277
          %1434 = vmatprep.subr.bf16.mxu0 0
          %1435 = vmatpush1.bf16.msra.mxu0 %v1280
          %1436 = vmatprep.subr.bf16.mxu0 0
          %1437 = vmatpush1.bf16.msra.mxu0 %v1283
          %1438 = vmatprep.subr.bf16.mxu0 0
          %1439 = vmatpush1.bf16.msra.mxu0 %v1286
          %1440 = vmatprep.subr.bf16.mxu0 0
          %1441 = vmatpush1.bf16.msra.mxu0 0
          %1442 = vmatprep.subr.bf16.mxu0 0
          %1443 = vmatpush1.bf16.msra.mxu0 0
          %1444 = vmatprep.subr.bf16.mxu0 0
          %1445 = vmatpush1.bf16.msra.mxu0 0
          %1446 = vmatprep.subr.bf16.mxu0 0
          %1447 = vmatpush1.bf16.msra.mxu0 0
          %1448 = vmatprep.subr.bf16.mxu0 0
          %1449 = vmatpush1.bf16.msra.mxu0 0
          %1450 = vmatprep.subr.bf16.mxu0 0
          %1451 = vmatpush1.bf16.msra.mxu0 0
          %1452 = vmatprep.subr.bf16.mxu0 0
          %1453 = vmatpush1.bf16.msra.mxu0 0
          %1454 = vmatprep.subr.bf16.mxu0 0
          %1455 = vmatpush1.bf16.msra.mxu0 0
          %1456 = vmatprep.mubr.bf16.mxu0 0
          %1457 = vmatmul.mubr.bf16.gmra.mrb[0].mxu0 %v1175
          %v1458 = vpop.f32.mrb[0].mxu0
          %v1459 = vadd.f32 0.0, %v1458
          %v1460 = vpop.f32.mrb[0].mxu0
          %v1461 = vpop.f32.mrb[0].mxu0
          %v1462 = vadd.f32 0.0, %v1461
          %v1463 = vpop.f32.mrb[0].mxu0
          %1464 = vmatprep.mubr.bf16.mxu0 0
          %1465 = vmatmul.mubr.bf16.gmra.mrb[0].mxu0 %v1176
          %v1466 = vpop.f32.mrb[0].mxu0
          %v1467 = vadd.f32 0.0, %v1466
          %v1468 = vpop.f32.mrb[0].mxu0
          %v1469 = vpop.f32.mrb[0].mxu0
          %v1470 = vadd.f32 0.0, %v1469
          %v1471 = vpop.f32.mrb[0].mxu0
          %1472 = vmatprep.mubr.bf16.mxu0 0
          %1473 = vmatmul.mubr.bf16.gmra.mrb[0].mxu0 %v1177
          %v1474 = vpop.f32.mrb[0].mxu0
          %v1475 = vadd.f32 0.0, %v1474
          %v1476 = vpop.f32.mrb[0].mxu0
          %v1477 = vpop.f32.mrb[0].mxu0
          %v1478 = vadd.f32 0.0, %v1477
          %v1479 = vpop.f32.mrb[0].mxu0
          %1480 = vmatprep.mubr.bf16.mxu0 0
          %1481 = vmatmul.mubr.bf16.gmra.mrb[0].mxu0 %v1178
          %v1482 = vpop.f32.mrb[0].mxu0
          %v1483 = vadd.f32 0.0, %v1482
          %v1484 = vpop.f32.mrb[0].mxu0
          %v1485 = vpop.f32.mrb[0].mxu0
          %v1486 = vadd.f32 0.0, %v1485
          %v1487 = vpop.f32.mrb[0].mxu0
          %1488 = vmatprep.mubr.bf16.mxu0 0
          %1489 = vmatmul.mubr.bf16.gmra.mrb[0].mxu0 %v1179
          %v1490 = vpop.f32.mrb[0].mxu0
          %v1491 = vadd.f32 0.0, %v1490
          %v1492 = vpop.f32.mrb[0].mxu0
          %v1493 = vpop.f32.mrb[0].mxu0
          %v1494 = vadd.f32 0.0, %v1493
          %v1495 = vpop.f32.mrb[0].mxu0
          %1496 = vmatprep.mubr.bf16.mxu0 0
          %1497 = vmatmul.mubr.bf16.gmra.mrb[0].mxu0 %v1180
          %v1498 = vpop.f32.mrb[0].mxu0
          %v1499 = vadd.f32 0.0, %v1498
          %v1500 = vpop.f32.mrb[0].mxu0
          %v1501 = vpop.f32.mrb[0].mxu0
          %v1502 = vadd.f32 0.0, %v1501
          %v1503 = vpop.f32.mrb[0].mxu0
          %1504 = vmatprep.mubr.bf16.mxu0 0
          %1505 = vmatmul.mubr.bf16.gmra.mrb[0].mxu0 %v1181
          %v1506 = vpop.f32.mrb[0].mxu0
          %v1507 = vadd.f32 0.0, %v1506
          %v1508 = vpop.f32.mrb[0].mxu0
          %v1509 = vpop.f32.mrb[0].mxu0
          %v1510 = vadd.f32 0.0, %v1509
          %v1511 = vpop.f32.mrb[0].mxu0
          %1512 = vmatprep.mubr.bf16.mxu0 0
          %1513 = vmatmul.mubr.bf16.gmra.mrb[0].mxu0 %v1182
          %v1514 = vpop.f32.mrb[0].mxu0
          %v1515 = vadd.f32 0.0, %v1514
          %v1516 = vpop.f32.mrb[0].mxu0
          %v1517 = vpop.f32.mrb[0].mxu0
          %v1518 = vadd.f32 0.0, %v1517
          %v1519 = vpop.f32.mrb[0].mxu0
          %1520 = vdwg.mxu0
          %v1521 = vpack.c.bf16 %v1350, %v1346
          %v1522 = vpack.c.bf16 %v1352, %v1348
          %v1523 = vpack.c.bf16 %v1462, %v1459
          %v1524 = vpack.c.bf16 %v1360, %v1356
          %v1525 = vpack.c.bf16 %v1362, %v1358
          %v1526 = vpack.c.bf16 %v1470, %v1467
          %v1527 = vpack.c.bf16 %v1370, %v1366
          %v1528 = vpack.c.bf16 %v1372, %v1368
          %v1529 = vpack.c.bf16 %v1478, %v1475
          %v1530 = vpack.c.bf16 %v1380, %v1376
          %v1531 = vpack.c.bf16 %v1382, %v1378
          %v1532 = vpack.c.bf16 %v1486, %v1483
          %v1533 = vpack.c.bf16 %v1390, %v1386
          %v1534 = vpack.c.bf16 %v1392, %v1388
          %v1535 = vpack.c.bf16 %v1494, %v1491
          %v1536 = vpack.c.bf16 %v1400, %v1396
          %v1537 = vpack.c.bf16 %v1402, %v1398
          %v1538 = vpack.c.bf16 %v1502, %v1499
          %v1539 = vpack.c.bf16 %v1410, %v1406
          %v1540 = vpack.c.bf16 %v1412, %v1408
          %v1541 = vpack.c.bf16 %v1510, %v1507
          %v1542 = vpack.c.bf16 %v1420, %v1416
          %v1543 = vpack.c.bf16 %v1422, %v1418
          %v1544 = vpack.c.bf16 %v1518, %v1515
          %v1569 = vunpack.c.l.b16 %v1521
          %v1570 = vunpack.c.l.b16 %v1522
          %v1571 = vunpack.c.l.b16 %v1523
          %v1572 = vunpack.c.h.b16 %v1521
          %v1573 = vunpack.c.h.b16 %v1522
          %v1574 = vunpack.c.h.b16 %v1523
          %v1575 = vunpack.c.l.b16 %v1524
          %v1576 = vunpack.c.l.b16 %v1525
          %v1577 = vunpack.c.l.b16 %v1526
          %v1578 = vunpack.c.h.b16 %v1524
          %v1579 = vunpack.c.h.b16 %v1525
          %v1580 = vunpack.c.h.b16 %v1526
          %v1581 = vunpack.c.l.b16 %v1527
          %v1582 = vunpack.c.l.b16 %v1528
          %v1583 = vunpack.c.l.b16 %v1529
          %v1584 = vunpack.c.h.b16 %v1527
          %v1585 = vunpack.c.h.b16 %v1528
          %v1586 = vunpack.c.h.b16 %v1529
          %v1587 = vunpack.c.l.b16 %v1530
          %v1588 = vunpack.c.l.b16 %v1531
          %v1589 = vunpack.c.l.b16 %v1532
          %v1590 = vunpack.c.h.b16 %v1530
          %v1591 = vunpack.c.h.b16 %v1531
          %v1592 = vunpack.c.h.b16 %v1532
          %v1593 = vunpack.c.l.b16 %v1533
          %v1594 = vunpack.c.l.b16 %v1534
          %v1595 = vunpack.c.l.b16 %v1535
          %v1596 = vunpack.c.h.b16 %v1533
          %v1597 = vunpack.c.h.b16 %v1534
          %v1598 = vunpack.c.h.b16 %v1535
          %v1599 = vunpack.c.l.b16 %v1536
          %v1600 = vunpack.c.l.b16 %v1537
          %v1601 = vunpack.c.l.b16 %v1538
          %v1602 = vunpack.c.h.b16 %v1536
          %v1603 = vunpack.c.h.b16 %v1537
          %v1604 = vunpack.c.h.b16 %v1538
          %v1605 = vunpack.c.l.b16 %v1539
          %v1606 = vunpack.c.l.b16 %v1540
          %v1607 = vunpack.c.l.b16 %v1541
          %v1608 = vunpack.c.h.b16 %v1539
          %v1609 = vunpack.c.h.b16 %v1540
          %v1610 = vunpack.c.h.b16 %v1541
          %v1611 = vunpack.c.l.b16 %v1542
          %v1612 = vunpack.c.l.b16 %v1543
          %v1613 = vunpack.c.l.b16 %v1544
          %v1614 = vunpack.c.h.b16 %v1542
          %v1615 = vunpack.c.h.b16 %v1543
          %v1616 = vunpack.c.h.b16 %v1544
          %v1617 = vpack.c.b16 %v1570, %v1569
          %v1618 = vpack.c.b16 %v1571, %v1571
          %v1619 = vpack.c.b16 %v1573, %v1572
          %v1620 = vpack.c.b16 %v1574, %v1574
          %v1621 = vpack.c.b16 %v1576, %v1575
          %v1622 = vpack.c.b16 %v1577, %v1577
          %v1623 = vpack.c.b16 %v1579, %v1578
          %v1624 = vpack.c.b16 %v1580, %v1580
          %v1625 = vpack.c.b16 %v1582, %v1581
          %v1626 = vpack.c.b16 %v1583, %v1583
          %v1627 = vpack.c.b16 %v1585, %v1584
          %v1628 = vpack.c.b16 %v1586, %v1586
          %v1629 = vpack.c.b16 %v1588, %v1587
          %v1630 = vpack.c.b16 %v1589, %v1589
          %v1631 = vpack.c.b16 %v1591, %v1590
          %v1632 = vpack.c.b16 %v1592, %v1592
          %v1633 = vpack.c.b16 %v1594, %v1593
          %v1634 = vpack.c.b16 %v1595, %v1595
          %v1635 = vpack.c.b16 %v1597, %v1596
          %v1636 = vpack.c.b16 %v1598, %v1598
          %v1637 = vpack.c.b16 %v1600, %v1599
          %v1638 = vpack.c.b16 %v1601, %v1601
          %v1639 = vpack.c.b16 %v1603, %v1602
          %v1640 = vpack.c.b16 %v1604, %v1604
          %v1641 = vpack.c.b16 %v1606, %v1605
          %v1642 = vpack.c.b16 %v1607, %v1607
          %v1643 = vpack.c.b16 %v1609, %v1608
          %v1644 = vpack.c.b16 %v1610, %v1610
          %v1645 = vpack.c.b16 %v1612, %v1611
          %v1646 = vpack.c.b16 %v1613, %v1613
          %v1647 = vpack.c.b16 %v1615, %v1614
          %v1648 = vpack.c.b16 %v1616, %v1616
          %v1650 = vsel %vm540, %v666, 0
          %v1653 = vsel %vm565, %v1617, 0
          %1655 = vmatprep.subr.bf16.mxu0 0
          %1656 = vmatpush1.bf16.msra.mxu0 %v1653
          %1657 = vmatprep.subr.bf16.mxu0 0
          %1658 = vmatpush1.bf16.msra.mxu0 0
          %1659 = vmatprep.subr.bf16.mxu0 0
          %1660 = vmatpush1.bf16.msra.mxu0 0
          %1661 = vmatprep.subr.bf16.mxu0 0
          %1662 = vmatpush1.bf16.msra.mxu0 0
          %1663 = vmatprep.subr.bf16.mxu0 0
          %1664 = vmatpush1.bf16.msra.mxu0 0
          %1665 = vmatprep.subr.bf16.mxu0 0
          %1666 = vmatpush1.bf16.msra.mxu0 0
          %1667 = vmatprep.subr.bf16.mxu0 0
          %1668 = vmatpush1.bf16.msra.mxu0 0
          %1669 = vmatprep.subr.bf16.mxu0 0
          %1670 = vmatpush1.bf16.msra.mxu0 0
          %1671 = vmatprep.subr.bf16.mxu0 0
          %1672 = vmatpush1.bf16.msra.mxu0 0
          %1673 = vmatprep.subr.bf16.mxu0 0
          %1674 = vmatpush1.bf16.msra.mxu0 0
          %1675 = vmatprep.subr.bf16.mxu0 0
          %1676 = vmatpush1.bf16.msra.mxu0 0
          %1677 = vmatprep.subr.bf16.mxu0 0
          %1678 = vmatpush1.bf16.msra.mxu0 0
          %1679 = vmatprep.subr.bf16.mxu0 0
          %1680 = vmatpush1.bf16.msra.mxu0 0
          %1681 = vmatprep.subr.bf16.mxu0 0
          %1682 = vmatpush1.bf16.msra.mxu0 0
          %1683 = vmatprep.subr.bf16.mxu0 0
          %1684 = vmatpush1.bf16.msra.mxu0 0
          %1685 = vmatprep.subr.bf16.mxu0 0
          %1686 = vmatpush1.bf16.msra.mxu0 0
          %1687 = vmatprep.mubr.bf16.mxu0 0
          %1688 = vmatmul.mubr.bf16.gmra.mrb[0].mxu0 %v1650
          %v1689 = vpop.f32.mrb[0].mxu0
          %v1690 = vadd.f32 0.0, %v1689
          %v1691 = vpop.f32.mrb[0].mxu0
          %v1692 = vpop.f32.mrb[0].mxu0
          %v1693 = vpop.f32.mrb[0].mxu0
          %1694 = vdwg.mxu0
          %v1696 = vsel %vm540, %v669, 0
          %v1699 = vsel %vm565, %v1619, 0
          %1701 = vmatprep.subr.bf16.mxu0 0
          %1702 = vmatpush1.bf16.msra.mxu0 %v1699
          %1703 = vmatprep.subr.bf16.mxu0 0
          %1704 = vmatpush1.bf16.msra.mxu0 0
          %1705 = vmatprep.subr.bf16.mxu0 0
          %1706 = vmatpush1.bf16.msra.mxu0 0
          %1707 = vmatprep.subr.bf16.mxu0 0
          %1708 = vmatpush1.bf16.msra.mxu0 0
          %1709 = vmatprep.subr.bf16.mxu0 0
          %1710 = vmatpush1.bf16.msra.mxu0 0
          %1711 = vmatprep.subr.bf16.mxu0 0
          %1712 = vmatpush1.bf16.msra.mxu0 0
          %1713 = vmatprep.subr.bf16.mxu0 0
          %1714 = vmatpush1.bf16.msra.mxu0 0
          %1715 = vmatprep.subr.bf16.mxu0 0
          %1716 = vmatpush1.bf16.msra.mxu0 0
          %1717 = vmatprep.subr.bf16.mxu0 0
          %1718 = vmatpush1.bf16.msra.mxu0 0
          %1719 = vmatprep.subr.bf16.mxu0 0
          %1720 = vmatpush1.bf16.msra.mxu0 0
          %1721 = vmatprep.subr.bf16.mxu0 0
          %1722 = vmatpush1.bf16.msra.mxu0 0
          %1723 = vmatprep.subr.bf16.mxu0 0
          %1724 = vmatpush1.bf16.msra.mxu0 0
          %1725 = vmatprep.subr.bf16.mxu0 0
          %1726 = vmatpush1.bf16.msra.mxu0 0
          %1727 = vmatprep.subr.bf16.mxu0 0
          %1728 = vmatpush1.bf16.msra.mxu0 0
          %1729 = vmatprep.subr.bf16.mxu0 0
          %1730 = vmatpush1.bf16.msra.mxu0 0
          %1731 = vmatprep.subr.bf16.mxu0 0
          %1732 = vmatpush1.bf16.msra.mxu0 0
          %1733 = vmatprep.mubr.bf16.mxu0 0
          %1734 = vmatmul.mubr.bf16.gmra.mrb[0].mxu0 %v1696
          %v1735 = vpop.f32.mrb[0].mxu0
          %v1736 = vadd.f32 0.0, %v1735
          %v1737 = vpop.f32.mrb[0].mxu0
          %v1738 = vpop.f32.mrb[0].mxu0
          %v1739 = vpop.f32.mrb[0].mxu0
          %1740 = vdwg.mxu0
          %v1742 = vsel %vm540, %v672, 0
          %v1745 = vsel %vm565, %v1621, 0
          %1747 = vmatprep.subr.bf16.mxu0 0
          %1748 = vmatpush1.bf16.msra.mxu0 %v1745
          %1749 = vmatprep.subr.bf16.mxu0 0
          %1750 = vmatpush1.bf16.msra.mxu0 0
          %1751 = vmatprep.subr.bf16.mxu0 0
          %1752 = vmatpush1.bf16.msra.mxu0 0
          %1753 = vmatprep.subr.bf16.mxu0 0
          %1754 = vmatpush1.bf16.msra.mxu0 0
          %1755 = vmatprep.subr.bf16.mxu0 0
          %1756 = vmatpush1.bf16.msra.mxu0 0
          %1757 = vmatprep.subr.bf16.mxu0 0
          %1758 = vmatpush1.bf16.msra.mxu0 0
          %1759 = vmatprep.subr.bf16.mxu0 0
          %1760 = vmatpush1.bf16.msra.mxu0 0
          %1761 = vmatprep.subr.bf16.mxu0 0
          %1762 = vmatpush1.bf16.msra.mxu0 0
          %1763 = vmatprep.subr.bf16.mxu0 0
          %1764 = vmatpush1.bf16.msra.mxu0 0
          %1765 = vmatprep.subr.bf16.mxu0 0
          %1766 = vmatpush1.bf16.msra.mxu0 0
          %1767 = vmatprep.subr.bf16.mxu0 0
          %1768 = vmatpush1.bf16.msra.mxu0 0
          %1769 = vmatprep.subr.bf16.mxu0 0
          %1770 = vmatpush1.bf16.msra.mxu0 0
          %1771 = vmatprep.subr.bf16.mxu0 0
          %1772 = vmatpush1.bf16.msra.mxu0 0
          %1773 = vmatprep.subr.bf16.mxu0 0
          %1774 = vmatpush1.bf16.msra.mxu0 0
          %1775 = vmatprep.subr.bf16.mxu0 0
          %1776 = vmatpush1.bf16.msra.mxu0 0
          %1777 = vmatprep.subr.bf16.mxu0 0
          %1778 = vmatpush1.bf16.msra.mxu0 0
          %1779 = vmatprep.mubr.bf16.mxu0 0
          %1780 = vmatmul.mubr.bf16.gmra.mrb[0].mxu0 %v1742
          %v1781 = vpop.f32.mrb[0].mxu0
          %v1782 = vadd.f32 0.0, %v1781
          %v1783 = vpop.f32.mrb[0].mxu0
          %v1784 = vpop.f32.mrb[0].mxu0
          %v1785 = vpop.f32.mrb[0].mxu0
          %1786 = vdwg.mxu0
          %v1788 = vsel %vm540, %v675, 0
          %v1791 = vsel %vm565, %v1623, 0
          %1793 = vmatprep.subr.bf16.mxu0 0
          %1794 = vmatpush1.bf16.msra.mxu0 %v1791
          %1795 = vmatprep.subr.bf16.mxu0 0
          %1796 = vmatpush1.bf16.msra.mxu0 0
          %1797 = vmatprep.subr.bf16.mxu0 0
          %1798 = vmatpush1.bf16.msra.mxu0 0
          %1799 = vmatprep.subr.bf16.mxu0 0
          %1800 = vmatpush1.bf16.msra.mxu0 0
          %1801 = vmatprep.subr.bf16.mxu0 0
          %1802 = vmatpush1.bf16.msra.mxu0 0
          %1803 = vmatprep.subr.bf16.mxu0 0
          %1804 = vmatpush1.bf16.msra.mxu0 0
          %1805 = vmatprep.subr.bf16.mxu0 0
          %1806 = vmatpush1.bf16.msra.mxu0 0
          %1807 = vmatprep.subr.bf16.mxu0 0
          %1808 = vmatpush1.bf16.msra.mxu0 0
          %1809 = vmatprep.subr.bf16.mxu0 0
          %1810 = vmatpush1.bf16.msra.mxu0 0
          %1811 = vmatprep.subr.bf16.mxu0 0
          %1812 = vmatpush1.bf16.msra.mxu0 0
          %1813 = vmatprep.subr.bf16.mxu0 0
          %1814 = vmatpush1.bf16.msra.mxu0 0
          %1815 = vmatprep.subr.bf16.mxu0 0
          %1816 = vmatpush1.bf16.msra.mxu0 0
          %1817 = vmatprep.subr.bf16.mxu0 0
          %1818 = vmatpush1.bf16.msra.mxu0 0
          %1819 = vmatprep.subr.bf16.mxu0 0
          %1820 = vmatpush1.bf16.msra.mxu0 0
          %1821 = vmatprep.subr.bf16.mxu0 0
          %1822 = vmatpush1.bf16.msra.mxu0 0
          %1823 = vmatprep.subr.bf16.mxu0 0
          %1824 = vmatpush1.bf16.msra.mxu0 0
          %1825 = vmatprep.mubr.bf16.mxu0 0
          %1826 = vmatmul.mubr.bf16.gmra.mrb[0].mxu0 %v1788
          %v1827 = vpop.f32.mrb[0].mxu0
          %v1828 = vadd.f32 0.0, %v1827
          %v1829 = vpop.f32.mrb[0].mxu0
          %v1830 = vpop.f32.mrb[0].mxu0
          %v1831 = vpop.f32.mrb[0].mxu0
          %1832 = vdwg.mxu0
          %v1834 = vsel %vm540, %v678, 0
          %v1837 = vsel %vm565, %v1625, 0
          %1839 = vmatprep.subr.bf16.mxu0 0
          %1840 = vmatpush1.bf16.msra.mxu0 %v1837
          %1841 = vmatprep.subr.bf16.mxu0 0
          %1842 = vmatpush1.bf16.msra.mxu0 0
          %1843 = vmatprep.subr.bf16.mxu0 0
          %1844 = vmatpush1.bf16.msra.mxu0 0
          %1845 = vmatprep.subr.bf16.mxu0 0
          %1846 = vmatpush1.bf16.msra.mxu0 0
          %1847 = vmatprep.subr.bf16.mxu0 0
          %1848 = vmatpush1.bf16.msra.mxu0 0
          %1849 = vmatprep.subr.bf16.mxu0 0
          %1850 = vmatpush1.bf16.msra.mxu0 0
          %1851 = vmatprep.subr.bf16.mxu0 0
          %1852 = vmatpush1.bf16.msra.mxu0 0
          %1853 = vmatprep.subr.bf16.mxu0 0
          %1854 = vmatpush1.bf16.msra.mxu0 0
          %1855 = vmatprep.subr.bf16.mxu0 0
          %1856 = vmatpush1.bf16.msra.mxu0 0
          %1857 = vmatprep.subr.bf16.mxu0 0
          %1858 = vmatpush1.bf16.msra.mxu0 0
          %1859 = vmatprep.subr.bf16.mxu0 0
          %1860 = vmatpush1.bf16.msra.mxu0 0
          %1861 = vmatprep.subr.bf16.mxu0 0
          %1862 = vmatpush1.bf16.msra.mxu0 0
          %1863 = vmatprep.subr.bf16.mxu0 0
          %1864 = vmatpush1.bf16.msra.mxu0 0
          %1865 = vmatprep.subr.bf16.mxu0 0
          %1866 = vmatpush1.bf16.msra.mxu0 0
          %1867 = vmatprep.subr.bf16.mxu0 0
          %1868 = vmatpush1.bf16.msra.mxu0 0
          %1869 = vmatprep.subr.bf16.mxu0 0
          %1870 = vmatpush1.bf16.msra.mxu0 0
          %1871 = vmatprep.mubr.bf16.mxu0 0
          %1872 = vmatmul.mubr.bf16.gmra.mrb[0].mxu0 %v1834
          %v1873 = vpop.f32.mrb[0].mxu0
          %v1874 = vadd.f32 0.0, %v1873
          %v1875 = vpop.f32.mrb[0].mxu0
          %v1876 = vpop.f32.mrb[0].mxu0
          %v1877 = vpop.f32.mrb[0].mxu0
          %1878 = vdwg.mxu0
          %v1880 = vsel %vm540, %v681, 0
          %v1883 = vsel %vm565, %v1627, 0
          %1885 = vmatprep.subr.bf16.mxu0 0
          %1886 = vmatpush1.bf16.msra.mxu0 %v1883
          %1887 = vmatprep.subr.bf16.mxu0 0
          %1888 = vmatpush1.bf16.msra.mxu0 0
          %1889 = vmatprep.subr.bf16.mxu0 0
          %1890 = vmatpush1.bf16.msra.mxu0 0
          %1891 = vmatprep.subr.bf16.mxu0 0
          %1892 = vmatpush1.bf16.msra.mxu0 0
          %1893 = vmatprep.subr.bf16.mxu0 0
          %1894 = vmatpush1.bf16.msra.mxu0 0
          %1895 = vmatprep.subr.bf16.mxu0 0
          %1896 = vmatpush1.bf16.msra.mxu0 0
          %1897 = vmatprep.subr.bf16.mxu0 0
          %1898 = vmatpush1.bf16.msra.mxu0 0
          %1899 = vmatprep.subr.bf16.mxu0 0
          %1900 = vmatpush1.bf16.msra.mxu0 0
          %1901 = vmatprep.subr.bf16.mxu0 0
          %1902 = vmatpush1.bf16.msra.mxu0 0
          %1903 = vmatprep.subr.bf16.mxu0 0
          %1904 = vmatpush1.bf16.msra.mxu0 0
          %1905 = vmatprep.subr.bf16.mxu0 0
          %1906 = vmatpush1.bf16.msra.mxu0 0
          %1907 = vmatprep.subr.bf16.mxu0 0
          %1908 = vmatpush1.bf16.msra.mxu0 0
          %1909 = vmatprep.subr.bf16.mxu0 0
          %1910 = vmatpush1.bf16.msra.mxu0 0
          %1911 = vmatprep.subr.bf16.mxu0 0
          %1912 = vmatpush1.bf16.msra.mxu0 0
          %1913 = vmatprep.subr.bf16.mxu0 0
          %1914 = vmatpush1.bf16.msra.mxu0 0
          %1915 = vmatprep.subr.bf16.mxu0 0
          %1916 = vmatpush1.bf16.msra.mxu0 0
          %1917 = vmatprep.mubr.bf16.mxu0 0
          %1918 = vmatmul.mubr.bf16.gmra.mrb[0].mxu0 %v1880
          %v1919 = vpop.f32.mrb[0].mxu0
          %v1920 = vadd.f32 0.0, %v1919
          %v1921 = vpop.f32.mrb[0].mxu0
          %v1922 = vpop.f32.mrb[0].mxu0
          %v1923 = vpop.f32.mrb[0].mxu0
          %1924 = vdwg.mxu0
          %v1926 = vsel %vm540, %v684, 0
          %v1929 = vsel %vm565, %v1629, 0
          %1931 = vmatprep.subr.bf16.mxu0 0
          %1932 = vmatpush1.bf16.msra.mxu0 %v1929
          %1933 = vmatprep.subr.bf16.mxu0 0
          %1934 = vmatpush1.bf16.msra.mxu0 0
          %1935 = vmatprep.subr.bf16.mxu0 0
          %1936 = vmatpush1.bf16.msra.mxu0 0
          %1937 = vmatprep.subr.bf16.mxu0 0
          %1938 = vmatpush1.bf16.msra.mxu0 0
          %1939 = vmatprep.subr.bf16.mxu0 0
          %1940 = vmatpush1.bf16.msra.mxu0 0
          %1941 = vmatprep.subr.bf16.mxu0 0
          %1942 = vmatpush1.bf16.msra.mxu0 0
          %1943 = vmatprep.subr.bf16.mxu0 0
          %1944 = vmatpush1.bf16.msra.mxu0 0
          %1945 = vmatprep.subr.bf16.mxu0 0
          %1946 = vmatpush1.bf16.msra.mxu0 0
          %1947 = vmatprep.subr.bf16.mxu0 0
          %1948 = vmatpush1.bf16.msra.mxu0 0
          %1949 = vmatprep.subr.bf16.mxu0 0
          %1950 = vmatpush1.bf16.msra.mxu0 0
          %1951 = vmatprep.subr.bf16.mxu0 0
          %1952 = vmatpush1.bf16.msra.mxu0 0
          %1953 = vmatprep.subr.bf16.mxu0 0
          %1954 = vmatpush1.bf16.msra.mxu0 0
          %1955 = vmatprep.subr.bf16.mxu0 0
          %1956 = vmatpush1.bf16.msra.mxu0 0
          %1957 = vmatprep.subr.bf16.mxu0 0
          %1958 = vmatpush1.bf16.msra.mxu0 0
          %1959 = vmatprep.subr.bf16.mxu0 0
          %1960 = vmatpush1.bf16.msra.mxu0 0
          %1961 = vmatprep.subr.bf16.mxu0 0
          %1962 = vmatpush1.bf16.msra.mxu0 0
          %1963 = vmatprep.mubr.bf16.mxu0 0
          %1964 = vmatmul.mubr.bf16.gmra.mrb[0].mxu0 %v1926
          %v1965 = vpop.f32.mrb[0].mxu0
          %v1966 = vadd.f32 0.0, %v1965
          %v1967 = vpop.f32.mrb[0].mxu0
          %v1968 = vpop.f32.mrb[0].mxu0
          %v1969 = vpop.f32.mrb[0].mxu0
          %1970 = vdwg.mxu0
          %v1972 = vsel %vm540, %v687, 0
          %v1975 = vsel %vm565, %v1631, 0
          %1977 = vmatprep.subr.bf16.mxu0 0
          %1978 = vmatpush1.bf16.msra.mxu0 %v1975
          %1979 = vmatprep.subr.bf16.mxu0 0
          %1980 = vmatpush1.bf16.msra.mxu0 0
          %1981 = vmatprep.subr.bf16.mxu0 0
          %1982 = vmatpush1.bf16.msra.mxu0 0
          %1983 = vmatprep.subr.bf16.mxu0 0
          %1984 = vmatpush1.bf16.msra.mxu0 0
          %1985 = vmatprep.subr.bf16.mxu0 0
          %1986 = vmatpush1.bf16.msra.mxu0 0
          %1987 = vmatprep.subr.bf16.mxu0 0
          %1988 = vmatpush1.bf16.msra.mxu0 0
          %1989 = vmatprep.subr.bf16.mxu0 0
          %1990 = vmatpush1.bf16.msra.mxu0 0
          %1991 = vmatprep.subr.bf16.mxu0 0
          %1992 = vmatpush1.bf16.msra.mxu0 0
          %1993 = vmatprep.subr.bf16.mxu0 0
          %1994 = vmatpush1.bf16.msra.mxu0 0
          %1995 = vmatprep.subr.bf16.mxu0 0
          %1996 = vmatpush1.bf16.msra.mxu0 0
          %1997 = vmatprep.subr.bf16.mxu0 0
          %1998 = vmatpush1.bf16.msra.mxu0 0
          %1999 = vmatprep.subr.bf16.mxu0 0
          %2000 = vmatpush1.bf16.msra.mxu0 0
          %2001 = vmatprep.subr.bf16.mxu0 0
          %2002 = vmatpush1.bf16.msra.mxu0 0
          %2003 = vmatprep.subr.bf16.mxu0 0
          %2004 = vmatpush1.bf16.msra.mxu0 0
          %2005 = vmatprep.subr.bf16.mxu0 0
          %2006 = vmatpush1.bf16.msra.mxu0 0
          %2007 = vmatprep.subr.bf16.mxu0 0
          %2008 = vmatpush1.bf16.msra.mxu0 0
          %2009 = vmatprep.mubr.bf16.mxu0 0
          %2010 = vmatmul.mubr.bf16.gmra.mrb[0].mxu0 %v1972
          %v2011 = vpop.f32.mrb[0].mxu0
          %v2012 = vadd.f32 0.0, %v2011
          %v2013 = vpop.f32.mrb[0].mxu0
          %v2014 = vpop.f32.mrb[0].mxu0
          %v2015 = vpop.f32.mrb[0].mxu0
          %2016 = vdwg.mxu0
          %v2018 = vsel %vm540, %v690, 0
          %v2021 = vsel %vm565, %v1633, 0
          %2023 = vmatprep.subr.bf16.mxu0 0
          %2024 = vmatpush1.bf16.msra.mxu0 %v2021
          %2025 = vmatprep.subr.bf16.mxu0 0
          %2026 = vmatpush1.bf16.msra.mxu0 0
          %2027 = vmatprep.subr.bf16.mxu0 0
          %2028 = vmatpush1.bf16.msra.mxu0 0
          %2029 = vmatprep.subr.bf16.mxu0 0
          %2030 = vmatpush1.bf16.msra.mxu0 0
          %2031 = vmatprep.subr.bf16.mxu0 0
          %2032 = vmatpush1.bf16.msra.mxu0 0
          %2033 = vmatprep.subr.bf16.mxu0 0
          %2034 = vmatpush1.bf16.msra.mxu0 0
          %2035 = vmatprep.subr.bf16.mxu0 0
          %2036 = vmatpush1.bf16.msra.mxu0 0
          %2037 = vmatprep.subr.bf16.mxu0 0
          %2038 = vmatpush1.bf16.msra.mxu0 0
          %2039 = vmatprep.subr.bf16.mxu0 0
          %2040 = vmatpush1.bf16.msra.mxu0 0
          %2041 = vmatprep.subr.bf16.mxu0 0
          %2042 = vmatpush1.bf16.msra.mxu0 0
          %2043 = vmatprep.subr.bf16.mxu0 0
          %2044 = vmatpush1.bf16.msra.mxu0 0
          %2045 = vmatprep.subr.bf16.mxu0 0
          %2046 = vmatpush1.bf16.msra.mxu0 0
          %2047 = vmatprep.subr.bf16.mxu0 0
          %2048 = vmatpush1.bf16.msra.mxu0 0
          %2049 = vmatprep.subr.bf16.mxu0 0
          %2050 = vmatpush1.bf16.msra.mxu0 0
          %2051 = vmatprep.subr.bf16.mxu0 0
          %2052 = vmatpush1.bf16.msra.mxu0 0
          %2053 = vmatprep.subr.bf16.mxu0 0
          %2054 = vmatpush1.bf16.msra.mxu0 0
          %2055 = vmatprep.mubr.bf16.mxu0 0
          %2056 = vmatmul.mubr.bf16.gmra.mrb[0].mxu0 %v2018
          %v2057 = vpop.f32.mrb[0].mxu0
          %v2058 = vadd.f32 0.0, %v2057
          %v2059 = vpop.f32.mrb[0].mxu0
          %v2060 = vpop.f32.mrb[0].mxu0
          %v2061 = vpop.f32.mrb[0].mxu0
          %2062 = vdwg.mxu0
          %v2064 = vsel %vm540, %v693, 0
          %v2067 = vsel %vm565, %v1635, 0
          %2069 = vmatprep.subr.bf16.mxu0 0
          %2070 = vmatpush1.bf16.msra.mxu0 %v2067
          %2071 = vmatprep.subr.bf16.mxu0 0
          %2072 = vmatpush1.bf16.msra.mxu0 0
          %2073 = vmatprep.subr.bf16.mxu0 0
          %2074 = vmatpush1.bf16.msra.mxu0 0
          %2075 = vmatprep.subr.bf16.mxu0 0
          %2076 = vmatpush1.bf16.msra.mxu0 0
          %2077 = vmatprep.subr.bf16.mxu0 0
          %2078 = vmatpush1.bf16.msra.mxu0 0
          %2079 = vmatprep.subr.bf16.mxu0 0
          %2080 = vmatpush1.bf16.msra.mxu0 0
          %2081 = vmatprep.subr.bf16.mxu0 0
          %2082 = vmatpush1.bf16.msra.mxu0 0
          %2083 = vmatprep.subr.bf16.mxu0 0
          %2084 = vmatpush1.bf16.msra.mxu0 0
          %2085 = vmatprep.subr.bf16.mxu0 0
          %2086 = vmatpush1.bf16.msra.mxu0 0
          %2087 = vmatprep.subr.bf16.mxu0 0
          %2088 = vmatpush1.bf16.msra.mxu0 0
          %2089 = vmatprep.subr.bf16.mxu0 0
          %2090 = vmatpush1.bf16.msra.mxu0 0
          %2091 = vmatprep.subr.bf16.mxu0 0
          %2092 = vmatpush1.bf16.msra.mxu0 0
          %2093 = vmatprep.subr.bf16.mxu0 0
          %2094 = vmatpush1.bf16.msra.mxu0 0
          %2095 = vmatprep.subr.bf16.mxu0 0
          %2096 = vmatpush1.bf16.msra.mxu0 0
          %2097 = vmatprep.subr.bf16.mxu0 0
          %2098 = vmatpush1.bf16.msra.mxu0 0
          %2099 = vmatprep.subr.bf16.mxu0 0
          %2100 = vmatpush1.bf16.msra.mxu0 0
          %2101 = vmatprep.mubr.bf16.mxu0 0
          %2102 = vmatmul.mubr.bf16.gmra.mrb[0].mxu0 %v2064
          %v2103 = vpop.f32.mrb[0].mxu0
          %v2104 = vadd.f32 0.0, %v2103
          %v2105 = vpop.f32.mrb[0].mxu0
          %v2106 = vpop.f32.mrb[0].mxu0
          %v2107 = vpop.f32.mrb[0].mxu0
          %2108 = vdwg.mxu0
          %v2110 = vsel %vm540, %v696, 0
          %v2113 = vsel %vm565, %v1637, 0
          %2115 = vmatprep.subr.bf16.mxu0 0
          %2116 = vmatpush1.bf16.msra.mxu0 %v2113
          %2117 = vmatprep.subr.bf16.mxu0 0
          %2118 = vmatpush1.bf16.msra.mxu0 0
          %2119 = vmatprep.subr.bf16.mxu0 0
          %2120 = vmatpush1.bf16.msra.mxu0 0
          %2121 = vmatprep.subr.bf16.mxu0 0
          %2122 = vmatpush1.bf16.msra.mxu0 0
          %2123 = vmatprep.subr.bf16.mxu0 0
          %2124 = vmatpush1.bf16.msra.mxu0 0
          %2125 = vmatprep.subr.bf16.mxu0 0
          %2126 = vmatpush1.bf16.msra.mxu0 0
          %2127 = vmatprep.subr.bf16.mxu0 0
          %2128 = vmatpush1.bf16.msra.mxu0 0
          %2129 = vmatprep.subr.bf16.mxu0 0
          %2130 = vmatpush1.bf16.msra.mxu0 0
          %2131 = vmatprep.subr.bf16.mxu0 0
          %2132 = vmatpush1.bf16.msra.mxu0 0
          %2133 = vmatprep.subr.bf16.mxu0 0
          %2134 = vmatpush1.bf16.msra.mxu0 0
          %2135 = vmatprep.subr.bf16.mxu0 0
          %2136 = vmatpush1.bf16.msra.mxu0 0
          %2137 = vmatprep.subr.bf16.mxu0 0
          %2138 = vmatpush1.bf16.msra.mxu0 0
          %2139 = vmatprep.subr.bf16.mxu0 0
          %2140 = vmatpush1.bf16.msra.mxu0 0
          %2141 = vmatprep.subr.bf16.mxu0 0
          %2142 = vmatpush1.bf16.msra.mxu0 0
          %2143 = vmatprep.subr.bf16.mxu0 0
          %2144 = vmatpush1.bf16.msra.mxu0 0
          %2145 = vmatprep.subr.bf16.mxu0 0
          %2146 = vmatpush1.bf16.msra.mxu0 0
          %2147 = vmatprep.mubr.bf16.mxu0 0
          %2148 = vmatmul.mubr.bf16.gmra.mrb[0].mxu0 %v2110
          %v2149 = vpop.f32.mrb[0].mxu0
          %v2150 = vadd.f32 0.0, %v2149
          %v2151 = vpop.f32.mrb[0].mxu0
          %v2152 = vpop.f32.mrb[0].mxu0
          %v2153 = vpop.f32.mrb[0].mxu0
          %2154 = vdwg.mxu0
          %v2156 = vsel %vm540, %v699, 0
          %v2159 = vsel %vm565, %v1639, 0
          %2161 = vmatprep.subr.bf16.mxu0 0
          %2162 = vmatpush1.bf16.msra.mxu0 %v2159
          %2163 = vmatprep.subr.bf16.mxu0 0
          %2164 = vmatpush1.bf16.msra.mxu0 0
          %2165 = vmatprep.subr.bf16.mxu0 0
          %2166 = vmatpush1.bf16.msra.mxu0 0
          %2167 = vmatprep.subr.bf16.mxu0 0
          %2168 = vmatpush1.bf16.msra.mxu0 0
          %2169 = vmatprep.subr.bf16.mxu0 0
          %2170 = vmatpush1.bf16.msra.mxu0 0
          %2171 = vmatprep.subr.bf16.mxu0 0
          %2172 = vmatpush1.bf16.msra.mxu0 0
          %2173 = vmatprep.subr.bf16.mxu0 0
          %2174 = vmatpush1.bf16.msra.mxu0 0
          %2175 = vmatprep.subr.bf16.mxu0 0
          %2176 = vmatpush1.bf16.msra.mxu0 0
          %2177 = vmatprep.subr.bf16.mxu0 0
          %2178 = vmatpush1.bf16.msra.mxu0 0
          %2179 = vmatprep.subr.bf16.mxu0 0
          %2180 = vmatpush1.bf16.msra.mxu0 0
          %2181 = vmatprep.subr.bf16.mxu0 0
          %2182 = vmatpush1.bf16.msra.mxu0 0
          %2183 = vmatprep.subr.bf16.mxu0 0
          %2184 = vmatpush1.bf16.msra.mxu0 0
          %2185 = vmatprep.subr.bf16.mxu0 0
          %2186 = vmatpush1.bf16.msra.mxu0 0
          %2187 = vmatprep.subr.bf16.mxu0 0
          %2188 = vmatpush1.bf16.msra.mxu0 0
          %2189 = vmatprep.subr.bf16.mxu0 0
          %2190 = vmatpush1.bf16.msra.mxu0 0
          %2191 = vmatprep.subr.bf16.mxu0 0
          %2192 = vmatpush1.bf16.msra.mxu0 0
          %2193 = vmatprep.mubr.bf16.mxu0 0
          %2194 = vmatmul.mubr.bf16.gmra.mrb[0].mxu0 %v2156
          %v2195 = vpop.f32.mrb[0].mxu0
          %v2196 = vadd.f32 0.0, %v2195
          %v2197 = vpop.f32.mrb[0].mxu0
          %v2198 = vpop.f32.mrb[0].mxu0
          %v2199 = vpop.f32.mrb[0].mxu0
          %2200 = vdwg.mxu0
          %v2202 = vsel %vm540, %v702, 0
          %v2205 = vsel %vm565, %v1641, 0
          %2207 = vmatprep.subr.bf16.mxu0 0
          %2208 = vmatpush1.bf16.msra.mxu0 %v2205
          %2209 = vmatprep.subr.bf16.mxu0 0
          %2210 = vmatpush1.bf16.msra.mxu0 0
          %2211 = vmatprep.subr.bf16.mxu0 0
          %2212 = vmatpush1.bf16.msra.mxu0 0
          %2213 = vmatprep.subr.bf16.mxu0 0
          %2214 = vmatpush1.bf16.msra.mxu0 0
          %2215 = vmatprep.subr.bf16.mxu0 0
          %2216 = vmatpush1.bf16.msra.mxu0 0
          %2217 = vmatprep.subr.bf16.mxu0 0
          %2218 = vmatpush1.bf16.msra.mxu0 0
          %2219 = vmatprep.subr.bf16.mxu0 0
          %2220 = vmatpush1.bf16.msra.mxu0 0
          %2221 = vmatprep.subr.bf16.mxu0 0
          %2222 = vmatpush1.bf16.msra.mxu0 0
          %2223 = vmatprep.subr.bf16.mxu0 0
          %2224 = vmatpush1.bf16.msra.mxu0 0
          %2225 = vmatprep.subr.bf16.mxu0 0
          %2226 = vmatpush1.bf16.msra.mxu0 0
          %2227 = vmatprep.subr.bf16.mxu0 0
          %2228 = vmatpush1.bf16.msra.mxu0 0
          %2229 = vmatprep.subr.bf16.mxu0 0
          %2230 = vmatpush1.bf16.msra.mxu0 0
          %2231 = vmatprep.subr.bf16.mxu0 0
          %2232 = vmatpush1.bf16.msra.mxu0 0
          %2233 = vmatprep.subr.bf16.mxu0 0
          %2234 = vmatpush1.bf16.msra.mxu0 0
          %2235 = vmatprep.subr.bf16.mxu0 0
          %2236 = vmatpush1.bf16.msra.mxu0 0
          %2237 = vmatprep.subr.bf16.mxu0 0
          %2238 = vmatpush1.bf16.msra.mxu0 0
          %2239 = vmatprep.mubr.bf16.mxu0 0
          %2240 = vmatmul.mubr.bf16.gmra.mrb[0].mxu0 %v2202
          %v2241 = vpop.f32.mrb[0].mxu0
          %v2242 = vadd.f32 0.0, %v2241
          %v2243 = vpop.f32.mrb[0].mxu0
          %v2244 = vpop.f32.mrb[0].mxu0
          %v2245 = vpop.f32.mrb[0].mxu0
          %2246 = vdwg.mxu0
          %v2248 = vsel %vm540, %v705, 0
          %v2251 = vsel %vm565, %v1643, 0
          %2253 = vmatprep.subr.bf16.mxu0 0
          %2254 = vmatpush1.bf16.msra.mxu0 %v2251
          %2255 = vmatprep.subr.bf16.mxu0 0
          %2256 = vmatpush1.bf16.msra.mxu0 0
          %2257 = vmatprep.subr.bf16.mxu0 0
          %2258 = vmatpush1.bf16.msra.mxu0 0
          %2259 = vmatprep.subr.bf16.mxu0 0
          %2260 = vmatpush1.bf16.msra.mxu0 0
          %2261 = vmatprep.subr.bf16.mxu0 0
          %2262 = vmatpush1.bf16.msra.mxu0 0
          %2263 = vmatprep.subr.bf16.mxu0 0
          %2264 = vmatpush1.bf16.msra.mxu0 0
          %2265 = vmatprep.subr.bf16.mxu0 0
          %2266 = vmatpush1.bf16.msra.mxu0 0
          %2267 = vmatprep.subr.bf16.mxu0 0
          %2268 = vmatpush1.bf16.msra.mxu0 0
          %2269 = vmatprep.subr.bf16.mxu0 0
          %2270 = vmatpush1.bf16.msra.mxu0 0
          %2271 = vmatprep.subr.bf16.mxu0 0
          %2272 = vmatpush1.bf16.msra.mxu0 0
          %2273 = vmatprep.subr.bf16.mxu0 0
          %2274 = vmatpush1.bf16.msra.mxu0 0
          %2275 = vmatprep.subr.bf16.mxu0 0
          %2276 = vmatpush1.bf16.msra.mxu0 0
          %2277 = vmatprep.subr.bf16.mxu0 0
          %2278 = vmatpush1.bf16.msra.mxu0 0
          %2279 = vmatprep.subr.bf16.mxu0 0
          %2280 = vmatpush1.bf16.msra.mxu0 0
          %2281 = vmatprep.subr.bf16.mxu0 0
          %2282 = vmatpush1.bf16.msra.mxu0 0
          %2283 = vmatprep.subr.bf16.mxu0 0
          %2284 = vmatpush1.bf16.msra.mxu0 0
          %2285 = vmatprep.mubr.bf16.mxu0 0
          %2286 = vmatmul.mubr.bf16.gmra.mrb[0].mxu0 %v2248
          %v2287 = vpop.f32.mrb[0].mxu0
          %v2288 = vadd.f32 0.0, %v2287
          %v2289 = vpop.f32.mrb[0].mxu0
          %v2290 = vpop.f32.mrb[0].mxu0
          %v2291 = vpop.f32.mrb[0].mxu0
          %2292 = vdwg.mxu0
          %v2294 = vsel %vm540, %v708, 0
          %v2297 = vsel %vm565, %v1645, 0
          %2299 = vmatprep.subr.bf16.mxu0 0
          %2300 = vmatpush1.bf16.msra.mxu0 %v2297
          %2301 = vmatprep.subr.bf16.mxu0 0
          %2302 = vmatpush1.bf16.msra.mxu0 0
          %2303 = vmatprep.subr.bf16.mxu0 0
          %2304 = vmatpush1.bf16.msra.mxu0 0
          %2305 = vmatprep.subr.bf16.mxu0 0
          %2306 = vmatpush1.bf16.msra.mxu0 0
          %2307 = vmatprep.subr.bf16.mxu0 0
          %2308 = vmatpush1.bf16.msra.mxu0 0
          %2309 = vmatprep.subr.bf16.mxu0 0
          %2310 = vmatpush1.bf16.msra.mxu0 0
          %2311 = vmatprep.subr.bf16.mxu0 0
          %2312 = vmatpush1.bf16.msra.mxu0 0
          %2313 = vmatprep.subr.bf16.mxu0 0
          %2314 = vmatpush1.bf16.msra.mxu0 0
          %2315 = vmatprep.subr.bf16.mxu0 0
          %2316 = vmatpush1.bf16.msra.mxu0 0
          %2317 = vmatprep.subr.bf16.mxu0 0
          %2318 = vmatpush1.bf16.msra.mxu0 0
          %2319 = vmatprep.subr.bf16.mxu0 0
          %2320 = vmatpush1.bf16.msra.mxu0 0
          %2321 = vmatprep.subr.bf16.mxu0 0
          %2322 = vmatpush1.bf16.msra.mxu0 0
          %2323 = vmatprep.subr.bf16.mxu0 0
          %2324 = vmatpush1.bf16.msra.mxu0 0
          %2325 = vmatprep.subr.bf16.mxu0 0
          %2326 = vmatpush1.bf16.msra.mxu0 0
          %2327 = vmatprep.subr.bf16.mxu0 0
          %2328 = vmatpush1.bf16.msra.mxu0 0
          %2329 = vmatprep.subr.bf16.mxu0 0
          %2330 = vmatpush1.bf16.msra.mxu0 0
          %2331 = vmatprep.mubr.bf16.mxu0 0
          %2332 = vmatmul.mubr.bf16.gmra.mrb[0].mxu0 %v2294
          %v2333 = vpop.f32.mrb[0].mxu0
          %v2334 = vadd.f32 0.0, %v2333
          %v2335 = vpop.f32.mrb[0].mxu0
          %v2336 = vpop.f32.mrb[0].mxu0
          %v2337 = vpop.f32.mrb[0].mxu0
          %2338 = vdwg.mxu0
          %v2340 = vsel %vm540, %v711, 0
          %v2343 = vsel %vm565, %v1647, 0
          %2345 = vmatprep.subr.bf16.mxu0 0
          %2346 = vmatpush1.bf16.msra.mxu0 %v2343
          %2347 = vmatprep.subr.bf16.mxu0 0
          %2348 = vmatpush1.bf16.msra.mxu0 0
          %2349 = vmatprep.subr.bf16.mxu0 0
          %2350 = vmatpush1.bf16.msra.mxu0 0
          %2351 = vmatprep.subr.bf16.mxu0 0
          %2352 = vmatpush1.bf16.msra.mxu0 0
          %2353 = vmatprep.subr.bf16.mxu0 0
          %2354 = vmatpush1.bf16.msra.mxu0 0
          %2355 = vmatprep.subr.bf16.mxu0 0
          %2356 = vmatpush1.bf16.msra.mxu0 0
          %2357 = vmatprep.subr.bf16.mxu0 0
          %2358 = vmatpush1.bf16.msra.mxu0 0
          %2359 = vmatprep.subr.bf16.mxu0 0
          %2360 = vmatpush1.bf16.msra.mxu0 0
          %2361 = vmatprep.subr.bf16.mxu0 0
          %2362 = vmatpush1.bf16.msra.mxu0 0
          %2363 = vmatprep.subr.bf16.mxu0 0
          %2364 = vmatpush1.bf16.msra.mxu0 0
          %2365 = vmatprep.subr.bf16.mxu0 0
          %2366 = vmatpush1.bf16.msra.mxu0 0
          %2367 = vmatprep.subr.bf16.mxu0 0
          %2368 = vmatpush1.bf16.msra.mxu0 0
          %2369 = vmatprep.subr.bf16.mxu0 0
          %2370 = vmatpush1.bf16.msra.mxu0 0
          %2371 = vmatprep.subr.bf16.mxu0 0
          %2372 = vmatpush1.bf16.msra.mxu0 0
          %2373 = vmatprep.subr.bf16.mxu0 0
          %2374 = vmatpush1.bf16.msra.mxu0 0
          %2375 = vmatprep.subr.bf16.mxu0 0
          %2376 = vmatpush1.bf16.msra.mxu0 0
          %2377 = vmatprep.mubr.bf16.mxu0 0
          %2378 = vmatmul.mubr.bf16.gmra.mrb[0].mxu0 %v2340
          %v2379 = vpop.f32.mrb[0].mxu0
          %v2380 = vadd.f32 0.0, %v2379
          %v2381 = vpop.f32.mrb[0].mxu0
          %v2382 = vpop.f32.mrb[0].mxu0
          %v2383 = vpop.f32.mrb[0].mxu0
          %2384 = vdwg.mxu0
          %v2385 = vadd.f32 %v1007, %v1690
          %v2386 = vadd.f32 %v1008, %v1736
          %v2387 = vadd.f32 %v1009, %v1782
          %v2388 = vadd.f32 %v1010, %v1828
          %v2389 = vadd.f32 %v1011, %v1874
          %v2390 = vadd.f32 %v1012, %v1920
          %v2391 = vadd.f32 %v1013, %v1966
          %v2392 = vadd.f32 %v1014, %v2012
          %v2393 = vadd.f32 %v1015, %v2058
          %v2394 = vadd.f32 %v1016, %v2104
          %v2395 = vadd.f32 %v1017, %v2150
          %v2396 = vadd.f32 %v1018, %v2196
          %v2397 = vadd.f32 %v1019, %v2242
          %v2398 = vadd.f32 %v1020, %v2288
          %v2399 = vadd.f32 %v1021, %v2334
          %v2400 = vadd.f32 %v1022, %v2380
          %v2401 = vrot.slane %v1617, 4
          %v2403 = vsel %vm540, %v667, 0
          %v2406 = vsel %vm565, %v2401, 0
          %2408 = vmatprep.subr.bf16.mxu0 0
          %2409 = vmatpush1.bf16.msra.mxu0 %v2406
          %2410 = vmatprep.subr.bf16.mxu0 0
          %2411 = vmatpush1.bf16.msra.mxu0 0
          %2412 = vmatprep.subr.bf16.mxu0 0
          %2413 = vmatpush1.bf16.msra.mxu0 0
          %2414 = vmatprep.subr.bf16.mxu0 0
          %2415 = vmatpush1.bf16.msra.mxu0 0
          %2416 = vmatprep.subr.bf16.mxu0 0
          %2417 = vmatpush1.bf16.msra.mxu0 0
          %2418 = vmatprep.subr.bf16.mxu0 0
          %2419 = vmatpush1.bf16.msra.mxu0 0
          %2420 = vmatprep.subr.bf16.mxu0 0
          %2421 = vmatpush1.bf16.msra.mxu0 0
          %2422 = vmatprep.subr.bf16.mxu0 0
          %2423 = vmatpush1.bf16.msra.mxu0 0
          %2424 = vmatprep.subr.bf16.mxu0 0
          %2425 = vmatpush1.bf16.msra.mxu0 0
          %2426 = vmatprep.subr.bf16.mxu0 0
          %2427 = vmatpush1.bf16.msra.mxu0 0
          %2428 = vmatprep.subr.bf16.mxu0 0
          %2429 = vmatpush1.bf16.msra.mxu0 0
          %2430 = vmatprep.subr.bf16.mxu0 0
          %2431 = vmatpush1.bf16.msra.mxu0 0
          %2432 = vmatprep.subr.bf16.mxu0 0
          %2433 = vmatpush1.bf16.msra.mxu0 0
          %2434 = vmatprep.subr.bf16.mxu0 0
          %2435 = vmatpush1.bf16.msra.mxu0 0
          %2436 = vmatprep.subr.bf16.mxu0 0
          %2437 = vmatpush1.bf16.msra.mxu0 0
          %2438 = vmatprep.subr.bf16.mxu0 0
          %2439 = vmatpush1.bf16.msra.mxu0 0
          %2440 = vmatprep.mubr.bf16.mxu0 0
          %2441 = vmatmul.mubr.bf16.gmra.mrb[0].mxu0 %v2403
          %v2442 = vpop.f32.mrb[0].mxu0
          %v2443 = vadd.f32 0.0, %v2442
          %v2444 = vpop.f32.mrb[0].mxu0
          %v2445 = vpop.f32.mrb[0].mxu0
          %v2446 = vpop.f32.mrb[0].mxu0
          %2447 = vdwg.mxu0
          %v2448 = vrot.slane %v1619, 4
          %v2450 = vsel %vm540, %v670, 0
          %v2453 = vsel %vm565, %v2448, 0
          %2455 = vmatprep.subr.bf16.mxu0 0
          %2456 = vmatpush1.bf16.msra.mxu0 %v2453
          %2457 = vmatprep.subr.bf16.mxu0 0
          %2458 = vmatpush1.bf16.msra.mxu0 0
          %2459 = vmatprep.subr.bf16.mxu0 0
          %2460 = vmatpush1.bf16.msra.mxu0 0
          %2461 = vmatprep.subr.bf16.mxu0 0
          %2462 = vmatpush1.bf16.msra.mxu0 0
          %2463 = vmatprep.subr.bf16.mxu0 0
          %2464 = vmatpush1.bf16.msra.mxu0 0
          %2465 = vmatprep.subr.bf16.mxu0 0
          %2466 = vmatpush1.bf16.msra.mxu0 0
          %2467 = vmatprep.subr.bf16.mxu0 0
          %2468 = vmatpush1.bf16.msra.mxu0 0
          %2469 = vmatprep.subr.bf16.mxu0 0
          %2470 = vmatpush1.bf16.msra.mxu0 0
          %2471 = vmatprep.subr.bf16.mxu0 0
          %2472 = vmatpush1.bf16.msra.mxu0 0
          %2473 = vmatprep.subr.bf16.mxu0 0
          %2474 = vmatpush1.bf16.msra.mxu0 0
          %2475 = vmatprep.subr.bf16.mxu0 0
          %2476 = vmatpush1.bf16.msra.mxu0 0
          %2477 = vmatprep.subr.bf16.mxu0 0
          %2478 = vmatpush1.bf16.msra.mxu0 0
          %2479 = vmatprep.subr.bf16.mxu0 0
          %2480 = vmatpush1.bf16.msra.mxu0 0
          %2481 = vmatprep.subr.bf16.mxu0 0
          %2482 = vmatpush1.bf16.msra.mxu0 0
          %2483 = vmatprep.subr.bf16.mxu0 0
          %2484 = vmatpush1.bf16.msra.mxu0 0
          %2485 = vmatprep.subr.bf16.mxu0 0
          %2486 = vmatpush1.bf16.msra.mxu0 0
          %2487 = vmatprep.mubr.bf16.mxu0 0
          %2488 = vmatmul.mubr.bf16.gmra.mrb[0].mxu0 %v2450
          %v2489 = vpop.f32.mrb[0].mxu0
          %v2490 = vadd.f32 0.0, %v2489
          %v2491 = vpop.f32.mrb[0].mxu0
          %v2492 = vpop.f32.mrb[0].mxu0
          %v2493 = vpop.f32.mrb[0].mxu0
          %2494 = vdwg.mxu0
          %v2495 = vrot.slane %v1621, 4
          %v2497 = vsel %vm540, %v673, 0
          %v2500 = vsel %vm565, %v2495, 0
          %2502 = vmatprep.subr.bf16.mxu0 0
          %2503 = vmatpush1.bf16.msra.mxu0 %v2500
          %2504 = vmatprep.subr.bf16.mxu0 0
          %2505 = vmatpush1.bf16.msra.mxu0 0
          %2506 = vmatprep.subr.bf16.mxu0 0
          %2507 = vmatpush1.bf16.msra.mxu0 0
          %2508 = vmatprep.subr.bf16.mxu0 0
          %2509 = vmatpush1.bf16.msra.mxu0 0
          %2510 = vmatprep.subr.bf16.mxu0 0
          %2511 = vmatpush1.bf16.msra.mxu0 0
          %2512 = vmatprep.subr.bf16.mxu0 0
          %2513 = vmatpush1.bf16.msra.mxu0 0
          %2514 = vmatprep.subr.bf16.mxu0 0
          %2515 = vmatpush1.bf16.msra.mxu0 0
          %2516 = vmatprep.subr.bf16.mxu0 0
          %2517 = vmatpush1.bf16.msra.mxu0 0
          %2518 = vmatprep.subr.bf16.mxu0 0
          %2519 = vmatpush1.bf16.msra.mxu0 0
          %2520 = vmatprep.subr.bf16.mxu0 0
          %2521 = vmatpush1.bf16.msra.mxu0 0
          %2522 = vmatprep.subr.bf16.mxu0 0
          %2523 = vmatpush1.bf16.msra.mxu0 0
          %2524 = vmatprep.subr.bf16.mxu0 0
          %2525 = vmatpush1.bf16.msra.mxu0 0
          %2526 = vmatprep.subr.bf16.mxu0 0
          %2527 = vmatpush1.bf16.msra.mxu0 0
          %2528 = vmatprep.subr.bf16.mxu0 0
          %2529 = vmatpush1.bf16.msra.mxu0 0
          %2530 = vmatprep.subr.bf16.mxu0 0
          %2531 = vmatpush1.bf16.msra.mxu0 0
          %2532 = vmatprep.subr.bf16.mxu0 0
          %2533 = vmatpush1.bf16.msra.mxu0 0
          %2534 = vmatprep.mubr.bf16.mxu0 0
          %2535 = vmatmul.mubr.bf16.gmra.mrb[0].mxu0 %v2497
          %v2536 = vpop.f32.mrb[0].mxu0
          %v2537 = vadd.f32 0.0, %v2536
          %v2538 = vpop.f32.mrb[0].mxu0
          %v2539 = vpop.f32.mrb[0].mxu0
          %v2540 = vpop.f32.mrb[0].mxu0
          %2541 = vdwg.mxu0
          %v2542 = vrot.slane %v1623, 4
          %v2544 = vsel %vm540, %v676, 0
          %v2547 = vsel %vm565, %v2542, 0
          %2549 = vmatprep.subr.bf16.mxu0 0
          %2550 = vmatpush1.bf16.msra.mxu0 %v2547
          %2551 = vmatprep.subr.bf16.mxu0 0
          %2552 = vmatpush1.bf16.msra.mxu0 0
          %2553 = vmatprep.subr.bf16.mxu0 0
          %2554 = vmatpush1.bf16.msra.mxu0 0
          %2555 = vmatprep.subr.bf16.mxu0 0
          %2556 = vmatpush1.bf16.msra.mxu0 0
          %2557 = vmatprep.subr.bf16.mxu0 0
          %2558 = vmatpush1.bf16.msra.mxu0 0
          %2559 = vmatprep.subr.bf16.mxu0 0
          %2560 = vmatpush1.bf16.msra.mxu0 0
          %2561 = vmatprep.subr.bf16.mxu0 0
          %2562 = vmatpush1.bf16.msra.mxu0 0
          %2563 = vmatprep.subr.bf16.mxu0 0
          %2564 = vmatpush1.bf16.msra.mxu0 0
          %2565 = vmatprep.subr.bf16.mxu0 0
          %2566 = vmatpush1.bf16.msra.mxu0 0
          %2567 = vmatprep.subr.bf16.mxu0 0
          %2568 = vmatpush1.bf16.msra.mxu0 0
          %2569 = vmatprep.subr.bf16.mxu0 0
          %2570 = vmatpush1.bf16.msra.mxu0 0
          %2571 = vmatprep.subr.bf16.mxu0 0
          %2572 = vmatpush1.bf16.msra.mxu0 0
          %2573 = vmatprep.subr.bf16.mxu0 0
          %2574 = vmatpush1.bf16.msra.mxu0 0
          %2575 = vmatprep.subr.bf16.mxu0 0
          %2576 = vmatpush1.bf16.msra.mxu0 0
          %2577 = vmatprep.subr.bf16.mxu0 0
          %2578 = vmatpush1.bf16.msra.mxu0 0
          %2579 = vmatprep.subr.bf16.mxu0 0
          %2580 = vmatpush1.bf16.msra.mxu0 0
          %2581 = vmatprep.mubr.bf16.mxu0 0
          %2582 = vmatmul.mubr.bf16.gmra.mrb[0].mxu0 %v2544
          %v2583 = vpop.f32.mrb[0].mxu0
          %v2584 = vadd.f32 0.0, %v2583
          %v2585 = vpop.f32.mrb[0].mxu0
          %v2586 = vpop.f32.mrb[0].mxu0
          %v2587 = vpop.f32.mrb[0].mxu0
          %2588 = vdwg.mxu0
          %v2589 = vrot.slane %v1625, 4
          %v2591 = vsel %vm540, %v679, 0
          %v2594 = vsel %vm565, %v2589, 0
          %2596 = vmatprep.subr.bf16.mxu0 0
          %2597 = vmatpush1.bf16.msra.mxu0 %v2594
          %2598 = vmatprep.subr.bf16.mxu0 0
          %2599 = vmatpush1.bf16.msra.mxu0 0
          %2600 = vmatprep.subr.bf16.mxu0 0
          %2601 = vmatpush1.bf16.msra.mxu0 0
          %2602 = vmatprep.subr.bf16.mxu0 0
          %2603 = vmatpush1.bf16.msra.mxu0 0
          %2604 = vmatprep.subr.bf16.mxu0 0
          %2605 = vmatpush1.bf16.msra.mxu0 0
          %2606 = vmatprep.subr.bf16.mxu0 0
          %2607 = vmatpush1.bf16.msra.mxu0 0
          %2608 = vmatprep.subr.bf16.mxu0 0
          %2609 = vmatpush1.bf16.msra.mxu0 0
          %2610 = vmatprep.subr.bf16.mxu0 0
          %2611 = vmatpush1.bf16.msra.mxu0 0
          %2612 = vmatprep.subr.bf16.mxu0 0
          %2613 = vmatpush1.bf16.msra.mxu0 0
          %2614 = vmatprep.subr.bf16.mxu0 0
          %2615 = vmatpush1.bf16.msra.mxu0 0
          %2616 = vmatprep.subr.bf16.mxu0 0
          %2617 = vmatpush1.bf16.msra.mxu0 0
          %2618 = vmatprep.subr.bf16.mxu0 0
          %2619 = vmatpush1.bf16.msra.mxu0 0
          %2620 = vmatprep.subr.bf16.mxu0 0
          %2621 = vmatpush1.bf16.msra.mxu0 0
          %2622 = vmatprep.subr.bf16.mxu0 0
          %2623 = vmatpush1.bf16.msra.mxu0 0
          %2624 = vmatprep.subr.bf16.mxu0 0
          %2625 = vmatpush1.bf16.msra.mxu0 0
          %2626 = vmatprep.subr.bf16.mxu0 0
          %2627 = vmatpush1.bf16.msra.mxu0 0
          %2628 = vmatprep.mubr.bf16.mxu0 0
          %2629 = vmatmul.mubr.bf16.gmra.mrb[0].mxu0 %v2591
          %v2630 = vpop.f32.mrb[0].mxu0
          %v2631 = vadd.f32 0.0, %v2630
          %v2632 = vpop.f32.mrb[0].mxu0
          %v2633 = vpop.f32.mrb[0].mxu0
          %v2634 = vpop.f32.mrb[0].mxu0
          %2635 = vdwg.mxu0
          %v2636 = vrot.slane %v1627, 4
          %v2638 = vsel %vm540, %v682, 0
          %v2641 = vsel %vm565, %v2636, 0
          %2643 = vmatprep.subr.bf16.mxu0 0
          %2644 = vmatpush1.bf16.msra.mxu0 %v2641
          %2645 = vmatprep.subr.bf16.mxu0 0
          %2646 = vmatpush1.bf16.msra.mxu0 0
          %2647 = vmatprep.subr.bf16.mxu0 0
          %2648 = vmatpush1.bf16.msra.mxu0 0
          %2649 = vmatprep.subr.bf16.mxu0 0
          %2650 = vmatpush1.bf16.msra.mxu0 0
          %2651 = vmatprep.subr.bf16.mxu0 0
          %2652 = vmatpush1.bf16.msra.mxu0 0
          %2653 = vmatprep.subr.bf16.mxu0 0
          %2654 = vmatpush1.bf16.msra.mxu0 0
          %2655 = vmatprep.subr.bf16.mxu0 0
          %2656 = vmatpush1.bf16.msra.mxu0 0
          %2657 = vmatprep.subr.bf16.mxu0 0
          %2658 = vmatpush1.bf16.msra.mxu0 0
          %2659 = vmatprep.subr.bf16.mxu0 0
          %2660 = vmatpush1.bf16.msra.mxu0 0
          %2661 = vmatprep.subr.bf16.mxu0 0
          %2662 = vmatpush1.bf16.msra.mxu0 0
          %2663 = vmatprep.subr.bf16.mxu0 0
          %2664 = vmatpush1.bf16.msra.mxu0 0
          %2665 = vmatprep.subr.bf16.mxu0 0
          %2666 = vmatpush1.bf16.msra.mxu0 0
          %2667 = vmatprep.subr.bf16.mxu0 0
          %2668 = vmatpush1.bf16.msra.mxu0 0
          %2669 = vmatprep.subr.bf16.mxu0 0
          %2670 = vmatpush1.bf16.msra.mxu0 0
          %2671 = vmatprep.subr.bf16.mxu0 0
          %2672 = vmatpush1.bf16.msra.mxu0 0
          %2673 = vmatprep.subr.bf16.mxu0 0
          %2674 = vmatpush1.bf16.msra.mxu0 0
          %2675 = vmatprep.mubr.bf16.mxu0 0
          %2676 = vmatmul.mubr.bf16.gmra.mrb[0].mxu0 %v2638
          %v2677 = vpop.f32.mrb[0].mxu0
          %v2678 = vadd.f32 0.0, %v2677
          %v2679 = vpop.f32.mrb[0].mxu0
          %v2680 = vpop.f32.mrb[0].mxu0
          %v2681 = vpop.f32.mrb[0].mxu0
          %2682 = vdwg.mxu0
          %v2683 = vrot.slane %v1629, 4
          %v2685 = vsel %vm540, %v685, 0
          %v2688 = vsel %vm565, %v2683, 0
          %2690 = vmatprep.subr.bf16.mxu0 0
          %2691 = vmatpush1.bf16.msra.mxu0 %v2688
          %2692 = vmatprep.subr.bf16.mxu0 0
          %2693 = vmatpush1.bf16.msra.mxu0 0
          %2694 = vmatprep.subr.bf16.mxu0 0
          %2695 = vmatpush1.bf16.msra.mxu0 0
          %2696 = vmatprep.subr.bf16.mxu0 0
          %2697 = vmatpush1.bf16.msra.mxu0 0
          %2698 = vmatprep.subr.bf16.mxu0 0
          %2699 = vmatpush1.bf16.msra.mxu0 0
          %2700 = vmatprep.subr.bf16.mxu0 0
          %2701 = vmatpush1.bf16.msra.mxu0 0
          %2702 = vmatprep.subr.bf16.mxu0 0
          %2703 = vmatpush1.bf16.msra.mxu0 0
          %2704 = vmatprep.subr.bf16.mxu0 0
          %2705 = vmatpush1.bf16.msra.mxu0 0
          %2706 = vmatprep.subr.bf16.mxu0 0
          %2707 = vmatpush1.bf16.msra.mxu0 0
          %2708 = vmatprep.subr.bf16.mxu0 0
          %2709 = vmatpush1.bf16.msra.mxu0 0
          %2710 = vmatprep.subr.bf16.mxu0 0
          %2711 = vmatpush1.bf16.msra.mxu0 0
          %2712 = vmatprep.subr.bf16.mxu0 0
          %2713 = vmatpush1.bf16.msra.mxu0 0
          %2714 = vmatprep.subr.bf16.mxu0 0
          %2715 = vmatpush1.bf16.msra.mxu0 0
          %2716 = vmatprep.subr.bf16.mxu0 0
          %2717 = vmatpush1.bf16.msra.mxu0 0
          %2718 = vmatprep.subr.bf16.mxu0 0
          %2719 = vmatpush1.bf16.msra.mxu0 0
          %2720 = vmatprep.subr.bf16.mxu0 0
          %2721 = vmatpush1.bf16.msra.mxu0 0
          %2722 = vmatprep.mubr.bf16.mxu0 0
          %2723 = vmatmul.mubr.bf16.gmra.mrb[0].mxu0 %v2685
          %v2724 = vpop.f32.mrb[0].mxu0
          %v2725 = vadd.f32 0.0, %v2724
          %v2726 = vpop.f32.mrb[0].mxu0
          %v2727 = vpop.f32.mrb[0].mxu0
          %v2728 = vpop.f32.mrb[0].mxu0
          %2729 = vdwg.mxu0
          %v2730 = vrot.slane %v1631, 4
          %v2732 = vsel %vm540, %v688, 0
          %v2735 = vsel %vm565, %v2730, 0
          %2737 = vmatprep.subr.bf16.mxu0 0
          %2738 = vmatpush1.bf16.msra.mxu0 %v2735
          %2739 = vmatprep.subr.bf16.mxu0 0
          %2740 = vmatpush1.bf16.msra.mxu0 0
          %2741 = vmatprep.subr.bf16.mxu0 0
          %2742 = vmatpush1.bf16.msra.mxu0 0
          %2743 = vmatprep.subr.bf16.mxu0 0
          %2744 = vmatpush1.bf16.msra.mxu0 0
          %2745 = vmatprep.subr.bf16.mxu0 0
          %2746 = vmatpush1.bf16.msra.mxu0 0
          %2747 = vmatprep.subr.bf16.mxu0 0
          %2748 = vmatpush1.bf16.msra.mxu0 0
          %2749 = vmatprep.subr.bf16.mxu0 0
          %2750 = vmatpush1.bf16.msra.mxu0 0
          %2751 = vmatprep.subr.bf16.mxu0 0
          %2752 = vmatpush1.bf16.msra.mxu0 0
          %2753 = vmatprep.subr.bf16.mxu0 0
          %2754 = vmatpush1.bf16.msra.mxu0 0
          %2755 = vmatprep.subr.bf16.mxu0 0
          %2756 = vmatpush1.bf16.msra.mxu0 0
          %2757 = vmatprep.subr.bf16.mxu0 0
          %2758 = vmatpush1.bf16.msra.mxu0 0
          %2759 = vmatprep.subr.bf16.mxu0 0
          %2760 = vmatpush1.bf16.msra.mxu0 0
          %2761 = vmatprep.subr.bf16.mxu0 0
          %2762 = vmatpush1.bf16.msra.mxu0 0
          %2763 = vmatprep.subr.bf16.mxu0 0
          %2764 = vmatpush1.bf16.msra.mxu0 0
          %2765 = vmatprep.subr.bf16.mxu0 0
          %2766 = vmatpush1.bf16.msra.mxu0 0
          %2767 = vmatprep.subr.bf16.mxu0 0
          %2768 = vmatpush1.bf16.msra.mxu0 0
          %2769 = vmatprep.mubr.bf16.mxu0 0
          %2770 = vmatmul.mubr.bf16.gmra.mrb[0].mxu0 %v2732
          %v2771 = vpop.f32.mrb[0].mxu0
          %v2772 = vadd.f32 0.0, %v2771
          %v2773 = vpop.f32.mrb[0].mxu0
          %v2774 = vpop.f32.mrb[0].mxu0
          %v2775 = vpop.f32.mrb[0].mxu0
          %2776 = vdwg.mxu0
          %v2777 = vrot.slane %v1633, 4
          %v2779 = vsel %vm540, %v691, 0
          %v2782 = vsel %vm565, %v2777, 0
          %2784 = vmatprep.subr.bf16.mxu0 0
          %2785 = vmatpush1.bf16.msra.mxu0 %v2782
          %2786 = vmatprep.subr.bf16.mxu0 0
          %2787 = vmatpush1.bf16.msra.mxu0 0
          %2788 = vmatprep.subr.bf16.mxu0 0
          %2789 = vmatpush1.bf16.msra.mxu0 0
          %2790 = vmatprep.subr.bf16.mxu0 0
          %2791 = vmatpush1.bf16.msra.mxu0 0
          %2792 = vmatprep.subr.bf16.mxu0 0
          %2793 = vmatpush1.bf16.msra.mxu0 0
          %2794 = vmatprep.subr.bf16.mxu0 0
          %2795 = vmatpush1.bf16.msra.mxu0 0
          %2796 = vmatprep.subr.bf16.mxu0 0
          %2797 = vmatpush1.bf16.msra.mxu0 0
          %2798 = vmatprep.subr.bf16.mxu0 0
          %2799 = vmatpush1.bf16.msra.mxu0 0
          %2800 = vmatprep.subr.bf16.mxu0 0
          %2801 = vmatpush1.bf16.msra.mxu0 0
          %2802 = vmatprep.subr.bf16.mxu0 0
          %2803 = vmatpush1.bf16.msra.mxu0 0
          %2804 = vmatprep.subr.bf16.mxu0 0
          %2805 = vmatpush1.bf16.msra.mxu0 0
          %2806 = vmatprep.subr.bf16.mxu0 0
          %2807 = vmatpush1.bf16.msra.mxu0 0
          %2808 = vmatprep.subr.bf16.mxu0 0
          %2809 = vmatpush1.bf16.msra.mxu0 0
          %2810 = vmatprep.subr.bf16.mxu0 0
          %2811 = vmatpush1.bf16.msra.mxu0 0
          %2812 = vmatprep.subr.bf16.mxu0 0
          %2813 = vmatpush1.bf16.msra.mxu0 0
          %2814 = vmatprep.subr.bf16.mxu0 0
          %2815 = vmatpush1.bf16.msra.mxu0 0
          %2816 = vmatprep.mubr.bf16.mxu0 0
          %2817 = vmatmul.mubr.bf16.gmra.mrb[0].mxu0 %v2779
          %v2818 = vpop.f32.mrb[0].mxu0
          %v2819 = vadd.f32 0.0, %v2818
          %v2820 = vpop.f32.mrb[0].mxu0
          %v2821 = vpop.f32.mrb[0].mxu0
          %v2822 = vpop.f32.mrb[0].mxu0
          %2823 = vdwg.mxu0
          %v2824 = vrot.slane %v1635, 4
          %v2826 = vsel %vm540, %v694, 0
          %v2829 = vsel %vm565, %v2824, 0
          %2831 = vmatprep.subr.bf16.mxu0 0
          %2832 = vmatpush1.bf16.msra.mxu0 %v2829
          %2833 = vmatprep.subr.bf16.mxu0 0
          %2834 = vmatpush1.bf16.msra.mxu0 0
          %2835 = vmatprep.subr.bf16.mxu0 0
          %2836 = vmatpush1.bf16.msra.mxu0 0
          %2837 = vmatprep.subr.bf16.mxu0 0
          %2838 = vmatpush1.bf16.msra.mxu0 0
          %2839 = vmatprep.subr.bf16.mxu0 0
          %2840 = vmatpush1.bf16.msra.mxu0 0
          %2841 = vmatprep.subr.bf16.mxu0 0
          %2842 = vmatpush1.bf16.msra.mxu0 0
          %2843 = vmatprep.subr.bf16.mxu0 0
          %2844 = vmatpush1.bf16.msra.mxu0 0
          %2845 = vmatprep.subr.bf16.mxu0 0
          %2846 = vmatpush1.bf16.msra.mxu0 0
          %2847 = vmatprep.subr.bf16.mxu0 0
          %2848 = vmatpush1.bf16.msra.mxu0 0
          %2849 = vmatprep.subr.bf16.mxu0 0
          %2850 = vmatpush1.bf16.msra.mxu0 0
          %2851 = vmatprep.subr.bf16.mxu0 0
          %2852 = vmatpush1.bf16.msra.mxu0 0
          %2853 = vmatprep.subr.bf16.mxu0 0
          %2854 = vmatpush1.bf16.msra.mxu0 0
          %2855 = vmatprep.subr.bf16.mxu0 0
          %2856 = vmatpush1.bf16.msra.mxu0 0
          %2857 = vmatprep.subr.bf16.mxu0 0
          %2858 = vmatpush1.bf16.msra.mxu0 0
          %2859 = vmatprep.subr.bf16.mxu0 0
          %2860 = vmatpush1.bf16.msra.mxu0 0
          %2861 = vmatprep.subr.bf16.mxu0 0
          %2862 = vmatpush1.bf16.msra.mxu0 0
          %2863 = vmatprep.mubr.bf16.mxu0 0
          %2864 = vmatmul.mubr.bf16.gmra.mrb[0].mxu0 %v2826
          %v2865 = vpop.f32.mrb[0].mxu0
          %v2866 = vadd.f32 0.0, %v2865
          %v2867 = vpop.f32.mrb[0].mxu0
          %v2868 = vpop.f32.mrb[0].mxu0
          %v2869 = vpop.f32.mrb[0].mxu0
          %2870 = vdwg.mxu0
          %v2871 = vrot.slane %v1637, 4
          %v2873 = vsel %vm540, %v697, 0
          %v2876 = vsel %vm565, %v2871, 0
          %2878 = vmatprep.subr.bf16.mxu0 0
          %2879 = vmatpush1.bf16.msra.mxu0 %v2876
          %2880 = vmatprep.subr.bf16.mxu0 0
          %2881 = vmatpush1.bf16.msra.mxu0 0
          %2882 = vmatprep.subr.bf16.mxu0 0
          %2883 = vmatpush1.bf16.msra.mxu0 0
          %2884 = vmatprep.subr.bf16.mxu0 0
          %2885 = vmatpush1.bf16.msra.mxu0 0
          %2886 = vmatprep.subr.bf16.mxu0 0
          %2887 = vmatpush1.bf16.msra.mxu0 0
          %2888 = vmatprep.subr.bf16.mxu0 0
          %2889 = vmatpush1.bf16.msra.mxu0 0
          %2890 = vmatprep.subr.bf16.mxu0 0
          %2891 = vmatpush1.bf16.msra.mxu0 0
          %2892 = vmatprep.subr.bf16.mxu0 0
          %2893 = vmatpush1.bf16.msra.mxu0 0
          %2894 = vmatprep.subr.bf16.mxu0 0
          %2895 = vmatpush1.bf16.msra.mxu0 0
          %2896 = vmatprep.subr.bf16.mxu0 0
          %2897 = vmatpush1.bf16.msra.mxu0 0
          %2898 = vmatprep.subr.bf16.mxu0 0
          %2899 = vmatpush1.bf16.msra.mxu0 0
          %2900 = vmatprep.subr.bf16.mxu0 0
          %2901 = vmatpush1.bf16.msra.mxu0 0
          %2902 = vmatprep.subr.bf16.mxu0 0
          %2903 = vmatpush1.bf16.msra.mxu0 0
          %2904 = vmatprep.subr.bf16.mxu0 0
          %2905 = vmatpush1.bf16.msra.mxu0 0
          %2906 = vmatprep.subr.bf16.mxu0 0
          %2907 = vmatpush1.bf16.msra.mxu0 0
          %2908 = vmatprep.subr.bf16.mxu0 0
          %2909 = vmatpush1.bf16.msra.mxu0 0
          %2910 = vmatprep.mubr.bf16.mxu0 0
          %2911 = vmatmul.mubr.bf16.gmra.mrb[0].mxu0 %v2873
          %v2912 = vpop.f32.mrb[0].mxu0
          %v2913 = vadd.f32 0.0, %v2912
          %v2914 = vpop.f32.mrb[0].mxu0
          %v2915 = vpop.f32.mrb[0].mxu0
          %v2916 = vpop.f32.mrb[0].mxu0
          %2917 = vdwg.mxu0
          %v2918 = vrot.slane %v1639, 4
          %v2920 = vsel %vm540, %v700, 0
          %v2923 = vsel %vm565, %v2918, 0
          %2925 = vmatprep.subr.bf16.mxu0 0
          %2926 = vmatpush1.bf16.msra.mxu0 %v2923
          %2927 = vmatprep.subr.bf16.mxu0 0
          %2928 = vmatpush1.bf16.msra.mxu0 0
          %2929 = vmatprep.subr.bf16.mxu0 0
          %2930 = vmatpush1.bf16.msra.mxu0 0
          %2931 = vmatprep.subr.bf16.mxu0 0
          %2932 = vmatpush1.bf16.msra.mxu0 0
          %2933 = vmatprep.subr.bf16.mxu0 0
          %2934 = vmatpush1.bf16.msra.mxu0 0
          %2935 = vmatprep.subr.bf16.mxu0 0
          %2936 = vmatpush1.bf16.msra.mxu0 0
          %2937 = vmatprep.subr.bf16.mxu0 0
          %2938 = vmatpush1.bf16.msra.mxu0 0
          %2939 = vmatprep.subr.bf16.mxu0 0
          %2940 = vmatpush1.bf16.msra.mxu0 0
          %2941 = vmatprep.subr.bf16.mxu0 0
          %2942 = vmatpush1.bf16.msra.mxu0 0
          %2943 = vmatprep.subr.bf16.mxu0 0
          %2944 = vmatpush1.bf16.msra.mxu0 0
          %2945 = vmatprep.subr.bf16.mxu0 0
          %2946 = vmatpush1.bf16.msra.mxu0 0
          %2947 = vmatprep.subr.bf16.mxu0 0
          %2948 = vmatpush1.bf16.msra.mxu0 0
          %2949 = vmatprep.subr.bf16.mxu0 0
          %2950 = vmatpush1.bf16.msra.mxu0 0
          %2951 = vmatprep.subr.bf16.mxu0 0
          %2952 = vmatpush1.bf16.msra.mxu0 0
          %2953 = vmatprep.subr.bf16.mxu0 0
          %2954 = vmatpush1.bf16.msra.mxu0 0
          %2955 = vmatprep.subr.bf16.mxu0 0
          %2956 = vmatpush1.bf16.msra.mxu0 0
          %2957 = vmatprep.mubr.bf16.mxu0 0
          %2958 = vmatmul.mubr.bf16.gmra.mrb[0].mxu0 %v2920
          %v2959 = vpop.f32.mrb[0].mxu0
          %v2960 = vadd.f32 0.0, %v2959
          %v2961 = vpop.f32.mrb[0].mxu0
          %v2962 = vpop.f32.mrb[0].mxu0
          %v2963 = vpop.f32.mrb[0].mxu0
          %2964 = vdwg.mxu0
          %v2965 = vrot.slane %v1641, 4
          %v2967 = vsel %vm540, %v703, 0
          %v2970 = vsel %vm565, %v2965, 0
          %2972 = vmatprep.subr.bf16.mxu0 0
          %2973 = vmatpush1.bf16.msra.mxu0 %v2970
          %2974 = vmatprep.subr.bf16.mxu0 0
          %2975 = vmatpush1.bf16.msra.mxu0 0
          %2976 = vmatprep.subr.bf16.mxu0 0
          %2977 = vmatpush1.bf16.msra.mxu0 0
          %2978 = vmatprep.subr.bf16.mxu0 0
          %2979 = vmatpush1.bf16.msra.mxu0 0
          %2980 = vmatprep.subr.bf16.mxu0 0
          %2981 = vmatpush1.bf16.msra.mxu0 0
          %2982 = vmatprep.subr.bf16.mxu0 0
          %2983 = vmatpush1.bf16.msra.mxu0 0
          %2984 = vmatprep.subr.bf16.mxu0 0
          %2985 = vmatpush1.bf16.msra.mxu0 0
          %2986 = vmatprep.subr.bf16.mxu0 0
          %2987 = vmatpush1.bf16.msra.mxu0 0
          %2988 = vmatprep.subr.bf16.mxu0 0
          %2989 = vmatpush1.bf16.msra.mxu0 0
          %2990 = vmatprep.subr.bf16.mxu0 0
          %2991 = vmatpush1.bf16.msra.mxu0 0
          %2992 = vmatprep.subr.bf16.mxu0 0
          %2993 = vmatpush1.bf16.msra.mxu0 0
          %2994 = vmatprep.subr.bf16.mxu0 0
          %2995 = vmatpush1.bf16.msra.mxu0 0
          %2996 = vmatprep.subr.bf16.mxu0 0
          %2997 = vmatpush1.bf16.msra.mxu0 0
          %2998 = vmatprep.subr.bf16.mxu0 0
          %2999 = vmatpush1.bf16.msra.mxu0 0
          %3000 = vmatprep.subr.bf16.mxu0 0
          %3001 = vmatpush1.bf16.msra.mxu0 0
          %3002 = vmatprep.subr.bf16.mxu0 0
          %3003 = vmatpush1.bf16.msra.mxu0 0
          %3004 = vmatprep.mubr.bf16.mxu0 0
          %3005 = vmatmul.mubr.bf16.gmra.mrb[0].mxu0 %v2967
          %v3006 = vpop.f32.mrb[0].mxu0
          %v3007 = vadd.f32 0.0, %v3006
          %v3008 = vpop.f32.mrb[0].mxu0
          %v3009 = vpop.f32.mrb[0].mxu0
          %v3010 = vpop.f32.mrb[0].mxu0
          %3011 = vdwg.mxu0
          %v3012 = vrot.slane %v1643, 4
          %v3014 = vsel %vm540, %v706, 0
          %v3017 = vsel %vm565, %v3012, 0
          %3019 = vmatprep.subr.bf16.mxu0 0
          %3020 = vmatpush1.bf16.msra.mxu0 %v3017
          %3021 = vmatprep.subr.bf16.mxu0 0
          %3022 = vmatpush1.bf16.msra.mxu0 0
          %3023 = vmatprep.subr.bf16.mxu0 0
          %3024 = vmatpush1.bf16.msra.mxu0 0
          %3025 = vmatprep.subr.bf16.mxu0 0
          %3026 = vmatpush1.bf16.msra.mxu0 0
          %3027 = vmatprep.subr.bf16.mxu0 0
          %3028 = vmatpush1.bf16.msra.mxu0 0
          %3029 = vmatprep.subr.bf16.mxu0 0
          %3030 = vmatpush1.bf16.msra.mxu0 0
          %3031 = vmatprep.subr.bf16.mxu0 0
          %3032 = vmatpush1.bf16.msra.mxu0 0
          %3033 = vmatprep.subr.bf16.mxu0 0
          %3034 = vmatpush1.bf16.msra.mxu0 0
          %3035 = vmatprep.subr.bf16.mxu0 0
          %3036 = vmatpush1.bf16.msra.mxu0 0
          %3037 = vmatprep.subr.bf16.mxu0 0
          %3038 = vmatpush1.bf16.msra.mxu0 0
          %3039 = vmatprep.subr.bf16.mxu0 0
          %3040 = vmatpush1.bf16.msra.mxu0 0
          %3041 = vmatprep.subr.bf16.mxu0 0
          %3042 = vmatpush1.bf16.msra.mxu0 0
          %3043 = vmatprep.subr.bf16.mxu0 0
          %3044 = vmatpush1.bf16.msra.mxu0 0
          %3045 = vmatprep.subr.bf16.mxu0 0
          %3046 = vmatpush1.bf16.msra.mxu0 0
          %3047 = vmatprep.subr.bf16.mxu0 0
          %3048 = vmatpush1.bf16.msra.mxu0 0
          %3049 = vmatprep.subr.bf16.mxu0 0
          %3050 = vmatpush1.bf16.msra.mxu0 0
          %3051 = vmatprep.mubr.bf16.mxu0 0
          %3052 = vmatmul.mubr.bf16.gmra.mrb[0].mxu0 %v3014
          %v3053 = vpop.f32.mrb[0].mxu0
          %v3054 = vadd.f32 0.0, %v3053
          %v3055 = vpop.f32.mrb[0].mxu0
          %v3056 = vpop.f32.mrb[0].mxu0
          %v3057 = vpop.f32.mrb[0].mxu0
          %3058 = vdwg.mxu0
          %v3059 = vrot.slane %v1645, 4
          %v3061 = vsel %vm540, %v709, 0
          %v3064 = vsel %vm565, %v3059, 0
          %3066 = vmatprep.subr.bf16.mxu0 0
          %3067 = vmatpush1.bf16.msra.mxu0 %v3064
          %3068 = vmatprep.subr.bf16.mxu0 0
          %3069 = vmatpush1.bf16.msra.mxu0 0
          %3070 = vmatprep.subr.bf16.mxu0 0
          %3071 = vmatpush1.bf16.msra.mxu0 0
          %3072 = vmatprep.subr.bf16.mxu0 0
          %3073 = vmatpush1.bf16.msra.mxu0 0
          %3074 = vmatprep.subr.bf16.mxu0 0
          %3075 = vmatpush1.bf16.msra.mxu0 0
          %3076 = vmatprep.subr.bf16.mxu0 0
          %3077 = vmatpush1.bf16.msra.mxu0 0
          %3078 = vmatprep.subr.bf16.mxu0 0
          %3079 = vmatpush1.bf16.msra.mxu0 0
          %3080 = vmatprep.subr.bf16.mxu0 0
          %3081 = vmatpush1.bf16.msra.mxu0 0
          %3082 = vmatprep.subr.bf16.mxu0 0
          %3083 = vmatpush1.bf16.msra.mxu0 0
          %3084 = vmatprep.subr.bf16.mxu0 0
          %3085 = vmatpush1.bf16.msra.mxu0 0
          %3086 = vmatprep.subr.bf16.mxu0 0
          %3087 = vmatpush1.bf16.msra.mxu0 0
          %3088 = vmatprep.subr.bf16.mxu0 0
          %3089 = vmatpush1.bf16.msra.mxu0 0
          %3090 = vmatprep.subr.bf16.mxu0 0
          %3091 = vmatpush1.bf16.msra.mxu0 0
          %3092 = vmatprep.subr.bf16.mxu0 0
          %3093 = vmatpush1.bf16.msra.mxu0 0
          %3094 = vmatprep.subr.bf16.mxu0 0
          %3095 = vmatpush1.bf16.msra.mxu0 0
          %3096 = vmatprep.subr.bf16.mxu0 0
          %3097 = vmatpush1.bf16.msra.mxu0 0
          %3098 = vmatprep.mubr.bf16.mxu0 0
          %3099 = vmatmul.mubr.bf16.gmra.mrb[0].mxu0 %v3061
          %v3100 = vpop.f32.mrb[0].mxu0
          %v3101 = vadd.f32 0.0, %v3100
          %v3102 = vpop.f32.mrb[0].mxu0
          %v3103 = vpop.f32.mrb[0].mxu0
          %v3104 = vpop.f32.mrb[0].mxu0
          %3105 = vdwg.mxu0
          %v3106 = vrot.slane %v1647, 4
          %v3108 = vsel %vm540, %v712, 0
          %v3111 = vsel %vm565, %v3106, 0
          %3113 = vmatprep.subr.bf16.mxu0 0
          %3114 = vmatpush1.bf16.msra.mxu0 %v3111
          %3115 = vmatprep.subr.bf16.mxu0 0
          %3116 = vmatpush1.bf16.msra.mxu0 0
          %3117 = vmatprep.subr.bf16.mxu0 0
          %3118 = vmatpush1.bf16.msra.mxu0 0
          %3119 = vmatprep.subr.bf16.mxu0 0
          %3120 = vmatpush1.bf16.msra.mxu0 0
          %3121 = vmatprep.subr.bf16.mxu0 0
          %3122 = vmatpush1.bf16.msra.mxu0 0
          %3123 = vmatprep.subr.bf16.mxu0 0
          %3124 = vmatpush1.bf16.msra.mxu0 0
          %3125 = vmatprep.subr.bf16.mxu0 0
          %3126 = vmatpush1.bf16.msra.mxu0 0
          %3127 = vmatprep.subr.bf16.mxu0 0
          %3128 = vmatpush1.bf16.msra.mxu0 0
          %3129 = vmatprep.subr.bf16.mxu0 0
          %3130 = vmatpush1.bf16.msra.mxu0 0
          %3131 = vmatprep.subr.bf16.mxu0 0
          %3132 = vmatpush1.bf16.msra.mxu0 0
          %3133 = vmatprep.subr.bf16.mxu0 0
          %3134 = vmatpush1.bf16.msra.mxu0 0
          %3135 = vmatprep.subr.bf16.mxu0 0
          %3136 = vmatpush1.bf16.msra.mxu0 0
          %3137 = vmatprep.subr.bf16.mxu0 0
          %3138 = vmatpush1.bf16.msra.mxu0 0
          %3139 = vmatprep.subr.bf16.mxu0 0
          %3140 = vmatpush1.bf16.msra.mxu0 0
          %3141 = vmatprep.subr.bf16.mxu0 0
          %3142 = vmatpush1.bf16.msra.mxu0 0
          %3143 = vmatprep.subr.bf16.mxu0 0
          %3144 = vmatpush1.bf16.msra.mxu0 0
          %3145 = vmatprep.mubr.bf16.mxu0 0
          %3146 = vmatmul.mubr.bf16.gmra.mrb[0].mxu0 %v3108
          %v3147 = vpop.f32.mrb[0].mxu0
          %v3148 = vadd.f32 0.0, %v3147
          %v3149 = vpop.f32.mrb[0].mxu0
          %v3150 = vpop.f32.mrb[0].mxu0
          %v3151 = vpop.f32.mrb[0].mxu0
          %3152 = vdwg.mxu0
          %v3153 = vadd.f32 %v2385, %v2443
          %v3154 = vadd.f32 %v2386, %v2490
          %v3155 = vadd.f32 %v2387, %v2537
          %v3156 = vadd.f32 %v2388, %v2584
          %v3157 = vadd.f32 %v2389, %v2631
          %v3158 = vadd.f32 %v2390, %v2678
          %v3159 = vadd.f32 %v2391, %v2725
          %v3160 = vadd.f32 %v2392, %v2772
          %v3161 = vadd.f32 %v2393, %v2819
          %v3162 = vadd.f32 %v2394, %v2866
          %v3163 = vadd.f32 %v2395, %v2913
          %v3164 = vadd.f32 %v2396, %v2960
          %v3165 = vadd.f32 %v2397, %v3007
          %v3166 = vadd.f32 %v2398, %v3054
          %v3167 = vadd.f32 %v2399, %v3101
          %v3168 = vadd.f32 %v2400, %v3148
          %v3170 = vsel %vm540, %v668, 0
          %v3173 = vsel %vm565, %v1618, 0
          %3175 = vmatprep.subr.bf16.mxu0 0
          %3176 = vmatpush1.bf16.msra.mxu0 %v3173
          %3177 = vmatprep.subr.bf16.mxu0 0
          %3178 = vmatpush1.bf16.msra.mxu0 0
          %3179 = vmatprep.subr.bf16.mxu0 0
          %3180 = vmatpush1.bf16.msra.mxu0 0
          %3181 = vmatprep.subr.bf16.mxu0 0
          %3182 = vmatpush1.bf16.msra.mxu0 0
          %3183 = vmatprep.subr.bf16.mxu0 0
          %3184 = vmatpush1.bf16.msra.mxu0 0
          %3185 = vmatprep.subr.bf16.mxu0 0
          %3186 = vmatpush1.bf16.msra.mxu0 0
          %3187 = vmatprep.subr.bf16.mxu0 0
          %3188 = vmatpush1.bf16.msra.mxu0 0
          %3189 = vmatprep.subr.bf16.mxu0 0
          %3190 = vmatpush1.bf16.msra.mxu0 0
          %3191 = vmatprep.subr.bf16.mxu0 0
          %3192 = vmatpush1.bf16.msra.mxu0 0
          %3193 = vmatprep.subr.bf16.mxu0 0
          %3194 = vmatpush1.bf16.msra.mxu0 0
          %3195 = vmatprep.subr.bf16.mxu0 0
          %3196 = vmatpush1.bf16.msra.mxu0 0
          %3197 = vmatprep.subr.bf16.mxu0 0
          %3198 = vmatpush1.bf16.msra.mxu0 0
          %3199 = vmatprep.subr.bf16.mxu0 0
          %3200 = vmatpush1.bf16.msra.mxu0 0
          %3201 = vmatprep.subr.bf16.mxu0 0
          %3202 = vmatpush1.bf16.msra.mxu0 0
          %3203 = vmatprep.subr.bf16.mxu0 0
          %3204 = vmatpush1.bf16.msra.mxu0 0
          %3205 = vmatprep.subr.bf16.mxu0 0
          %3206 = vmatpush1.bf16.msra.mxu0 0
          %3207 = vmatprep.mubr.bf16.mxu0 0
          %3208 = vmatmul.mubr.bf16.gmra.mrb[0].mxu0 %v3170
          %v3209 = vpop.f32.mrb[0].mxu0
          %v3210 = vadd.f32 0.0, %v3209
          %v3211 = vpop.f32.mrb[0].mxu0
          %v3212 = vpop.f32.mrb[0].mxu0
          %v3213 = vpop.f32.mrb[0].mxu0
          %3214 = vdwg.mxu0
          %v3216 = vsel %vm540, %v671, 0
          %v3219 = vsel %vm565, %v1620, 0
          %3221 = vmatprep.subr.bf16.mxu0 0
          %3222 = vmatpush1.bf16.msra.mxu0 %v3219
          %3223 = vmatprep.subr.bf16.mxu0 0
          %3224 = vmatpush1.bf16.msra.mxu0 0
          %3225 = vmatprep.subr.bf16.mxu0 0
          %3226 = vmatpush1.bf16.msra.mxu0 0
          %3227 = vmatprep.subr.bf16.mxu0 0
          %3228 = vmatpush1.bf16.msra.mxu0 0
          %3229 = vmatprep.subr.bf16.mxu0 0
          %3230 = vmatpush1.bf16.msra.mxu0 0
          %3231 = vmatprep.subr.bf16.mxu0 0
          %3232 = vmatpush1.bf16.msra.mxu0 0
          %3233 = vmatprep.subr.bf16.mxu0 0
          %3234 = vmatpush1.bf16.msra.mxu0 0
          %3235 = vmatprep.subr.bf16.mxu0 0
          %3236 = vmatpush1.bf16.msra.mxu0 0
          %3237 = vmatprep.subr.bf16.mxu0 0
          %3238 = vmatpush1.bf16.msra.mxu0 0
          %3239 = vmatprep.subr.bf16.mxu0 0
          %3240 = vmatpush1.bf16.msra.mxu0 0
          %3241 = vmatprep.subr.bf16.mxu0 0
          %3242 = vmatpush1.bf16.msra.mxu0 0
          %3243 = vmatprep.subr.bf16.mxu0 0
          %3244 = vmatpush1.bf16.msra.mxu0 0
          %3245 = vmatprep.subr.bf16.mxu0 0
          %3246 = vmatpush1.bf16.msra.mxu0 0
          %3247 = vmatprep.subr.bf16.mxu0 0
          %3248 = vmatpush1.bf16.msra.mxu0 0
          %3249 = vmatprep.subr.bf16.mxu0 0
          %3250 = vmatpush1.bf16.msra.mxu0 0
          %3251 = vmatprep.subr.bf16.mxu0 0
          %3252 = vmatpush1.bf16.msra.mxu0 0
          %3253 = vmatprep.mubr.bf16.mxu0 0
          %3254 = vmatmul.mubr.bf16.gmra.mrb[0].mxu0 %v3216
          %v3255 = vpop.f32.mrb[0].mxu0
          %v3256 = vadd.f32 0.0, %v3255
          %v3257 = vpop.f32.mrb[0].mxu0
          %v3258 = vpop.f32.mrb[0].mxu0
          %v3259 = vpop.f32.mrb[0].mxu0
          %3260 = vdwg.mxu0
          %v3262 = vsel %vm540, %v674, 0
          %v3265 = vsel %vm565, %v1622, 0
          %3267 = vmatprep.subr.bf16.mxu0 0
          %3268 = vmatpush1.bf16.msra.mxu0 %v3265
          %3269 = vmatprep.subr.bf16.mxu0 0
          %3270 = vmatpush1.bf16.msra.mxu0 0
          %3271 = vmatprep.subr.bf16.mxu0 0
          %3272 = vmatpush1.bf16.msra.mxu0 0
          %3273 = vmatprep.subr.bf16.mxu0 0
          %3274 = vmatpush1.bf16.msra.mxu0 0
          %3275 = vmatprep.subr.bf16.mxu0 0
          %3276 = vmatpush1.bf16.msra.mxu0 0
          %3277 = vmatprep.subr.bf16.mxu0 0
          %3278 = vmatpush1.bf16.msra.mxu0 0
          %3279 = vmatprep.subr.bf16.mxu0 0
          %3280 = vmatpush1.bf16.msra.mxu0 0
          %3281 = vmatprep.subr.bf16.mxu0 0
          %3282 = vmatpush1.bf16.msra.mxu0 0
          %3283 = vmatprep.subr.bf16.mxu0 0
          %3284 = vmatpush1.bf16.msra.mxu0 0
          %3285 = vmatprep.subr.bf16.mxu0 0
          %3286 = vmatpush1.bf16.msra.mxu0 0
          %3287 = vmatprep.subr.bf16.mxu0 0
          %3288 = vmatpush1.bf16.msra.mxu0 0
          %3289 = vmatprep.subr.bf16.mxu0 0
          %3290 = vmatpush1.bf16.msra.mxu0 0
          %3291 = vmatprep.subr.bf16.mxu0 0
          %3292 = vmatpush1.bf16.msra.mxu0 0
          %3293 = vmatprep.subr.bf16.mxu0 0
          %3294 = vmatpush1.bf16.msra.mxu0 0
          %3295 = vmatprep.subr.bf16.mxu0 0
          %3296 = vmatpush1.bf16.msra.mxu0 0
          %3297 = vmatprep.subr.bf16.mxu0 0
          %3298 = vmatpush1.bf16.msra.mxu0 0
          %3299 = vmatprep.mubr.bf16.mxu0 0
          %3300 = vmatmul.mubr.bf16.gmra.mrb[0].mxu0 %v3262
          %v3301 = vpop.f32.mrb[0].mxu0
          %v3302 = vadd.f32 0.0, %v3301
          %v3303 = vpop.f32.mrb[0].mxu0
          %v3304 = vpop.f32.mrb[0].mxu0
          %v3305 = vpop.f32.mrb[0].mxu0
          %3306 = vdwg.mxu0
          %v3308 = vsel %vm540, %v677, 0
          %v3311 = vsel %vm565, %v1624, 0
          %3313 = vmatprep.subr.bf16.mxu0 0
          %3314 = vmatpush1.bf16.msra.mxu0 %v3311
          %3315 = vmatprep.subr.bf16.mxu0 0
          %3316 = vmatpush1.bf16.msra.mxu0 0
          %3317 = vmatprep.subr.bf16.mxu0 0
          %3318 = vmatpush1.bf16.msra.mxu0 0
          %3319 = vmatprep.subr.bf16.mxu0 0
          %3320 = vmatpush1.bf16.msra.mxu0 0
          %3321 = vmatprep.subr.bf16.mxu0 0
          %3322 = vmatpush1.bf16.msra.mxu0 0
          %3323 = vmatprep.subr.bf16.mxu0 0
          %3324 = vmatpush1.bf16.msra.mxu0 0
          %3325 = vmatprep.subr.bf16.mxu0 0
          %3326 = vmatpush1.bf16.msra.mxu0 0
          %3327 = vmatprep.subr.bf16.mxu0 0
          %3328 = vmatpush1.bf16.msra.mxu0 0
          %3329 = vmatprep.subr.bf16.mxu0 0
          %3330 = vmatpush1.bf16.msra.mxu0 0
          %3331 = vmatprep.subr.bf16.mxu0 0
          %3332 = vmatpush1.bf16.msra.mxu0 0
          %3333 = vmatprep.subr.bf16.mxu0 0
          %3334 = vmatpush1.bf16.msra.mxu0 0
          %3335 = vmatprep.subr.bf16.mxu0 0
          %3336 = vmatpush1.bf16.msra.mxu0 0
          %3337 = vmatprep.subr.bf16.mxu0 0
          %3338 = vmatpush1.bf16.msra.mxu0 0
          %3339 = vmatprep.subr.bf16.mxu0 0
          %3340 = vmatpush1.bf16.msra.mxu0 0
          %3341 = vmatprep.subr.bf16.mxu0 0
          %3342 = vmatpush1.bf16.msra.mxu0 0
          %3343 = vmatprep.subr.bf16.mxu0 0
          %3344 = vmatpush1.bf16.msra.mxu0 0
          %3345 = vmatprep.mubr.bf16.mxu0 0
          %3346 = vmatmul.mubr.bf16.gmra.mrb[0].mxu0 %v3308
          %v3347 = vpop.f32.mrb[0].mxu0
          %v3348 = vadd.f32 0.0, %v3347
          %v3349 = vpop.f32.mrb[0].mxu0
          %v3350 = vpop.f32.mrb[0].mxu0
          %v3351 = vpop.f32.mrb[0].mxu0
          %3352 = vdwg.mxu0
          %v3354 = vsel %vm540, %v680, 0
          %v3357 = vsel %vm565, %v1626, 0
          %3359 = vmatprep.subr.bf16.mxu0 0
          %3360 = vmatpush1.bf16.msra.mxu0 %v3357
          %3361 = vmatprep.subr.bf16.mxu0 0
          %3362 = vmatpush1.bf16.msra.mxu0 0
          %3363 = vmatprep.subr.bf16.mxu0 0
          %3364 = vmatpush1.bf16.msra.mxu0 0
          %3365 = vmatprep.subr.bf16.mxu0 0
          %3366 = vmatpush1.bf16.msra.mxu0 0
          %3367 = vmatprep.subr.bf16.mxu0 0
          %3368 = vmatpush1.bf16.msra.mxu0 0
          %3369 = vmatprep.subr.bf16.mxu0 0
          %3370 = vmatpush1.bf16.msra.mxu0 0
          %3371 = vmatprep.subr.bf16.mxu0 0
          %3372 = vmatpush1.bf16.msra.mxu0 0
          %3373 = vmatprep.subr.bf16.mxu0 0
          %3374 = vmatpush1.bf16.msra.mxu0 0
          %3375 = vmatprep.subr.bf16.mxu0 0
          %3376 = vmatpush1.bf16.msra.mxu0 0
          %3377 = vmatprep.subr.bf16.mxu0 0
          %3378 = vmatpush1.bf16.msra.mxu0 0
          %3379 = vmatprep.subr.bf16.mxu0 0
          %3380 = vmatpush1.bf16.msra.mxu0 0
          %3381 = vmatprep.subr.bf16.mxu0 0
          %3382 = vmatpush1.bf16.msra.mxu0 0
          %3383 = vmatprep.subr.bf16.mxu0 0
          %3384 = vmatpush1.bf16.msra.mxu0 0
          %3385 = vmatprep.subr.bf16.mxu0 0
          %3386 = vmatpush1.bf16.msra.mxu0 0
          %3387 = vmatprep.subr.bf16.mxu0 0
          %3388 = vmatpush1.bf16.msra.mxu0 0
          %3389 = vmatprep.subr.bf16.mxu0 0
          %3390 = vmatpush1.bf16.msra.mxu0 0
          %3391 = vmatprep.mubr.bf16.mxu0 0
          %3392 = vmatmul.mubr.bf16.gmra.mrb[0].mxu0 %v3354
          %v3393 = vpop.f32.mrb[0].mxu0
          %v3394 = vadd.f32 0.0, %v3393
          %v3395 = vpop.f32.mrb[0].mxu0
          %v3396 = vpop.f32.mrb[0].mxu0
          %v3397 = vpop.f32.mrb[0].mxu0
          %3398 = vdwg.mxu0
          %v3400 = vsel %vm540, %v683, 0
          %v3403 = vsel %vm565, %v1628, 0
          %3405 = vmatprep.subr.bf16.mxu0 0
          %3406 = vmatpush1.bf16.msra.mxu0 %v3403
          %3407 = vmatprep.subr.bf16.mxu0 0
          %3408 = vmatpush1.bf16.msra.mxu0 0
          %3409 = vmatprep.subr.bf16.mxu0 0
          %3410 = vmatpush1.bf16.msra.mxu0 0
          %3411 = vmatprep.subr.bf16.mxu0 0
          %3412 = vmatpush1.bf16.msra.mxu0 0
          %3413 = vmatprep.subr.bf16.mxu0 0
          %3414 = vmatpush1.bf16.msra.mxu0 0
          %3415 = vmatprep.subr.bf16.mxu0 0
          %3416 = vmatpush1.bf16.msra.mxu0 0
          %3417 = vmatprep.subr.bf16.mxu0 0
          %3418 = vmatpush1.bf16.msra.mxu0 0
          %3419 = vmatprep.subr.bf16.mxu0 0
          %3420 = vmatpush1.bf16.msra.mxu0 0
          %3421 = vmatprep.subr.bf16.mxu0 0
          %3422 = vmatpush1.bf16.msra.mxu0 0
          %3423 = vmatprep.subr.bf16.mxu0 0
          %3424 = vmatpush1.bf16.msra.mxu0 0
          %3425 = vmatprep.subr.bf16.mxu0 0
          %3426 = vmatpush1.bf16.msra.mxu0 0
          %3427 = vmatprep.subr.bf16.mxu0 0
          %3428 = vmatpush1.bf16.msra.mxu0 0
          %3429 = vmatprep.subr.bf16.mxu0 0
          %3430 = vmatpush1.bf16.msra.mxu0 0
          %3431 = vmatprep.subr.bf16.mxu0 0
          %3432 = vmatpush1.bf16.msra.mxu0 0
          %3433 = vmatprep.subr.bf16.mxu0 0
          %3434 = vmatpush1.bf16.msra.mxu0 0
          %3435 = vmatprep.subr.bf16.mxu0 0
          %3436 = vmatpush1.bf16.msra.mxu0 0
          %3437 = vmatprep.mubr.bf16.mxu0 0
          %3438 = vmatmul.mubr.bf16.gmra.mrb[0].mxu0 %v3400
          %v3439 = vpop.f32.mrb[0].mxu0
          %v3440 = vadd.f32 0.0, %v3439
          %v3441 = vpop.f32.mrb[0].mxu0
          %v3442 = vpop.f32.mrb[0].mxu0
          %v3443 = vpop.f32.mrb[0].mxu0
          %3444 = vdwg.mxu0
          %v3446 = vsel %vm540, %v686, 0
          %v3449 = vsel %vm565, %v1630, 0
          %3451 = vmatprep.subr.bf16.mxu0 0
          %3452 = vmatpush1.bf16.msra.mxu0 %v3449
          %3453 = vmatprep.subr.bf16.mxu0 0
          %3454 = vmatpush1.bf16.msra.mxu0 0
          %3455 = vmatprep.subr.bf16.mxu0 0
          %3456 = vmatpush1.bf16.msra.mxu0 0
          %3457 = vmatprep.subr.bf16.mxu0 0
          %3458 = vmatpush1.bf16.msra.mxu0 0
          %3459 = vmatprep.subr.bf16.mxu0 0
          %3460 = vmatpush1.bf16.msra.mxu0 0
          %3461 = vmatprep.subr.bf16.mxu0 0
          %3462 = vmatpush1.bf16.msra.mxu0 0
          %3463 = vmatprep.subr.bf16.mxu0 0
          %3464 = vmatpush1.bf16.msra.mxu0 0
          %3465 = vmatprep.subr.bf16.mxu0 0
          %3466 = vmatpush1.bf16.msra.mxu0 0
          %3467 = vmatprep.subr.bf16.mxu0 0
          %3468 = vmatpush1.bf16.msra.mxu0 0
          %3469 = vmatprep.subr.bf16.mxu0 0
          %3470 = vmatpush1.bf16.msra.mxu0 0
          %3471 = vmatprep.subr.bf16.mxu0 0
          %3472 = vmatpush1.bf16.msra.mxu0 0
          %3473 = vmatprep.subr.bf16.mxu0 0
          %3474 = vmatpush1.bf16.msra.mxu0 0
          %3475 = vmatprep.subr.bf16.mxu0 0
          %3476 = vmatpush1.bf16.msra.mxu0 0
          %3477 = vmatprep.subr.bf16.mxu0 0
          %3478 = vmatpush1.bf16.msra.mxu0 0
          %3479 = vmatprep.subr.bf16.mxu0 0
          %3480 = vmatpush1.bf16.msra.mxu0 0
          %3481 = vmatprep.subr.bf16.mxu0 0
          %3482 = vmatpush1.bf16.msra.mxu0 0
          %3483 = vmatprep.mubr.bf16.mxu0 0
          %3484 = vmatmul.mubr.bf16.gmra.mrb[0].mxu0 %v3446
          %v3485 = vpop.f32.mrb[0].mxu0
          %v3486 = vadd.f32 0.0, %v3485
          %v3487 = vpop.f32.mrb[0].mxu0
          %v3488 = vpop.f32.mrb[0].mxu0
          %v3489 = vpop.f32.mrb[0].mxu0
          %3490 = vdwg.mxu0
          %v3492 = vsel %vm540, %v689, 0
          %v3495 = vsel %vm565, %v1632, 0
          %3497 = vmatprep.subr.bf16.mxu0 0
          %3498 = vmatpush1.bf16.msra.mxu0 %v3495
          %3499 = vmatprep.subr.bf16.mxu0 0
          %3500 = vmatpush1.bf16.msra.mxu0 0
          %3501 = vmatprep.subr.bf16.mxu0 0
          %3502 = vmatpush1.bf16.msra.mxu0 0
          %3503 = vmatprep.subr.bf16.mxu0 0
          %3504 = vmatpush1.bf16.msra.mxu0 0
          %3505 = vmatprep.subr.bf16.mxu0 0
          %3506 = vmatpush1.bf16.msra.mxu0 0
          %3507 = vmatprep.subr.bf16.mxu0 0
          %3508 = vmatpush1.bf16.msra.mxu0 0
          %3509 = vmatprep.subr.bf16.mxu0 0
          %3510 = vmatpush1.bf16.msra.mxu0 0
          %3511 = vmatprep.subr.bf16.mxu0 0
          %3512 = vmatpush1.bf16.msra.mxu0 0
          %3513 = vmatprep.subr.bf16.mxu0 0
          %3514 = vmatpush1.bf16.msra.mxu0 0
          %3515 = vmatprep.subr.bf16.mxu0 0
          %3516 = vmatpush1.bf16.msra.mxu0 0
          %3517 = vmatprep.subr.bf16.mxu0 0
          %3518 = vmatpush1.bf16.msra.mxu0 0
          %3519 = vmatprep.subr.bf16.mxu0 0
          %3520 = vmatpush1.bf16.msra.mxu0 0
          %3521 = vmatprep.subr.bf16.mxu0 0
          %3522 = vmatpush1.bf16.msra.mxu0 0
          %3523 = vmatprep.subr.bf16.mxu0 0
          %3524 = vmatpush1.bf16.msra.mxu0 0
          %3525 = vmatprep.subr.bf16.mxu0 0
          %3526 = vmatpush1.bf16.msra.mxu0 0
          %3527 = vmatprep.subr.bf16.mxu0 0
          %3528 = vmatpush1.bf16.msra.mxu0 0
          %3529 = vmatprep.mubr.bf16.mxu0 0
          %3530 = vmatmul.mubr.bf16.gmra.mrb[0].mxu0 %v3492
          %v3531 = vpop.f32.mrb[0].mxu0
          %v3532 = vadd.f32 0.0, %v3531
          %v3533 = vpop.f32.mrb[0].mxu0
          %v3534 = vpop.f32.mrb[0].mxu0
          %v3535 = vpop.f32.mrb[0].mxu0
          %3536 = vdwg.mxu0
          %v3538 = vsel %vm540, %v692, 0
          %v3541 = vsel %vm565, %v1634, 0
          %3543 = vmatprep.subr.bf16.mxu0 0
          %3544 = vmatpush1.bf16.msra.mxu0 %v3541
          %3545 = vmatprep.subr.bf16.mxu0 0
          %3546 = vmatpush1.bf16.msra.mxu0 0
          %3547 = vmatprep.subr.bf16.mxu0 0
          %3548 = vmatpush1.bf16.msra.mxu0 0
          %3549 = vmatprep.subr.bf16.mxu0 0
          %3550 = vmatpush1.bf16.msra.mxu0 0
          %3551 = vmatprep.subr.bf16.mxu0 0
          %3552 = vmatpush1.bf16.msra.mxu0 0
          %3553 = vmatprep.subr.bf16.mxu0 0
          %3554 = vmatpush1.bf16.msra.mxu0 0
          %3555 = vmatprep.subr.bf16.mxu0 0
          %3556 = vmatpush1.bf16.msra.mxu0 0
          %3557 = vmatprep.subr.bf16.mxu0 0
          %3558 = vmatpush1.bf16.msra.mxu0 0
          %3559 = vmatprep.subr.bf16.mxu0 0
          %3560 = vmatpush1.bf16.msra.mxu0 0
          %3561 = vmatprep.subr.bf16.mxu0 0
          %3562 = vmatpush1.bf16.msra.mxu0 0
          %3563 = vmatprep.subr.bf16.mxu0 0
          %3564 = vmatpush1.bf16.msra.mxu0 0
          %3565 = vmatprep.subr.bf16.mxu0 0
          %3566 = vmatpush1.bf16.msra.mxu0 0
          %3567 = vmatprep.subr.bf16.mxu0 0
          %3568 = vmatpush1.bf16.msra.mxu0 0
          %3569 = vmatprep.subr.bf16.mxu0 0
          %3570 = vmatpush1.bf16.msra.mxu0 0
          %3571 = vmatprep.subr.bf16.mxu0 0
          %3572 = vmatpush1.bf16.msra.mxu0 0
          %3573 = vmatprep.subr.bf16.mxu0 0
          %3574 = vmatpush1.bf16.msra.mxu0 0
          %3575 = vmatprep.mubr.bf16.mxu0 0
          %3576 = vmatmul.mubr.bf16.gmra.mrb[0].mxu0 %v3538
          %v3577 = vpop.f32.mrb[0].mxu0
          %v3578 = vadd.f32 0.0, %v3577
          %v3579 = vpop.f32.mrb[0].mxu0
          %v3580 = vpop.f32.mrb[0].mxu0
          %v3581 = vpop.f32.mrb[0].mxu0
          %3582 = vdwg.mxu0
          %v3584 = vsel %vm540, %v695, 0
          %v3587 = vsel %vm565, %v1636, 0
          %3589 = vmatprep.subr.bf16.mxu0 0
          %3590 = vmatpush1.bf16.msra.mxu0 %v3587
          %3591 = vmatprep.subr.bf16.mxu0 0
          %3592 = vmatpush1.bf16.msra.mxu0 0
          %3593 = vmatprep.subr.bf16.mxu0 0
          %3594 = vmatpush1.bf16.msra.mxu0 0
          %3595 = vmatprep.subr.bf16.mxu0 0
          %3596 = vmatpush1.bf16.msra.mxu0 0
          %3597 = vmatprep.subr.bf16.mxu0 0
          %3598 = vmatpush1.bf16.msra.mxu0 0
          %3599 = vmatprep.subr.bf16.mxu0 0
          %3600 = vmatpush1.bf16.msra.mxu0 0
          %3601 = vmatprep.subr.bf16.mxu0 0
          %3602 = vmatpush1.bf16.msra.mxu0 0
          %3603 = vmatprep.subr.bf16.mxu0 0
          %3604 = vmatpush1.bf16.msra.mxu0 0
          %3605 = vmatprep.subr.bf16.mxu0 0
          %3606 = vmatpush1.bf16.msra.mxu0 0
          %3607 = vmatprep.subr.bf16.mxu0 0
          %3608 = vmatpush1.bf16.msra.mxu0 0
          %3609 = vmatprep.subr.bf16.mxu0 0
          %3610 = vmatpush1.bf16.msra.mxu0 0
          %3611 = vmatprep.subr.bf16.mxu0 0
          %3612 = vmatpush1.bf16.msra.mxu0 0
          %3613 = vmatprep.subr.bf16.mxu0 0
          %3614 = vmatpush1.bf16.msra.mxu0 0
          %3615 = vmatprep.subr.bf16.mxu0 0
          %3616 = vmatpush1.bf16.msra.mxu0 0
          %3617 = vmatprep.subr.bf16.mxu0 0
          %3618 = vmatpush1.bf16.msra.mxu0 0
          %3619 = vmatprep.subr.bf16.mxu0 0
          %3620 = vmatpush1.bf16.msra.mxu0 0
          %3621 = vmatprep.mubr.bf16.mxu0 0
          %3622 = vmatmul.mubr.bf16.gmra.mrb[0].mxu0 %v3584
          %v3623 = vpop.f32.mrb[0].mxu0
          %v3624 = vadd.f32 0.0, %v3623
          %v3625 = vpop.f32.mrb[0].mxu0
          %v3626 = vpop.f32.mrb[0].mxu0
          %v3627 = vpop.f32.mrb[0].mxu0
          %3628 = vdwg.mxu0
          %v3630 = vsel %vm540, %v698, 0
          %v3633 = vsel %vm565, %v1638, 0
          %3635 = vmatprep.subr.bf16.mxu0 0
          %3636 = vmatpush1.bf16.msra.mxu0 %v3633
          %3637 = vmatprep.subr.bf16.mxu0 0
          %3638 = vmatpush1.bf16.msra.mxu0 0
          %3639 = vmatprep.subr.bf16.mxu0 0
          %3640 = vmatpush1.bf16.msra.mxu0 0
          %3641 = vmatprep.subr.bf16.mxu0 0
          %3642 = vmatpush1.bf16.msra.mxu0 0
          %3643 = vmatprep.subr.bf16.mxu0 0
          %3644 = vmatpush1.bf16.msra.mxu0 0
          %3645 = vmatprep.subr.bf16.mxu0 0
          %3646 = vmatpush1.bf16.msra.mxu0 0
          %3647 = vmatprep.subr.bf16.mxu0 0
          %3648 = vmatpush1.bf16.msra.mxu0 0
          %3649 = vmatprep.subr.bf16.mxu0 0
          %3650 = vmatpush1.bf16.msra.mxu0 0
          %3651 = vmatprep.subr.bf16.mxu0 0
          %3652 = vmatpush1.bf16.msra.mxu0 0
          %3653 = vmatprep.subr.bf16.mxu0 0
          %3654 = vmatpush1.bf16.msra.mxu0 0
          %3655 = vmatprep.subr.bf16.mxu0 0
          %3656 = vmatpush1.bf16.msra.mxu0 0
          %3657 = vmatprep.subr.bf16.mxu0 0
          %3658 = vmatpush1.bf16.msra.mxu0 0
          %3659 = vmatprep.subr.bf16.mxu0 0
          %3660 = vmatpush1.bf16.msra.mxu0 0
          %3661 = vmatprep.subr.bf16.mxu0 0
          %3662 = vmatpush1.bf16.msra.mxu0 0
          %3663 = vmatprep.subr.bf16.mxu0 0
          %3664 = vmatpush1.bf16.msra.mxu0 0
          %3665 = vmatprep.subr.bf16.mxu0 0
          %3666 = vmatpush1.bf16.msra.mxu0 0
          %3667 = vmatprep.mubr.bf16.mxu0 0
          %3668 = vmatmul.mubr.bf16.gmra.mrb[0].mxu0 %v3630
          %v3669 = vpop.f32.mrb[0].mxu0
          %v3670 = vadd.f32 0.0, %v3669
          %v3671 = vpop.f32.mrb[0].mxu0
          %v3672 = vpop.f32.mrb[0].mxu0
          %v3673 = vpop.f32.mrb[0].mxu0
          %3674 = vdwg.mxu0
          %v3676 = vsel %vm540, %v701, 0
          %v3679 = vsel %vm565, %v1640, 0
          %3681 = vmatprep.subr.bf16.mxu0 0
          %3682 = vmatpush1.bf16.msra.mxu0 %v3679
          %3683 = vmatprep.subr.bf16.mxu0 0
          %3684 = vmatpush1.bf16.msra.mxu0 0
          %3685 = vmatprep.subr.bf16.mxu0 0
          %3686 = vmatpush1.bf16.msra.mxu0 0
          %3687 = vmatprep.subr.bf16.mxu0 0
          %3688 = vmatpush1.bf16.msra.mxu0 0
          %3689 = vmatprep.subr.bf16.mxu0 0
          %3690 = vmatpush1.bf16.msra.mxu0 0
          %3691 = vmatprep.subr.bf16.mxu0 0
          %3692 = vmatpush1.bf16.msra.mxu0 0
          %3693 = vmatprep.subr.bf16.mxu0 0
          %3694 = vmatpush1.bf16.msra.mxu0 0
          %3695 = vmatprep.subr.bf16.mxu0 0
          %3696 = vmatpush1.bf16.msra.mxu0 0
          %3697 = vmatprep.subr.bf16.mxu0 0
          %3698 = vmatpush1.bf16.msra.mxu0 0
          %3699 = vmatprep.subr.bf16.mxu0 0
          %3700 = vmatpush1.bf16.msra.mxu0 0
          %3701 = vmatprep.subr.bf16.mxu0 0
          %3702 = vmatpush1.bf16.msra.mxu0 0
          %3703 = vmatprep.subr.bf16.mxu0 0
          %3704 = vmatpush1.bf16.msra.mxu0 0
          %3705 = vmatprep.subr.bf16.mxu0 0
          %3706 = vmatpush1.bf16.msra.mxu0 0
          %3707 = vmatprep.subr.bf16.mxu0 0
          %3708 = vmatpush1.bf16.msra.mxu0 0
          %3709 = vmatprep.subr.bf16.mxu0 0
          %3710 = vmatpush1.bf16.msra.mxu0 0
          %3711 = vmatprep.subr.bf16.mxu0 0
          %3712 = vmatpush1.bf16.msra.mxu0 0
          %3713 = vmatprep.mubr.bf16.mxu0 0
          %3714 = vmatmul.mubr.bf16.gmra.mrb[0].mxu0 %v3676
          %v3715 = vpop.f32.mrb[0].mxu0
          %v3716 = vadd.f32 0.0, %v3715
          %v3717 = vpop.f32.mrb[0].mxu0
          %v3718 = vpop.f32.mrb[0].mxu0
          %v3719 = vpop.f32.mrb[0].mxu0
          %3720 = vdwg.mxu0
          %v3722 = vsel %vm540, %v704, 0
          %v3725 = vsel %vm565, %v1642, 0
          %3727 = vmatprep.subr.bf16.mxu0 0
          %3728 = vmatpush1.bf16.msra.mxu0 %v3725
          %3729 = vmatprep.subr.bf16.mxu0 0
          %3730 = vmatpush1.bf16.msra.mxu0 0
          %3731 = vmatprep.subr.bf16.mxu0 0
          %3732 = vmatpush1.bf16.msra.mxu0 0
          %3733 = vmatprep.subr.bf16.mxu0 0
          %3734 = vmatpush1.bf16.msra.mxu0 0
          %3735 = vmatprep.subr.bf16.mxu0 0
          %3736 = vmatpush1.bf16.msra.mxu0 0
          %3737 = vmatprep.subr.bf16.mxu0 0
          %3738 = vmatpush1.bf16.msra.mxu0 0
          %3739 = vmatprep.subr.bf16.mxu0 0
          %3740 = vmatpush1.bf16.msra.mxu0 0
          %3741 = vmatprep.subr.bf16.mxu0 0
          %3742 = vmatpush1.bf16.msra.mxu0 0
          %3743 = vmatprep.subr.bf16.mxu0 0
          %3744 = vmatpush1.bf16.msra.mxu0 0
          %3745 = vmatprep.subr.bf16.mxu0 0
          %3746 = vmatpush1.bf16.msra.mxu0 0
          %3747 = vmatprep.subr.bf16.mxu0 0
          %3748 = vmatpush1.bf16.msra.mxu0 0
          %3749 = vmatprep.subr.bf16.mxu0 0
          %3750 = vmatpush1.bf16.msra.mxu0 0
          %3751 = vmatprep.subr.bf16.mxu0 0
          %3752 = vmatpush1.bf16.msra.mxu0 0
          %3753 = vmatprep.subr.bf16.mxu0 0
          %3754 = vmatpush1.bf16.msra.mxu0 0
          %3755 = vmatprep.subr.bf16.mxu0 0
          %3756 = vmatpush1.bf16.msra.mxu0 0
          %3757 = vmatprep.subr.bf16.mxu0 0
          %3758 = vmatpush1.bf16.msra.mxu0 0
          %3759 = vmatprep.mubr.bf16.mxu0 0
          %3760 = vmatmul.mubr.bf16.gmra.mrb[0].mxu0 %v3722
          %v3761 = vpop.f32.mrb[0].mxu0
          %v3762 = vadd.f32 0.0, %v3761
          %v3763 = vpop.f32.mrb[0].mxu0
          %v3764 = vpop.f32.mrb[0].mxu0
          %v3765 = vpop.f32.mrb[0].mxu0
          %3766 = vdwg.mxu0
          %v3768 = vsel %vm540, %v707, 0
          %v3771 = vsel %vm565, %v1644, 0
          %3773 = vmatprep.subr.bf16.mxu0 0
          %3774 = vmatpush1.bf16.msra.mxu0 %v3771
          %3775 = vmatprep.subr.bf16.mxu0 0
          %3776 = vmatpush1.bf16.msra.mxu0 0
          %3777 = vmatprep.subr.bf16.mxu0 0
          %3778 = vmatpush1.bf16.msra.mxu0 0
          %3779 = vmatprep.subr.bf16.mxu0 0
          %3780 = vmatpush1.bf16.msra.mxu0 0
          %3781 = vmatprep.subr.bf16.mxu0 0
          %3782 = vmatpush1.bf16.msra.mxu0 0
          %3783 = vmatprep.subr.bf16.mxu0 0
          %3784 = vmatpush1.bf16.msra.mxu0 0
          %3785 = vmatprep.subr.bf16.mxu0 0
          %3786 = vmatpush1.bf16.msra.mxu0 0
          %3787 = vmatprep.subr.bf16.mxu0 0
          %3788 = vmatpush1.bf16.msra.mxu0 0
          %3789 = vmatprep.subr.bf16.mxu0 0
          %3790 = vmatpush1.bf16.msra.mxu0 0
          %3791 = vmatprep.subr.bf16.mxu0 0
          %3792 = vmatpush1.bf16.msra.mxu0 0
          %3793 = vmatprep.subr.bf16.mxu0 0
          %3794 = vmatpush1.bf16.msra.mxu0 0
          %3795 = vmatprep.subr.bf16.mxu0 0
          %3796 = vmatpush1.bf16.msra.mxu0 0
          %3797 = vmatprep.subr.bf16.mxu0 0
          %3798 = vmatpush1.bf16.msra.mxu0 0
          %3799 = vmatprep.subr.bf16.mxu0 0
          %3800 = vmatpush1.bf16.msra.mxu0 0
          %3801 = vmatprep.subr.bf16.mxu0 0
          %3802 = vmatpush1.bf16.msra.mxu0 0
          %3803 = vmatprep.subr.bf16.mxu0 0
          %3804 = vmatpush1.bf16.msra.mxu0 0
          %3805 = vmatprep.mubr.bf16.mxu0 0
          %3806 = vmatmul.mubr.bf16.gmra.mrb[0].mxu0 %v3768
          %v3807 = vpop.f32.mrb[0].mxu0
          %v3808 = vadd.f32 0.0, %v3807
          %v3809 = vpop.f32.mrb[0].mxu0
          %v3810 = vpop.f32.mrb[0].mxu0
          %v3811 = vpop.f32.mrb[0].mxu0
          %3812 = vdwg.mxu0
          %v3814 = vsel %vm540, %v710, 0
          %v3817 = vsel %vm565, %v1646, 0
          %3819 = vmatprep.subr.bf16.mxu0 0
          %3820 = vmatpush1.bf16.msra.mxu0 %v3817
          %3821 = vmatprep.subr.bf16.mxu0 0
          %3822 = vmatpush1.bf16.msra.mxu0 0
          %3823 = vmatprep.subr.bf16.mxu0 0
          %3824 = vmatpush1.bf16.msra.mxu0 0
          %3825 = vmatprep.subr.bf16.mxu0 0
          %3826 = vmatpush1.bf16.msra.mxu0 0
          %3827 = vmatprep.subr.bf16.mxu0 0
          %3828 = vmatpush1.bf16.msra.mxu0 0
          %3829 = vmatprep.subr.bf16.mxu0 0
          %3830 = vmatpush1.bf16.msra.mxu0 0
          %3831 = vmatprep.subr.bf16.mxu0 0
          %3832 = vmatpush1.bf16.msra.mxu0 0
          %3833 = vmatprep.subr.bf16.mxu0 0
          %3834 = vmatpush1.bf16.msra.mxu0 0
          %3835 = vmatprep.subr.bf16.mxu0 0
          %3836 = vmatpush1.bf16.msra.mxu0 0
          %3837 = vmatprep.subr.bf16.mxu0 0
          %3838 = vmatpush1.bf16.msra.mxu0 0
          %3839 = vmatprep.subr.bf16.mxu0 0
          %3840 = vmatpush1.bf16.msra.mxu0 0
          %3841 = vmatprep.subr.bf16.mxu0 0
          %3842 = vmatpush1.bf16.msra.mxu0 0
          %3843 = vmatprep.subr.bf16.mxu0 0
          %3844 = vmatpush1.bf16.msra.mxu0 0
          %3845 = vmatprep.subr.bf16.mxu0 0
          %3846 = vmatpush1.bf16.msra.mxu0 0
          %3847 = vmatprep.subr.bf16.mxu0 0
          %3848 = vmatpush1.bf16.msra.mxu0 0
          %3849 = vmatprep.subr.bf16.mxu0 0
          %3850 = vmatpush1.bf16.msra.mxu0 0
          %3851 = vmatprep.mubr.bf16.mxu0 0
          %3852 = vmatmul.mubr.bf16.gmra.mrb[0].mxu0 %v3814
          %v3853 = vpop.f32.mrb[0].mxu0
          %v3854 = vadd.f32 0.0, %v3853
          %v3855 = vpop.f32.mrb[0].mxu0
          %v3856 = vpop.f32.mrb[0].mxu0
          %v3857 = vpop.f32.mrb[0].mxu0
          %3858 = vdwg.mxu0
          %v3860 = vsel %vm540, %v713, 0
          %v3863 = vsel %vm565, %v1648, 0
          %3865 = vmatprep.subr.bf16.mxu0 0
          %3866 = vmatpush1.bf16.msra.mxu0 %v3863
          %3867 = vmatprep.subr.bf16.mxu0 0
          %3868 = vmatpush1.bf16.msra.mxu0 0
          %3869 = vmatprep.subr.bf16.mxu0 0
          %3870 = vmatpush1.bf16.msra.mxu0 0
          %3871 = vmatprep.subr.bf16.mxu0 0
          %3872 = vmatpush1.bf16.msra.mxu0 0
          %3873 = vmatprep.subr.bf16.mxu0 0
          %3874 = vmatpush1.bf16.msra.mxu0 0
          %3875 = vmatprep.subr.bf16.mxu0 0
          %3876 = vmatpush1.bf16.msra.mxu0 0
          %3877 = vmatprep.subr.bf16.mxu0 0
          %3878 = vmatpush1.bf16.msra.mxu0 0
          %3879 = vmatprep.subr.bf16.mxu0 0
          %3880 = vmatpush1.bf16.msra.mxu0 0
          %3881 = vmatprep.subr.bf16.mxu0 0
          %3882 = vmatpush1.bf16.msra.mxu0 0
          %3883 = vmatprep.subr.bf16.mxu0 0
          %3884 = vmatpush1.bf16.msra.mxu0 0
          %3885 = vmatprep.subr.bf16.mxu0 0
          %3886 = vmatpush1.bf16.msra.mxu0 0
          %3887 = vmatprep.subr.bf16.mxu0 0
          %3888 = vmatpush1.bf16.msra.mxu0 0
          %3889 = vmatprep.subr.bf16.mxu0 0
          %3890 = vmatpush1.bf16.msra.mxu0 0
          %3891 = vmatprep.subr.bf16.mxu0 0
          %3892 = vmatpush1.bf16.msra.mxu0 0
          %3893 = vmatprep.subr.bf16.mxu0 0
          %3894 = vmatpush1.bf16.msra.mxu0 0
          %3895 = vmatprep.subr.bf16.mxu0 0
          %3896 = vmatpush1.bf16.msra.mxu0 0
          %3897 = vmatprep.mubr.bf16.mxu0 0
          %3898 = vmatmul.mubr.bf16.gmra.mrb[0].mxu0 %v3860
          %v3899 = vpop.f32.mrb[0].mxu0
          %v3900 = vadd.f32 0.0, %v3899
          %v3901 = vpop.f32.mrb[0].mxu0
          %v3902 = vpop.f32.mrb[0].mxu0
          %v3903 = vpop.f32.mrb[0].mxu0
          %3904 = vdwg.mxu0
          %v3905 = vadd.f32 %v3153, %v3210
          %v3906 = vadd.f32 %v3154, %v3256
          %v3907 = vadd.f32 %v3155, %v3302
          %v3908 = vadd.f32 %v3156, %v3348
          %v3909 = vadd.f32 %v3157, %v3394
          %v3910 = vadd.f32 %v3158, %v3440
          %v3911 = vadd.f32 %v3159, %v3486
          %v3912 = vadd.f32 %v3160, %v3532
          %v3913 = vadd.f32 %v3161, %v3578
          %v3914 = vadd.f32 %v3162, %v3624
          %v3915 = vadd.f32 %v3163, %v3670
          %v3916 = vadd.f32 %v3164, %v3716
          %v3917 = vadd.f32 %v3165, %v3762
          %v3918 = vadd.f32 %v3166, %v3808
          %v3919 = vadd.f32 %v3167, %v3854
          %v3920 = vadd.f32 %v3168, %v3900
          %v3921 = vpack.c.bf16 %v3906, %v3905
          %v3922 = vpack.c.bf16 %v3908, %v3907
          %v3923 = vpack.c.bf16 %v3910, %v3909
          %v3924 = vpack.c.bf16 %v3912, %v3911
          %v3925 = vpack.c.bf16 %v3914, %v3913
          %v3926 = vpack.c.bf16 %v3916, %v3915
          %v3927 = vpack.c.bf16 %v3918, %v3917
          %v3928 = vpack.c.bf16 %v3920, %v3919
          %v3961 = vunpack.c.l.b16 %v1089
          %v3962 = vunpack.c.h.b16 %v1089
          %v3963 = vunpack.c.l.b16 %v1090
          %v3964 = vunpack.c.l.b16 %v1091
          %v3965 = vunpack.c.h.b16 %v1091
          %v3966 = vunpack.c.l.b16 %v1092
          %v3967 = vunpack.c.l.b16 %v1093
          %v3968 = vunpack.c.h.b16 %v1093
          %v3969 = vunpack.c.l.b16 %v1094
          %v3970 = vunpack.c.l.b16 %v1095
          %v3971 = vunpack.c.h.b16 %v1095
          %v3972 = vunpack.c.l.b16 %v1096
          %v3973 = vunpack.c.l.b16 %v1097
          %v3974 = vunpack.c.h.b16 %v1097
          %v3975 = vunpack.c.l.b16 %v1098
          %v3976 = vunpack.c.l.b16 %v1099
          %v3977 = vunpack.c.h.b16 %v1099
          %v3978 = vunpack.c.l.b16 %v1100
          %v3979 = vunpack.c.l.b16 %v1101
          %v3980 = vunpack.c.h.b16 %v1101
          %v3981 = vunpack.c.l.b16 %v1102
          %v3982 = vunpack.c.l.b16 %v1103
          %v3983 = vunpack.c.h.b16 %v1103
          %v3984 = vunpack.c.l.b16 %v1104
          %v3985 = vunpack.c.l.b16 %v1105
          %v3986 = vunpack.c.h.b16 %v1105
          %v3987 = vunpack.c.l.b16 %v1106
          %v3988 = vunpack.c.l.b16 %v1107
          %v3989 = vunpack.c.h.b16 %v1107
          %v3990 = vunpack.c.l.b16 %v1108
          %v3991 = vunpack.c.l.b16 %v1109
          %v3992 = vunpack.c.h.b16 %v1109
          %v3993 = vunpack.c.l.b16 %v1110
          %v3994 = vunpack.c.l.b16 %v1111
          %v3995 = vunpack.c.h.b16 %v1111
          %v3996 = vunpack.c.l.b16 %v1112
          %v3997 = vunpack.c.l.b16 %v1113
          %v3998 = vunpack.c.h.b16 %v1113
          %v3999 = vunpack.c.l.b16 %v1114
          %v4000 = vunpack.c.l.b16 %v1115
          %v4001 = vunpack.c.h.b16 %v1115
          %v4002 = vunpack.c.l.b16 %v1116
          %v4003 = vunpack.c.l.b16 %v1117
          %v4004 = vunpack.c.h.b16 %v1117
          %v4005 = vunpack.c.l.b16 %v1118
          %v4006 = vunpack.c.l.b16 %v1119
          %v4007 = vunpack.c.h.b16 %v1119
          %v4008 = vunpack.c.l.b16 %v1120
          %v4009 = vpack.c.b16 %v3964, %v3961
          %v4010 = vpack.c.b16 %v3965, %v3962
          %v4011 = vpack.c.b16 %v3966, %v3963
          %v4012 = vpack.c.b16 %v3970, %v3967
          %v4013 = vpack.c.b16 %v3971, %v3968
          %v4014 = vpack.c.b16 %v3972, %v3969
          %v4015 = vpack.c.b16 %v3976, %v3973
          %v4016 = vpack.c.b16 %v3977, %v3974
          %v4017 = vpack.c.b16 %v3978, %v3975
          %v4018 = vpack.c.b16 %v3982, %v3979
          %v4019 = vpack.c.b16 %v3983, %v3980
          %v4020 = vpack.c.b16 %v3984, %v3981
          %v4021 = vpack.c.b16 %v3988, %v3985
          %v4022 = vpack.c.b16 %v3989, %v3986
          %v4023 = vpack.c.b16 %v3990, %v3987
          %v4024 = vpack.c.b16 %v3994, %v3991
          %v4025 = vpack.c.b16 %v3995, %v3992
          %v4026 = vpack.c.b16 %v3996, %v3993
          %v4027 = vpack.c.b16 %v4000, %v3997
          %v4028 = vpack.c.b16 %v4001, %v3998
          %v4029 = vpack.c.b16 %v4002, %v3999
          %v4030 = vpack.c.b16 %v4006, %v4003
          %v4031 = vpack.c.b16 %v4007, %v4004
          %v4032 = vpack.c.b16 %v4008, %v4005
          %4057 = vmatprep.subr.bf16.mxu0 %v4010
          %4058 = vmatpush1.bf16.msra.mxu0 %v4009
          %4059 = vmatprep.subr.bf16.mxu0 %v4013
          %4060 = vmatpush1.bf16.msra.mxu0 %v4012
          %4061 = vmatprep.subr.bf16.mxu0 %v4016
          %4062 = vmatpush1.bf16.msra.mxu0 %v4015
          %4063 = vmatprep.subr.bf16.mxu0 %v4019
          %4064 = vmatpush1.bf16.msra.mxu0 %v4018
          %4065 = vmatprep.subr.bf16.mxu0 %v4022
          %4066 = vmatpush1.bf16.msra.mxu0 %v4021
          %4067 = vmatprep.subr.bf16.mxu0 %v4025
          %4068 = vmatpush1.bf16.msra.mxu0 %v4024
          %4069 = vmatprep.subr.bf16.mxu0 %v4028
          %4070 = vmatpush1.bf16.msra.mxu0 %v4027
          %4071 = vmatprep.subr.bf16.mxu0 %v4031
          %4072 = vmatpush1.bf16.msra.mxu0 %v4030
          %4073 = vmatprep.subr.bf16.mxu0 0
          %4074 = vmatpush1.bf16.msra.mxu0 0
          %4075 = vmatprep.subr.bf16.mxu0 0
          %4076 = vmatpush1.bf16.msra.mxu0 0
          %4077 = vmatprep.subr.bf16.mxu0 0
          %4078 = vmatpush1.bf16.msra.mxu0 0
          %4079 = vmatprep.subr.bf16.mxu0 0
          %4080 = vmatpush1.bf16.msra.mxu0 0
          %4081 = vmatprep.subr.bf16.mxu0 0
          %4082 = vmatpush1.bf16.msra.mxu0 0
          %4083 = vmatprep.subr.bf16.mxu0 0
          %4084 = vmatpush1.bf16.msra.mxu0 0
          %4085 = vmatprep.subr.bf16.mxu0 0
          %4086 = vmatpush1.bf16.msra.mxu0 0
          %4087 = vmatprep.subr.bf16.mxu0 0
          %4088 = vmatpush1.bf16.msra.mxu0 0
          %4089 = vmatprep.mubr.bf16.mxu0 0
          %4090 = vmatmul.mubr.bf16.gmra.mrb[0].mxu0 %v3921
          %v4091 = vpop.f32.mrb[0].mxu0
          %v4092 = vadd.f32 %v1028, %v4091
          %v4093 = vpop.f32.mrb[0].mxu0
          %v4094 = vadd.f32 %v1032, %v4093
          %v4095 = vpop.f32.mrb[0].mxu0
          %v4096 = vadd.f32 %v1028, %v4095
          %v4097 = vpop.f32.mrb[0].mxu0
          %v4098 = vadd.f32 %v1032, %v4097
          %4099 = vmatprep.mubr.bf16.mxu0 0
          %4100 = vmatmul.mubr.bf16.gmra.mrb[0].mxu0 %v3922
          %v4101 = vpop.f32.mrb[0].mxu0
          %v4102 = vadd.f32 %v1028, %v4101
          %v4103 = vpop.f32.mrb[0].mxu0
          %v4104 = vadd.f32 %v1032, %v4103
          %v4105 = vpop.f32.mrb[0].mxu0
          %v4106 = vadd.f32 %v1028, %v4105
          %v4107 = vpop.f32.mrb[0].mxu0
          %v4108 = vadd.f32 %v1032, %v4107
          %4109 = vmatprep.mubr.bf16.mxu0 0
          %4110 = vmatmul.mubr.bf16.gmra.mrb[0].mxu0 %v3923
          %v4111 = vpop.f32.mrb[0].mxu0
          %v4112 = vadd.f32 %v1028, %v4111
          %v4113 = vpop.f32.mrb[0].mxu0
          %v4114 = vadd.f32 %v1032, %v4113
          %v4115 = vpop.f32.mrb[0].mxu0
          %v4116 = vadd.f32 %v1028, %v4115
          %v4117 = vpop.f32.mrb[0].mxu0
          %v4118 = vadd.f32 %v1032, %v4117
          %4119 = vmatprep.mubr.bf16.mxu0 0
          %4120 = vmatmul.mubr.bf16.gmra.mrb[0].mxu0 %v3924
          %v4121 = vpop.f32.mrb[0].mxu0
          %v4122 = vadd.f32 %v1028, %v4121
          %v4123 = vpop.f32.mrb[0].mxu0
          %v4124 = vadd.f32 %v1032, %v4123
          %v4125 = vpop.f32.mrb[0].mxu0
          %v4126 = vadd.f32 %v1028, %v4125
          %v4127 = vpop.f32.mrb[0].mxu0
          %v4128 = vadd.f32 %v1032, %v4127
          %4129 = vmatprep.mubr.bf16.mxu0 0
          %4130 = vmatmul.mubr.bf16.gmra.mrb[0].mxu0 %v3925
          %v4131 = vpop.f32.mrb[0].mxu0
          %v4132 = vadd.f32 %v1028, %v4131
          %v4133 = vpop.f32.mrb[0].mxu0
          %v4134 = vadd.f32 %v1032, %v4133
          %v4135 = vpop.f32.mrb[0].mxu0
          %v4136 = vadd.f32 %v1028, %v4135
          %v4137 = vpop.f32.mrb[0].mxu0
          %v4138 = vadd.f32 %v1032, %v4137
          %4139 = vmatprep.mubr.bf16.mxu0 0
          %4140 = vmatmul.mubr.bf16.gmra.mrb[0].mxu0 %v3926
          %v4141 = vpop.f32.mrb[0].mxu0
          %v4142 = vadd.f32 %v1028, %v4141
          %v4143 = vpop.f32.mrb[0].mxu0
          %v4144 = vadd.f32 %v1032, %v4143
          %v4145 = vpop.f32.mrb[0].mxu0
          %v4146 = vadd.f32 %v1028, %v4145
          %v4147 = vpop.f32.mrb[0].mxu0
          %v4148 = vadd.f32 %v1032, %v4147
          %4149 = vmatprep.mubr.bf16.mxu0 0
          %4150 = vmatmul.mubr.bf16.gmra.mrb[0].mxu0 %v3927
          %v4151 = vpop.f32.mrb[0].mxu0
          %v4152 = vadd.f32 %v1028, %v4151
          %v4153 = vpop.f32.mrb[0].mxu0
          %v4154 = vadd.f32 %v1032, %v4153
          %v4155 = vpop.f32.mrb[0].mxu0
          %v4156 = vadd.f32 %v1028, %v4155
          %v4157 = vpop.f32.mrb[0].mxu0
          %v4158 = vadd.f32 %v1032, %v4157
          %4159 = vmatprep.mubr.bf16.mxu0 0
          %4160 = vmatmul.mubr.bf16.gmra.mrb[0].mxu0 %v3928
          %v4161 = vpop.f32.mrb[0].mxu0
          %v4162 = vadd.f32 %v1028, %v4161
          %v4163 = vpop.f32.mrb[0].mxu0
          %v4164 = vadd.f32 %v1032, %v4163
          %v4165 = vpop.f32.mrb[0].mxu0
          %v4166 = vadd.f32 %v1028, %v4165
          %v4167 = vpop.f32.mrb[0].mxu0
          %v4168 = vadd.f32 %v1032, %v4167
          %4169 = vdwg.mxu0
          %4170 = vmatprep.subr.bf16.mxu0 0
          %4171 = vmatpush1.bf16.msra.mxu0 %v4011
          %4172 = vmatprep.subr.bf16.mxu0 0
          %4173 = vmatpush1.bf16.msra.mxu0 %v4014
          %4174 = vmatprep.subr.bf16.mxu0 0
          %4175 = vmatpush1.bf16.msra.mxu0 %v4017
          %4176 = vmatprep.subr.bf16.mxu0 0
          %4177 = vmatpush1.bf16.msra.mxu0 %v4020
          %4178 = vmatprep.subr.bf16.mxu0 0
          %4179 = vmatpush1.bf16.msra.mxu0 %v4023
          %4180 = vmatprep.subr.bf16.mxu0 0
          %4181 = vmatpush1.bf16.msra.mxu0 %v4026
          %4182 = vmatprep.subr.bf16.mxu0 0
          %4183 = vmatpush1.bf16.msra.mxu0 %v4029
          %4184 = vmatprep.subr.bf16.mxu0 0
          %4185 = vmatpush1.bf16.msra.mxu0 %v4032
          %4186 = vmatprep.subr.bf16.mxu0 0
          %4187 = vmatpush1.bf16.msra.mxu0 0
          %4188 = vmatprep.subr.bf16.mxu0 0
          %4189 = vmatpush1.bf16.msra.mxu0 0
          %4190 = vmatprep.subr.bf16.mxu0 0
          %4191 = vmatpush1.bf16.msra.mxu0 0
          %4192 = vmatprep.subr.bf16.mxu0 0
          %4193 = vmatpush1.bf16.msra.mxu0 0
          %4194 = vmatprep.subr.bf16.mxu0 0
          %4195 = vmatpush1.bf16.msra.mxu0 0
          %4196 = vmatprep.subr.bf16.mxu0 0
          %4197 = vmatpush1.bf16.msra.mxu0 0
          %4198 = vmatprep.subr.bf16.mxu0 0
          %4199 = vmatpush1.bf16.msra.mxu0 0
          %4200 = vmatprep.subr.bf16.mxu0 0
          %4201 = vmatpush1.bf16.msra.mxu0 0
          %4202 = vmatprep.mubr.bf16.mxu0 0
          %4203 = vmatmul.mubr.bf16.gmra.mrb[0].mxu0 %v3921
          %v4204 = vpop.f32.mrb[0].mxu0
          %v4205 = vadd.f32 %v1036, %v4204
          %v4206 = vpop.f32.mrb[0].mxu0
          %v4207 = vpop.f32.mrb[0].mxu0
          %v4208 = vadd.f32 %v1036, %v4207
          %v4209 = vpop.f32.mrb[0].mxu0
          %4210 = vmatprep.mubr.bf16.mxu0 0
          %4211 = vmatmul.mubr.bf16.gmra.mrb[0].mxu0 %v3922
          %v4212 = vpop.f32.mrb[0].mxu0
          %v4213 = vadd.f32 %v1036, %v4212
          %v4214 = vpop.f32.mrb[0].mxu0
          %v4215 = vpop.f32.mrb[0].mxu0
          %v4216 = vadd.f32 %v1036, %v4215
          %v4217 = vpop.f32.mrb[0].mxu0
          %4218 = vmatprep.mubr.bf16.mxu0 0
          %4219 = vmatmul.mubr.bf16.gmra.mrb[0].mxu0 %v3923
          %v4220 = vpop.f32.mrb[0].mxu0
          %v4221 = vadd.f32 %v1036, %v4220
          %v4222 = vpop.f32.mrb[0].mxu0
          %v4223 = vpop.f32.mrb[0].mxu0
          %v4224 = vadd.f32 %v1036, %v4223
          %v4225 = vpop.f32.mrb[0].mxu0
          %4226 = vmatprep.mubr.bf16.mxu0 0
          %4227 = vmatmul.mubr.bf16.gmra.mrb[0].mxu0 %v3924
          %v4228 = vpop.f32.mrb[0].mxu0
          %v4229 = vadd.f32 %v1036, %v4228
          %v4230 = vpop.f32.mrb[0].mxu0
          %v4231 = vpop.f32.mrb[0].mxu0
          %v4232 = vadd.f32 %v1036, %v4231
          %v4233 = vpop.f32.mrb[0].mxu0
          %4234 = vmatprep.mubr.bf16.mxu0 0
          %4235 = vmatmul.mubr.bf16.gmra.mrb[0].mxu0 %v3925
          %v4236 = vpop.f32.mrb[0].mxu0
          %v4237 = vadd.f32 %v1036, %v4236
          %v4238 = vpop.f32.mrb[0].mxu0
          %v4239 = vpop.f32.mrb[0].mxu0
          %v4240 = vadd.f32 %v1036, %v4239
          %v4241 = vpop.f32.mrb[0].mxu0
          %4242 = vmatprep.mubr.bf16.mxu0 0
          %4243 = vmatmul.mubr.bf16.gmra.mrb[0].mxu0 %v3926
          %v4244 = vpop.f32.mrb[0].mxu0
          %v4245 = vadd.f32 %v1036, %v4244
          %v4246 = vpop.f32.mrb[0].mxu0
          %v4247 = vpop.f32.mrb[0].mxu0
          %v4248 = vadd.f32 %v1036, %v4247
          %v4249 = vpop.f32.mrb[0].mxu0
          %4250 = vmatprep.mubr.bf16.mxu0 0
          %4251 = vmatmul.mubr.bf16.gmra.mrb[0].mxu0 %v3927
          %v4252 = vpop.f32.mrb[0].mxu0
          %v4253 = vadd.f32 %v1036, %v4252
          %v4254 = vpop.f32.mrb[0].mxu0
          %v4255 = vpop.f32.mrb[0].mxu0
          %v4256 = vadd.f32 %v1036, %v4255
          %v4257 = vpop.f32.mrb[0].mxu0
          %4258 = vmatprep.mubr.bf16.mxu0 0
          %4259 = vmatmul.mubr.bf16.gmra.mrb[0].mxu0 %v3928
          %v4260 = vpop.f32.mrb[0].mxu0
          %v4261 = vadd.f32 %v1036, %v4260
          %v4262 = vpop.f32.mrb[0].mxu0
          %v4263 = vpop.f32.mrb[0].mxu0
          %v4264 = vadd.f32 %v1036, %v4263
          %v4265 = vpop.f32.mrb[0].mxu0
          %4266 = vdwg.mxu0
          %v4299 = vunpack.c.l.b16 %v1121
          %v4300 = vunpack.c.h.b16 %v1121
          %v4301 = vunpack.c.l.b16 %v1122
          %v4302 = vunpack.c.l.b16 %v1123
          %v4303 = vunpack.c.h.b16 %v1123
          %v4304 = vunpack.c.l.b16 %v1124
          %v4305 = vunpack.c.l.b16 %v1125
          %v4306 = vunpack.c.h.b16 %v1125
          %v4307 = vunpack.c.l.b16 %v1126
          %v4308 = vunpack.c.l.b16 %v1127
          %v4309 = vunpack.c.h.b16 %v1127
          %v4310 = vunpack.c.l.b16 %v1128
          %v4311 = vunpack.c.l.b16 %v1129
          %v4312 = vunpack.c.h.b16 %v1129
          %v4313 = vunpack.c.l.b16 %v1130
          %v4314 = vunpack.c.l.b16 %v1131
          %v4315 = vunpack.c.h.b16 %v1131
          %v4316 = vunpack.c.l.b16 %v1132
          %v4317 = vunpack.c.l.b16 %v1133
          %v4318 = vunpack.c.h.b16 %v1133
          %v4319 = vunpack.c.l.b16 %v1134
          %v4320 = vunpack.c.l.b16 %v1135
          %v4321 = vunpack.c.h.b16 %v1135
          %v4322 = vunpack.c.l.b16 %v1136
          %v4323 = vunpack.c.l.b16 %v1137
          %v4324 = vunpack.c.h.b16 %v1137
          %v4325 = vunpack.c.l.b16 %v1138
          %v4326 = vunpack.c.l.b16 %v1139
          %v4327 = vunpack.c.h.b16 %v1139
          %v4328 = vunpack.c.l.b16 %v1140
          %v4329 = vunpack.c.l.b16 %v1141
          %v4330 = vunpack.c.h.b16 %v1141
          %v4331 = vunpack.c.l.b16 %v1142
          %v4332 = vunpack.c.l.b16 %v1143
          %v4333 = vunpack.c.h.b16 %v1143
          %v4334 = vunpack.c.l.b16 %v1144
          %v4335 = vunpack.c.l.b16 %v1145
          %v4336 = vunpack.c.h.b16 %v1145
          %v4337 = vunpack.c.l.b16 %v1146
          %v4338 = vunpack.c.l.b16 %v1147
          %v4339 = vunpack.c.h.b16 %v1147
          %v4340 = vunpack.c.l.b16 %v1148
          %v4341 = vunpack.c.l.b16 %v1149
          %v4342 = vunpack.c.h.b16 %v1149
          %v4343 = vunpack.c.l.b16 %v1150
          %v4344 = vunpack.c.l.b16 %v1151
          %v4345 = vunpack.c.h.b16 %v1151
          %v4346 = vunpack.c.l.b16 %v1152
          %v4347 = vpack.c.b16 %v4302, %v4299
          %v4348 = vpack.c.b16 %v4303, %v4300
          %v4349 = vpack.c.b16 %v4304, %v4301
          %v4350 = vpack.c.b16 %v4308, %v4305
          %v4351 = vpack.c.b16 %v4309, %v4306
          %v4352 = vpack.c.b16 %v4310, %v4307
          %v4353 = vpack.c.b16 %v4314, %v4311
          %v4354 = vpack.c.b16 %v4315, %v4312
          %v4355 = vpack.c.b16 %v4316, %v4313
          %v4356 = vpack.c.b16 %v4320, %v4317
          %v4357 = vpack.c.b16 %v4321, %v4318
          %v4358 = vpack.c.b16 %v4322, %v4319
          %v4359 = vpack.c.b16 %v4326, %v4323
          %v4360 = vpack.c.b16 %v4327, %v4324
          %v4361 = vpack.c.b16 %v4328, %v4325
          %v4362 = vpack.c.b16 %v4332, %v4329
          %v4363 = vpack.c.b16 %v4333, %v4330
          %v4364 = vpack.c.b16 %v4334, %v4331
          %v4365 = vpack.c.b16 %v4338, %v4335
          %v4366 = vpack.c.b16 %v4339, %v4336
          %v4367 = vpack.c.b16 %v4340, %v4337
          %v4368 = vpack.c.b16 %v4344, %v4341
          %v4369 = vpack.c.b16 %v4345, %v4342
          %v4370 = vpack.c.b16 %v4346, %v4343
          %4395 = vmatprep.subr.bf16.mxu0 %v4348
          %4396 = vmatpush1.bf16.msra.mxu0 %v4347
          %4397 = vmatprep.subr.bf16.mxu0 %v4351
          %4398 = vmatpush1.bf16.msra.mxu0 %v4350
          %4399 = vmatprep.subr.bf16.mxu0 %v4354
          %4400 = vmatpush1.bf16.msra.mxu0 %v4353
          %4401 = vmatprep.subr.bf16.mxu0 %v4357
          %4402 = vmatpush1.bf16.msra.mxu0 %v4356
          %4403 = vmatprep.subr.bf16.mxu0 %v4360
          %4404 = vmatpush1.bf16.msra.mxu0 %v4359
          %4405 = vmatprep.subr.bf16.mxu0 %v4363
          %4406 = vmatpush1.bf16.msra.mxu0 %v4362
          %4407 = vmatprep.subr.bf16.mxu0 %v4366
          %4408 = vmatpush1.bf16.msra.mxu0 %v4365
          %4409 = vmatprep.subr.bf16.mxu0 %v4369
          %4410 = vmatpush1.bf16.msra.mxu0 %v4368
          %4411 = vmatprep.subr.bf16.mxu0 0
          %4412 = vmatpush1.bf16.msra.mxu0 0
          %4413 = vmatprep.subr.bf16.mxu0 0
          %4414 = vmatpush1.bf16.msra.mxu0 0
          %4415 = vmatprep.subr.bf16.mxu0 0
          %4416 = vmatpush1.bf16.msra.mxu0 0
          %4417 = vmatprep.subr.bf16.mxu0 0
          %4418 = vmatpush1.bf16.msra.mxu0 0
          %4419 = vmatprep.subr.bf16.mxu0 0
          %4420 = vmatpush1.bf16.msra.mxu0 0
          %4421 = vmatprep.subr.bf16.mxu0 0
          %4422 = vmatpush1.bf16.msra.mxu0 0
          %4423 = vmatprep.subr.bf16.mxu0 0
          %4424 = vmatpush1.bf16.msra.mxu0 0
          %4425 = vmatprep.subr.bf16.mxu0 0
          %4426 = vmatpush1.bf16.msra.mxu0 0
          %4427 = vmatprep.mubr.bf16.mxu0 0
          %4428 = vmatmul.mubr.bf16.gmra.mrb[0].mxu0 %v1175
          %v4429 = vpop.f32.mrb[0].mxu0
          %v4430 = vadd.f32 %v1045, %v4429
          %v4431 = vpop.f32.mrb[0].mxu0
          %v4432 = vadd.f32 %v1049, %v4431
          %v4433 = vpop.f32.mrb[0].mxu0
          %v4434 = vadd.f32 %v1045, %v4433
          %v4435 = vpop.f32.mrb[0].mxu0
          %v4436 = vadd.f32 %v1049, %v4435
          %4437 = vmatprep.mubr.bf16.mxu0 0
          %4438 = vmatmul.mubr.bf16.gmra.mrb[0].mxu0 %v1176
          %v4439 = vpop.f32.mrb[0].mxu0
          %v4440 = vadd.f32 %v1045, %v4439
          %v4441 = vpop.f32.mrb[0].mxu0
          %v4442 = vadd.f32 %v1049, %v4441
          %v4443 = vpop.f32.mrb[0].mxu0
          %v4444 = vadd.f32 %v1045, %v4443
          %v4445 = vpop.f32.mrb[0].mxu0
          %v4446 = vadd.f32 %v1049, %v4445
          %4447 = vmatprep.mubr.bf16.mxu0 0
          %4448 = vmatmul.mubr.bf16.gmra.mrb[0].mxu0 %v1177
          %v4449 = vpop.f32.mrb[0].mxu0
          %v4450 = vadd.f32 %v1045, %v4449
          %v4451 = vpop.f32.mrb[0].mxu0
          %v4452 = vadd.f32 %v1049, %v4451
          %v4453 = vpop.f32.mrb[0].mxu0
          %v4454 = vadd.f32 %v1045, %v4453
          %v4455 = vpop.f32.mrb[0].mxu0
          %v4456 = vadd.f32 %v1049, %v4455
          %4457 = vmatprep.mubr.bf16.mxu0 0
          %4458 = vmatmul.mubr.bf16.gmra.mrb[0].mxu0 %v1178
          %v4459 = vpop.f32.mrb[0].mxu0
          %v4460 = vadd.f32 %v1045, %v4459
          %v4461 = vpop.f32.mrb[0].mxu0
          %v4462 = vadd.f32 %v1049, %v4461
          %v4463 = vpop.f32.mrb[0].mxu0
          %v4464 = vadd.f32 %v1045, %v4463
          %v4465 = vpop.f32.mrb[0].mxu0
          %v4466 = vadd.f32 %v1049, %v4465
          %4467 = vmatprep.mubr.bf16.mxu0 0
          %4468 = vmatmul.mubr.bf16.gmra.mrb[0].mxu0 %v1179
          %v4469 = vpop.f32.mrb[0].mxu0
          %v4470 = vadd.f32 %v1045, %v4469
          %v4471 = vpop.f32.mrb[0].mxu0
          %v4472 = vadd.f32 %v1049, %v4471
          %v4473 = vpop.f32.mrb[0].mxu0
          %v4474 = vadd.f32 %v1045, %v4473
          %v4475 = vpop.f32.mrb[0].mxu0
          %v4476 = vadd.f32 %v1049, %v4475
          %4477 = vmatprep.mubr.bf16.mxu0 0
          %4478 = vmatmul.mubr.bf16.gmra.mrb[0].mxu0 %v1180
          %v4479 = vpop.f32.mrb[0].mxu0
          %v4480 = vadd.f32 %v1045, %v4479
          %v4481 = vpop.f32.mrb[0].mxu0
          %v4482 = vadd.f32 %v1049, %v4481
          %v4483 = vpop.f32.mrb[0].mxu0
          %v4484 = vadd.f32 %v1045, %v4483
          %v4485 = vpop.f32.mrb[0].mxu0
          %v4486 = vadd.f32 %v1049, %v4485
          %4487 = vmatprep.mubr.bf16.mxu0 0
          %4488 = vmatmul.mubr.bf16.gmra.mrb[0].mxu0 %v1181
          %v4489 = vpop.f32.mrb[0].mxu0
          %v4490 = vadd.f32 %v1045, %v4489
          %v4491 = vpop.f32.mrb[0].mxu0
          %v4492 = vadd.f32 %v1049, %v4491
          %v4493 = vpop.f32.mrb[0].mxu0
          %v4494 = vadd.f32 %v1045, %v4493
          %v4495 = vpop.f32.mrb[0].mxu0
          %v4496 = vadd.f32 %v1049, %v4495
          %4497 = vmatprep.mubr.bf16.mxu0 0
          %4498 = vmatmul.mubr.bf16.gmra.mrb[0].mxu0 %v1182
          %v4499 = vpop.f32.mrb[0].mxu0
          %v4500 = vadd.f32 %v1045, %v4499
          %v4501 = vpop.f32.mrb[0].mxu0
          %v4502 = vadd.f32 %v1049, %v4501
          %v4503 = vpop.f32.mrb[0].mxu0
          %v4504 = vadd.f32 %v1045, %v4503
          %v4505 = vpop.f32.mrb[0].mxu0
          %v4506 = vadd.f32 %v1049, %v4505
          %4507 = vdwg.mxu0
          %4508 = vmatprep.subr.bf16.mxu0 0
          %4509 = vmatpush1.bf16.msra.mxu0 %v4349
          %4510 = vmatprep.subr.bf16.mxu0 0
          %4511 = vmatpush1.bf16.msra.mxu0 %v4352
          %4512 = vmatprep.subr.bf16.mxu0 0
          %4513 = vmatpush1.bf16.msra.mxu0 %v4355
          %4514 = vmatprep.subr.bf16.mxu0 0
          %4515 = vmatpush1.bf16.msra.mxu0 %v4358
          %4516 = vmatprep.subr.bf16.mxu0 0
          %4517 = vmatpush1.bf16.msra.mxu0 %v4361
          %4518 = vmatprep.subr.bf16.mxu0 0
          %4519 = vmatpush1.bf16.msra.mxu0 %v4364
          %4520 = vmatprep.subr.bf16.mxu0 0
          %4521 = vmatpush1.bf16.msra.mxu0 %v4367
          %4522 = vmatprep.subr.bf16.mxu0 0
          %4523 = vmatpush1.bf16.msra.mxu0 %v4370
          %4524 = vmatprep.subr.bf16.mxu0 0
          %4525 = vmatpush1.bf16.msra.mxu0 0
          %4526 = vmatprep.subr.bf16.mxu0 0
          %4527 = vmatpush1.bf16.msra.mxu0 0
          %4528 = vmatprep.subr.bf16.mxu0 0
          %4529 = vmatpush1.bf16.msra.mxu0 0
          %4530 = vmatprep.subr.bf16.mxu0 0
          %4531 = vmatpush1.bf16.msra.mxu0 0
          %4532 = vmatprep.subr.bf16.mxu0 0
          %4533 = vmatpush1.bf16.msra.mxu0 0
          %4534 = vmatprep.subr.bf16.mxu0 0
          %4535 = vmatpush1.bf16.msra.mxu0 0
          %4536 = vmatprep.subr.bf16.mxu0 0
          %4537 = vmatpush1.bf16.msra.mxu0 0
          %4538 = vmatprep.subr.bf16.mxu0 0
          %4539 = vmatpush1.bf16.msra.mxu0 0
          %4540 = vmatprep.mubr.bf16.mxu0 0
          %4541 = vmatmul.mubr.bf16.gmra.mrb[0].mxu0 %v1175
          %v4542 = vpop.f32.mrb[0].mxu0
          %v4543 = vadd.f32 %v1053, %v4542
          %v4544 = vpop.f32.mrb[0].mxu0
          %v4545 = vpop.f32.mrb[0].mxu0
          %v4546 = vadd.f32 %v1053, %v4545
          %v4547 = vpop.f32.mrb[0].mxu0
          %4548 = vmatprep.mubr.bf16.mxu0 0
          %4549 = vmatmul.mubr.bf16.gmra.mrb[0].mxu0 %v1176
          %v4550 = vpop.f32.mrb[0].mxu0
          %v4551 = vadd.f32 %v1053, %v4550
          %v4552 = vpop.f32.mrb[0].mxu0
          %v4553 = vpop.f32.mrb[0].mxu0
          %v4554 = vadd.f32 %v1053, %v4553
          %v4555 = vpop.f32.mrb[0].mxu0
          %4556 = vmatprep.mubr.bf16.mxu0 0
          %4557 = vmatmul.mubr.bf16.gmra.mrb[0].mxu0 %v1177
          %v4558 = vpop.f32.mrb[0].mxu0
          %v4559 = vadd.f32 %v1053, %v4558
          %v4560 = vpop.f32.mrb[0].mxu0
          %v4561 = vpop.f32.mrb[0].mxu0
          %v4562 = vadd.f32 %v1053, %v4561
          %v4563 = vpop.f32.mrb[0].mxu0
          %4564 = vmatprep.mubr.bf16.mxu0 0
          %4565 = vmatmul.mubr.bf16.gmra.mrb[0].mxu0 %v1178
          %v4566 = vpop.f32.mrb[0].mxu0
          %v4567 = vadd.f32 %v1053, %v4566
          %v4568 = vpop.f32.mrb[0].mxu0
          %v4569 = vpop.f32.mrb[0].mxu0
          %v4570 = vadd.f32 %v1053, %v4569
          %v4571 = vpop.f32.mrb[0].mxu0
          %4572 = vmatprep.mubr.bf16.mxu0 0
          %4573 = vmatmul.mubr.bf16.gmra.mrb[0].mxu0 %v1179
          %v4574 = vpop.f32.mrb[0].mxu0
          %v4575 = vadd.f32 %v1053, %v4574
          %v4576 = vpop.f32.mrb[0].mxu0
          %v4577 = vpop.f32.mrb[0].mxu0
          %v4578 = vadd.f32 %v1053, %v4577
          %v4579 = vpop.f32.mrb[0].mxu0
          %4580 = vmatprep.mubr.bf16.mxu0 0
          %4581 = vmatmul.mubr.bf16.gmra.mrb[0].mxu0 %v1180
          %v4582 = vpop.f32.mrb[0].mxu0
          %v4583 = vadd.f32 %v1053, %v4582
          %v4584 = vpop.f32.mrb[0].mxu0
          %v4585 = vpop.f32.mrb[0].mxu0
          %v4586 = vadd.f32 %v1053, %v4585
          %v4587 = vpop.f32.mrb[0].mxu0
          %4588 = vmatprep.mubr.bf16.mxu0 0
          %4589 = vmatmul.mubr.bf16.gmra.mrb[0].mxu0 %v1181
          %v4590 = vpop.f32.mrb[0].mxu0
          %v4591 = vadd.f32 %v1053, %v4590
          %v4592 = vpop.f32.mrb[0].mxu0
          %v4593 = vpop.f32.mrb[0].mxu0
          %v4594 = vadd.f32 %v1053, %v4593
          %v4595 = vpop.f32.mrb[0].mxu0
          %4596 = vmatprep.mubr.bf16.mxu0 0
          %4597 = vmatmul.mubr.bf16.gmra.mrb[0].mxu0 %v1182
          %v4598 = vpop.f32.mrb[0].mxu0
          %v4599 = vadd.f32 %v1053, %v4598
          %v4600 = vpop.f32.mrb[0].mxu0
          %v4601 = vpop.f32.mrb[0].mxu0
          %v4602 = vadd.f32 %v1053, %v4601
          %v4603 = vpop.f32.mrb[0].mxu0
          %4604 = vdwg.mxu0
          %v4605 = vadd.f32 %v4092, %v4430
          %v4606 = vadd.f32 %v4096, %v4434
          %v4607 = vadd.f32 %v4102, %v4440
          %v4608 = vadd.f32 %v4106, %v4444
          %v4609 = vadd.f32 %v4112, %v4450
          %v4610 = vadd.f32 %v4116, %v4454
          %v4611 = vadd.f32 %v4122, %v4460
          %v4612 = vadd.f32 %v4126, %v4464
          %v4613 = vadd.f32 %v4132, %v4470
          %v4614 = vadd.f32 %v4136, %v4474
          %v4615 = vadd.f32 %v4142, %v4480
          %v4616 = vadd.f32 %v4146, %v4484
          %v4617 = vadd.f32 %v4152, %v4490
          %v4618 = vadd.f32 %v4156, %v4494
          %v4619 = vadd.f32 %v4162, %v4500
          %v4620 = vadd.f32 %v4166, %v4504
          %v4621 = vxor.u32 %v4605, 2147483648
          %v4622 = vxor.u32 %v4606, 2147483648
          %v4623 = vxor.u32 %v4607, 2147483648
          %v4624 = vxor.u32 %v4608, 2147483648
          %v4625 = vxor.u32 %v4609, 2147483648
          %v4626 = vxor.u32 %v4610, 2147483648
          %v4627 = vxor.u32 %v4611, 2147483648
          %v4628 = vxor.u32 %v4612, 2147483648
          %v4629 = vxor.u32 %v4613, 2147483648
          %v4630 = vxor.u32 %v4614, 2147483648
          %v4631 = vxor.u32 %v4615, 2147483648
          %v4632 = vxor.u32 %v4616, 2147483648
          %v4633 = vxor.u32 %v4617, 2147483648
          %v4634 = vxor.u32 %v4618, 2147483648
          %v4635 = vxor.u32 %v4619, 2147483648
          %v4636 = vxor.u32 %v4620, 2147483648
          %v4637 = vmul.f32 %v4621, 1.442695
          %v4638 = vpow.pop %v4637
          %v4639 = vmul.f32 %v4622, 1.442695
          %v4640 = vpow.pop %v4639
          %v4641 = vmul.f32 %v4623, 1.442695
          %v4642 = vpow.pop %v4641
          %v4643 = vmul.f32 %v4624, 1.442695
          %v4644 = vpow.pop %v4643
          %v4645 = vmul.f32 %v4625, 1.442695
          %v4646 = vpow.pop %v4645
          %v4647 = vmul.f32 %v4626, 1.442695
          %v4648 = vpow.pop %v4647
          %v4649 = vmul.f32 %v4627, 1.442695
          %v4650 = vpow.pop %v4649
          %v4651 = vmul.f32 %v4628, 1.442695
          %v4652 = vpow.pop %v4651
          %v4653 = vmul.f32 %v4629, 1.442695
          %v4654 = vpow.pop %v4653
          %v4655 = vmul.f32 %v4630, 1.442695
          %v4656 = vpow.pop %v4655
          %v4657 = vmul.f32 %v4631, 1.442695
          %v4658 = vpow.pop %v4657
          %v4659 = vmul.f32 %v4632, 1.442695
          %v4660 = vpow.pop %v4659
          %v4661 = vmul.f32 %v4633, 1.442695
          %v4662 = vpow.pop %v4661
          %v4663 = vmul.f32 %v4634, 1.442695
          %v4664 = vpow.pop %v4663
          %v4665 = vmul.f32 %v4635, 1.442695
          %v4666 = vpow.pop %v4665
          %v4667 = vmul.f32 %v4636, 1.442695
          %v4668 = vpow.pop %v4667
          %v4669 = vadd.f32 %v4638, 1.0
          %v4670 = vadd.f32 %v4640, 1.0
          %v4671 = vadd.f32 %v4642, 1.0
          %v4672 = vadd.f32 %v4644, 1.0
          %v4673 = vadd.f32 %v4646, 1.0
          %v4674 = vadd.f32 %v4648, 1.0
          %v4675 = vadd.f32 %v4650, 1.0
          %v4676 = vadd.f32 %v4652, 1.0
          %v4677 = vadd.f32 %v4654, 1.0
          %v4678 = vadd.f32 %v4656, 1.0
          %v4679 = vadd.f32 %v4658, 1.0
          %v4680 = vadd.f32 %v4660, 1.0
          %v4681 = vadd.f32 %v4662, 1.0
          %v4682 = vadd.f32 %v4664, 1.0
          %v4683 = vadd.f32 %v4666, 1.0
          %v4684 = vadd.f32 %v4668, 1.0
          %v4685 = vrcp.pop %v4669
          %v4686 = vmul.f32 1.0, %v4685
          %v4687 = vrcp.pop %v4670
          %v4688 = vmul.f32 1.0, %v4687
          %v4689 = vrcp.pop %v4671
          %v4690 = vmul.f32 1.0, %v4689
          %v4691 = vrcp.pop %v4672
          %v4692 = vmul.f32 1.0, %v4691
          %v4693 = vrcp.pop %v4673
          %v4694 = vmul.f32 1.0, %v4693
          %v4695 = vrcp.pop %v4674
          %v4696 = vmul.f32 1.0, %v4695
          %v4697 = vrcp.pop %v4675
          %v4698 = vmul.f32 1.0, %v4697
          %v4699 = vrcp.pop %v4676
          %v4700 = vmul.f32 1.0, %v4699
          %v4701 = vrcp.pop %v4677
          %v4702 = vmul.f32 1.0, %v4701
          %v4703 = vrcp.pop %v4678
          %v4704 = vmul.f32 1.0, %v4703
          %v4705 = vrcp.pop %v4679
          %v4706 = vmul.f32 1.0, %v4705
          %v4707 = vrcp.pop %v4680
          %v4708 = vmul.f32 1.0, %v4707
          %v4709 = vrcp.pop %v4681
          %v4710 = vmul.f32 1.0, %v4709
          %v4711 = vrcp.pop %v4682
          %v4712 = vmul.f32 1.0, %v4711
          %v4713 = vrcp.pop %v4683
          %v4714 = vmul.f32 1.0, %v4713
          %v4715 = vrcp.pop %v4684
          %v4716 = vmul.f32 1.0, %v4715
          %v4717 = vadd.f32 %v4094, %v4432
          %v4718 = vadd.f32 %v4098, %v4436
          %v4719 = vadd.f32 %v4104, %v4442
          %v4720 = vadd.f32 %v4108, %v4446
          %v4721 = vadd.f32 %v4114, %v4452
          %v4722 = vadd.f32 %v4118, %v4456
          %v4723 = vadd.f32 %v4124, %v4462
          %v4724 = vadd.f32 %v4128, %v4466
          %v4725 = vadd.f32 %v4134, %v4472
          %v4726 = vadd.f32 %v4138, %v4476
          %v4727 = vadd.f32 %v4144, %v4482
          %v4728 = vadd.f32 %v4148, %v4486
          %v4729 = vadd.f32 %v4154, %v4492
          %v4730 = vadd.f32 %v4158, %v4496
          %v4731 = vadd.f32 %v4164, %v4502
          %v4732 = vadd.f32 %v4168, %v4506
          %v4733 = vxor.u32 %v4717, 2147483648
          %v4734 = vxor.u32 %v4718, 2147483648
          %v4735 = vxor.u32 %v4719, 2147483648
          %v4736 = vxor.u32 %v4720, 2147483648
          %v4737 = vxor.u32 %v4721, 2147483648
          %v4738 = vxor.u32 %v4722, 2147483648
          %v4739 = vxor.u32 %v4723, 2147483648
          %v4740 = vxor.u32 %v4724, 2147483648
          %v4741 = vxor.u32 %v4725, 2147483648
          %v4742 = vxor.u32 %v4726, 2147483648
          %v4743 = vxor.u32 %v4727, 2147483648
          %v4744 = vxor.u32 %v4728, 2147483648
          %v4745 = vxor.u32 %v4729, 2147483648
          %v4746 = vxor.u32 %v4730, 2147483648
          %v4747 = vxor.u32 %v4731, 2147483648
          %v4748 = vxor.u32 %v4732, 2147483648
          %v4749 = vmul.f32 %v4733, 1.442695
          %v4750 = vpow.pop %v4749
          %v4751 = vmul.f32 %v4734, 1.442695
          %v4752 = vpow.pop %v4751
          %v4753 = vmul.f32 %v4735, 1.442695
          %v4754 = vpow.pop %v4753
          %v4755 = vmul.f32 %v4736, 1.442695
          %v4756 = vpow.pop %v4755
          %v4757 = vmul.f32 %v4737, 1.442695
          %v4758 = vpow.pop %v4757
          %v4759 = vmul.f32 %v4738, 1.442695
          %v4760 = vpow.pop %v4759
          %v4761 = vmul.f32 %v4739, 1.442695
          %v4762 = vpow.pop %v4761
          %v4763 = vmul.f32 %v4740, 1.442695
          %v4764 = vpow.pop %v4763
          %v4765 = vmul.f32 %v4741, 1.442695
          %v4766 = vpow.pop %v4765
          %v4767 = vmul.f32 %v4742, 1.442695
          %v4768 = vpow.pop %v4767
          %v4769 = vmul.f32 %v4743, 1.442695
          %v4770 = vpow.pop %v4769
          %v4771 = vmul.f32 %v4744, 1.442695
          %v4772 = vpow.pop %v4771
          %v4773 = vmul.f32 %v4745, 1.442695
          %v4774 = vpow.pop %v4773
          %v4775 = vmul.f32 %v4746, 1.442695
          %v4776 = vpow.pop %v4775
          %v4777 = vmul.f32 %v4747, 1.442695
          %v4778 = vpow.pop %v4777
          %v4779 = vmul.f32 %v4748, 1.442695
          %v4780 = vpow.pop %v4779
          %v4781 = vadd.f32 %v4750, 1.0
          %v4782 = vadd.f32 %v4752, 1.0
          %v4783 = vadd.f32 %v4754, 1.0
          %v4784 = vadd.f32 %v4756, 1.0
          %v4785 = vadd.f32 %v4758, 1.0
          %v4786 = vadd.f32 %v4760, 1.0
          %v4787 = vadd.f32 %v4762, 1.0
          %v4788 = vadd.f32 %v4764, 1.0
          %v4789 = vadd.f32 %v4766, 1.0
          %v4790 = vadd.f32 %v4768, 1.0
          %v4791 = vadd.f32 %v4770, 1.0
          %v4792 = vadd.f32 %v4772, 1.0
          %v4793 = vadd.f32 %v4774, 1.0
          %v4794 = vadd.f32 %v4776, 1.0
          %v4795 = vadd.f32 %v4778, 1.0
          %v4796 = vadd.f32 %v4780, 1.0
          %v4797 = vrcp.pop %v4781
          %v4798 = vmul.f32 1.0, %v4797
          %v4799 = vrcp.pop %v4782
          %v4800 = vmul.f32 1.0, %v4799
          %v4801 = vrcp.pop %v4783
          %v4802 = vmul.f32 1.0, %v4801
          %v4803 = vrcp.pop %v4784
          %v4804 = vmul.f32 1.0, %v4803
          %v4805 = vrcp.pop %v4785
          %v4806 = vmul.f32 1.0, %v4805
          %v4807 = vrcp.pop %v4786
          %v4808 = vmul.f32 1.0, %v4807
          %v4809 = vrcp.pop %v4787
          %v4810 = vmul.f32 1.0, %v4809
          %v4811 = vrcp.pop %v4788
          %v4812 = vmul.f32 1.0, %v4811
          %v4813 = vrcp.pop %v4789
          %v4814 = vmul.f32 1.0, %v4813
          %v4815 = vrcp.pop %v4790
          %v4816 = vmul.f32 1.0, %v4815
          %v4817 = vrcp.pop %v4791
          %v4818 = vmul.f32 1.0, %v4817
          %v4819 = vrcp.pop %v4792
          %v4820 = vmul.f32 1.0, %v4819
          %v4821 = vrcp.pop %v4793
          %v4822 = vmul.f32 1.0, %v4821
          %v4823 = vrcp.pop %v4794
          %v4824 = vmul.f32 1.0, %v4823
          %v4825 = vrcp.pop %v4795
          %v4826 = vmul.f32 1.0, %v4825
          %v4827 = vrcp.pop %v4796
          %v4828 = vmul.f32 1.0, %v4827
          %v4829 = vmul.f32 %v4686, %v4543
          %v4830 = vmul.f32 %v4688, %v4546
          %v4831 = vmul.f32 %v4690, %v4551
          %v4832 = vmul.f32 %v4692, %v4554
          %v4833 = vmul.f32 %v4694, %v4559
          %v4834 = vmul.f32 %v4696, %v4562
          %v4835 = vmul.f32 %v4698, %v4567
          %v4836 = vmul.f32 %v4700, %v4570
          %v4837 = vmul.f32 %v4702, %v4575
          %v4838 = vmul.f32 %v4704, %v4578
          %v4839 = vmul.f32 %v4706, %v4583
          %v4840 = vmul.f32 %v4708, %v4586
          %v4841 = vmul.f32 %v4710, %v4591
          %v4842 = vmul.f32 %v4712, %v4594
          %v4843 = vmul.f32 %v4714, %v4599
          %v4844 = vmul.f32 %v4716, %v4602
          %v4845 = vadd.f32 %v4205, %v4829
          %v4846 = vadd.f32 %v4208, %v4830
          %v4847 = vadd.f32 %v4213, %v4831
          %v4848 = vadd.f32 %v4216, %v4832
          %v4849 = vadd.f32 %v4221, %v4833
          %v4850 = vadd.f32 %v4224, %v4834
          %v4851 = vadd.f32 %v4229, %v4835
          %v4852 = vadd.f32 %v4232, %v4836
          %v4853 = vadd.f32 %v4237, %v4837
          %v4854 = vadd.f32 %v4240, %v4838
          %v4855 = vadd.f32 %v4245, %v4839
          %v4856 = vadd.f32 %v4248, %v4840
          %v4857 = vadd.f32 %v4253, %v4841
          %v4858 = vadd.f32 %v4256, %v4842
          %v4859 = vadd.f32 %v4261, %v4843
          %v4860 = vadd.f32 %v4264, %v4844
          %v4861 = vtanh.pop %v4845
          %v4862 = vtanh.pop %v4846
          %v4863 = vtanh.pop %v4847
          %v4864 = vtanh.pop %v4848
          %v4865 = vtanh.pop %v4849
          %v4866 = vtanh.pop %v4850
          %v4867 = vtanh.pop %v4851
          %v4868 = vtanh.pop %v4852
          %v4869 = vtanh.pop %v4853
          %v4870 = vtanh.pop %v4854
          %v4871 = vtanh.pop %v4855
          %v4872 = vtanh.pop %v4856
          %v4873 = vtanh.pop %v4857
          %v4874 = vtanh.pop %v4858
          %v4875 = vtanh.pop %v4859
          %v4876 = vtanh.pop %v4860
          %v4877 = vsub.f32 1.0, %v4798
          %v4878 = vsub.f32 1.0, %v4800
          %v4879 = vsub.f32 1.0, %v4802
          %v4880 = vsub.f32 1.0, %v4804
          %v4881 = vsub.f32 1.0, %v4806
          %v4882 = vsub.f32 1.0, %v4808
          %v4883 = vsub.f32 1.0, %v4810
          %v4884 = vsub.f32 1.0, %v4812
          %v4885 = vsub.f32 1.0, %v4814
          %v4886 = vsub.f32 1.0, %v4816
          %v4887 = vsub.f32 1.0, %v4818
          %v4888 = vsub.f32 1.0, %v4820
          %v4889 = vsub.f32 1.0, %v4822
          %v4890 = vsub.f32 1.0, %v4824
          %v4891 = vsub.f32 1.0, %v4826
          %v4892 = vsub.f32 1.0, %v4828
          %v4893 = vmul.f32 %v4877, %v4861
          %v4894 = vmul.f32 %v4878, %v4862
          %v4895 = vmul.f32 %v4879, %v4863
          %v4896 = vmul.f32 %v4880, %v4864
          %v4897 = vmul.f32 %v4881, %v4865
          %v4898 = vmul.f32 %v4882, %v4866
          %v4899 = vmul.f32 %v4883, %v4867
          %v4900 = vmul.f32 %v4884, %v4868
          %v4901 = vmul.f32 %v4885, %v4869
          %v4902 = vmul.f32 %v4886, %v4870
          %v4903 = vmul.f32 %v4887, %v4871
          %v4904 = vmul.f32 %v4888, %v4872
          %v4905 = vmul.f32 %v4889, %v4873
          %v4906 = vmul.f32 %v4890, %v4874
          %v4907 = vmul.f32 %v4891, %v4875
          %v4908 = vmul.f32 %v4892, %v4876
          %v4909 = vmul.f32 %v4798, %v1159
          %v4910 = vmul.f32 %v4800, %v1160
          %v4911 = vmul.f32 %v4802, %v1161
          %v4912 = vmul.f32 %v4804, %v1162
          %v4913 = vmul.f32 %v4806, %v1163
          %v4914 = vmul.f32 %v4808, %v1164
          %v4915 = vmul.f32 %v4810, %v1165
          %v4916 = vmul.f32 %v4812, %v1166
          %v4917 = vmul.f32 %v4814, %v1167
          %v4918 = vmul.f32 %v4816, %v1168
          %v4919 = vmul.f32 %v4818, %v1169
          %v4920 = vmul.f32 %v4820, %v1170
          %v4921 = vmul.f32 %v4822, %v1171
          %v4922 = vmul.f32 %v4824, %v1172
          %v4923 = vmul.f32 %v4826, %v1173
          %v4924 = vmul.f32 %v4828, %v1174
          %v4925 = vadd.f32 %v4893, %v4909
          %v4926 = vadd.f32 %v4894, %v4910
          %v4927 = vadd.f32 %v4895, %v4911
          %v4928 = vadd.f32 %v4896, %v4912
          %v4929 = vadd.f32 %v4897, %v4913
          %v4930 = vadd.f32 %v4898, %v4914
          %v4931 = vadd.f32 %v4899, %v4915
          %v4932 = vadd.f32 %v4900, %v4916
          %v4933 = vadd.f32 %v4901, %v4917
          %v4934 = vadd.f32 %v4902, %v4918
          %v4935 = vadd.f32 %v4903, %v4919
          %v4936 = vadd.f32 %v4904, %v4920
          %v4937 = vadd.f32 %v4905, %v4921
          %v4938 = vadd.f32 %v4906, %v4922
          %v4939 = vadd.f32 %v4907, %v4923
          %v4940 = vadd.f32 %v4908, %v4924
        $region85: #{tpu_custom_call.1} parent=75 // loop_footer
          %s1158 = sadd.s32 1, %s1154
        $region86: #{tpu_custom_call.1} parent=75 // loop_footer_branch
          %1153 = sbr.rel target = $region82
        $region87: #{tpu_custom_call.1} parent=75 // loop_exit
          _
        %v4941 = vrot.slane %v1159, 4
        %v4942 = vadd.f32 %v1159, %v4941
        %v4943 = vrot.slane %v4942, 2
        %v4944 = vadd.f32 %v4942, %v4943
        %v4945 = vrot.slane %v4944, 1
        %v4946 = vadd.f32 %v4944, %v4945
        %v4947 = vrot.slane %v1160, 4
        %v4948 = vadd.f32 %v1160, %v4947
        %v4949 = vrot.slane %v4948, 2
        %v4950 = vadd.f32 %v4948, %v4949
        %v4951 = vrot.slane %v4950, 1
        %v4952 = vadd.f32 %v4950, %v4951
        %v4953 = vrot.slane %v1161, 4
        %v4954 = vadd.f32 %v1161, %v4953
        %v4955 = vrot.slane %v4954, 2
        %v4956 = vadd.f32 %v4954, %v4955
        %v4957 = vrot.slane %v4956, 1
        %v4958 = vadd.f32 %v4956, %v4957
        %v4959 = vrot.slane %v1162, 4
        %v4960 = vadd.f32 %v1162, %v4959
        %v4961 = vrot.slane %v4960, 2
        %v4962 = vadd.f32 %v4960, %v4961
        %v4963 = vrot.slane %v4962, 1
        %v4964 = vadd.f32 %v4962, %v4963
        %v4965 = vrot.slane %v1163, 4
        %v4966 = vadd.f32 %v1163, %v4965
        %v4967 = vrot.slane %v4966, 2
        %v4968 = vadd.f32 %v4966, %v4967
        %v4969 = vrot.slane %v4968, 1
        %v4970 = vadd.f32 %v4968, %v4969
        %v4971 = vrot.slane %v1164, 4
        %v4972 = vadd.f32 %v1164, %v4971
        %v4973 = vrot.slane %v4972, 2
        %v4974 = vadd.f32 %v4972, %v4973
        %v4975 = vrot.slane %v4974, 1
        %v4976 = vadd.f32 %v4974, %v4975
        %v4977 = vrot.slane %v1165, 4
        %v4978 = vadd.f32 %v1165, %v4977
        %v4979 = vrot.slane %v4978, 2
        %v4980 = vadd.f32 %v4978, %v4979
        %v4981 = vrot.slane %v4980, 1
        %v4982 = vadd.f32 %v4980, %v4981
        %v4983 = vrot.slane %v1166, 4
        %v4984 = vadd.f32 %v1166, %v4983
        %v4985 = vrot.slane %v4984, 2
        %v4986 = vadd.f32 %v4984, %v4985
        %v4987 = vrot.slane %v4986, 1
        %v4988 = vadd.f32 %v4986, %v4987
        %v4989 = vrot.slane %v1167, 4
        %v4990 = vadd.f32 %v1167, %v4989
        %v4991 = vrot.slane %v4990, 2
        %v4992 = vadd.f32 %v4990, %v4991
        %v4993 = vrot.slane %v4992, 1
        %v4994 = vadd.f32 %v4992, %v4993
        %v4995 = vrot.slane %v1168, 4
        %v4996 = vadd.f32 %v1168, %v4995
        %v4997 = vrot.slane %v4996, 2
        %v4998 = vadd.f32 %v4996, %v4997
        %v4999 = vrot.slane %v4998, 1
        %v5000 = vadd.f32 %v4998, %v4999
        %v5001 = vrot.slane %v1169, 4
        %v5002 = vadd.f32 %v1169, %v5001
        %v5003 = vrot.slane %v5002, 2
        %v5004 = vadd.f32 %v5002, %v5003
        %v5005 = vrot.slane %v5004, 1
        %v5006 = vadd.f32 %v5004, %v5005
        %v5007 = vrot.slane %v1170, 4
        %v5008 = vadd.f32 %v1170, %v5007
        %v5009 = vrot.slane %v5008, 2
        %v5010 = vadd.f32 %v5008, %v5009
        %v5011 = vrot.slane %v5010, 1
        %v5012 = vadd.f32 %v5010, %v5011
        %v5013 = vrot.slane %v1171, 4
        %v5014 = vadd.f32 %v1171, %v5013
        %v5015 = vrot.slane %v5014, 2
        %v5016 = vadd.f32 %v5014, %v5015
        %v5017 = vrot.slane %v5016, 1
        %v5018 = vadd.f32 %v5016, %v5017
        %v5019 = vrot.slane %v1172, 4
        %v5020 = vadd.f32 %v1172, %v5019
        %v5021 = vrot.slane %v5020, 2
        %v5022 = vadd.f32 %v5020, %v5021
        %v5023 = vrot.slane %v5022, 1
        %v5024 = vadd.f32 %v5022, %v5023
        %v5025 = vrot.slane %v1173, 4
        %v5026 = vadd.f32 %v1173, %v5025
        %v5027 = vrot.slane %v5026, 2
        %v5028 = vadd.f32 %v5026, %v5027
        %v5029 = vrot.slane %v5028, 1
        %v5030 = vadd.f32 %v5028, %v5029
        %v5031 = vrot.slane %v1174, 4
        %v5032 = vadd.f32 %v1174, %v5031
        %v5033 = vrot.slane %v5032, 2
        %v5034 = vadd.f32 %v5032, %v5033
        %v5035 = vrot.slane %v5034, 1
        %v5036 = vadd.f32 %v5034, %v5035
        %v5037 = vrcp.pop 8.0
        %v5038 = vmul.f32 %v4946, %v5037
        %v5039 = vmul.f32 %v4952, %v5037
        %v5040 = vmul.f32 %v4958, %v5037
        %v5041 = vmul.f32 %v4964, %v5037
        %v5042 = vmul.f32 %v4970, %v5037
        %v5043 = vmul.f32 %v4976, %v5037
        %v5044 = vmul.f32 %v4982, %v5037
        %v5045 = vmul.f32 %v4988, %v5037
        %v5046 = vmul.f32 %v4994, %v5037
        %v5047 = vmul.f32 %v5000, %v5037
        %v5048 = vmul.f32 %v5006, %v5037
        %v5049 = vmul.f32 %v5012, %v5037
        %v5050 = vmul.f32 %v5018, %v5037
        %v5051 = vmul.f32 %v5024, %v5037
        %v5052 = vmul.f32 %v5030, %v5037
        %v5053 = vmul.f32 %v5036, %v5037
        %v5054 = vpack.c.bf16 %v5038, %v5038
        %v5055 = vpack.c.bf16 %v5039, %v5039
        %v5056 = vpack.c.bf16 %v5040, %v5040
        %v5057 = vpack.c.bf16 %v5041, %v5041
        %v5058 = vpack.c.bf16 %v5042, %v5042
        %v5059 = vpack.c.bf16 %v5043, %v5043
        %v5060 = vpack.c.bf16 %v5044, %v5044
        %v5061 = vpack.c.bf16 %v5045, %v5045
        %v5062 = vpack.c.bf16 %v5046, %v5046
        %v5063 = vpack.c.bf16 %v5047, %v5047
        %v5064 = vpack.c.bf16 %v5048, %v5048
        %v5065 = vpack.c.bf16 %v5049, %v5049
        %v5066 = vpack.c.bf16 %v5050, %v5050
        %v5067 = vpack.c.bf16 %v5051, %v5051
        %v5068 = vpack.c.bf16 %v5052, %v5052
        %v5069 = vpack.c.bf16 %v5053, %v5053
        %v5070 = vld [vmem:[%s10] sm:$0xf]
        %v5071 = vld [vmem:[%s10 + $0x4] sm:$0xf]
        %v5072 = vld [vmem:[%s10 + $0x8] sm:$0xf]
        %v5073 = vld [vmem:[%s10 + $0xc] sm:$0xf]
        %v5074 = vld [vmem:[%s10 + $0x10] sm:$0xf]
        %v5075 = vld [vmem:[%s10 + $0x14] sm:$0xf]
        %v5076 = vld [vmem:[%s10 + $0x18] sm:$0xf]
        %v5077 = vld [vmem:[%s10 + $0x1c] sm:$0xf]
        %v5078 = vld [vmem:[%s10 + $0x20] sm:$0xf]
        %v5079 = vld [vmem:[%s10 + $0x24] sm:$0xf]
        %v5080 = vld [vmem:[%s10 + $0x28] sm:$0xf]
        %v5081 = vld [vmem:[%s10 + $0x2c] sm:$0xf]
        %v5082 = vld [vmem:[%s10 + $0x30] sm:$0xf]
        %v5083 = vld [vmem:[%s10 + $0x34] sm:$0xf]
        %v5084 = vld [vmem:[%s10 + $0x38] sm:$0xf]
        %v5085 = vld [vmem:[%s10 + $0x3c] sm:$0xf]
        %v5086 = vld [vmem:[%s11] sm:$0x1]
        %v5088 = vlaneseq
        %v5089 = vshrl.u32 %v5088, 7
        %v5090 = vsub.s32 0, %v5089
        %v5091 = vrot.slane %v5086, %v5090
        %v5109 = vunpack.c.l.b16 %v5054
        %v5110 = vunpack.c.l.b16 %v5055
        %v5111 = vunpack.c.l.b16 %v5056
        %v5112 = vunpack.c.l.b16 %v5057
        %v5113 = vunpack.c.l.b16 %v5058
        %v5114 = vunpack.c.l.b16 %v5059
        %v5115 = vunpack.c.l.b16 %v5060
        %v5116 = vunpack.c.l.b16 %v5061
        %v5117 = vunpack.c.l.b16 %v5062
        %v5118 = vunpack.c.l.b16 %v5063
        %v5119 = vunpack.c.l.b16 %v5064
        %v5120 = vunpack.c.l.b16 %v5065
        %v5121 = vunpack.c.l.b16 %v5066
        %v5122 = vunpack.c.l.b16 %v5067
        %v5123 = vunpack.c.l.b16 %v5068
        %v5124 = vunpack.c.l.b16 %v5069
        %vm5125 = vcmask 1041409
        %v5126 = vsel %vm5125, %v5110, %v5109
        %vm5127 = vcmask 1042434
        %v5128 = vsel %vm5127, %v5111, %v5126
        %vm5129 = vcmask 1043459
        %v5130 = vsel %vm5129, %v5112, %v5128
        %vm5131 = vcmask 1044484
        %v5132 = vsel %vm5131, %v5113, %v5130
        %vm5133 = vcmask 1045509
        %v5134 = vsel %vm5133, %v5114, %v5132
        %vm5135 = vcmask 1046534
        %v5136 = vsel %vm5135, %v5115, %v5134
        %vm5137 = vcmask 1047559
        %v5138 = vsel %vm5137, %v5116, %v5136
        %v5139 = vsel %vm5125, %v5118, %v5117
        %v5140 = vsel %vm5127, %v5119, %v5139
        %v5141 = vsel %vm5129, %v5120, %v5140
        %v5142 = vsel %vm5131, %v5121, %v5141
        %v5143 = vsel %vm5133, %v5122, %v5142
        %v5144 = vsel %vm5135, %v5123, %v5143
        %v5145 = vsel %vm5137, %v5124, %v5144
        %v5146 = vpack.c.b16 %v5145, %v5138
        %v5164 = vunpack.c.l.b16 %v5070
        %v5165 = vunpack.c.l.b16 %v5071
        %v5166 = vunpack.c.l.b16 %v5072
        %v5167 = vunpack.c.l.b16 %v5073
        %v5168 = vunpack.c.l.b16 %v5074
        %v5169 = vunpack.c.l.b16 %v5075
        %v5170 = vunpack.c.l.b16 %v5076
        %v5171 = vunpack.c.l.b16 %v5077
        %v5172 = vunpack.c.l.b16 %v5078
        %v5173 = vunpack.c.l.b16 %v5079
        %v5174 = vunpack.c.l.b16 %v5080
        %v5175 = vunpack.c.l.b16 %v5081
        %v5176 = vunpack.c.l.b16 %v5082
        %v5177 = vunpack.c.l.b16 %v5083
        %v5178 = vunpack.c.l.b16 %v5084
        %v5179 = vunpack.c.l.b16 %v5085
        %v5180 = vpack.c.b16 %v5165, %v5164
        %v5181 = vpack.c.b16 %v5167, %v5166
        %v5182 = vpack.c.b16 %v5169, %v5168
        %v5183 = vpack.c.b16 %v5171, %v5170
        %v5184 = vpack.c.b16 %v5173, %v5172
        %v5185 = vpack.c.b16 %v5175, %v5174
        %v5186 = vpack.c.b16 %v5177, %v5176
        %v5187 = vpack.c.b16 %v5179, %v5178
        %5196 = vmatprep.subr.bf16.mxu0 0
        %5197 = vmatpush1.bf16.msra.mxu0 %v5180
        %5198 = vmatprep.subr.bf16.mxu0 0
        %5199 = vmatpush1.bf16.msra.mxu0 %v5181
        %5200 = vmatprep.subr.bf16.mxu0 0
        %5201 = vmatpush1.bf16.msra.mxu0 %v5182
        %5202 = vmatprep.subr.bf16.mxu0 0
        %5203 = vmatpush1.bf16.msra.mxu0 %v5183
        %5204 = vmatprep.subr.bf16.mxu0 0
        %5205 = vmatpush1.bf16.msra.mxu0 %v5184
        %5206 = vmatprep.subr.bf16.mxu0 0
        %5207 = vmatpush1.bf16.msra.mxu0 %v5185
        %5208 = vmatprep.subr.bf16.mxu0 0
        %5209 = vmatpush1.bf16.msra.mxu0 %v5186
        %5210 = vmatprep.subr.bf16.mxu0 0
        %5211 = vmatpush1.bf16.msra.mxu0 %v5187
        %5212 = vmatprep.subr.bf16.mxu0 0
        %5213 = vmatpush1.bf16.msra.mxu0 0
        %5214 = vmatprep.subr.bf16.mxu0 0
        %5215 = vmatpush1.bf16.msra.mxu0 0
        %5216 = vmatprep.subr.bf16.mxu0 0
        %5217 = vmatpush1.bf16.msra.mxu0 0
        %5218 = vmatprep.subr.bf16.mxu0 0
        %5219 = vmatpush1.bf16.msra.mxu0 0
        %5220 = vmatprep.subr.bf16.mxu0 0
        %5221 = vmatpush1.bf16.msra.mxu0 0
        %5222 = vmatprep.subr.bf16.mxu0 0
        %5223 = vmatpush1.bf16.msra.mxu0 0
        %5224 = vmatprep.subr.bf16.mxu0 0
        %5225 = vmatpush1.bf16.msra.mxu0 0
        %5226 = vmatprep.subr.bf16.mxu0 0
        %5227 = vmatpush1.bf16.msra.mxu0 0
        %5228 = vmatprep.mubr.bf16.mxu0 0
        %5229 = vmatmul.mubr.bf16.gmra.mrb[0].mxu0 %v5146
        %v5230 = vpop.f32.mrb[0].mxu0
        %v5231 = vadd.f32 %v5091, %v5230
        %v5232 = vpop.f32.mrb[0].mxu0
        %v5233 = vpop.f32.mrb[0].mxu0
        %v5234 = vadd.f32 %v5091, %v5233
        %v5235 = vpop.f32.mrb[0].mxu0
        %5236 = vdwg.mxu0
        %v5237 = vmax.f32 %v5231, 0.0
        %v5238 = vmax.f32 %v5234, 0.0
        %v5239 = vpack.c.bf16 %v5238, %v5237
        %v5240 = vld [vmem:[%s12] sm:$0xf]
        %v5241 = vld [vmem:[%s12 + $0x4] sm:$0xf]
        %v5242 = vld [vmem:[%s12 + $0x8] sm:$0xf]
        %v5243 = vld [vmem:[%s12 + $0xc] sm:$0xf]
        %v5244 = vld [vmem:[%s12 + $0x10] sm:$0xf]
        %v5245 = vld [vmem:[%s12 + $0x14] sm:$0xf]
        %v5246 = vld [vmem:[%s12 + $0x18] sm:$0xf]
        %v5247 = vld [vmem:[%s12 + $0x1c] sm:$0xf]
        %v5248 = vld [vmem:[%s12 + $0x20] sm:$0xf]
        %v5249 = vld [vmem:[%s12 + $0x24] sm:$0xf]
        %v5250 = vld [vmem:[%s12 + $0x28] sm:$0xf]
        %v5251 = vld [vmem:[%s12 + $0x2c] sm:$0xf]
        %v5252 = vld [vmem:[%s12 + $0x30] sm:$0xf]
        %v5253 = vld [vmem:[%s12 + $0x34] sm:$0xf]
        %v5254 = vld [vmem:[%s12 + $0x38] sm:$0xf]
        %v5255 = vld [vmem:[%s12 + $0x3c] sm:$0xf]
        %v5256 = vld [vmem:[%s13] sm:$0x1]
        %v5258 = vlaneseq
        %v5259 = vshrl.u32 %v5258, 7
        %v5260 = vsub.s32 0, %v5259
        %v5261 = vrot.slane %v5256, %v5260
        %v5279 = vunpack.c.l.b16 %v5240
        %v5280 = vunpack.c.l.b16 %v5241
        %v5281 = vunpack.c.l.b16 %v5242
        %v5282 = vunpack.c.l.b16 %v5243
        %v5283 = vunpack.c.l.b16 %v5244
        %v5284 = vunpack.c.l.b16 %v5245
        %v5285 = vunpack.c.l.b16 %v5246
        %v5286 = vunpack.c.l.b16 %v5247
        %v5287 = vunpack.c.l.b16 %v5248
        %v5288 = vunpack.c.l.b16 %v5249
        %v5289 = vunpack.c.l.b16 %v5250
        %v5290 = vunpack.c.l.b16 %v5251
        %v5291 = vunpack.c.l.b16 %v5252
        %v5292 = vunpack.c.l.b16 %v5253
        %v5293 = vunpack.c.l.b16 %v5254
        %v5294 = vunpack.c.l.b16 %v5255
        %v5295 = vpack.c.b16 %v5280, %v5279
        %v5296 = vpack.c.b16 %v5282, %v5281
        %v5297 = vpack.c.b16 %v5284, %v5283
        %v5298 = vpack.c.b16 %v5286, %v5285
        %v5299 = vpack.c.b16 %v5288, %v5287
        %v5300 = vpack.c.b16 %v5290, %v5289
        %v5301 = vpack.c.b16 %v5292, %v5291
        %v5302 = vpack.c.b16 %v5294, %v5293
        %5311 = vmatprep.subr.bf16.mxu0 0
        %5312 = vmatpush1.bf16.msra.mxu0 %v5295
        %5313 = vmatprep.subr.bf16.mxu0 0
        %5314 = vmatpush1.bf16.msra.mxu0 %v5296
        %5315 = vmatprep.subr.bf16.mxu0 0
        %5316 = vmatpush1.bf16.msra.mxu0 %v5297
        %5317 = vmatprep.subr.bf16.mxu0 0
        %5318 = vmatpush1.bf16.msra.mxu0 %v5298
        %5319 = vmatprep.subr.bf16.mxu0 0
        %5320 = vmatpush1.bf16.msra.mxu0 %v5299
        %5321 = vmatprep.subr.bf16.mxu0 0
        %5322 = vmatpush1.bf16.msra.mxu0 %v5300
        %5323 = vmatprep.subr.bf16.mxu0 0
        %5324 = vmatpush1.bf16.msra.mxu0 %v5301
        %5325 = vmatprep.subr.bf16.mxu0 0
        %5326 = vmatpush1.bf16.msra.mxu0 %v5302
        %5327 = vmatprep.subr.bf16.mxu0 0
        %5328 = vmatpush1.bf16.msra.mxu0 0
        %5329 = vmatprep.subr.bf16.mxu0 0
        %5330 = vmatpush1.bf16.msra.mxu0 0
        %5331 = vmatprep.subr.bf16.mxu0 0
        %5332 = vmatpush1.bf16.msra.mxu0 0
        %5333 = vmatprep.subr.bf16.mxu0 0
        %5334 = vmatpush1.bf16.msra.mxu0 0
        %5335 = vmatprep.subr.bf16.mxu0 0
        %5336 = vmatpush1.bf16.msra.mxu0 0
        %5337 = vmatprep.subr.bf16.mxu0 0
        %5338 = vmatpush1.bf16.msra.mxu0 0
        %5339 = vmatprep.subr.bf16.mxu0 0
        %5340 = vmatpush1.bf16.msra.mxu0 0
        %5341 = vmatprep.subr.bf16.mxu0 0
        %5342 = vmatpush1.bf16.msra.mxu0 0
        %5343 = vmatprep.mubr.bf16.mxu0 0
        %5344 = vmatmul.mubr.bf16.gmra.mrb[0].mxu0 %v5239
        %v5345 = vpop.f32.mrb[0].mxu0
        %v5346 = vadd.f32 %v5261, %v5345
        %v5347 = vpop.f32.mrb[0].mxu0
        %v5348 = vpop.f32.mrb[0].mxu0
        %v5349 = vadd.f32 %v5261, %v5348
        %v5350 = vpop.f32.mrb[0].mxu0
        %5351 = vdwg.mxu0
        %5352 = vst [vmem:[%s492] sm:$0xff] %v5346
        %5353 = vst [vmem:[%s492 + $0x8] sm:$0xff] %v5349
        %s5354 = sand.u32 %s341, 1
        %s5355 = scalar_lea.sflag [#allocation4], %s5354
        %s5356 = sand.u32 %s341, 1
        %s5357 = smul.addr %s5356, 16
        %s5358 = scalar_lea.vmem [#allocation5], %s5357
        // Predicated region
        $region88: #{tpu_custom_call.1} parent=75 // pred_check
          %p5359 = pneg %p351
        $region89: #{tpu_custom_call.1} parent=75 // pred_check_branch
          %5361 = sbr.rel (%p5359) target = $region91
        $region90: #{tpu_custom_call.1} parent=75 // pred_region
          %s5362 = smul.u32 2, %s29
          %s5364 = ssub.s32 256, 256
          %5365 = vsyncadd %s5355, %s5364
          %s5366 = smul.addr %s5362, 128
          %s5367 = scalar_lea.hbm %s14, %s5366
          %s5368 = sshll.u32 %s5358, 4
          %s5369 = int_to_ptr.vmem [resolvable:$true] %s5368
          %5374 = dma.vmem_to_hbm [thread:$0]  %s5369, 256, %s5367, %s5355, 128, 128, 8
        $region91: #{tpu_custom_call.1} parent=75 // pred_fallthru
          _
      $region76: #{tpu_custom_call.1} parent=5 // pred_fallthru
        _
      %p5375 = scmp.le.s32.totalorder 2, %s24
      // Predicated region
      $region92: #{tpu_custom_call.1} parent=5 // pred_check
        %p5376 = pneg %p5375
      $region93: #{tpu_custom_call.1} parent=5 // pred_check_branch
        %5378 = sbr.rel (%p5376) target = $region95
      $region94: #{tpu_custom_call.1} parent=5 // pred_region
        %s5379 = ssub.s32 %s24, 2
        // Predicated region
        $region96: #{tpu_custom_call.1} parent=94 // pred_check
          %p5380 = pneg %p357
        $region97: #{tpu_custom_call.1} parent=94 // pred_check_branch
          %5382 = sbr.rel (%p5380) target = $region99
        $region98: #{tpu_custom_call.1} parent=94 // pred_region
          %s5383 = sand.u32 %s342, 1
          %s5384 = scalar_lea.sflag [#allocation4], %s5383
          %s5385 = sand.u32 %s342, 1
          %s5386 = smul.addr %s5385, 16
          %s5387 = scalar_lea.vmem [#allocation5], %s5386
          %5388 = dma.done %s5384, 256
        $region99: #{tpu_custom_call.1} parent=94 // pred_fallthru
          _
      $region95: #{tpu_custom_call.1} parent=5 // pred_fallthru
        _
    $region6: #{tpu_custom_call.1} parent=1 // loop_footer
      %s28 = sadd.s32 1, %s24
    $region7: #{tpu_custom_call.1} parent=1 // loop_footer_branch
      %23 = sbr.rel target = $region3
    $region8: #{tpu_custom_call.1} parent=1 // loop_exit
      _
    %5389 = vsyncpa [#allocation3], 1
    %s5390 = scalar_lea.sflag [#allocation3], 1
    %5391 = vsyncpa %s5390, 1
    %5392 = vsyncpa [#allocation4], 1
    %s5393 = scalar_lea.sflag [#allocation4], 1
    %5394 = vsyncpa %s5393, 1

// kernel: tpu_custom_call.1
$region0: #{tpu_custom_call.1}
  #allocation0 [shape = 'u32[]', space=smem, size = 0x4, offset = 0x4, fixed_abs, tag = 'smem constant byte address 0x4 - core index']
  #allocation1 [shape = 'u32[144,128]{1,0:T(1,128)}', space=vmem, size = 0x12000, scoped, tag = 'internal scratch']
  %s0 = inlined_call_operand.vmem [shape: f32[32,8,8], index: 0, kind: input, shape index: {}]
  %s1 = inlined_call_operand.vmem [shape: bf16[32,3,8,8], index: 1, kind: input, shape index: {}]
  %s2 = inlined_call_operand.hbm [shape: bf16[8,128], index: 2, kind: input, shape index: {}]
  %s3 = inlined_call_operand.vmem [shape: f32[1,128], index: 3, kind: input, shape index: {}]
  %s4 = inlined_call_operand.vmem [shape: bf16[128,384], index: 4, kind: input, shape index: {}]
  %s5 = inlined_call_operand.vmem [shape: f32[1,384], index: 5, kind: input, shape index: {}]
  %s6 = inlined_call_operand.vmem [shape: bf16[128,384], index: 6, kind: input, shape index: {}]
  %s7 = inlined_call_operand.vmem [shape: f32[1,384], index: 7, kind: input, shape index: {}]
  %s8 = inlined_call_operand.vmem [shape: bf16[128,384], index: 8, kind: input, shape index: {}]
  %s9 = inlined_call_operand.vmem [shape: f32[1,384], index: 9, kind: input, shape index: {}]
  %s10 = inlined_call_operand.vmem [shape: bf16[128,128], index: 10, kind: input, shape index: {}]
  %s11 = inlined_call_operand.vmem [shape: f32[1,128], index: 11, kind: input, shape index: {}]
  %s12 = inlined_call_operand.vmem [shape: bf16[128,128], index: 12, kind: input, shape index: {}]
  %s13 = inlined_call_operand.vmem [shape: f32[1,128], index: 13, kind: input, shape index: {}]
  %s14 = inlined_call_operand.hbm [shape: f32[32,128], index: 14, kind: output, shape index: {}]
  %s15 = sld [smem:[#allocation0]]
  $region100: #{tpu_custom_call.1} parent=0
    _
  %s17 = ssub.s32 1, %s15
  %s18 = scalar_select 0, %s17, %s15
  $region1: #{tpu_custom_call.1} parent=0
    #allocation2 [shape = 'u8[2048]{0}', space=vmem, size = 0x800, scoped, tag = 'input window, operand 2, single buffered']
    #allocation3 [shape = 's32[2]{0}', space=sflag, size = 0x8, scoped, tag = 'scoped memory for tpu_custom_call.1']
    #allocation4 [shape = 's32[2]{0}', space=sflag, size = 0x8, scoped, tag = 'scoped memory for tpu_custom_call.1']
    #allocation5 [shape = 'u8[16384]{0}', space=vmem, size = 0x4000, scoped, tag = 'output window, operand 0']
    %19 = vsyncpa [#allocation3], 0
    %20 = vsyncpa [#allocation4], 0
    %s21 = scalar_lea.sflag [#allocation4], 1
    %22 = vsyncpa %s21, 0
    loop: start=0, step=1, limit=4
    $region2: #{tpu_custom_call.1} parent=1 // loop_pre_header
      _
    $region3: #{tpu_custom_call.1} parent=1 // loop_header
      %s24 = sphi 0, %s28
      %p25 = scmp.ge.s32.totalorder %s24, 4
      %s34 = sphi 0, %s36
      %s37 = sphi 0, %s34
      %s38 = sphi 0, %s37
      %s54 = sphi 0, %s38
      %s60 = sphi 0, %s62
      %s63 = sphi 0, %s60
      %s64 = sphi 0, %s63
      %s80 = sphi 0, %s64
      %s84 = sphi 0, %s84
      %s86 = sphi 0, %s84
      %s87 = sphi 0, %s86
      %s101 = sphi 0, %s87
      %s105 = sphi 0, %s105
      %s107 = sphi 0, %s105
      %s108 = sphi 0, %s107
      %s122 = sphi 0, %s108
      %s126 = sphi 0, %s126
      %s128 = sphi 0, %s126
      %s129 = sphi 0, %s128
      %s143 = sphi 0, %s129
      %s147 = sphi 0, %s147
      %s149 = sphi 0, %s147
      %s150 = sphi 0, %s149
      %s164 = sphi 0, %s150
      %s168 = sphi 0, %s168
      %s170 = sphi 0, %s168
      %s171 = sphi 0, %s170
      %s185 = sphi 0, %s171
      %s189 = sphi 0, %s189
      %s191 = sphi 0, %s189
      %s192 = sphi 0, %s191
      %s206 = sphi 0, %s192
      %s210 = sphi 0, %s210
      %s212 = sphi 0, %s210
      %s213 = sphi 0, %s212
      %s227 = sphi 0, %s213
      %s231 = sphi 0, %s231
      %s233 = sphi 0, %s231
      %s234 = sphi 0, %s233
      %s248 = sphi 0, %s234
      %s252 = sphi 0, %s252
      %s254 = sphi 0, %s252
      %s255 = sphi 0, %s254
      %s269 = sphi 0, %s255
      %s273 = sphi 0, %s273
      %s275 = sphi 0, %s273
      %s276 = sphi 0, %s275
      %s290 = sphi 0, %s276
      %s294 = sphi 0, %s294
      %s296 = sphi 0, %s294
      %s297 = sphi 0, %s296
      %s311 = sphi 0, %s297
      %s315 = sphi 0, %s315
      %s317 = sphi 0, %s315
      %s318 = sphi 0, %s317
      %s332 = sphi 0, %s318
      %s338 = sphi 0, %s340
      %s341 = sphi 0, %s338
      %s342 = sphi 0, %s341
      %s358 = sphi 0, %s342
    $region4: #{tpu_custom_call.1} parent=1 // loop_header_branch
      %27 = sbr.rel (%p25) target = $region8
    $region5: #{tpu_custom_call.1} parent=1 // loop_body
      %s29 = ssub.s32 %s24, 1
      %s30 = ssub.s32 %s24, 2
      %s31 = sadd.s32 %s24, 1
      %s32 = ssub.s32 %s24, %s31
      %p33 = scmp.eq.s32.totalorder %s32, 0
      %s35 = sadd.s32 %s34, 1
      %s36 = scalar_select %p33, %s34, %s35
      %p39 = pneg %p33
      %p40 = scmp.eq.s32.totalorder %s24, 1
      %p41 = por %p39, %p40
      %p42 = scmp.ne.s32.totalorder %s34, %s37
      %p43 = scmp.eq.s32.totalorder %s24, 0
      %p44 = por %p42, %p43
      %p45 = scmp.ne.s32.totalorder %s34, %s37
      %p46 = scmp.eq.s32.totalorder %s29, 1
      %p47 = por %p45, %p46
      %p48 = scmp.ne.s32.totalorder %s37, %s38
      %p49 = scmp.eq.s32.totalorder %s29, 0
      %p50 = por %p48, %p49
      %p51 = scmp.ne.s32.totalorder %s37, %s38
      %p52 = scmp.eq.s32.totalorder %s30, 1
      %p53 = por %p51, %p52
      %p55 = scmp.ne.s32.totalorder %s38, %s54
      %p56 = scmp.eq.s32.totalorder %s30, 0
      %p57 = por %p55, %p56
      %s58 = ssub.s32 %s24, %s31
      %p59 = scmp.eq.s32.totalorder %s58, 0
      %s61 = sadd.s32 %s60, 1
      %s62 = scalar_select %p59, %s60, %s61
      %p65 = pneg %p59
      %p66 = scmp.eq.s32.totalorder %s24, 1
      %p67 = por %p65, %p66
      %p68 = scmp.ne.s32.totalorder %s60, %s63
      %p69 = scmp.eq.s32.totalorder %s24, 0
      %p70 = por %p68, %p69
      %p71 = scmp.ne.s32.totalorder %s60, %s63
      %p72 = scmp.eq.s32.totalorder %s29, 1
      %p73 = por %p71, %p72
      %p74 = scmp.ne.s32.totalorder %s63, %s64
      %p75 = scmp.eq.s32.totalorder %s29, 0
      %p76 = por %p74, %p75
      %p77 = scmp.ne.s32.totalorder %s63, %s64
      %p78 = scmp.eq.s32.totalorder %s30, 1
      %p79 = por %p77, %p78
      %p81 = scmp.ne.s32.totalorder %s64, %s80
      %p82 = scmp.eq.s32.totalorder %s30, 0
      %p83 = por %p81, %p82
      %s85 = sadd.s32 %s84, 1
      %p88 = scmp.eq.s32.totalorder %s24, 1
      %p89 = scmp.ne.s32.totalorder %s84, %s86
      %p90 = scmp.eq.s32.totalorder %s24, 0
      %p91 = por %p89, %p90
      %p92 = scmp.ne.s32.totalorder %s84, %s86
      %p93 = scmp.eq.s32.totalorder %s29, 1
      %p94 = por %p92, %p93
      %p95 = scmp.ne.s32.totalorder %s86, %s87
      %p96 = scmp.eq.s32.totalorder %s29, 0
      %p97 = por %p95, %p96
      %p98 = scmp.ne.s32.totalorder %s86, %s87
      %p99 = scmp.eq.s32.totalorder %s30, 1
      %p100 = por %p98, %p99
      %p102 = scmp.ne.s32.totalorder %s87, %s101
      %p103 = scmp.eq.s32.totalorder %s30, 0
      %p104 = por %p102, %p103
      %s106 = sadd.s32 %s105, 1
      %p109 = scmp.eq.s32.totalorder %s24, 1
      %p110 = scmp.ne.s32.totalorder %s105, %s107
      %p111 = scmp.eq.s32.totalorder %s24, 0
      %p112 = por %p110, %p111
      %p113 = scmp.ne.s32.totalorder %s105, %s107
      %p114 = scmp.eq.s32.totalorder %s29, 1
      %p115 = por %p113, %p114
      %p116 = scmp.ne.s32.totalorder %s107, %s108
      %p117 = scmp.eq.s32.totalorder %s29, 0
      %p118 = por %p116, %p117
      %p119 = scmp.ne.s32.totalorder %s107, %s108
      %p120 = scmp.eq.s32.totalorder %s30, 1
      %p121 = por %p119, %p120
      %p123 = scmp.ne.s32.totalorder %s108, %s122
      %p124 = scmp.eq.s32.totalorder %s30, 0
      %p125 = por %p123, %p124
      %s127 = sadd.s32 %s126, 1
      %p130 = scmp.eq.s32.totalorder %s24, 1
      %p131 = scmp.ne.s32.totalorder %s126, %s128
      %p132 = scmp.eq.s32.totalorder %s24, 0
      %p133 = por %p131, %p132
      %p134 = scmp.ne.s32.totalorder %s126, %s128
      %p135 = scmp.eq.s32.totalorder %s29, 1
      %p136 = por %p134, %p135
      %p137 = scmp.ne.s32.totalorder %s128, %s129
      %p138 = scmp.eq.s32.totalorder %s29, 0
      %p139 = por %p137, %p138
      %p140 = scmp.ne.s32.totalorder %s128, %s129
      %p141 = scmp.eq.s32.totalorder %s30, 1
      %p142 = por %p140, %p141
      %p144 = scmp.ne.s32.totalorder %s129, %s143
      %p145 = scmp.eq.s32.totalorder %s30, 0
      %p146 = por %p144, %p145
      %s148 = sadd.s32 %s147, 1
      %p151 = scmp.eq.s32.totalorder %s24, 1
      %p152 = scmp.ne.s32.totalorder %s147, %s149
      %p153 = scmp.eq.s32.totalorder %s24, 0
      %p154 = por %p152, %p153
      %p155 = scmp.ne.s32.totalorder %s147, %s149
      %p156 = scmp.eq.s32.totalorder %s29, 1
      %p157 = por %p155, %p156
      %p158 = scmp.ne.s32.totalorder %s149, %s150
      %p159 = scmp.eq.s32.totalorder %s29, 0
      %p160 = por %p158, %p159
      %p161 = scmp.ne.s32.totalorder %s149, %s150
      %p162 = scmp.eq.s32.totalorder %s30, 1
      %p163 = por %p161, %p162
      %p165 = scmp.ne.s32.totalorder %s150, %s164
      %p166 = scmp.eq.s32.totalorder %s30, 0
      %p167 = por %p165, %p166
      %s169 = sadd.s32 %s168, 1
      %p172 = scmp.eq.s32.totalorder %s24, 1
      %p173 = scmp.ne.s32.totalorder %s168, %s170
      %p174 = scmp.eq.s32.totalorder %s24, 0
      %p175 = por %p173, %p174
      %p176 = scmp.ne.s32.totalorder %s168, %s170
      %p177 = scmp.eq.s32.totalorder %s29, 1
      %p178 = por %p176, %p177
      %p179 = scmp.ne.s32.totalorder %s170, %s171
      %p180 = scmp.eq.s32.totalorder %s29, 0
      %p181 = por %p179, %p180
      %p182 = scmp.ne.s32.totalorder %s170, %s171
      %p183 = scmp.eq.s32.totalorder %s30, 1
      %p184 = por %p182, %p183
      %p186 = scmp.ne.s32.totalorder %s171, %s185
      %p187 = scmp.eq.s32.totalorder %s30, 0
      %p188 = por %p186, %p187
      %s190 = sadd.s32 %s189, 1
      %p193 = scmp.eq.s32.totalorder %s24, 1
      %p194 = scmp.ne.s32.totalorder %s189, %s191
      %p195 = scmp.eq.s32.totalorder %s24, 0
      %p196 = por %p194, %p195
      %p197 = scmp.ne.s32.totalorder %s189, %s191
      %p198 = scmp.eq.s32.totalorder %s29, 1
      %p199 = por %p197, %p198
      %p200 = scmp.ne.s32.totalorder %s191, %s192
      %p201 = scmp.eq.s32.totalorder %s29, 0
      %p202 = por %p200, %p201
      %p203 = scmp.ne.s32.totalorder %s191, %s192
      %p204 = scmp.eq.s32.totalorder %s30, 1
      %p205 = por %p203, %p204
      %p207 = scmp.ne.s32.totalorder %s192, %s206
      %p208 = scmp.eq.s32.totalorder %s30, 0
      %p209 = por %p207, %p208
      %s211 = sadd.s32 %s210, 1
      %p214 = scmp.eq.s32.totalorder %s24, 1
      %p215 = scmp.ne.s32.totalorder %s210, %s212
      %p216 = scmp.eq.s32.totalorder %s24, 0
      %p217 = por %p215, %p216
      %p218 = scmp.ne.s32.totalorder %s210, %s212
      %p219 = scmp.eq.s32.totalorder %s29, 1
      %p220 = por %p218, %p219
      %p221 = scmp.ne.s32.totalorder %s212, %s213
      %p222 = scmp.eq.s32.totalorder %s29, 0
      %p223 = por %p221, %p222
      %p224 = scmp.ne.s32.totalorder %s212, %s213
      %p225 = scmp.eq.s32.totalorder %s30, 1
      %p226 = por %p224, %p225
      %p228 = scmp.ne.s32.totalorder %s213, %s227
      %p229 = scmp.eq.s32.totalorder %s30, 0
      %p230 = por %p228, %p229
      %s232 = sadd.s32 %s231, 1
      %p235 = scmp.eq.s32.totalorder %s24, 1
      %p236 = scmp.ne.s32.totalorder %s231, %s233
      %p237 = scmp.eq.s32.totalorder %s24, 0
      %p238 = por %p236, %p237
      %p239 = scmp.ne.s32.totalorder %s231, %s233
      %p240 = scmp.eq.s32.totalorder %s29, 1
      %p241 = por %p239, %p240
      %p242 = scmp.ne.s32.totalorder %s233, %s234
      %p243 = scmp.eq.s32.totalorder %s29, 0
      %p244 = por %p242, %p243
      %p245 = scmp.ne.s32.totalorder %s233, %s234
      %p246 = scmp.eq.s32.totalorder %s30, 1
      %p247 = por %p245, %p246
      %p249 = scmp.ne.s32.totalorder %s234, %s248
      %p250 = scmp.eq.s32.totalorder %s30, 0
      %p251 = por %p249, %p250
      %s253 = sadd.s32 %s252, 1
      %p256 = scmp.eq.s32.totalorder %s24, 1
      %p257 = scmp.ne.s32.totalorder %s252, %s254
      %p258 = scmp.eq.s32.totalorder %s24, 0
      %p259 = por %p257, %p258
      %p260 = scmp.ne.s32.totalorder %s252, %s254
      %p261 = scmp.eq.s32.totalorder %s29, 1
      %p262 = por %p260, %p261
      %p263 = scmp.ne.s32.totalorder %s254, %s255
      %p264 = scmp.eq.s32.totalorder %s29, 0
      %p265 = por %p263, %p264
      %p266 = scmp.ne.s32.totalorder %s254, %s255
      %p267 = scmp.eq.s32.totalorder %s30, 1
      %p268 = por %p266, %p267
      %p270 = scmp.ne.s32.totalorder %s255, %s269
      %p271 = scmp.eq.s32.totalorder %s30, 0
      %p272 = por %p270, %p271
      %s274 = sadd.s32 %s273, 1
      %p277 = scmp.eq.s32.totalorder %s24, 1
      %p278 = scmp.ne.s32.totalorder %s273, %s275
      %p279 = scmp.eq.s32.totalorder %s24, 0
      %p280 = por %p278, %p279
      %p281 = scmp.ne.s32.totalorder %s273, %s275
      %p282 = scmp.eq.s32.totalorder %s29, 1
      %p283 = por %p281, %p282
      %p284 = scmp.ne.s32.totalorder %s275, %s276
      %p285 = scmp.eq.s32.totalorder %s29, 0
      %p286 = por %p284, %p285
      %p287 = scmp.ne.s32.totalorder %s275, %s276
      %p288 = scmp.eq.s32.totalorder %s30, 1
      %p289 = por %p287, %p288
      %p291 = scmp.ne.s32.totalorder %s276, %s290
      %p292 = scmp.eq.s32.totalorder %s30, 0
      %p293 = por %p291, %p292
      %s295 = sadd.s32 %s294, 1
      %p298 = scmp.eq.s32.totalorder %s24, 1
      %p299 = scmp.ne.s32.totalorder %s294, %s296
      %p300 = scmp.eq.s32.totalorder %s24, 0
      %p301 = por %p299, %p300
      %p302 = scmp.ne.s32.totalorder %s294, %s296
      %p303 = scmp.eq.s32.totalorder %s29, 1
      %p304 = por %p302, %p303
      %p305 = scmp.ne.s32.totalorder %s296, %s297
      %p306 = scmp.eq.s32.totalorder %s29, 0
      %p307 = por %p305, %p306
      %p308 = scmp.ne.s32.totalorder %s296, %s297
      %p309 = scmp.eq.s32.totalorder %s30, 1
      %p310 = por %p308, %p309
      %p312 = scmp.ne.s32.totalorder %s297, %s311
      %p313 = scmp.eq.s32.totalorder %s30, 0
      %p314 = por %p312, %p313
      %s316 = sadd.s32 %s315, 1
      %p319 = scmp.eq.s32.totalorder %s24, 1
      %p320 = scmp.ne.s32.totalorder %s315, %s317
      %p321 = scmp.eq.s32.totalorder %s24, 0
      %p322 = por %p320, %p321
      %p323 = scmp.ne.s32.totalorder %s315, %s317
      %p324 = scmp.eq.s32.totalorder %s29, 1
      %p325 = por %p323, %p324
      %p326 = scmp.ne.s32.totalorder %s317, %s318
      %p327 = scmp.eq.s32.totalorder %s29, 0
      %p328 = por %p326, %p327
      %p329 = scmp.ne.s32.totalorder %s317, %s318
      %p330 = scmp.eq.s32.totalorder %s30, 1
      %p331 = por %p329, %p330
      %p333 = scmp.ne.s32.totalorder %s318, %s332
      %p334 = scmp.eq.s32.totalorder %s30, 0
      %p335 = por %p333, %p334
      %s336 = ssub.s32 %s24, %s31
      %p337 = scmp.eq.s32.totalorder %s336, 0
      %s339 = sadd.s32 %s338, 1
      %s340 = scalar_select %p337, %s338, %s339
      %p343 = pneg %p337
      %p344 = scmp.eq.s32.totalorder %s24, 1
      %p345 = por %p343, %p344
      %p346 = scmp.ne.s32.totalorder %s338, %s341
      %p347 = scmp.eq.s32.totalorder %s24, 0
      %p348 = por %p346, %p347
      %p349 = scmp.ne.s32.totalorder %s338, %s341
      %p350 = scmp.eq.s32.totalorder %s29, 1
      %p351 = por %p349, %p350
      %p352 = scmp.ne.s32.totalorder %s341, %s342
      %p353 = scmp.eq.s32.totalorder %s29, 0
      %p354 = por %p352, %p353
      %p355 = scmp.ne.s32.totalorder %s341, %s342
      %p356 = scmp.eq.s32.totalorder %s30, 1
      %p357 = por %p355, %p356
      %p359 = scmp.ne.s32.totalorder %s342, %s358
      %p360 = scmp.eq.s32.totalorder %s30, 0
      %p361 = por %p359, %p360
      %p362 = scmp.le.s32.totalorder 1, %s24
      %p363 = scmp.lt.s32.totalorder %s24, 3
      %p364 = pnand %p362, %p363
      %p365 = pneg %p364
      // Predicated region
      $region9: #{tpu_custom_call.1} parent=5 // pred_check
        _
      $region10: #{tpu_custom_call.1} parent=5 // pred_check_branch
        %367 = sbr.rel (%p364) target = $region12
      $region11: #{tpu_custom_call.1} parent=5 // pred_region
        %s368 = ssub.s32 %s24, 1
        // Predicated region
        $region13: #{tpu_custom_call.1} parent=11 // pred_check
          %p369 = pneg %p97
        $region14: #{tpu_custom_call.1} parent=11 // pred_check_branch
          %371 = sbr.rel (%p369) target = $region16
        $region15: #{tpu_custom_call.1} parent=11 // pred_region
          %s373 = ssub.s32 64, 64
          %374 = vsyncadd [#allocation3], %s373
          %s376 = sshll.u32 [#allocation2], 4
          %s377 = int_to_ptr.vmem [resolvable:$true] %s376
          %379 = dma.hbm_to_vmem [thread:$0]  %s2, 64, %s377, [#allocation3]
        $region16: #{tpu_custom_call.1} parent=11 // pred_fallthru
          _
        // Predicated region
        $region17: #{tpu_custom_call.1} parent=11 // pred_check
          %p380 = pneg %p118
        $region18: #{tpu_custom_call.1} parent=11 // pred_check_branch
          %382 = sbr.rel (%p380) target = $region20
        $region19: #{tpu_custom_call.1} parent=11 // pred_region
          _
        $region20: #{tpu_custom_call.1} parent=11 // pred_fallthru
          _
        // Predicated region
        $region21: #{tpu_custom_call.1} parent=11 // pred_check
          %p383 = pneg %p139
        $region22: #{tpu_custom_call.1} parent=11 // pred_check_branch
          %385 = sbr.rel (%p383) target = $region24
        $region23: #{tpu_custom_call.1} parent=11 // pred_region
          _
        $region24: #{tpu_custom_call.1} parent=11 // pred_fallthru
          _
        // Predicated region
        $region25: #{tpu_custom_call.1} parent=11 // pred_check
          %p386 = pneg %p160
        $region26: #{tpu_custom_call.1} parent=11 // pred_check_branch
          %388 = sbr.rel (%p386) target = $region28
        $region27: #{tpu_custom_call.1} parent=11 // pred_region
          _
        $region28: #{tpu_custom_call.1} parent=11 // pred_fallthru
          _
        // Predicated region
        $region29: #{tpu_custom_call.1} parent=11 // pred_check
          %p389 = pneg %p181
        $region30: #{tpu_custom_call.1} parent=11 // pred_check_branch
          %391 = sbr.rel (%p389) target = $region32
        $region31: #{tpu_custom_call.1} parent=11 // pred_region
          _
        $region32: #{tpu_custom_call.1} parent=11 // pred_fallthru
          _
        // Predicated region
        $region33: #{tpu_custom_call.1} parent=11 // pred_check
          %p392 = pneg %p202
        $region34: #{tpu_custom_call.1} parent=11 // pred_check_branch
          %394 = sbr.rel (%p392) target = $region36
        $region35: #{tpu_custom_call.1} parent=11 // pred_region
          _
        $region36: #{tpu_custom_call.1} parent=11 // pred_fallthru
          _
        // Predicated region
        $region37: #{tpu_custom_call.1} parent=11 // pred_check
          %p395 = pneg %p223
        $region38: #{tpu_custom_call.1} parent=11 // pred_check_branch
          %397 = sbr.rel (%p395) target = $region40
        $region39: #{tpu_custom_call.1} parent=11 // pred_region
          _
        $region40: #{tpu_custom_call.1} parent=11 // pred_fallthru
          _
        // Predicated region
        $region41: #{tpu_custom_call.1} parent=11 // pred_check
          %p398 = pneg %p244
        $region42: #{tpu_custom_call.1} parent=11 // pred_check_branch
          %400 = sbr.rel (%p398) target = $region44
        $region43: #{tpu_custom_call.1} parent=11 // pred_region
          _
        $region44: #{tpu_custom_call.1} parent=11 // pred_fallthru
          _
        // Predicated region
        $region45: #{tpu_custom_call.1} parent=11 // pred_check
          %p401 = pneg %p265
        $region46: #{tpu_custom_call.1} parent=11 // pred_check_branch
          %403 = sbr.rel (%p401) target = $region48
        $region47: #{tpu_custom_call.1} parent=11 // pred_region
          _
        $region48: #{tpu_custom_call.1} parent=11 // pred_fallthru
          _
        // Predicated region
        $region49: #{tpu_custom_call.1} parent=11 // pred_check
          %p404 = pneg %p286
        $region50: #{tpu_custom_call.1} parent=11 // pred_check_branch
          %406 = sbr.rel (%p404) target = $region52
        $region51: #{tpu_custom_call.1} parent=11 // pred_region
          _
        $region52: #{tpu_custom_call.1} parent=11 // pred_fallthru
          _
        // Predicated region
        $region53: #{tpu_custom_call.1} parent=11 // pred_check
          %p407 = pneg %p307
        $region54: #{tpu_custom_call.1} parent=11 // pred_check_branch
          %409 = sbr.rel (%p407) target = $region56
        $region55: #{tpu_custom_call.1} parent=11 // pred_region
          _
        $region56: #{tpu_custom_call.1} parent=11 // pred_fallthru
          _
        // Predicated region
        $region57: #{tpu_custom_call.1} parent=11 // pred_check
          %p410 = pneg %p328
        $region58: #{tpu_custom_call.1} parent=11 // pred_check_branch
          %412 = sbr.rel (%p410) target = $region60
        $region59: #{tpu_custom_call.1} parent=11 // pred_region
          _
        $region60: #{tpu_custom_call.1} parent=11 // pred_fallthru
          _
      $region12: #{tpu_custom_call.1} parent=5 // pred_fallthru
        _
      %p413 = scmp.lt.s32.totalorder %s24, 2
      // Predicated region
      $region61: #{tpu_custom_call.1} parent=5 // pred_check
        %p414 = pneg %p413
      $region62: #{tpu_custom_call.1} parent=5 // pred_check_branch
        %416 = sbr.rel (%p414) target = $region64
      $region63: #{tpu_custom_call.1} parent=5 // pred_region
        // Predicated region
        $region65: #{tpu_custom_call.1} parent=63 // pred_check
          %p417 = pneg %p44
        $region66: #{tpu_custom_call.1} parent=63 // pred_check_branch
          %419 = sbr.rel (%p417) target = $region68
        $region67: #{tpu_custom_call.1} parent=63 // pred_region
          %s420 = smul.u32 16, %s24
          %p421 = scmp.lt.s32.totalorder %s420, 31
          %s422 = scalar_select %p421, %s420, 31
          %s423 = smul.addr %s422, 8
          %s424 = scalar_lea.vmem %s0, %s423
          %s425 = smul.u32 16, %s24
        $region68: #{tpu_custom_call.1} parent=63 // pred_fallthru
          _
        // Predicated region
        $region69: #{tpu_custom_call.1} parent=63 // pred_check
          %p426 = pneg %p70
        $region70: #{tpu_custom_call.1} parent=63 // pred_check_branch
          %428 = sbr.rel (%p426) target = $region72
        $region71: #{tpu_custom_call.1} parent=63 // pred_region
          %s429 = smul.u32 16, %s24
          %p430 = scmp.lt.s32.totalorder %s429, 31
          %s431 = scalar_select %p430, %s429, 31
          %s432 = smul.addr %s431, 3
          %s433 = smul.addr %s432, 4
          %s434 = scalar_lea.vmem %s1, %s433
          %s435 = smul.u32 16, %s24
        $region72: #{tpu_custom_call.1} parent=63 // pred_fallthru
          _
      $region64: #{tpu_custom_call.1} parent=5 // pred_fallthru
        _
      %p436 = scmp.le.s32.totalorder 1, %s24
      %p437 = scmp.lt.s32.totalorder %s24, 3
      %p438 = pnand %p436, %p437
      %p439 = pneg %p438
      // Predicated region
      $region73: #{tpu_custom_call.1} parent=5 // pred_check
        _
      $region74: #{tpu_custom_call.1} parent=5 // pred_check_branch
        %441 = sbr.rel (%p438) target = $region76
      $region75: #{tpu_custom_call.1} parent=5 // pred_region
        %s442 = ssub.s32 %s24, 1
        // Predicated region
        $region77: #{tpu_custom_call.1} parent=75 // pred_check
          %p443 = pneg %p97
        $region78: #{tpu_custom_call.1} parent=75 // pred_check_branch
          %445 = sbr.rel (%p443) target = $region80
        $region79: #{tpu_custom_call.1} parent=75 // pred_region
          %446 = dma.done [#allocation3], 64
        $region80: #{tpu_custom_call.1} parent=75 // pred_fallthru
          _
        %s447 = smul.u32 16, %s29
        %p448 = scmp.lt.s32.totalorder %s447, 31
        %s449 = scalar_select %p448, %s447, 31
        %s450 = smul.addr %s449, 8
        %s451 = scalar_lea.vmem %s0, %s450
        %p452 = pneg %p50
        %p453 = pneg %p47
        %s454 = smul.u32 16, %s29
        %p455 = scmp.lt.s32.totalorder %s454, 31
        %s456 = scalar_select %p455, %s454, 31
        %s457 = smul.addr %s456, 3
        %s458 = smul.addr %s457, 4
        %s459 = scalar_lea.vmem %s1, %s458
        %p460 = pneg %p76
        %p461 = pneg %p73
        %p462 = pneg %p97
        %p463 = pneg %p94
        %p464 = pneg %p118
        %p465 = pneg %p115
        %p466 = pneg %p139
        %p467 = pneg %p136
        %p468 = pneg %p160
        %p469 = pneg %p157
        %p470 = pneg %p181
        %p471 = pneg %p178
        %p472 = pneg %p202
        %p473 = pneg %p199
        %p474 = pneg %p223
        %p475 = pneg %p220
        %p476 = pneg %p244
        %p477 = pneg %p241
        %p478 = pneg %p265
        %p479 = pneg %p262
        %p480 = pneg %p286
        %p481 = pneg %p283
        %p482 = pneg %p307
        %p483 = pneg %p304
        %p484 = pneg %p328
        %p485 = pneg %p325
        %p486 = pneg %p354
        %p487 = pneg %p351
        %s488 = sand.u32 %s341, 1
        %s489 = scalar_lea.sflag [#allocation4], %s488
        %s490 = sand.u32 %s341, 1
        %s491 = smul.addr %s490, 16
        %s492 = scalar_lea.vmem [#allocation5], %s491
        %s493 = smul.u32 16, %s29
        %p494 = scmp.lt.s32.totalorder %s493, 31
        %s495 = scalar_select %p494, %s493, 31
        %s496 = smul.addr %s495, 8
        %s497 = scalar_lea.vmem %s0, %s496
        %s498 = smul.u32 16, %s29
        %s499 = smul.u32 16, %s29
        %p500 = scmp.lt.s32.totalorder %s499, 31
        %s501 = scalar_select %p500, %s499, 31
        %s502 = smul.addr %s501, 3
        %s503 = smul.addr %s502, 4
        %s504 = scalar_lea.vmem %s1, %s503
        %s505 = smul.u32 16, %s29
        %s506 = smul.u32 2, %s29
        %v508 = vld [vmem:[%s497] sm:$0xff]
        %v509 = vld [vmem:[%s497 + $0x8] sm:$0xff]
        %v510 = vld [vmem:[%s497 + $0x10] sm:$0xff]
        %v511 = vld [vmem:[%s497 + $0x18] sm:$0xff]
        %v512 = vld [vmem:[%s497 + $0x20] sm:$0xff]
        %v513 = vld [vmem:[%s497 + $0x28] sm:$0xff]
        %v514 = vld [vmem:[%s497 + $0x30] sm:$0xff]
        %v515 = vld [vmem:[%s497 + $0x38] sm:$0xff]
        %v516 = vld [vmem:[%s497 + $0x40] sm:$0xff]
        %v517 = vld [vmem:[%s497 + $0x48] sm:$0xff]
        %v518 = vld [vmem:[%s497 + $0x50] sm:$0xff]
        %v519 = vld [vmem:[%s497 + $0x58] sm:$0xff]
        %v520 = vld [vmem:[%s497 + $0x60] sm:$0xff]
        %v521 = vld [vmem:[%s497 + $0x68] sm:$0xff]
        %v522 = vld [vmem:[%s497 + $0x70] sm:$0xff]
        %v523 = vld [vmem:[%s497 + $0x78] sm:$0xff]
        %v524 = vpack.c.bf16 %v509, %v508
        %v525 = vpack.c.bf16 %v511, %v510
        %v526 = vpack.c.bf16 %v513, %v512
        %v527 = vpack.c.bf16 %v515, %v514
        %v528 = vpack.c.bf16 %v517, %v516
        %v529 = vpack.c.bf16 %v519, %v518
        %v530 = vpack.c.bf16 %v521, %v520
        %v531 = vpack.c.bf16 %v523, %v522
        %v532 = vld [vmem:[#allocation2] sm:$0xf]
        %v533 = vld [vmem:[%s3] sm:$0x1]
        %v535 = vlaneseq
        %v536 = vshrl.u32 %v535, 7
        %v537 = vsub.s32 0, %v536
        %v538 = vrot.slane %v533, %v537
        %vm540 = vcmask 64512
        %v542 = vsel %vm540, %v524, 0
        %v545 = vsel %vm540, %v525, 0
        %v548 = vsel %vm540, %v526, 0
        %v551 = vsel %vm540, %v527, 0
        %v554 = vsel %vm540, %v528, 0
        %v557 = vsel %vm540, %v529, 0
        %v560 = vsel %vm540, %v530, 0
        %v563 = vsel %vm540, %v531, 0
        %vm565 = vcmask 1043456
        %v567 = vsel %vm565, %v532, 0
        %569 = vmatprep.subr.bf16.mxu0 0
        %570 = vmatpush1.bf16.msra.mxu0 %v567
        %571 = vmatprep.subr.bf16.mxu0 0
        %572 = vmatpush1.bf16.msra.mxu0 0
        %573 = vmatprep.subr.bf16.mxu0 0
        %574 = vmatpush1.bf16.msra.mxu0 0
        %575 = vmatprep.subr.bf16.mxu0 0
        %576 = vmatpush1.bf16.msra.mxu0 0
        %577 = vmatprep.subr.bf16.mxu0 0
        %578 = vmatpush1.bf16.msra.mxu0 0
        %579 = vmatprep.subr.bf16.mxu0 0
        %580 = vmatpush1.bf16.msra.mxu0 0
        %581 = vmatprep.subr.bf16.mxu0 0
        %582 = vmatpush1.bf16.msra.mxu0 0
        %583 = vmatprep.subr.bf16.mxu0 0
        %584 = vmatpush1.bf16.msra.mxu0 0
        %585 = vmatprep.subr.bf16.mxu0 0
        %586 = vmatpush1.bf16.msra.mxu0 0
        %587 = vmatprep.subr.bf16.mxu0 0
        %588 = vmatpush1.bf16.msra.mxu0 0
        %589 = vmatprep.subr.bf16.mxu0 0
        %590 = vmatpush1.bf16.msra.mxu0 0
        %591 = vmatprep.subr.bf16.mxu0 0
        %592 = vmatpush1.bf16.msra.mxu0 0
        %593 = vmatprep.subr.bf16.mxu0 0
        %594 = vmatpush1.bf16.msra.mxu0 0
        %595 = vmatprep.subr.bf16.mxu0 0
        %596 = vmatpush1.bf16.msra.mxu0 0
        %597 = vmatprep.subr.bf16.mxu0 0
        %598 = vmatpush1.bf16.msra.mxu0 0
        %599 = vmatprep.subr.bf16.mxu0 0
        %600 = vmatpush1.bf16.msra.mxu0 0
        %601 = vmatprep.mubr.bf16.mxu0 0
        %602 = vmatmul.mubr.bf16.gmra.mrb[0].mxu0 %v542
        %v603 = vpop.f32.mrb[0].mxu0
        %v604 = vadd.f32 %v538, %v603
        %v605 = vpop.f32.mrb[0].mxu0
        %v606 = vpop.f32.mrb[0].mxu0
        %v607 = vadd.f32 %v538, %v606
        %v608 = vpop.f32.mrb[0].mxu0
        %609 = vmatprep.mubr.bf16.mxu0 0
        %610 = vmatmul.mubr.bf16.gmra.mrb[0].mxu0 %v545
        %v611 = vpop.f32.mrb[0].mxu0
        %v612 = vadd.f32 %v538, %v611
        %v613 = vpop.f32.mrb[0].mxu0
        %v614 = vpop.f32.mrb[0].mxu0
        %v615 = vadd.f32 %v538, %v614
        %v616 = vpop.f32.mrb[0].mxu0
        %617 = vmatprep.mubr.bf16.mxu0 0
        %618 = vmatmul.mubr.bf16.gmra.mrb[0].mxu0 %v548
        %v619 = vpop.f32.mrb[0].mxu0
        %v620 = vadd.f32 %v538, %v619
        %v621 = vpop.f32.mrb[0].mxu0
        %v622 = vpop.f32.mrb[0].mxu0
        %v623 = vadd.f32 %v538, %v622
        %v624 = vpop.f32.mrb[0].mxu0
        %625 = vmatprep.mubr.bf16.mxu0 0
        %626 = vmatmul.mubr.bf16.gmra.mrb[0].mxu0 %v551
        %v627 = vpop.f32.mrb[0].mxu0
        %v628 = vadd.f32 %v538, %v627
        %v629 = vpop.f32.mrb[0].mxu0
        %v630 = vpop.f32.mrb[0].mxu0
        %v631 = vadd.f32 %v538, %v630
        %v632 = vpop.f32.mrb[0].mxu0
        %633 = vmatprep.mubr.bf16.mxu0 0
        %634 = vmatmul.mubr.bf16.gmra.mrb[0].mxu0 %v554
        %v635 = vpop.f32.mrb[0].mxu0
        %v636 = vadd.f32 %v538, %v635
        %v637 = vpop.f32.mrb[0].mxu0
        %v638 = vpop.f32.mrb[0].mxu0
        %v639 = vadd.f32 %v538, %v638
        %v640 = vpop.f32.mrb[0].mxu0
        %641 = vmatprep.mubr.bf16.mxu0 0
        %642 = vmatmul.mubr.bf16.gmra.mrb[0].mxu0 %v557
        %v643 = vpop.f32.mrb[0].mxu0
        %v644 = vadd.f32 %v538, %v643
        %v645 = vpop.f32.mrb[0].mxu0
        %v646 = vpop.f32.mrb[0].mxu0
        %v647 = vadd.f32 %v538, %v646
        %v648 = vpop.f32.mrb[0].mxu0
        %649 = vmatprep.mubr.bf16.mxu0 0
        %650 = vmatmul.mubr.bf16.gmra.mrb[0].mxu0 %v560
        %v651 = vpop.f32.mrb[0].mxu0
        %v652 = vadd.f32 %v538, %v651
        %v653 = vpop.f32.mrb[0].mxu0
        %v654 = vpop.f32.mrb[0].mxu0
        %v655 = vadd.f32 %v538, %v654
        %v656 = vpop.f32.mrb[0].mxu0
        %657 = vmatprep.mubr.bf16.mxu0 0
        %658 = vmatmul.mubr.bf16.gmra.mrb[0].mxu0 %v563
        %v659 = vpop.f32.mrb[0].mxu0
        %v660 = vadd.f32 %v538, %v659
        %v661 = vpop.f32.mrb[0].mxu0
        %v662 = vpop.f32.mrb[0].mxu0
        %v663 = vadd.f32 %v538, %v662
        %v664 = vpop.f32.mrb[0].mxu0
        %665 = vdwg.mxu0
        %v666 = vld [vmem:[%s504] sm:$0xf]
        %v667 = vld [vmem:[%s504 + $0x4] sm:$0xf]
        %v668 = vld [vmem:[%s504 + $0x8] sm:$0xf]
        %v669 = vld [vmem:[%s504 + $0xc] sm:$0xf]
        %v670 = vld [vmem:[%s504 + $0x10] sm:$0xf]
        %v671 = vld [vmem:[%s504 + $0x14] sm:$0xf]
        %v672 = vld [vmem:[%s504 + $0x18] sm:$0xf]
        %v673 = vld [vmem:[%s504 + $0x1c] sm:$0xf]
        %v674 = vld [vmem:[%s504 + $0x20] sm:$0xf]
        %v675 = vld [vmem:[%s504 + $0x24] sm:$0xf]
        %v676 = vld [vmem:[%s504 + $0x28] sm:$0xf]
        %v677 = vld [vmem:[%s504 + $0x2c] sm:$0xf]
        %v678 = vld [vmem:[%s504 + $0x30] sm:$0xf]
        %v679 = vld [vmem:[%s504 + $0x34] sm:$0xf]
        %v680 = vld [vmem:[%s504 + $0x38] sm:$0xf]
        %v681 = vld [vmem:[%s504 + $0x3c] sm:$0xf]
        %v682 = vld [vmem:[%s504 + $0x40] sm:$0xf]
        %v683 = vld [vmem:[%s504 + $0x44] sm:$0xf]
        %v684 = vld [vmem:[%s504 + $0x48] sm:$0xf]
        %v685 = vld [vmem:[%s504 + $0x4c] sm:$0xf]
        %v686 = vld [vmem:[%s504 + $0x50] sm:$0xf]
        %v687 = vld [vmem:[%s504 + $0x54] sm:$0xf]
        %v688 = vld [vmem:[%s504 + $0x58] sm:$0xf]
        %v689 = vld [vmem:[%s504 + $0x5c] sm:$0xf]
        %v690 = vld [vmem:[%s504 + $0x60] sm:$0xf]
        %v691 = vld [vmem:[%s504 + $0x64] sm:$0xf]
        %v692 = vld [vmem:[%s504 + $0x68] sm:$0xf]
        %v693 = vld [vmem:[%s504 + $0x6c] sm:$0xf]
        %v694 = vld [vmem:[%s504 + $0x70] sm:$0xf]
        %v695 = vld [vmem:[%s504 + $0x74] sm:$0xf]
        %v696 = vld [vmem:[%s504 + $0x78] sm:$0xf]
        %v697 = vld [vmem:[%s504 + $0x7c] sm:$0xf]
        %v698 = vld [vmem:[%s504 + $0x80] sm:$0xf]
        %v699 = vld [vmem:[%s504 + $0x84] sm:$0xf]
        %v700 = vld [vmem:[%s504 + $0x88] sm:$0xf]
        %v701 = vld [vmem:[%s504 + $0x8c] sm:$0xf]
        %v702 = vld [vmem:[%s504 + $0x90] sm:$0xf]
        %v703 = vld [vmem:[%s504 + $0x94] sm:$0xf]
        %v704 = vld [vmem:[%s504 + $0x98] sm:$0xf]
        %v705 = vld [vmem:[%s504 + $0x9c] sm:$0xf]
        %v706 = vld [vmem:[%s504 + $0xa0] sm:$0xf]
        %v707 = vld [vmem:[%s504 + $0xa4] sm:$0xf]
        %v708 = vld [vmem:[%s504 + $0xa8] sm:$0xf]
        %v709 = vld [vmem:[%s504 + $0xac] sm:$0xf]
        %v710 = vld [vmem:[%s504 + $0xb0] sm:$0xf]
        %v711 = vld [vmem:[%s504 + $0xb4] sm:$0xf]
        %v712 = vld [vmem:[%s504 + $0xb8] sm:$0xf]
        %v713 = vld [vmem:[%s504 + $0xbc] sm:$0xf]
        %v714 = vunpack.c.l.bf16 %v666
        %v715 = vunpack.c.l.bf16 %v669
        %v716 = vunpack.c.l.bf16 %v672
        %v717 = vunpack.c.l.bf16 %v675
        %v718 = vunpack.c.l.bf16 %v678
        %v719 = vunpack.c.l.bf16 %v681
        %v720 = vunpack.c.l.bf16 %v684
        %v721 = vunpack.c.l.bf16 %v687
        %v722 = vunpack.c.l.bf16 %v690
        %v723 = vunpack.c.l.bf16 %v693
        %v724 = vunpack.c.l.bf16 %v696
        %v725 = vunpack.c.l.bf16 %v699
        %v726 = vunpack.c.l.bf16 %v702
        %v727 = vunpack.c.l.bf16 %v705
        %v728 = vunpack.c.l.bf16 %v708
        %v729 = vunpack.c.l.bf16 %v711
        %v730 = vsel %vm540, %v714, 0.0
        %731 = vadd.xlane.f32.xlu0 %v730
        %v732 = vpop.xlane.xlu0 %731
        %v733 = vsel %vm540, %v715, 0.0
        %734 = vadd.xlane.f32.xlu0 %v733
        %v735 = vpop.xlane.xlu0 %734
        %v736 = vsel %vm540, %v716, 0.0
        %737 = vadd.xlane.f32.xlu0 %v736
        %v738 = vpop.xlane.xlu0 %737
        %v739 = vsel %vm540, %v717, 0.0
        %740 = vadd.xlane.f32.xlu0 %v739
        %v741 = vpop.xlane.xlu0 %740
        %v742 = vsel %vm540, %v718, 0.0
        %743 = vadd.xlane.f32.xlu0 %v742
        %v744 = vpop.xlane.xlu0 %743
        %v745 = vsel %vm540, %v719, 0.0
        %746 = vadd.xlane.f32.xlu0 %v745
        %v747 = vpop.xlane.xlu0 %746
        %v748 = vsel %vm540, %v720, 0.0
        %749 = vadd.xlane.f32.xlu0 %v748
        %v750 = vpop.xlane.xlu0 %749
        %v751 = vsel %vm540, %v721, 0.0
        %752 = vadd.xlane.f32.xlu0 %v751
        %v753 = vpop.xlane.xlu0 %752
        %v754 = vsel %vm540, %v722, 0.0
        %755 = vadd.xlane.f32.xlu0 %v754
        %v756 = vpop.xlane.xlu0 %755
        %v757 = vsel %vm540, %v723, 0.0
        %758 = vadd.xlane.f32.xlu0 %v757
        %v759 = vpop.xlane.xlu0 %758
        %v760 = vsel %vm540, %v724, 0.0
        %761 = vadd.xlane.f32.xlu0 %v760
        %v762 = vpop.xlane.xlu0 %761
        %v763 = vsel %vm540, %v725, 0.0
        %764 = vadd.xlane.f32.xlu0 %v763
        %v765 = vpop.xlane.xlu0 %764
        %v766 = vsel %vm540, %v726, 0.0
        %767 = vadd.xlane.f32.xlu0 %v766
        %v768 = vpop.xlane.xlu0 %767
        %v769 = vsel %vm540, %v727, 0.0
        %770 = vadd.xlane.f32.xlu0 %v769
        %v771 = vpop.xlane.xlu0 %770
        %v772 = vsel %vm540, %v728, 0.0
        %773 = vadd.xlane.f32.xlu0 %v772
        %v774 = vpop.xlane.xlu0 %773
        %v775 = vsel %vm540, %v729, 0.0
        %776 = vadd.xlane.f32.xlu0 %v775
        %v777 = vpop.xlane.xlu0 %776
        %v778 = vld [vmem:[%s5] sm:$0x1]
        %v780 = vlaneseq
        %v781 = vshrl.u32 %v780, 7
        %v782 = vsub.s32 0, %v781
        %v783 = vrot.slane %v778, %v782
        %v785 = vmul.f32 %v732, %v783
        %v786 = vmul.f32 %v735, %v783
        %v787 = vmul.f32 %v738, %v783
        %v788 = vmul.f32 %v741, %v783
        %v789 = vmul.f32 %v744, %v783
        %v790 = vmul.f32 %v747, %v783
        %v791 = vmul.f32 %v750, %v783
        %v792 = vmul.f32 %v753, %v783
        %v793 = vmul.f32 %v756, %v783
        %v794 = vmul.f32 %v759, %v783
        %v795 = vmul.f32 %v762, %v783
        %v796 = vmul.f32 %v765, %v783
        %v797 = vmul.f32 %v768, %v783
        %v798 = vmul.f32 %v771, %v783
        %v799 = vmul.f32 %v774, %v783
        %v800 = vmul.f32 %v777, %v783
        %v801 = vadd.f32 %v785, 0.0
        %v802 = vadd.f32 %v786, 0.0
        %v803 = vadd.f32 %v787, 0.0
        %v804 = vadd.f32 %v788, 0.0
        %v805 = vadd.f32 %v789, 0.0
        %v806 = vadd.f32 %v790, 0.0
        %v807 = vadd.f32 %v791, 0.0
        %v808 = vadd.f32 %v792, 0.0
        %v809 = vadd.f32 %v793, 0.0
        %v810 = vadd.f32 %v794, 0.0
        %v811 = vadd.f32 %v795, 0.0
        %v812 = vadd.f32 %v796, 0.0
        %v813 = vadd.f32 %v797, 0.0
        %v814 = vadd.f32 %v798, 0.0
        %v815 = vadd.f32 %v799, 0.0
        %v816 = vadd.f32 %v800, 0.0
        %v817 = vunpack.c.l.bf16 %v667
        %v818 = vunpack.c.l.bf16 %v670
        %v819 = vunpack.c.l.bf16 %v673
        %v820 = vunpack.c.l.bf16 %v676
        %v821 = vunpack.c.l.bf16 %v679
        %v822 = vunpack.c.l.bf16 %v682
        %v823 = vunpack.c.l.bf16 %v685
        %v824 = vunpack.c.l.bf16 %v688
        %v825 = vunpack.c.l.bf16 %v691
        %v826 = vunpack.c.l.bf16 %v694
        %v827 = vunpack.c.l.bf16 %v697
        %v828 = vunpack.c.l.bf16 %v700
        %v829 = vunpack.c.l.bf16 %v703
        %v830 = vunpack.c.l.bf16 %v706
        %v831 = vunpack.c.l.bf16 %v709
        %v832 = vunpack.c.l.bf16 %v712
        %v833 = vsel %vm540, %v817, 0.0
        %834 = vadd.xlane.f32.xlu0 %v833
        %v835 = vpop.xlane.xlu0 %834
        %v836 = vsel %vm540, %v818, 0.0
        %837 = vadd.xlane.f32.xlu0 %v836
        %v838 = vpop.xlane.xlu0 %837
        %v839 = vsel %vm540, %v819, 0.0
        %840 = vadd.xlane.f32.xlu0 %v839
        %v841 = vpop.xlane.xlu0 %840
        %v842 = vsel %vm540, %v820, 0.0
        %843 = vadd.xlane.f32.xlu0 %v842
        %v844 = vpop.xlane.xlu0 %843
        %v845 = vsel %vm540, %v821, 0.0
        %846 = vadd.xlane.f32.xlu0 %v845
        %v847 = vpop.xlane.xlu0 %846
        %v848 = vsel %vm540, %v822, 0.0
        %849 = vadd.xlane.f32.xlu0 %v848
        %v850 = vpop.xlane.xlu0 %849
        %v851 = vsel %vm540, %v823, 0.0
        %852 = vadd.xlane.f32.xlu0 %v851
        %v853 = vpop.xlane.xlu0 %852
        %v854 = vsel %vm540, %v824, 0.0
        %855 = vadd.xlane.f32.xlu0 %v854
        %v856 = vpop.xlane.xlu0 %855
        %v857 = vsel %vm540, %v825, 0.0
        %858 = vadd.xlane.f32.xlu0 %v857
        %v859 = vpop.xlane.xlu0 %858
        %v860 = vsel %vm540, %v826, 0.0
        %861 = vadd.xlane.f32.xlu0 %v860
        %v862 = vpop.xlane.xlu0 %861
        %v863 = vsel %vm540, %v827, 0.0
        %864 = vadd.xlane.f32.xlu0 %v863
        %v865 = vpop.xlane.xlu0 %864
        %v866 = vsel %vm540, %v828, 0.0
        %867 = vadd.xlane.f32.xlu0 %v866
        %v868 = vpop.xlane.xlu0 %867
        %v869 = vsel %vm540, %v829, 0.0
        %870 = vadd.xlane.f32.xlu0 %v869
        %v871 = vpop.xlane.xlu0 %870
        %v872 = vsel %vm540, %v830, 0.0
        %873 = vadd.xlane.f32.xlu0 %v872
        %v874 = vpop.xlane.xlu0 %873
        %v875 = vsel %vm540, %v831, 0.0
        %876 = vadd.xlane.f32.xlu0 %v875
        %v877 = vpop.xlane.xlu0 %876
        %v878 = vsel %vm540, %v832, 0.0
        %879 = vadd.xlane.f32.xlu0 %v878
        %v880 = vpop.xlane.xlu0 %879
        %v881 = vld [vmem:[%s5 + $0x1] sm:$0x1]
        %v883 = vlaneseq
        %v884 = vshrl.u32 %v883, 7
        %v885 = vsub.s32 0, %v884
        %v886 = vrot.slane %v881, %v885
        %v888 = vmul.f32 %v835, %v886
        %v889 = vmul.f32 %v838, %v886
        %v890 = vmul.f32 %v841, %v886
        %v891 = vmul.f32 %v844, %v886
        %v892 = vmul.f32 %v847, %v886
        %v893 = vmul.f32 %v850, %v886
        %v894 = vmul.f32 %v853, %v886
        %v895 = vmul.f32 %v856, %v886
        %v896 = vmul.f32 %v859, %v886
        %v897 = vmul.f32 %v862, %v886
        %v898 = vmul.f32 %v865, %v886
        %v899 = vmul.f32 %v868, %v886
        %v900 = vmul.f32 %v871, %v886
        %v901 = vmul.f32 %v874, %v886
        %v902 = vmul.f32 %v877, %v886
        %v903 = vmul.f32 %v880, %v886
        %v904 = vadd.f32 %v801, %v888
        %v905 = vadd.f32 %v802, %v889
        %v906 = vadd.f32 %v803, %v890
        %v907 = vadd.f32 %v804, %v891
        %v908 = vadd.f32 %v805, %v892
        %v909 = vadd.f32 %v806, %v893
        %v910 = vadd.f32 %v807, %v894
        %v911 = vadd.f32 %v808, %v895
        %v912 = vadd.f32 %v809, %v896
        %v913 = vadd.f32 %v810, %v897
        %v914 = vadd.f32 %v811, %v898
        %v915 = vadd.f32 %v812, %v899
        %v916 = vadd.f32 %v813, %v900
        %v917 = vadd.f32 %v814, %v901
        %v918 = vadd.f32 %v815, %v902
        %v919 = vadd.f32 %v816, %v903
        %v920 = vunpack.c.l.bf16 %v668
        %v921 = vunpack.c.l.bf16 %v671
        %v922 = vunpack.c.l.bf16 %v674
        %v923 = vunpack.c.l.bf16 %v677
        %v924 = vunpack.c.l.bf16 %v680
        %v925 = vunpack.c.l.bf16 %v683
        %v926 = vunpack.c.l.bf16 %v686
        %v927 = vunpack.c.l.bf16 %v689
        %v928 = vunpack.c.l.bf16 %v692
        %v929 = vunpack.c.l.bf16 %v695
        %v930 = vunpack.c.l.bf16 %v698
        %v931 = vunpack.c.l.bf16 %v701
        %v932 = vunpack.c.l.bf16 %v704
        %v933 = vunpack.c.l.bf16 %v707
        %v934 = vunpack.c.l.bf16 %v710
        %v935 = vunpack.c.l.bf16 %v713
        %v936 = vsel %vm540, %v920, 0.0
        %937 = vadd.xlane.f32.xlu0 %v936
        %v938 = vpop.xlane.xlu0 %937
        %v939 = vsel %vm540, %v921, 0.0
        %940 = vadd.xlane.f32.xlu0 %v939
        %v941 = vpop.xlane.xlu0 %940
        %v942 = vsel %vm540, %v922, 0.0
        %943 = vadd.xlane.f32.xlu0 %v942
        %v944 = vpop.xlane.xlu0 %943
        %v945 = vsel %vm540, %v923, 0.0
        %946 = vadd.xlane.f32.xlu0 %v945
        %v947 = vpop.xlane.xlu0 %946
        %v948 = vsel %vm540, %v924, 0.0
        %949 = vadd.xlane.f32.xlu0 %v948
        %v950 = vpop.xlane.xlu0 %949
        %v951 = vsel %vm540, %v925, 0.0
        %952 = vadd.xlane.f32.xlu0 %v951
        %v953 = vpop.xlane.xlu0 %952
        %v954 = vsel %vm540, %v926, 0.0
        %955 = vadd.xlane.f32.xlu0 %v954
        %v956 = vpop.xlane.xlu0 %955
        %v957 = vsel %vm540, %v927, 0.0
        %958 = vadd.xlane.f32.xlu0 %v957
        %v959 = vpop.xlane.xlu0 %958
        %v960 = vsel %vm540, %v928, 0.0
        %961 = vadd.xlane.f32.xlu0 %v960
        %v962 = vpop.xlane.xlu0 %961
        %v963 = vsel %vm540, %v929, 0.0
        %964 = vadd.xlane.f32.xlu0 %v963
        %v965 = vpop.xlane.xlu0 %964
        %v966 = vsel %vm540, %v930, 0.0
        %967 = vadd.xlane.f32.xlu0 %v966
        %v968 = vpop.xlane.xlu0 %967
        %v969 = vsel %vm540, %v931, 0.0
        %970 = vadd.xlane.f32.xlu0 %v969
        %v971 = vpop.xlane.xlu0 %970
        %v972 = vsel %vm540, %v932, 0.0
        %973 = vadd.xlane.f32.xlu0 %v972
        %v974 = vpop.xlane.xlu0 %973
        %v975 = vsel %vm540, %v933, 0.0
        %976 = vadd.xlane.f32.xlu0 %v975
        %v977 = vpop.xlane.xlu0 %976
        %v978 = vsel %vm540, %v934, 0.0
        %979 = vadd.xlane.f32.xlu0 %v978
        %v980 = vpop.xlane.xlu0 %979
        %v981 = vsel %vm540, %v935, 0.0
        %982 = vadd.xlane.f32.xlu0 %v981
        %v983 = vpop.xlane.xlu0 %982
        %v984 = vld [vmem:[%s5 + $0x2] sm:$0x1]
        %v986 = vlaneseq
        %v987 = vshrl.u32 %v986, 7
        %v988 = vsub.s32 0, %v987
        %v989 = vrot.slane %v984, %v988
        %v991 = vmul.f32 %v938, %v989
        %v992 = vmul.f32 %v941, %v989
        %v993 = vmul.f32 %v944, %v989
        %v994 = vmul.f32 %v947, %v989
        %v995 = vmul.f32 %v950, %v989
        %v996 = vmul.f32 %v953, %v989
        %v997 = vmul.f32 %v956, %v989
        %v998 = vmul.f32 %v959, %v989
        %v999 = vmul.f32 %v962, %v989
        %v1000 = vmul.f32 %v965, %v989
        %v1001 = vmul.f32 %v968, %v989
        %v1002 = vmul.f32 %v971, %v989
        %v1003 = vmul.f32 %v974, %v989
        %v1004 = vmul.f32 %v977, %v989
        %v1005 = vmul.f32 %v980, %v989
        %v1006 = vmul.f32 %v983, %v989
        %v1007 = vadd.f32 %v904, %v991
        %v1008 = vadd.f32 %v905, %v992
        %v1009 = vadd.f32 %v906, %v993
        %v1010 = vadd.f32 %v907, %v994
        %v1011 = vadd.f32 %v908, %v995
        %v1012 = vadd.f32 %v909, %v996
        %v1013 = vadd.f32 %v910, %v997
        %v1014 = vadd.f32 %v911, %v998
        %v1015 = vadd.f32 %v912, %v999
        %v1016 = vadd.f32 %v913, %v1000
        %v1017 = vadd.f32 %v914, %v1001
        %v1018 = vadd.f32 %v915, %v1002
        %v1019 = vadd.f32 %v916, %v1003
        %v1020 = vadd.f32 %v917, %v1004
        %v1021 = vadd.f32 %v918, %v1005
        %v1022 = vadd.f32 %v919, %v1006
        %v1023 = vld [vmem:[%s7] sm:$0x7]
        %v1025 = vlaneseq
        %v1026 = vshrl.u32 %v1025, 7
        %v1027 = vsub.s32 0, %v1026
        %v1028 = vrot.slane %v1023, %v1027
        %v1029 = vlaneseq
        %v1030 = vshrl.u32 %v1029, 7
        %v1031 = vsub.s32 1, %v1030
        %v1032 = vrot.slane %v1023, %v1031
        %v1033 = vlaneseq
        %v1034 = vshrl.u32 %v1033, 7
        %v1035 = vsub.s32 2, %v1034
        %v1036 = vrot.slane %v1023, %v1035
        %v1040 = vld [vmem:[%s9] sm:$0x7]
        %v1042 = vlaneseq
        %v1043 = vshrl.u32 %v1042, 7
        %v1044 = vsub.s32 0, %v1043
        %v1045 = vrot.slane %v1040, %v1044
        %v1046 = vlaneseq
        %v1047 = vshrl.u32 %v1046, 7
        %v1048 = vsub.s32 1, %v1047
        %v1049 = vrot.slane %v1040, %v1048
        %v1050 = vlaneseq
        %v1051 = vshrl.u32 %v1050, 7
        %v1052 = vsub.s32 2, %v1051
        %v1053 = vrot.slane %v1040, %v1052
        %v1057 = vld [vmem:[%s4] sm:$0xff]
        %v1058 = vld [vmem:[%s4 + $0x8] sm:$0xf]
        %v1059 = vld [vmem:[%s4 + $0xc] sm:$0xff]
        %v1060 = vld [vmem:[%s4 + $0x14] sm:$0xf]
        %v1061 = vld [vmem:[%s4 + $0x18] sm:$0xff]
        %v1062 = vld [vmem:[%s4 + $0x20] sm:$0xf]
        %v1063 = vld [vmem:[%s4 + $0x24] sm:$0xff]
        %v1064 = vld [vmem:[%s4 + $0x2c] sm:$0xf]
        %v1065 = vld [vmem:[%s4 + $0x30] sm:$0xff]
        %v1066 = vld [vmem:[%s4 + $0x38] sm:$0xf]
        %v1067 = vld [vmem:[%s4 + $0x3c] sm:$0xff]
        %v1068 = vld [vmem:[%s4 + $0x44] sm:$0xf]
        %v1069 = vld [vmem:[%s4 + $0x48] sm:$0xff]
        %v1070 = vld [vmem:[%s4 + $0x50] sm:$0xf]
        %v1071 = vld [vmem:[%s4 + $0x54] sm:$0xff]
        %v1072 = vld [vmem:[%s4 + $0x5c] sm:$0xf]
        %v1073 = vld [vmem:[%s4 + $0x60] sm:$0xff]
        %v1074 = vld [vmem:[%s4 + $0x68] sm:$0xf]
        %v1075 = vld [vmem:[%s4 + $0x6c] sm:$0xff]
        %v1076 = vld [vmem:[%s4 + $0x74] sm:$0xf]
        %v1077 = vld [vmem:[%s4 + $0x78] sm:$0xff]
        %v1078 = vld [vmem:[%s4 + $0x80] sm:$0xf]
        %v1079 = vld [vmem:[%s4 + $0x84] sm:$0xff]
        %v1080 = vld [vmem:[%s4 + $0x8c] sm:$0xf]
        %v1081 = vld [vmem:[%s4 + $0x90] sm:$0xff]
        %v1082 = vld [vmem:[%s4 + $0x98] sm:$0xf]
        %v1083 = vld [vmem:[%s4 + $0x9c] sm:$0xff]
        %v1084 = vld [vmem:[%s4 + $0xa4] sm:$0xf]
        %v1085 = vld [vmem:[%s4 + $0xa8] sm:$0xff]
        %v1086 = vld [vmem:[%s4 + $0xb0] sm:$0xf]
        %v1087 = vld [vmem:[%s4 + $0xb4] sm:$0xff]
        %v1088 = vld [vmem:[%s4 + $0xbc] sm:$0xf]
        %v1089 = vld [vmem:[%s6] sm:$0xff]
        %v1090 = vld [vmem:[%s6 + $0x8] sm:$0xf]
        %v1091 = vld [vmem:[%s6 + $0xc] sm:$0xff]
        %v1092 = vld [vmem:[%s6 + $0x14] sm:$0xf]
        %v1093 = vld [vmem:[%s6 + $0x18] sm:$0xff]
        %v1094 = vld [vmem:[%s6 + $0x20] sm:$0xf]
        %v1095 = vld [vmem:[%s6 + $0x24] sm:$0xff]
        %v1096 = vld [vmem:[%s6 + $0x2c] sm:$0xf]
        %v1097 = vld [vmem:[%s6 + $0x30] sm:$0xff]
        %v1098 = vld [vmem:[%s6 + $0x38] sm:$0xf]
        %v1099 = vld [vmem:[%s6 + $0x3c] sm:$0xff]
        %v1100 = vld [vmem:[%s6 + $0x44] sm:$0xf]
        %v1101 = vld [vmem:[%s6 + $0x48] sm:$0xff]
        %v1102 = vld [vmem:[%s6 + $0x50] sm:$0xf]
        %v1103 = vld [vmem:[%s6 + $0x54] sm:$0xff]
        %v1104 = vld [vmem:[%s6 + $0x5c] sm:$0xf]
        %v1105 = vld [vmem:[%s6 + $0x60] sm:$0xff]
        %v1106 = vld [vmem:[%s6 + $0x68] sm:$0xf]
        %v1107 = vld [vmem:[%s6 + $0x6c] sm:$0xff]
        %v1108 = vld [vmem:[%s6 + $0x74] sm:$0xf]
        %v1109 = vld [vmem:[%s6 + $0x78] sm:$0xff]
        %v1110 = vld [vmem:[%s6 + $0x80] sm:$0xf]
        %v1111 = vld [vmem:[%s6 + $0x84] sm:$0xff]
        %v1112 = vld [vmem:[%s6 + $0x8c] sm:$0xf]
        %v1113 = vld [vmem:[%s6 + $0x90] sm:$0xff]
        %v1114 = vld [vmem:[%s6 + $0x98] sm:$0xf]
        %v1115 = vld [vmem:[%s6 + $0x9c] sm:$0xff]
        %v1116 = vld [vmem:[%s6 + $0xa4] sm:$0xf]
        %v1117 = vld [vmem:[%s6 + $0xa8] sm:$0xff]
        %v1118 = vld [vmem:[%s6 + $0xb0] sm:$0xf]
        %v1119 = vld [vmem:[%s6 + $0xb4] sm:$0xff]
        %v1120 = vld [vmem:[%s6 + $0xbc] sm:$0xf]
        %v1121 = vld [vmem:[%s8] sm:$0xff]
        %v1122 = vld [vmem:[%s8 + $0x8] sm:$0xf]
        %v1123 = vld [vmem:[%s8 + $0xc] sm:$0xff]
        %v1124 = vld [vmem:[%s8 + $0x14] sm:$0xf]
        %v1125 = vld [vmem:[%s8 + $0x18] sm:$0xff]
        %v1126 = vld [vmem:[%s8 + $0x20] sm:$0xf]
        %v1127 = vld [vmem:[%s8 + $0x24] sm:$0xff]
        %v1128 = vld [vmem:[%s8 + $0x2c] sm:$0xf]
        %v1129 = vld [vmem:[%s8 + $0x30] sm:$0xff]
        %v1130 = vld [vmem:[%s8 + $0x38] sm:$0xf]
        %v1131 = vld [vmem:[%s8 + $0x3c] sm:$0xff]
        %v1132 = vld [vmem:[%s8 + $0x44] sm:$0xf]
        %v1133 = vld [vmem:[%s8 + $0x48] sm:$0xff]
        %v1134 = vld [vmem:[%s8 + $0x50] sm:$0xf]
        %v1135 = vld [vmem:[%s8 + $0x54] sm:$0xff]
        %v1136 = vld [vmem:[%s8 + $0x5c] sm:$0xf]
        %v1137 = vld [vmem:[%s8 + $0x60] sm:$0xff]
        %v1138 = vld [vmem:[%s8 + $0x68] sm:$0xf]
        %v1139 = vld [vmem:[%s8 + $0x6c] sm:$0xff]
        %v1140 = vld [vmem:[%s8 + $0x74] sm:$0xf]
        %v1141 = vld [vmem:[%s8 + $0x78] sm:$0xff]
        %v1142 = vld [vmem:[%s8 + $0x80] sm:$0xf]
        %v1143 = vld [vmem:[%s8 + $0x84] sm:$0xff]
        %v1144 = vld [vmem:[%s8 + $0x8c] sm:$0xf]
        %v1145 = vld [vmem:[%s8 + $0x90] sm:$0xff]
        %v1146 = vld [vmem:[%s8 + $0x98] sm:$0xf]
        %v1147 = vld [vmem:[%s8 + $0x9c] sm:$0xff]
        %v1148 = vld [vmem:[%s8 + $0xa4] sm:$0xf]
        %v1149 = vld [vmem:[%s8 + $0xa8] sm:$0xff]
        %v1150 = vld [vmem:[%s8 + $0xb0] sm:$0xf]
        %v1151 = vld [vmem:[%s8 + $0xb4] sm:$0xff]
        %v1152 = vld [vmem:[%s8 + $0xbc] sm:$0xf]
        loop: start=0, step=1, limit=4
        $region81: #{tpu_custom_call.1} parent=75 // loop_pre_header
          _
        $region82: #{tpu_custom_call.1} parent=75 // loop_header
          %s1154 = sphi 0, %s1158
          %p1155 = scmp.ge.s32.totalorder %s1154, 4
          %v1159 = vphi %v604, %v4925
          %v1160 = vphi %v607, %v4926
          %v1161 = vphi %v612, %v4927
          %v1162 = vphi %v615, %v4928
          %v1163 = vphi %v620, %v4929
          %v1164 = vphi %v623, %v4930
          %v1165 = vphi %v628, %v4931
          %v1166 = vphi %v631, %v4932
          %v1167 = vphi %v636, %v4933
          %v1168 = vphi %v639, %v4934
          %v1169 = vphi %v644, %v4935
          %v1170 = vphi %v647, %v4936
          %v1171 = vphi %v652, %v4937
          %v1172 = vphi %v655, %v4938
          %v1173 = vphi %v660, %v4939
          %v1174 = vphi %v663, %v4940
        $region83: #{tpu_custom_call.1} parent=75 // loop_header_branch
          %1157 = sbr.rel (%p1155) target = $region87
        $region84: #{tpu_custom_call.1} parent=75 // loop_body
          %v1175 = vpack.c.bf16 %v1160, %v1159
          %v1176 = vpack.c.bf16 %v1162, %v1161
          %v1177 = vpack.c.bf16 %v1164, %v1163
          %v1178 = vpack.c.bf16 %v1166, %v1165
          %v1179 = vpack.c.bf16 %v1168, %v1167
          %v1180 = vpack.c.bf16 %v1170, %v1169
          %v1181 = vpack.c.bf16 %v1172, %v1171
          %v1182 = vpack.c.bf16 %v1174, %v1173
          %v1215 = vunpack.c.l.b16 %v1057
          %v1216 = vunpack.c.h.b16 %v1057
          %v1217 = vunpack.c.l.b16 %v1058
          %v1218 = vunpack.c.l.b16 %v1059
          %v1219 = vunpack.c.h.b16 %v1059
          %v1220 = vunpack.c.l.b16 %v1060
          %v1221 = vunpack.c.l.b16 %v1061
          %v1222 = vunpack.c.h.b16 %v1061
          %v1223 = vunpack.c.l.b16 %v1062
          %v1224 = vunpack.c.l.b16 %v1063
          %v1225 = vunpack.c.h.b16 %v1063
          %v1226 = vunpack.c.l.b16 %v1064
          %v1227 = vunpack.c.l.b16 %v1065
          %v1228 = vunpack.c.h.b16 %v1065
          %v1229 = vunpack.c.l.b16 %v1066
          %v1230 = vunpack.c.l.b16 %v1067
          %v1231 = vunpack.c.h.b16 %v1067
          %v1232 = vunpack.c.l.b16 %v1068
          %v1233 = vunpack.c.l.b16 %v1069
          %v1234 = vunpack.c.h.b16 %v1069
          %v1235 = vunpack.c.l.b16 %v1070
          %v1236 = vunpack.c.l.b16 %v1071
          %v1237 = vunpack.c.h.b16 %v1071
          %v1238 = vunpack.c.l.b16 %v1072
          %v1239 = vunpack.c.l.b16 %v1073
          %v1240 = vunpack.c.h.b16 %v1073
          %v1241 = vunpack.c.l.b16 %v1074
          %v1242 = vunpack.c.l.b16 %v1075
          %v1243 = vunpack.c.h.b16 %v1075
          %v1244 = vunpack.c.l.b16 %v1076
          %v1245 = vunpack.c.l.b16 %v1077
          %v1246 = vunpack.c.h.b16 %v1077
          %v1247 = vunpack.c.l.b16 %v1078
          %v1248 = vunpack.c.l.b16 %v1079
          %v1249 = vunpack.c.h.b16 %v1079
          %v1250 = vunpack.c.l.b16 %v1080
          %v1251 = vunpack.c.l.b16 %v1081
          %v1252 = vunpack.c.h.b16 %v1081
          %v1253 = vunpack.c.l.b16 %v1082
          %v1254 = vunpack.c.l.b16 %v1083
          %v1255 = vunpack.c.h.b16 %v1083
          %v1256 = vunpack.c.l.b16 %v1084
          %v1257 = vunpack.c.l.b16 %v1085
          %v1258 = vunpack.c.h.b16 %v1085
          %v1259 = vunpack.c.l.b16 %v1086
          %v1260 = vunpack.c.l.b16 %v1087
          %v1261 = vunpack.c.h.b16 %v1087
          %v1262 = vunpack.c.l.b16 %v1088
          %v1263 = vpack.c.b16 %v1218, %v1215
          %v1264 = vpack.c.b16 %v1219, %v1216
          %v1265 = vpack.c.b16 %v1220, %v1217
          %v1266 = vpack.c.b16 %v1224, %v1221
          %v1267 = vpack.c.b16 %v1225, %v1222
          %v1268 = vpack.c.b16 %v1226, %v1223
          %v1269 = vpack.c.b16 %v1230, %v1227
          %v1270 = vpack.c.b16 %v1231, %v1228
          %v1271 = vpack.c.b16 %v1232, %v1229
          %v1272 = vpack.c.b16 %v1236, %v1233
          %v1273 = vpack.c.b16 %v1237, %v1234
          %v1274 = vpack.c.b16 %v1238, %v1235
          %v1275 = vpack.c.b16 %v1242, %v1239
          %v1276 = vpack.c.b16 %v1243, %v1240
          %v1277 = vpack.c.b16 %v1244, %v1241
          %v1278 = vpack.c.b16 %v1248, %v1245
          %v1279 = vpack.c.b16 %v1249, %v1246
          %v1280 = vpack.c.b16 %v1250, %v1247
          %v1281 = vpack.c.b16 %v1254, %v1251
          %v1282 = vpack.c.b16 %v1255, %v1252
          %v1283 = vpack.c.b16 %v1256, %v1253
          %v1284 = vpack.c.b16 %v1260, %v1257
          %v1285 = vpack.c.b16 %v1261, %v1258
          %v1286 = vpack.c.b16 %v1262, %v1259
          %1311 = vmatprep.subr.bf16.mxu0 %v1264
          %1312 = vmatpush1.bf16.msra.mxu0 %v1263
          %1313 = vmatprep.subr.bf16.mxu0 %v1267
          %1314 = vmatpush1.bf16.msra.mxu0 %v1266
          %1315 = vmatprep.subr.bf16.mxu0 %v1270
          %1316 = vmatpush1.bf16.msra.mxu0 %v1269
          %1317 = vmatprep.subr.bf16.mxu0 %v1273
          %1318 = vmatpush1.bf16.msra.mxu0 %v1272
          %1319 = vmatprep.subr.bf16.mxu0 %v1276
          %1320 = vmatpush1.bf16.msra.mxu0 %v1275
          %1321 = vmatprep.subr.bf16.mxu0 %v1279
          %1322 = vmatpush1.bf16.msra.mxu0 %v1278
          %1323 = vmatprep.subr.bf16.mxu0 %v1282
          %1324 = vmatpush1.bf16.msra.mxu0 %v1281
          %1325 = vmatprep.subr.bf16.mxu0 %v1285
          %1326 = vmatpush1.bf16.msra.mxu0 %v1284
          %1327 = vmatprep.subr.bf16.mxu0 0
          %1328 = vmatpush1.bf16.msra.mxu0 0
          %1329 = vmatprep.subr.bf16.mxu0 0
          %1330 = vmatpush1.bf16.msra.mxu0 0
          %1331 = vmatprep.subr.bf16.mxu0 0
          %1332 = vmatpush1.bf16.msra.mxu0 0
          %1333 = vmatprep.subr.bf16.mxu0 0
          %1334 = vmatpush1.bf16.msra.mxu0 0
          %1335 = vmatprep.subr.bf16.mxu0 0
          %1336 = vmatpush1.bf16.msra.mxu0 0
          %1337 = vmatprep.subr.bf16.mxu0 0
          %1338 = vmatpush1.bf16.msra.mxu0 0
          %1339 = vmatprep.subr.bf16.mxu0 0
          %1340 = vmatpush1.bf16.msra.mxu0 0
          %1341 = vmatprep.subr.bf16.mxu0 0
          %1342 = vmatpush1.bf16.msra.mxu0 0
          %1343 = vmatprep.mubr.bf16.mxu0 0
          %1344 = vmatmul.mubr.bf16.gmra.mrb[0].mxu0 %v1175
          %v1345 = vpop.f32.mrb[0].mxu0
          %v1346 = vadd.f32 0.0, %v1345
          %v1347 = vpop.f32.mrb[0].mxu0
          %v1348 = vadd.f32 0.0, %v1347
          %v1349 = vpop.f32.mrb[0].mxu0
          %v1350 = vadd.f32 0.0, %v1349
          %v1351 = vpop.f32.mrb[0].mxu0
          %v1352 = vadd.f32 0.0, %v1351
          %1353 = vmatprep.mubr.bf16.mxu0 0
          %1354 = vmatmul.mubr.bf16.gmra.mrb[0].mxu0 %v1176
          %v1355 = vpop.f32.mrb[0].mxu0
          %v1356 = vadd.f32 0.0, %v1355
          %v1357 = vpop.f32.mrb[0].mxu0
          %v1358 = vadd.f32 0.0, %v1357
          %v1359 = vpop.f32.mrb[0].mxu0
          %v1360 = vadd.f32 0.0, %v1359
          %v1361 = vpop.f32.mrb[0].mxu0
          %v1362 = vadd.f32 0.0, %v1361
          %1363 = vmatprep.mubr.bf16.mxu0 0
          %1364 = vmatmul.mubr.bf16.gmra.mrb[0].mxu0 %v1177
          %v1365 = vpop.f32.mrb[0].mxu0
          %v1366 = vadd.f32 0.0, %v1365
          %v1367 = vpop.f32.mrb[0].mxu0
          %v1368 = vadd.f32 0.0, %v1367
          %v1369 = vpop.f32.mrb[0].mxu0
          %v1370 = vadd.f32 0.0, %v1369
          %v1371 = vpop.f32.mrb[0].mxu0
          %v1372 = vadd.f32 0.0, %v1371
          %1373 = vmatprep.mubr.bf16.mxu0 0
          %1374 = vmatmul.mubr.bf16.gmra.mrb[0].mxu0 %v1178
          %v1375 = vpop.f32.mrb[0].mxu0
          %v1376 = vadd.f32 0.0, %v1375
          %v1377 = vpop.f32.mrb[0].mxu0
          %v1378 = vadd.f32 0.0, %v1377
          %v1379 = vpop.f32.mrb[0].mxu0
          %v1380 = vadd.f32 0.0, %v1379
          %v1381 = vpop.f32.mrb[0].mxu0
          %v1382 = vadd.f32 0.0, %v1381
          %1383 = vmatprep.mubr.bf16.mxu0 0
          %1384 = vmatmul.mubr.bf16.gmra.mrb[0].mxu0 %v1179
          %v1385 = vpop.f32.mrb[0].mxu0
          %v1386 = vadd.f32 0.0, %v1385
          %v1387 = vpop.f32.mrb[0].mxu0
          %v1388 = vadd.f32 0.0, %v1387
          %v1389 = vpop.f32.mrb[0].mxu0
          %v1390 = vadd.f32 0.0, %v1389
          %v1391 = vpop.f32.mrb[0].mxu0
          %v1392 = vadd.f32 0.0, %v1391
          %1393 = vmatprep.mubr.bf16.mxu0 0
          %1394 = vmatmul.mubr.bf16.gmra.mrb[0].mxu0 %v1180
          %v1395 = vpop.f32.mrb[0].mxu0
          %v1396 = vadd.f32 0.0, %v1395
          %v1397 = vpop.f32.mrb[0].mxu0
          %v1398 = vadd.f32 0.0, %v1397
          %v1399 = vpop.f32.mrb[0].mxu0
          %v1400 = vadd.f32 0.0, %v1399
          %v1401 = vpop.f32.mrb[0].mxu0
          %v1402 = vadd.f32 0.0, %v1401
          %1403 = vmatprep.mubr.bf16.mxu0 0
          %1404 = vmatmul.mubr.bf16.gmra.mrb[0].mxu0 %v1181
          %v1405 = vpop.f32.mrb[0].mxu0
          %v1406 = vadd.f32 0.0, %v1405
          %v1407 = vpop.f32.mrb[0].mxu0
          %v1408 = vadd.f32 0.0, %v1407
          %v1409 = vpop.f32.mrb[0].mxu0
          %v1410 = vadd.f32 0.0, %v1409
          %v1411 = vpop.f32.mrb[0].mxu0
          %v1412 = vadd.f32 0.0, %v1411
          %1413 = vmatprep.mubr.bf16.mxu0 0
          %1414 = vmatmul.mubr.bf16.gmra.mrb[0].mxu0 %v1182
          %v1415 = vpop.f32.mrb[0].mxu0
          %v1416 = vadd.f32 0.0, %v1415
          %v1417 = vpop.f32.mrb[0].mxu0
          %v1418 = vadd.f32 0.0, %v1417
          %v1419 = vpop.f32.mrb[0].mxu0
          %v1420 = vadd.f32 0.0, %v1419
          %v1421 = vpop.f32.mrb[0].mxu0
          %v1422 = vadd.f32 0.0, %v1421
          %1423 = vdwg.mxu0
          %1424 = vmatprep.subr.bf16.mxu0 0
          %1425 = vmatpush1.bf16.msra.mxu0 %v1265
          %1426 = vmatprep.subr.bf16.mxu0 0
          %1427 = vmatpush1.bf16.msra.mxu0 %v1268
          %1428 = vmatprep.subr.bf16.mxu0 0
          %1429 = vmatpush1.bf16.msra.mxu0 %v1271
          %1430 = vmatprep.subr.bf16.mxu0 0
          %1431 = vmatpush1.bf16.msra.mxu0 %v1274
          %1432 = vmatprep.subr.bf16.mxu0 0
          %1433 = vmatpush1.bf16.msra.mxu0 %v1277
          %1434 = vmatprep.subr.bf16.mxu0 0
          %1435 = vmatpush1.bf16.msra.mxu0 %v1280
          %1436 = vmatprep.subr.bf16.mxu0 0
          %1437 = vmatpush1.bf16.msra.mxu0 %v1283
          %1438 = vmatprep.subr.bf16.mxu0 0
          %1439 = vmatpush1.bf16.msra.mxu0 %v1286
          %1440 = vmatprep.subr.bf16.mxu0 0
          %1441 = vmatpush1.bf16.msra.mxu0 0
          %1442 = vmatprep.subr.bf16.mxu0 0
          %1443 = vmatpush1.bf16.msra.mxu0 0
          %1444 = vmatprep.subr.bf16.mxu0 0
          %1445 = vmatpush1.bf16.msra.mxu0 0
          %1446 = vmatprep.subr.bf16.mxu0 0
          %1447 = vmatpush1.bf16.msra.mxu0 0
          %1448 = vmatprep.subr.bf16.mxu0 0
          %1449 = vmatpush1.bf16.msra.mxu0 0
          %1450 = vmatprep.subr.bf16.mxu0 0
          %1451 = vmatpush1.bf16.msra.mxu0 0
          %1452 = vmatprep.subr.bf16.mxu0 0
          %1453 = vmatpush1.bf16.msra.mxu0 0
          %1454 = vmatprep.subr.bf16.mxu0 0
          %1455 = vmatpush1.bf16.msra.mxu0 0
          %1456 = vmatprep.mubr.bf16.mxu0 0
          %1457 = vmatmul.mubr.bf16.gmra.mrb[0].mxu0 %v1175
          %v1458 = vpop.f32.mrb[0].mxu0
          %v1459 = vadd.f32 0.0, %v1458
          %v1460 = vpop.f32.mrb[0].mxu0
          %v1461 = vpop.f32.mrb[0].mxu0
          %v1462 = vadd.f32 0.0, %v1461
          %v1463 = vpop.f32.mrb[0].mxu0
          %1464 = vmatprep.mubr.bf16.mxu0 0
          %1465 = vmatmul.mubr.bf16.gmra.mrb[0].mxu0 %v1176
          %v1466 = vpop.f32.mrb[0].mxu0
          %v1467 = vadd.f32 0.0, %v1466
          %v1468 = vpop.f32.mrb[0].mxu0
          %v1469 = vpop.f32.mrb[0].mxu0
          %v1470 = vadd.f32 0.0, %v1469
          %v1471 = vpop.f32.mrb[0].mxu0
          %1472 = vmatprep.mubr.bf16.mxu0 0
          %1473 = vmatmul.mubr.bf16.gmra.mrb[0].mxu0 %v1177
          %v1474 = vpop.f32.mrb[0].mxu0
          %v1475 = vadd.f32 0.0, %v1474
          %v1476 = vpop.f32.mrb[0].mxu0
          %v1477 = vpop.f32.mrb[0].mxu0
          %v1478 = vadd.f32 0.0, %v1477
          %v1479 = vpop.f32.mrb[0].mxu0
          %1480 = vmatprep.mubr.bf16.mxu0 0
          %1481 = vmatmul.mubr.bf16.gmra.mrb[0].mxu0 %v1178
          %v1482 = vpop.f32.mrb[0].mxu0
          %v1483 = vadd.f32 0.0, %v1482
          %v1484 = vpop.f32.mrb[0].mxu0
          %v1485 = vpop.f32.mrb[0].mxu0
          %v1486 = vadd.f32 0.0, %v1485
          %v1487 = vpop.f32.mrb[0].mxu0
          %1488 = vmatprep.mubr.bf16.mxu0 0
          %1489 = vmatmul.mubr.bf16.gmra.mrb[0].mxu0 %v1179
          %v1490 = vpop.f32.mrb[0].mxu0
          %v1491 = vadd.f32 0.0, %v1490
          %v1492 = vpop.f32.mrb[0].mxu0
          %v1493 = vpop.f32.mrb[0].mxu0
          %v1494 = vadd.f32 0.0, %v1493
          %v1495 = vpop.f32.mrb[0].mxu0
          %1496 = vmatprep.mubr.bf16.mxu0 0
          %1497 = vmatmul.mubr.bf16.gmra.mrb[0].mxu0 %v1180
          %v1498 = vpop.f32.mrb[0].mxu0
          %v1499 = vadd.f32 0.0, %v1498
          %v1500 = vpop.f32.mrb[0].mxu0
          %v1501 = vpop.f32.mrb[0].mxu0
          %v1502 = vadd.f32 0.0, %v1501
          %v1503 = vpop.f32.mrb[0].mxu0
          %1504 = vmatprep.mubr.bf16.mxu0 0
          %1505 = vmatmul.mubr.bf16.gmra.mrb[0].mxu0 %v1181
          %v1506 = vpop.f32.mrb[0].mxu0
          %v1507 = vadd.f32 0.0, %v1506
          %v1508 = vpop.f32.mrb[0].mxu0
          %v1509 = vpop.f32.mrb[0].mxu0
          %v1510 = vadd.f32 0.0, %v1509
          %v1511 = vpop.f32.mrb[0].mxu0
          %1512 = vmatprep.mubr.bf16.mxu0 0
          %1513 = vmatmul.mubr.bf16.gmra.mrb[0].mxu0 %v1182
          %v1514 = vpop.f32.mrb[0].mxu0
          %v1515 = vadd.f32 0.0, %v1514
          %v1516 = vpop.f32.mrb[0].mxu0
          %v1517 = vpop.f32.mrb[0].mxu0
          %v1518 = vadd.f32 0.0, %v1517
          %v1519 = vpop.f32.mrb[0].mxu0
          %1520 = vdwg.mxu0
          %v1521 = vpack.c.bf16 %v1350, %v1346
          %v1522 = vpack.c.bf16 %v1352, %v1348
          %v1523 = vpack.c.bf16 %v1462, %v1459
          %v1524 = vpack.c.bf16 %v1360, %v1356
          %v1525 = vpack.c.bf16 %v1362, %v1358
          %v1526 = vpack.c.bf16 %v1470, %v1467
          %v1527 = vpack.c.bf16 %v1370, %v1366
          %v1528 = vpack.c.bf16 %v1372, %v1368
          %v1529 = vpack.c.bf16 %v1478, %v1475
          %v1530 = vpack.c.bf16 %v1380, %v1376
          %v1531 = vpack.c.bf16 %v1382, %v1378
          %v1532 = vpack.c.bf16 %v1486, %v1483
          %v1533 = vpack.c.bf16 %v1390, %v1386
          %v1534 = vpack.c.bf16 %v1392, %v1388
          %v1535 = vpack.c.bf16 %v1494, %v1491
          %v1536 = vpack.c.bf16 %v1400, %v1396
          %v1537 = vpack.c.bf16 %v1402, %v1398
          %v1538 = vpack.c.bf16 %v1502, %v1499
          %v1539 = vpack.c.bf16 %v1410, %v1406
          %v1540 = vpack.c.bf16 %v1412, %v1408
          %v1541 = vpack.c.bf16 %v1510, %v1507
          %v1542 = vpack.c.bf16 %v1420, %v1416
          %v1543 = vpack.c.bf16 %v1422, %v1418
          %v1544 = vpack.c.bf16 %v1518, %v1515
          %v1569 = vunpack.c.l.b16 %v1521
          %v1570 = vunpack.c.l.b16 %v1522
          %v1571 = vunpack.c.l.b16 %v1523
          %v1572 = vunpack.c.h.b16 %v1521
          %v1573 = vunpack.c.h.b16 %v1522
          %v1574 = vunpack.c.h.b16 %v1523
          %v1575 = vunpack.c.l.b16 %v1524
          %v1576 = vunpack.c.l.b16 %v1525
          %v1577 = vunpack.c.l.b16 %v1526
          %v1578 = vunpack.c.h.b16 %v1524
          %v1579 = vunpack.c.h.b16 %v1525
          %v1580 = vunpack.c.h.b16 %v1526
          %v1581 = vunpack.c.l.b16 %v1527
          %v1582 = vunpack.c.l.b16 %v1528
          %v1583 = vunpack.c.l.b16 %v1529
          %v1584 = vunpack.c.h.b16 %v1527
          %v1585 = vunpack.c.h.b16 %v1528
          %v1586 = vunpack.c.h.b16 %v1529
          %v1587 = vunpack.c.l.b16 %v1530
          %v1588 = vunpack.c.l.b16 %v1531
          %v1589 = vunpack.c.l.b16 %v1532
          %v1590 = vunpack.c.h.b16 %v1530
          %v1591 = vunpack.c.h.b16 %v1531
          %v1592 = vunpack.c.h.b16 %v1532
          %v1593 = vunpack.c.l.b16 %v1533
          %v1594 = vunpack.c.l.b16 %v1534
          %v1595 = vunpack.c.l.b16 %v1535
          %v1596 = vunpack.c.h.b16 %v1533
          %v1597 = vunpack.c.h.b16 %v1534
          %v1598 = vunpack.c.h.b16 %v1535
          %v1599 = vunpack.c.l.b16 %v1536
          %v1600 = vunpack.c.l.b16 %v1537
          %v1601 = vunpack.c.l.b16 %v1538
          %v1602 = vunpack.c.h.b16 %v1536
          %v1603 = vunpack.c.h.b16 %v1537
          %v1604 = vunpack.c.h.b16 %v1538
          %v1605 = vunpack.c.l.b16 %v1539
          %v1606 = vunpack.c.l.b16 %v1540
          %v1607 = vunpack.c.l.b16 %v1541
          %v1608 = vunpack.c.h.b16 %v1539
          %v1609 = vunpack.c.h.b16 %v1540
          %v1610 = vunpack.c.h.b16 %v1541
          %v1611 = vunpack.c.l.b16 %v1542
          %v1612 = vunpack.c.l.b16 %v1543
          %v1613 = vunpack.c.l.b16 %v1544
          %v1614 = vunpack.c.h.b16 %v1542
          %v1615 = vunpack.c.h.b16 %v1543
          %v1616 = vunpack.c.h.b16 %v1544
          %v1617 = vpack.c.b16 %v1570, %v1569
          %v1618 = vpack.c.b16 %v1571, %v1571
          %v1619 = vpack.c.b16 %v1573, %v1572
          %v1620 = vpack.c.b16 %v1574, %v1574
          %v1621 = vpack.c.b16 %v1576, %v1575
          %v1622 = vpack.c.b16 %v1577, %v1577
          %v1623 = vpack.c.b16 %v1579, %v1578
          %v1624 = vpack.c.b16 %v1580, %v1580
          %v1625 = vpack.c.b16 %v1582, %v1581
          %v1626 = vpack.c.b16 %v1583, %v1583
          %v1627 = vpack.c.b16 %v1585, %v1584
          %v1628 = vpack.c.b16 %v1586, %v1586
          %v1629 = vpack.c.b16 %v1588, %v1587
          %v1630 = vpack.c.b16 %v1589, %v1589
          %v1631 = vpack.c.b16 %v1591, %v1590
          %v1632 = vpack.c.b16 %v1592, %v1592
          %v1633 = vpack.c.b16 %v1594, %v1593
          %v1634 = vpack.c.b16 %v1595, %v1595
          %v1635 = vpack.c.b16 %v1597, %v1596
          %v1636 = vpack.c.b16 %v1598, %v1598
          %v1637 = vpack.c.b16 %v1600, %v1599
          %v1638 = vpack.c.b16 %v1601, %v1601
          %v1639 = vpack.c.b16 %v1603, %v1602
          %v1640 = vpack.c.b16 %v1604, %v1604
          %v1641 = vpack.c.b16 %v1606, %v1605
          %v1642 = vpack.c.b16 %v1607, %v1607
          %v1643 = vpack.c.b16 %v1609, %v1608
          %v1644 = vpack.c.b16 %v1610, %v1610
          %v1645 = vpack.c.b16 %v1612, %v1611
          %v1646 = vpack.c.b16 %v1613, %v1613
          %v1647 = vpack.c.b16 %v1615, %v1614
          %v1648 = vpack.c.b16 %v1616, %v1616
          %v1650 = vsel %vm540, %v666, 0
          %v1653 = vsel %vm565, %v1617, 0
          %1655 = vmatprep.subr.bf16.mxu0 0
          %1656 = vmatpush1.bf16.msra.mxu0 %v1653
          %1657 = vmatprep.subr.bf16.mxu0 0
          %1658 = vmatpush1.bf16.msra.mxu0 0
          %1659 = vmatprep.subr.bf16.mxu0 0
          %1660 = vmatpush1.bf16.msra.mxu0 0
          %1661 = vmatprep.subr.bf16.mxu0 0
          %1662 = vmatpush1.bf16.msra.mxu0 0
          %1663 = vmatprep.subr.bf16.mxu0 0
          %1664 = vmatpush1.bf16.msra.mxu0 0
          %1665 = vmatprep.subr.bf16.mxu0 0
          %1666 = vmatpush1.bf16.msra.mxu0 0
          %1667 = vmatprep.subr.bf16.mxu0 0
          %1668 = vmatpush1.bf16.msra.mxu0 0
          %1669 = vmatprep.subr.bf16.mxu0 0
          %1670 = vmatpush1.bf16.msra.mxu0 0
          %1671 = vmatprep.subr.bf16.mxu0 0
          %1672 = vmatpush1.bf16.msra.mxu0 0
          %1673 = vmatprep.subr.bf16.mxu0 0
          %1674 = vmatpush1.bf16.msra.mxu0 0
          %1675 = vmatprep.subr.bf16.mxu0 0
          %1676 = vmatpush1.bf16.msra.mxu0 0
          %1677 = vmatprep.subr.bf16.mxu0 0
          %1678 = vmatpush1.bf16.msra.mxu0 0
          %1679 = vmatprep.subr.bf16.mxu0 0
          %1680 = vmatpush1.bf16.msra.mxu0 0
          %1681 = vmatprep.subr.bf16.mxu0 0
          %1682 = vmatpush1.bf16.msra.mxu0 0
          %1683 = vmatprep.subr.bf16.mxu0 0
          %1684 = vmatpush1.bf16.msra.mxu0 0
          %1685 = vmatprep.subr.bf16.mxu0 0
          %1686 = vmatpush1.bf16.msra.mxu0 0
          %1687 = vmatprep.mubr.bf16.mxu0 0
          %1688 = vmatmul.mubr.bf16.gmra.mrb[0].mxu0 %v1650
          %v1689 = vpop.f32.mrb[0].mxu0
          %v1690 = vadd.f32 0.0, %v1689
          %v1691 = vpop.f32.mrb[0].mxu0
          %v1692 = vpop.f32.mrb[0].mxu0
          %v1693 = vpop.f32.mrb[0].mxu0
          %1694 = vdwg.mxu0
          %v1696 = vsel %vm540, %v669, 0
          %v1699 = vsel %vm565, %v1619, 0
          %1701 = vmatprep.subr.bf16.mxu0 0
          %1702 = vmatpush1.bf16.msra.mxu0 %v1699
          %1703 = vmatprep.subr.bf16.mxu0 0
          %1704 = vmatpush1.bf16.msra.mxu0 0
          %1705 = vmatprep.subr.bf16.mxu0 0
          %1706 = vmatpush1.bf16.msra.mxu0 0
          %1707 = vmatprep.subr.bf16.mxu0 0
          %1708 = vmatpush1.bf16.msra.mxu0 0
          %1709 = vmatprep.subr.bf16.mxu0 0
          %1710 = vmatpush1.bf16.msra.mxu0 0
          %1711 = vmatprep.subr.bf16.mxu0 0
          %1712 = vmatpush1.bf16.msra.mxu0 0
          %1713 = vmatprep.subr.bf16.mxu0 0
          %1714 = vmatpush1.bf16.msra.mxu0 0
          %1715 = vmatprep.subr.bf16.mxu0 0
          %1716 = vmatpush1.bf16.msra.mxu0 0
          %1717 = vmatprep.subr.bf16.mxu0 0
          %1718 = vmatpush1.bf16.msra.mxu0 0
          %1719 = vmatprep.subr.bf16.mxu0 0
          %1720 = vmatpush1.bf16.msra.mxu0 0
          %1721 = vmatprep.subr.bf16.mxu0 0
          %1722 = vmatpush1.bf16.msra.mxu0 0
          %1723 = vmatprep.subr.bf16.mxu0 0
          %1724 = vmatpush1.bf16.msra.mxu0 0
          %1725 = vmatprep.subr.bf16.mxu0 0
          %1726 = vmatpush1.bf16.msra.mxu0 0
          %1727 = vmatprep.subr.bf16.mxu0 0
          %1728 = vmatpush1.bf16.msra.mxu0 0
          %1729 = vmatprep.subr.bf16.mxu0 0
          %1730 = vmatpush1.bf16.msra.mxu0 0
          %1731 = vmatprep.subr.bf16.mxu0 0
          %1732 = vmatpush1.bf16.msra.mxu0 0
          %1733 = vmatprep.mubr.bf16.mxu0 0
          %1734 = vmatmul.mubr.bf16.gmra.mrb[0].mxu0 %v1696
          %v1735 = vpop.f32.mrb[0].mxu0
          %v1736 = vadd.f32 0.0, %v1735
          %v1737 = vpop.f32.mrb[0].mxu0
          %v1738 = vpop.f32.mrb[0].mxu0
          %v1739 = vpop.f32.mrb[0].mxu0
          %1740 = vdwg.mxu0
          %v1742 = vsel %vm540, %v672, 0
          %v1745 = vsel %vm565, %v1621, 0
          %1747 = vmatprep.subr.bf16.mxu0 0
          %1748 = vmatpush1.bf16.msra.mxu0 %v1745
          %1749 = vmatprep.subr.bf16.mxu0 0
          %1750 = vmatpush1.bf16.msra.mxu0 0
          %1751 = vmatprep.subr.bf16.mxu0 0
          %1752 = vmatpush1.bf16.msra.mxu0 0
          %1753 = vmatprep.subr.bf16.mxu0 0
          %1754 = vmatpush1.bf16.msra.mxu0 0
          %1755 = vmatprep.subr.bf16.mxu0 0
          %1756 = vmatpush1.bf16.msra.mxu0 0
          %1757 = vmatprep.subr.bf16.mxu0 0
          %1758 = vmatpush1.bf16.msra.mxu0 0
          %1759 = vmatprep.subr.bf16.mxu0 0
          %1760 = vmatpush1.bf16.msra.mxu0 0
          %1761 = vmatprep.subr.bf16.mxu0 0
          %1762 = vmatpush1.bf16.msra.mxu0 0
          %1763 = vmatprep.subr.bf16.mxu0 0
          %1764 = vmatpush1.bf16.msra.mxu0 0
          %1765 = vmatprep.subr.bf16.mxu0 0
          %1766 = vmatpush1.bf16.msra.mxu0 0
          %1767 = vmatprep.subr.bf16.mxu0 0
          %1768 = vmatpush1.bf16.msra.mxu0 0
          %1769 = vmatprep.subr.bf16.mxu0 0
          %1770 = vmatpush1.bf16.msra.mxu0 0
          %1771 = vmatprep.subr.bf16.mxu0 0
          %1772 = vmatpush1.bf16.msra.mxu0 0
          %1773 = vmatprep.subr.bf16.mxu0 0
          %1774 = vmatpush1.bf16.msra.mxu0 0
          %1775 = vmatprep.subr.bf16.mxu0 0
          %1776 = vmatpush1.bf16.msra.mxu0 0
          %1777 = vmatprep.subr.bf16.mxu0 0
          %1778 = vmatpush1.bf16.msra.mxu0 0
          %1779 = vmatprep.mubr.bf16.mxu0 0
          %1780 = vmatmul.mubr.bf16.gmra.mrb[0].mxu0 %v1742
          %v1781 = vpop.f32.mrb[0].mxu0
          %v1782 = vadd.f32 0.0, %v1781
          %v1783 = vpop.f32.mrb[0].mxu0
          %v1784 = vpop.f32.mrb[0].mxu0
          %v1785 = vpop.f32.mrb[0].mxu0
          %1786 = vdwg.mxu0
          %v1788 = vsel %vm540, %v675, 0
          %v1791 = vsel %vm565, %v1623, 0
          %1793 = vmatprep.subr.bf16.mxu0 0
          %1794 = vmatpush1.bf16.msra.mxu0 %v1791
          %1795 = vmatprep.subr.bf16.mxu0 0
          %1796 = vmatpush1.bf16.msra.mxu0 0
          %1797 = vmatprep.subr.bf16.mxu0 0
          %1798 = vmatpush1.bf16.msra.mxu0 0
          %1799 = vmatprep.subr.bf16.mxu0 0
          %1800 = vmatpush1.bf16.msra.mxu0 0
          %1801 = vmatprep.subr.bf16.mxu0 0
          %1802 = vmatpush1.bf16.msra.mxu0 0
          %1803 = vmatprep.subr.bf16.mxu0 0
          %1804 = vmatpush1.bf16.msra.mxu0 0
          %1805 = vmatprep.subr.bf16.mxu0 0
          %1806 = vmatpush1.bf16.msra.mxu0 0
          %1807 = vmatprep.subr.bf16.mxu0 0
          %1808 = vmatpush1.bf16.msra.mxu0 0
          %1809 = vmatprep.subr.bf16.mxu0 0
          %1810 = vmatpush1.bf16.msra.mxu0 0
          %1811 = vmatprep.subr.bf16.mxu0 0
          %1812 = vmatpush1.bf16.msra.mxu0 0
          %1813 = vmatprep.subr.bf16.mxu0 0
          %1814 = vmatpush1.bf16.msra.mxu0 0
          %1815 = vmatprep.subr.bf16.mxu0 0
          %1816 = vmatpush1.bf16.msra.mxu0 0
          %1817 = vmatprep.subr.bf16.mxu0 0
          %1818 = vmatpush1.bf16.msra.mxu0 0
          %1819 = vmatprep.subr.bf16.mxu0 0
          %1820 = vmatpush1.bf16.msra.mxu0 0
          %1821 = vmatprep.subr.bf16.mxu0 0
          %1822 = vmatpush1.bf16.msra.mxu0 0
          %1823 = vmatprep.subr.bf16.mxu0 0
          %1824 = vmatpush1.bf16.msra.mxu0 0
          %1825 = vmatprep.mubr.bf16.mxu0 0
          %1826 = vmatmul.mubr.bf16.gmra.mrb[0].mxu0 %v1788
          %v1827 = vpop.f32.mrb[0].mxu0
          %v1828 = vadd.f32 0.0, %v1827
          %v1829 = vpop.f32.mrb[0].mxu0
          %v1830 = vpop.f32.mrb[0].mxu0
          %v1831 = vpop.f32.mrb[0].mxu0
          %1832 = vdwg.mxu0
          %v1834 = vsel %vm540, %v678, 0
          %v1837 = vsel %vm565, %v1625, 0
          %1839 = vmatprep.subr.bf16.mxu0 0
          %1840 = vmatpush1.bf16.msra.mxu0 %v1837
          %1841 = vmatprep.subr.bf16.mxu0 0
          %1842 = vmatpush1.bf16.msra.mxu0 0
          %1843 = vmatprep.subr.bf16.mxu0 0
          %1844 = vmatpush1.bf16.msra.mxu0 0
          %1845 = vmatprep.subr.bf16.mxu0 0
          %1846 = vmatpush1.bf16.msra.mxu0 0
          %1847 = vmatprep.subr.bf16.mxu0 0
          %1848 = vmatpush1.bf16.msra.mxu0 0
          %1849 = vmatprep.subr.bf16.mxu0 0
          %1850 = vmatpush1.bf16.msra.mxu0 0
          %1851 = vmatprep.subr.bf16.mxu0 0
          %1852 = vmatpush1.bf16.msra.mxu0 0
          %1853 = vmatprep.subr.bf16.mxu0 0
          %1854 = vmatpush1.bf16.msra.mxu0 0
          %1855 = vmatprep.subr.bf16.mxu0 0
          %1856 = vmatpush1.bf16.msra.mxu0 0
          %1857 = vmatprep.subr.bf16.mxu0 0
          %1858 = vmatpush1.bf16.msra.mxu0 0
          %1859 = vmatprep.subr.bf16.mxu0 0
          %1860 = vmatpush1.bf16.msra.mxu0 0
          %1861 = vmatprep.subr.bf16.mxu0 0
          %1862 = vmatpush1.bf16.msra.mxu0 0
          %1863 = vmatprep.subr.bf16.mxu0 0
          %1864 = vmatpush1.bf16.msra.mxu0 0
          %1865 = vmatprep.subr.bf16.mxu0 0
          %1866 = vmatpush1.bf16.msra.mxu0 0
          %1867 = vmatprep.subr.bf16.mxu0 0
          %1868 = vmatpush1.bf16.msra.mxu0 0
          %1869 = vmatprep.subr.bf16.mxu0 0
          %1870 = vmatpush1.bf16.msra.mxu0 0
          %1871 = vmatprep.mubr.bf16.mxu0 0
          %1872 = vmatmul.mubr.bf16.gmra.mrb[0].mxu0 %v1834
          %v1873 = vpop.f32.mrb[0].mxu0
          %v1874 = vadd.f32 0.0, %v1873
          %v1875 = vpop.f32.mrb[0].mxu0
          %v1876 = vpop.f32.mrb[0].mxu0
          %v1877 = vpop.f32.mrb[0].mxu0
          %1878 = vdwg.mxu0
          %v1880 = vsel %vm540, %v681, 0
          %v1883 = vsel %vm565, %v1627, 0
          %1885 = vmatprep.subr.bf16.mxu0 0
          %1886 = vmatpush1.bf16.msra.mxu0 %v1883
          %1887 = vmatprep.subr.bf16.mxu0 0
          %1888 = vmatpush1.bf16.msra.mxu0 0
          %1889 = vmatprep.subr.bf16.mxu0 0
          %1890 = vmatpush1.bf16.msra.mxu0 0
          %1891 = vmatprep.subr.bf16.mxu0 0
          %1892 = vmatpush1.bf16.msra.mxu0 0
          %1893 = vmatprep.subr.bf16.mxu0 0
          %1894 = vmatpush1.bf16.msra.mxu0 0
          %1895 = vmatprep.subr.bf16.mxu0 0
          %1896 = vmatpush1.bf16.msra.mxu0 0
          %1897 = vmatprep.subr.bf16.mxu0 0
          %1898 = vmatpush1.bf16.msra.mxu0 0
          %1899 = vmatprep.subr.bf16.mxu0 0
          %1900 = vmatpush1.bf16.msra.mxu0 0
          %1901 = vmatprep.subr.bf16.mxu0 0
          %1902 = vmatpush1.bf16.msra.mxu0 0
          %1903 = vmatprep.subr.bf16.mxu0 0
          %1904 = vmatpush1.bf16.msra.mxu0 0
          %1905 = vmatprep.subr.bf16.mxu0 0
          %1906 = vmatpush1.bf16.msra.mxu0 0
          %1907 = vmatprep.subr.bf16.mxu0 0
          %1908 = vmatpush1.bf16.msra.mxu0 0
          %1909 = vmatprep.subr.bf16.mxu0 0
          %1910 = vmatpush1.bf16.msra.mxu0 0
          %1911 = vmatprep.subr.bf16.mxu0 0
          %1912 = vmatpush1.bf16.msra.mxu0 0
          %1913 = vmatprep.subr.bf16.mxu0 0
          %1914 = vmatpush1.bf16.msra.mxu0 0
          %1915 = vmatprep.subr.bf16.mxu0 0
          %1916 = vmatpush1.bf16.msra.mxu0 0
          %1917 = vmatprep.mubr.bf16.mxu0 0
          %1918 = vmatmul.mubr.bf16.gmra.mrb[0].mxu0 %v1880
          %v1919 = vpop.f32.mrb[0].mxu0
          %v1920 = vadd.f32 0.0, %v1919
          %v1921 = vpop.f32.mrb[0].mxu0
          %v1922 = vpop.f32.mrb[0].mxu0
          %v1923 = vpop.f32.mrb[0].mxu0
          %1924 = vdwg.mxu0
          %v1926 = vsel %vm540, %v684, 0
          %v1929 = vsel %vm565, %v1629, 0
          %1931 = vmatprep.subr.bf16.mxu0 0
          %1932 = vmatpush1.bf16.msra.mxu0 %v1929
          %1933 = vmatprep.subr.bf16.mxu0 0
          %1934 = vmatpush1.bf16.msra.mxu0 0
          %1935 = vmatprep.subr.bf16.mxu0 0
          %1936 = vmatpush1.bf16.msra.mxu0 0
          %1937 = vmatprep.subr.bf16.mxu0 0
          %1938 = vmatpush1.bf16.msra.mxu0 0
          %1939 = vmatprep.subr.bf16.mxu0 0
          %1940 = vmatpush1.bf16.msra.mxu0 0
          %1941 = vmatprep.subr.bf16.mxu0 0
          %1942 = vmatpush1.bf16.msra.mxu0 0
          %1943 = vmatprep.subr.bf16.mxu0 0
          %1944 = vmatpush1.bf16.msra.mxu0 0
          %1945 = vmatprep.subr.bf16.mxu0 0
          %1946 = vmatpush1.bf16.msra.mxu0 0
          %1947 = vmatprep.subr.bf16.mxu0 0
          %1948 = vmatpush1.bf16.msra.mxu0 0
          %1949 = vmatprep.subr.bf16.mxu0 0
          %1950 = vmatpush1.bf16.msra.mxu0 0
          %1951 = vmatprep.subr.bf16.mxu0 0
          %1952 = vmatpush1.bf16.msra.mxu0 0
          %1953 = vmatprep.subr.bf16.mxu0 0
          %1954 = vmatpush1.bf16.msra.mxu0 0
          %1955 = vmatprep.subr.bf16.mxu0 0
          %1956 = vmatpush1.bf16.msra.mxu0 0
          %1957 = vmatprep.subr.bf16.mxu0 0
          %1958 = vmatpush1.bf16.msra.mxu0 0
          %1959 = vmatprep.subr.bf16.mxu0 0
          %1960 = vmatpush1.bf16.msra.mxu0 0
          %1961 = vmatprep.subr.bf16.mxu0 0
          %1962 = vmatpush1.bf16.msra.mxu0 0
          %1963 = vmatprep.mubr.bf16.mxu0 0
          %1964 = vmatmul.mubr.bf16.gmra.mrb[0].mxu0 %v1926
          %v1965 = vpop.f32.mrb[0].mxu0
          %v1966 = vadd.f32 0.0, %v1965
          %v1967 = vpop.f32.mrb[0].mxu0
          %v1968 = vpop.f32.mrb[0].mxu0
          %v1969 = vpop.f32.mrb[0].mxu0
          %1970 = vdwg.mxu0
          %v1972 = vsel %vm540, %v687, 0
          %v1975 = vsel %vm565, %v1631, 0
          %1977 = vmatprep.subr.bf16.mxu0 0
          %1978 = vmatpush1.bf16.msra.mxu0 %v1975
          %1979 = vmatprep.subr.bf16.mxu0 0
          %1980 = vmatpush1.bf16.msra.mxu0 0
          %1981 = vmatprep.subr.bf16.mxu0 0
          %1982 = vmatpush1.bf16.msra.mxu0 0
          %1983 = vmatprep.subr.bf16.mxu0 0
          %1984 = vmatpush1.bf16.msra.mxu0 0
          %1985 = vmatprep.subr.bf16.mxu0 0
          %1986 = vmatpush1.bf16.msra.mxu0 0
          %1987 = vmatprep.subr.bf16.mxu0 0
          %1988 = vmatpush1.bf16.msra.mxu0 0
          %1989 = vmatprep.subr.bf16.mxu0 0
          %1990 = vmatpush1.bf16.msra.mxu0 0
          %1991 = vmatprep.subr.bf16.mxu0 0
          %1992 = vmatpush1.bf16.msra.mxu0 0
          %1993 = vmatprep.subr.bf16.mxu0 0
          %1994 = vmatpush1.bf16.msra.mxu0 0
          %1995 = vmatprep.subr.bf16.mxu0 0
          %1996 = vmatpush1.bf16.msra.mxu0 0
          %1997 = vmatprep.subr.bf16.mxu0 0
          %1998 = vmatpush1.bf16.msra.mxu0 0
          %1999 = vmatprep.subr.bf16.mxu0 0
          %2000 = vmatpush1.bf16.msra.mxu0 0
          %2001 = vmatprep.subr.bf16.mxu0 0
          %2002 = vmatpush1.bf16.msra.mxu0 0
          %2003 = vmatprep.subr.bf16.mxu0 0
          %2004 = vmatpush1.bf16.msra.mxu0 0
          %2005 = vmatprep.subr.bf16.mxu0 0
          %2006 = vmatpush1.bf16.msra.mxu0 0
          %2007 = vmatprep.subr.bf16.mxu0 0
          %2008 = vmatpush1.bf16.msra.mxu0 0
          %2009 = vmatprep.mubr.bf16.mxu0 0
          %2010 = vmatmul.mubr.bf16.gmra.mrb[0].mxu0 %v1972
          %v2011 = vpop.f32.mrb[0].mxu0
          %v2012 = vadd.f32 0.0, %v2011
          %v2013 = vpop.f32.mrb[0].mxu0
          %v2014 = vpop.f32.mrb[0].mxu0
          %v2015 = vpop.f32.mrb[0].mxu0
          %2016 = vdwg.mxu0
          %v2018 = vsel %vm540, %v690, 0
          %v2021 = vsel %vm565, %v1633, 0
          %2023 = vmatprep.subr.bf16.mxu0 0
          %2024 = vmatpush1.bf16.msra.mxu0 %v2021
          %2025 = vmatprep.subr.bf16.mxu0 0
          %2026 = vmatpush1.bf16.msra.mxu0 0
          %2027 = vmatprep.subr.bf16.mxu0 0
          %2028 = vmatpush1.bf16.msra.mxu0 0
          %2029 = vmatprep.subr.bf16.mxu0 0
          %2030 = vmatpush1.bf16.msra.mxu0 0
          %2031 = vmatprep.subr.bf16.mxu0 0
          %2032 = vmatpush1.bf16.msra.mxu0 0
          %2033 = vmatprep.subr.bf16.mxu0 0
          %2034 = vmatpush1.bf16.msra.mxu0 0
          %2035 = vmatprep.subr.bf16.mxu0 0
          %2036 = vmatpush1.bf16.msra.mxu0 0
          %2037 = vmatprep.subr.bf16.mxu0 0
          %2038 = vmatpush1.bf16.msra.mxu0 0
          %2039 = vmatprep.subr.bf16.mxu0 0
          %2040 = vmatpush1.bf16.msra.mxu0 0
          %2041 = vmatprep.subr.bf16.mxu0 0
          %2042 = vmatpush1.bf16.msra.mxu0 0
          %2043 = vmatprep.subr.bf16.mxu0 0
          %2044 = vmatpush1.bf16.msra.mxu0 0
          %2045 = vmatprep.subr.bf16.mxu0 0
          %2046 = vmatpush1.bf16.msra.mxu0 0
          %2047 = vmatprep.subr.bf16.mxu0 0
          %2048 = vmatpush1.bf16.msra.mxu0 0
          %2049 = vmatprep.subr.bf16.mxu0 0
          %2050 = vmatpush1.bf16.msra.mxu0 0
          %2051 = vmatprep.subr.bf16.mxu0 0
          %2052 = vmatpush1.bf16.msra.mxu0 0
          %2053 = vmatprep.subr.bf16.mxu0 0
          %2054 = vmatpush1.bf16.msra.mxu0 0
          %2055 = vmatprep.mubr.bf16.mxu0 0
          %2056 = vmatmul.mubr.bf16.gmra.mrb[0].mxu0 %v2018
          %v2057 = vpop.f32.mrb[0].mxu0
          %v2058 = vadd.f32 0.0, %v2057
          %v2059 = vpop.f32.mrb[0].mxu0
          %v2060 = vpop.f32.mrb[0].mxu0
          %v2061 = vpop.f32.mrb[0].mxu0
          %2062 = vdwg.mxu0
          %v2064 = vsel %vm540, %v693, 0
          %v2067 = vsel %vm565, %v1635, 0
          %2069 = vmatprep.subr.bf16.mxu0 0
          %2070 = vmatpush1.bf16.msra.mxu0 %v2067
          %2071 = vmatprep.subr.bf16.mxu0 0
          %2072 = vmatpush1.bf16.msra.mxu0 0
          %2073 = vmatprep.subr.bf16.mxu0 0
          %2074 = vmatpush1.bf16.msra.mxu0 0
          %2075 = vmatprep.subr.bf16.mxu0 0
          %2076 = vmatpush1.bf16.msra.mxu0 0
          %2077 = vmatprep.subr.bf16.mxu0 0
          %2078 = vmatpush1.bf16.msra.mxu0 0
          %2079 = vmatprep.subr.bf16.mxu0 0
          %2080 = vmatpush1.bf16.msra.mxu0 0
          %2081 = vmatprep.subr.bf16.mxu0 0
          %2082 = vmatpush1.bf16.msra.mxu0 0
          %2083 = vmatprep.subr.bf16.mxu0 0
          %2084 = vmatpush1.bf16.msra.mxu0 0
          %2085 = vmatprep.subr.bf16.mxu0 0
          %2086 = vmatpush1.bf16.msra.mxu0 0
          %2087 = vmatprep.subr.bf16.mxu0 0
          %2088 = vmatpush1.bf16.msra.mxu0 0
          %2089 = vmatprep.subr.bf16.mxu0 0
          %2090 = vmatpush1.bf16.msra.mxu0 0
          %2091 = vmatprep.subr.bf16.mxu0 0
          %2092 = vmatpush1.bf16.msra.mxu0 0
          %2093 = vmatprep.subr.bf16.mxu0 0
          %2094 = vmatpush1.bf16.msra.mxu0 0
          %2095 = vmatprep.subr.bf16.mxu0 0
          %2096 = vmatpush1.bf16.msra.mxu0 0
          %2097 = vmatprep.subr.bf16.mxu0 0
          %2098 = vmatpush1.bf16.msra.mxu0 0
          %2099 = vmatprep.subr.bf16.mxu0 0
          %2100 = vmatpush1.bf16.msra.mxu0 0
          %2101 = vmatprep.mubr.bf16.mxu0 0
          %2102 = vmatmul.mubr.bf16.gmra.mrb[0].mxu0 %v2064
          %v2103 = vpop.f32.mrb[0].mxu0
          %v2104 = vadd.f32 0.0, %v2103
          %v2105 = vpop.f32.mrb[0].mxu0
          %v2106 = vpop.f32.mrb[0].mxu0
          %v2107 = vpop.f32.mrb[0].mxu0
          %2108 = vdwg.mxu0
          %v2110 = vsel %vm540, %v696, 0
          %v2113 = vsel %vm565, %v1637, 0
          %2115 = vmatprep.subr.bf16.mxu0 0
          %2116 = vmatpush1.bf16.msra.mxu0 %v2113
          %2117 = vmatprep.subr.bf16.mxu0 0
          %2118 = vmatpush1.bf16.msra.mxu0 0
          %2119 = vmatprep.subr.bf16.mxu0 0
          %2120 = vmatpush1.bf16.msra.mxu0 0
          %2121 = vmatprep.subr.bf16.mxu0 0
          %2122 = vmatpush1.bf16.msra.mxu0 0
          %2123 = vmatprep.subr.bf16.mxu0 0
          %2124 = vmatpush1.bf16.msra.mxu0 0
          %2125 = vmatprep.subr.bf16.mxu0 0
          %2126 = vmatpush1.bf16.msra.mxu0 0
          %2127 = vmatprep.subr.bf16.mxu0 0
          %2128 = vmatpush1.bf16.msra.mxu0 0
          %2129 = vmatprep.subr.bf16.mxu0 0
          %2130 = vmatpush1.bf16.msra.mxu0 0
          %2131 = vmatprep.subr.bf16.mxu0 0
          %2132 = vmatpush1.bf16.msra.mxu0 0
          %2133 = vmatprep.subr.bf16.mxu0 0
          %2134 = vmatpush1.bf16.msra.mxu0 0
          %2135 = vmatprep.subr.bf16.mxu0 0
          %2136 = vmatpush1.bf16.msra.mxu0 0
          %2137 = vmatprep.subr.bf16.mxu0 0
          %2138 = vmatpush1.bf16.msra.mxu0 0
          %2139 = vmatprep.subr.bf16.mxu0 0
          %2140 = vmatpush1.bf16.msra.mxu0 0
          %2141 = vmatprep.subr.bf16.mxu0 0
          %2142 = vmatpush1.bf16.msra.mxu0 0
          %2143 = vmatprep.subr.bf16.mxu0 0
          %2144 = vmatpush1.bf16.msra.mxu0 0
          %2145 = vmatprep.subr.bf16.mxu0 0
          %2146 = vmatpush1.bf16.msra.mxu0 0
          %2147 = vmatprep.mubr.bf16.mxu0 0
          %2148 = vmatmul.mubr.bf16.gmra.mrb[0].mxu0 %v2110
          %v2149 = vpop.f32.mrb[0].mxu0
          %v2150 = vadd.f32 0.0, %v2149
          %v2151 = vpop.f32.mrb[0].mxu0
          %v2152 = vpop.f32.mrb[0].mxu0
          %v2153 = vpop.f32.mrb[0].mxu0
          %2154 = vdwg.mxu0
          %v2156 = vsel %vm540, %v699, 0
          %v2159 = vsel %vm565, %v1639, 0
          %2161 = vmatprep.subr.bf16.mxu0 0
          %2162 = vmatpush1.bf16.msra.mxu0 %v2159
          %2163 = vmatprep.subr.bf16.mxu0 0
          %2164 = vmatpush1.bf16.msra.mxu0 0
          %2165 = vmatprep.subr.bf16.mxu0 0
          %2166 = vmatpush1.bf16.msra.mxu0 0
          %2167 = vmatprep.subr.bf16.mxu0 0
          %2168 = vmatpush1.bf16.msra.mxu0 0
          %2169 = vmatprep.subr.bf16.mxu0 0
          %2170 = vmatpush1.bf16.msra.mxu0 0
          %2171 = vmatprep.subr.bf16.mxu0 0
          %2172 = vmatpush1.bf16.msra.mxu0 0
          %2173 = vmatprep.subr.bf16.mxu0 0
          %2174 = vmatpush1.bf16.msra.mxu0 0
          %2175 = vmatprep.subr.bf16.mxu0 0
          %2176 = vmatpush1.bf16.msra.mxu0 0
          %2177 = vmatprep.subr.bf16.mxu0 0
          %2178 = vmatpush1.bf16.msra.mxu0 0
          %2179 = vmatprep.subr.bf16.mxu0 0
          %2180 = vmatpush1.bf16.msra.mxu0 0
          %2181 = vmatprep.subr.bf16.mxu0 0
          %2182 = vmatpush1.bf16.msra.mxu0 0
          %2183 = vmatprep.subr.bf16.mxu0 0
          %2184 = vmatpush1.bf16.msra.mxu0 0
          %2185 = vmatprep.subr.bf16.mxu0 0
          %2186 = vmatpush1.bf16.msra.mxu0 0
          %2187 = vmatprep.subr.bf16.mxu0 0
          %2188 = vmatpush1.bf16.msra.mxu0 0
          %2189 = vmatprep.subr.bf16.mxu0 0
          %2190 = vmatpush1.bf16.msra.mxu0 0
          %2191 = vmatprep.subr.bf16.mxu0 0
          %2192 = vmatpush1.bf16.msra.mxu0 0
          %2193 = vmatprep.mubr.bf16.mxu0 0
          %2194 = vmatmul.mubr.bf16.gmra.mrb[0].mxu0 %v2156
          %v2195 = vpop.f32.mrb[0].mxu0
          %v2196 = vadd.f32 0.0, %v2195
          %v2197 = vpop.f32.mrb[0].mxu0
          %v2198 = vpop.f32.mrb[0].mxu0
          %v2199 = vpop.f32.mrb[0].mxu0
          %2200 = vdwg.mxu0
          %v2202 = vsel %vm540, %v702, 0
          %v2205 = vsel %vm565, %v1641, 0
          %2207 = vmatprep.subr.bf16.mxu0 0
          %2208 = vmatpush1.bf16.msra.mxu0 %v2205
          %2209 = vmatprep.subr.bf16.mxu0 0
          %2210 = vmatpush1.bf16.msra.mxu0 0
          %2211 = vmatprep.subr.bf16.mxu0 0
          %2212 = vmatpush1.bf16.msra.mxu0 0
          %2213 = vmatprep.subr.bf16.mxu0 0
          %2214 = vmatpush1.bf16.msra.mxu0 0
          %2215 = vmatprep.subr.bf16.mxu0 0
          %2216 = vmatpush1.bf16.msra.mxu0 0
          %2217 = vmatprep.subr.bf16.mxu0 0
          %2218 = vmatpush1.bf16.msra.mxu0 0
          %2219 = vmatprep.subr.bf16.mxu0 0
          %2220 = vmatpush1.bf16.msra.mxu0 0
          %2221 = vmatprep.subr.bf16.mxu0 0
          %2222 = vmatpush1.bf16.msra.mxu0 0
          %2223 = vmatprep.subr.bf16.mxu0 0
          %2224 = vmatpush1.bf16.msra.mxu0 0
          %2225 = vmatprep.subr.bf16.mxu0 0
          %2226 = vmatpush1.bf16.msra.mxu0 0
          %2227 = vmatprep.subr.bf16.mxu0 0
          %2228 = vmatpush1.bf16.msra.mxu0 0
          %2229 = vmatprep.subr.bf16.mxu0 0
          %2230 = vmatpush1.bf16.msra.mxu0 0
          %2231 = vmatprep.subr.bf16.mxu0 0
          %2232 = vmatpush1.bf16.msra.mxu0 0
          %2233 = vmatprep.subr.bf16.mxu0 0
          %2234 = vmatpush1.bf16.msra.mxu0 0
          %2235 = vmatprep.subr.bf16.mxu0 0
          %2236 = vmatpush1.bf16.msra.mxu0 0
          %2237 = vmatprep.subr.bf16.mxu0 0
          %2238 = vmatpush1.bf16.msra.mxu0 0
          %2239 = vmatprep.mubr.bf16.mxu0 0
          %2240 = vmatmul.mubr.bf16.gmra.mrb[0].mxu0 %v2202
          %v2241 = vpop.f32.mrb[0].mxu0
          %v2242 = vadd.f32 0.0, %v2241
          %v2243 = vpop.f32.mrb[0].mxu0
          %v2244 = vpop.f32.mrb[0].mxu0
          %v2245 = vpop.f32.mrb[0].mxu0
          %2246 = vdwg.mxu0
          %v2248 = vsel %vm540, %v705, 0
          %v2251 = vsel %vm565, %v1643, 0
          %2253 = vmatprep.subr.bf16.mxu0 0
          %2254 = vmatpush1.bf16.msra.mxu0 %v2251
          %2255 = vmatprep.subr.bf16.mxu0 0
          %2256 = vmatpush1.bf16.msra.mxu0 0
          %2257 = vmatprep.subr.bf16.mxu0 0
          %2258 = vmatpush1.bf16.msra.mxu0 0
          %2259 = vmatprep.subr.bf16.mxu0 0
          %2260 = vmatpush1.bf16.msra.mxu0 0
          %2261 = vmatprep.subr.bf16.mxu0 0
          %2262 = vmatpush1.bf16.msra.mxu0 0
          %2263 = vmatprep.subr.bf16.mxu0 0
          %2264 = vmatpush1.bf16.msra.mxu0 0
          %2265 = vmatprep.subr.bf16.mxu0 0
          %2266 = vmatpush1.bf16.msra.mxu0 0
          %2267 = vmatprep.subr.bf16.mxu0 0
          %2268 = vmatpush1.bf16.msra.mxu0 0
          %2269 = vmatprep.subr.bf16.mxu0 0
          %2270 = vmatpush1.bf16.msra.mxu0 0
          %2271 = vmatprep.subr.bf16.mxu0 0
          %2272 = vmatpush1.bf16.msra.mxu0 0
          %2273 = vmatprep.subr.bf16.mxu0 0
          %2274 = vmatpush1.bf16.msra.mxu0 0
          %2275 = vmatprep.subr.bf16.mxu0 0
          %2276 = vmatpush1.bf16.msra.mxu0 0
          %2277 = vmatprep.subr.bf16.mxu0 0
          %2278 = vmatpush1.bf16.msra.mxu0 0
          %2279 = vmatprep.subr.bf16.mxu0 0
          %2280 = vmatpush1.bf16.msra.mxu0 0
          %2281 = vmatprep.subr.bf16.mxu0 0
          %2282 = vmatpush1.bf16.msra.mxu0 0
          %2283 = vmatprep.subr.bf16.mxu0 0
          %2284 = vmatpush1.bf16.msra.mxu0 0
          %2285 = vmatprep.mubr.bf16.mxu0 0
          %2286 = vmatmul.mubr.bf16.gmra.mrb[0].mxu0 %v2248
          %v2287 = vpop.f32.mrb[0].mxu0
          %v2288 = vadd.f32 0.0, %v2287
          %v2289 = vpop.f32.mrb[0].mxu0
          %v2290 = vpop.f32.mrb[0].mxu0
          %v2291 = vpop.f32.mrb[0].mxu0
          %2292 = vdwg.mxu0
          %v2294 = vsel %vm540, %v708, 0
          %v2297 = vsel %vm565, %v1645, 0
          %2299 = vmatprep.subr.bf16.mxu0 0
          %2300 = vmatpush1.bf16.msra.mxu0 %v2297
          %2301 = vmatprep.subr.bf16.mxu0 0
          %2302 = vmatpush1.bf16.msra.mxu0 0
          %2303 = vmatprep.subr.bf16.mxu0 0
          %2304 = vmatpush1.bf16.msra.mxu0 0
          %2305 = vmatprep.subr.bf16.mxu0 0
          %2306 = vmatpush1.bf16.msra.mxu0 0
          %2307 = vmatprep.subr.bf16.mxu0 0
          %2308 = vmatpush1.bf16.msra.mxu0 0
          %2309 = vmatprep.subr.bf16.mxu0 0
          %2310 = vmatpush1.bf16.msra.mxu0 0
          %2311 = vmatprep.subr.bf16.mxu0 0
          %2312 = vmatpush1.bf16.msra.mxu0 0
          %2313 = vmatprep.subr.bf16.mxu0 0
          %2314 = vmatpush1.bf16.msra.mxu0 0
          %2315 = vmatprep.subr.bf16.mxu0 0
          %2316 = vmatpush1.bf16.msra.mxu0 0
          %2317 = vmatprep.subr.bf16.mxu0 0
          %2318 = vmatpush1.bf16.msra.mxu0 0
          %2319 = vmatprep.subr.bf16.mxu0 0
          %2320 = vmatpush1.bf16.msra.mxu0 0
          %2321 = vmatprep.subr.bf16.mxu0 0
          %2322 = vmatpush1.bf16.msra.mxu0 0
          %2323 = vmatprep.subr.bf16.mxu0 0
          %2324 = vmatpush1.bf16.msra.mxu0 0
          %2325 = vmatprep.subr.bf16.mxu0 0
          %2326 = vmatpush1.bf16.msra.mxu0 0
          %2327 = vmatprep.subr.bf16.mxu0 0
          %2328 = vmatpush1.bf16.msra.mxu0 0
          %2329 = vmatprep.subr.bf16.mxu0 0
          %2330 = vmatpush1.bf16.msra.mxu0 0
          %2331 = vmatprep.mubr.bf16.mxu0 0
          %2332 = vmatmul.mubr.bf16.gmra.mrb[0].mxu0 %v2294
          %v2333 = vpop.f32.mrb[0].mxu0
          %v2334 = vadd.f32 0.0, %v2333
          %v2335 = vpop.f32.mrb[0].mxu0
          %v2336 = vpop.f32.mrb[0].mxu0
          %v2337 = vpop.f32.mrb[0].mxu0
          %2338 = vdwg.mxu0
          %v2340 = vsel %vm540, %v711, 0
          %v2343 = vsel %vm565, %v1647, 0
          %2345 = vmatprep.subr.bf16.mxu0 0
          %2346 = vmatpush1.bf16.msra.mxu0 %v2343
          %2347 = vmatprep.subr.bf16.mxu0 0
          %2348 = vmatpush1.bf16.msra.mxu0 0
          %2349 = vmatprep.subr.bf16.mxu0 0
          %2350 = vmatpush1.bf16.msra.mxu0 0
          %2351 = vmatprep.subr.bf16.mxu0 0
          %2352 = vmatpush1.bf16.msra.mxu0 0
          %2353 = vmatprep.subr.bf16.mxu0 0
          %2354 = vmatpush1.bf16.msra.mxu0 0
          %2355 = vmatprep.subr.bf16.mxu0 0
          %2356 = vmatpush1.bf16.msra.mxu0 0
          %2357 = vmatprep.subr.bf16.mxu0 0
          %2358 = vmatpush1.bf16.msra.mxu0 0
          %2359 = vmatprep.subr.bf16.mxu0 0
          %2360 = vmatpush1.bf16.msra.mxu0 0
          %2361 = vmatprep.subr.bf16.mxu0 0
          %2362 = vmatpush1.bf16.msra.mxu0 0
          %2363 = vmatprep.subr.bf16.mxu0 0
          %2364 = vmatpush1.bf16.msra.mxu0 0
          %2365 = vmatprep.subr.bf16.mxu0 0
          %2366 = vmatpush1.bf16.msra.mxu0 0
          %2367 = vmatprep.subr.bf16.mxu0 0
          %2368 = vmatpush1.bf16.msra.mxu0 0
          %2369 = vmatprep.subr.bf16.mxu0 0
          %2370 = vmatpush1.bf16.msra.mxu0 0
          %2371 = vmatprep.subr.bf16.mxu0 0
          %2372 = vmatpush1.bf16.msra.mxu0 0
          %2373 = vmatprep.subr.bf16.mxu0 0
          %2374 = vmatpush1.bf16.msra.mxu0 0
          %2375 = vmatprep.subr.bf16.mxu0 0
          %2376 = vmatpush1.bf16.msra.mxu0 0
          %2377 = vmatprep.mubr.bf16.mxu0 0
          %2378 = vmatmul.mubr.bf16.gmra.mrb[0].mxu0 %v2340
          %v2379 = vpop.f32.mrb[0].mxu0
          %v2380 = vadd.f32 0.0, %v2379
          %v2381 = vpop.f32.mrb[0].mxu0
          %v2382 = vpop.f32.mrb[0].mxu0
          %v2383 = vpop.f32.mrb[0].mxu0
          %2384 = vdwg.mxu0
          %v2385 = vadd.f32 %v1007, %v1690
          %v2386 = vadd.f32 %v1008, %v1736
          %v2387 = vadd.f32 %v1009, %v1782
          %v2388 = vadd.f32 %v1010, %v1828
          %v2389 = vadd.f32 %v1011, %v1874
          %v2390 = vadd.f32 %v1012, %v1920
          %v2391 = vadd.f32 %v1013, %v1966
          %v2392 = vadd.f32 %v1014, %v2012
          %v2393 = vadd.f32 %v1015, %v2058
          %v2394 = vadd.f32 %v1016, %v2104
          %v2395 = vadd.f32 %v1017, %v2150
          %v2396 = vadd.f32 %v1018, %v2196
          %v2397 = vadd.f32 %v1019, %v2242
          %v2398 = vadd.f32 %v1020, %v2288
          %v2399 = vadd.f32 %v1021, %v2334
          %v2400 = vadd.f32 %v1022, %v2380
          %v2401 = vrot.slane %v1617, 4
          %v2403 = vsel %vm540, %v667, 0
          %v2406 = vsel %vm565, %v2401, 0
          %2408 = vmatprep.subr.bf16.mxu0 0
          %2409 = vmatpush1.bf16.msra.mxu0 %v2406
          %2410 = vmatprep.subr.bf16.mxu0 0
          %2411 = vmatpush1.bf16.msra.mxu0 0
          %2412 = vmatprep.subr.bf16.mxu0 0
          %2413 = vmatpush1.bf16.msra.mxu0 0
          %2414 = vmatprep.subr.bf16.mxu0 0
          %2415 = vmatpush1.bf16.msra.mxu0 0
          %2416 = vmatprep.subr.bf16.mxu0 0
          %2417 = vmatpush1.bf16.msra.mxu0 0
          %2418 = vmatprep.subr.bf16.mxu0 0
          %2419 = vmatpush1.bf16.msra.mxu0 0
          %2420 = vmatprep.subr.bf16.mxu0 0
          %2421 = vmatpush1.bf16.msra.mxu0 0
          %2422 = vmatprep.subr.bf16.mxu0 0
          %2423 = vmatpush1.bf16.msra.mxu0 0
          %2424 = vmatprep.subr.bf16.mxu0 0
          %2425 = vmatpush1.bf16.msra.mxu0 0
          %2426 = vmatprep.subr.bf16.mxu0 0
          %2427 = vmatpush1.bf16.msra.mxu0 0
          %2428 = vmatprep.subr.bf16.mxu0 0
          %2429 = vmatpush1.bf16.msra.mxu0 0
          %2430 = vmatprep.subr.bf16.mxu0 0
          %2431 = vmatpush1.bf16.msra.mxu0 0
          %2432 = vmatprep.subr.bf16.mxu0 0
          %2433 = vmatpush1.bf16.msra.mxu0 0
          %2434 = vmatprep.subr.bf16.mxu0 0
          %2435 = vmatpush1.bf16.msra.mxu0 0
          %2436 = vmatprep.subr.bf16.mxu0 0
          %2437 = vmatpush1.bf16.msra.mxu0 0
          %2438 = vmatprep.subr.bf16.mxu0 0
          %2439 = vmatpush1.bf16.msra.mxu0 0
          %2440 = vmatprep.mubr.bf16.mxu0 0
          %2441 = vmatmul.mubr.bf16.gmra.mrb[0].mxu0 %v2403
          %v2442 = vpop.f32.mrb[0].mxu0
          %v2443 = vadd.f32 0.0, %v2442
          %v2444 = vpop.f32.mrb[0].mxu0
          %v2445 = vpop.f32.mrb[0].mxu0
          %v2446 = vpop.f32.mrb[0].mxu0
          %2447 = vdwg.mxu0
          %v2448 = vrot.slane %v1619, 4
          %v2450 = vsel %vm540, %v670, 0
          %v2453 = vsel %vm565, %v2448, 0
          %2455 = vmatprep.subr.bf16.mxu0 0
          %2456 = vmatpush1.bf16.msra.mxu0 %v2453
          %2457 = vmatprep.subr.bf16.mxu0 0
          %2458 = vmatpush1.bf16.msra.mxu0 0
          %2459 = vmatprep.subr.bf16.mxu0 0
          %2460 = vmatpush1.bf16.msra.mxu0 0
          %2461 = vmatprep.subr.bf16.mxu0 0
          %2462 = vmatpush1.bf16.msra.mxu0 0
          %2463 = vmatprep.subr.bf16.mxu0 0
          %2464 = vmatpush1.bf16.msra.mxu0 0
          %2465 = vmatprep.subr.bf16.mxu0 0
          %2466 = vmatpush1.bf16.msra.mxu0 0
          %2467 = vmatprep.subr.bf16.mxu0 0
          %2468 = vmatpush1.bf16.msra.mxu0 0
          %2469 = vmatprep.subr.bf16.mxu0 0
          %2470 = vmatpush1.bf16.msra.mxu0 0
          %2471 = vmatprep.subr.bf16.mxu0 0
          %2472 = vmatpush1.bf16.msra.mxu0 0
          %2473 = vmatprep.subr.bf16.mxu0 0
          %2474 = vmatpush1.bf16.msra.mxu0 0
          %2475 = vmatprep.subr.bf16.mxu0 0
          %2476 = vmatpush1.bf16.msra.mxu0 0
          %2477 = vmatprep.subr.bf16.mxu0 0
          %2478 = vmatpush1.bf16.msra.mxu0 0
          %2479 = vmatprep.subr.bf16.mxu0 0
          %2480 = vmatpush1.bf16.msra.mxu0 0
          %2481 = vmatprep.subr.bf16.mxu0 0
          %2482 = vmatpush1.bf16.msra.mxu0 0
          %2483 = vmatprep.subr.bf16.mxu0 0
          %2484 = vmatpush1.bf16.msra.mxu0 0
          %2485 = vmatprep.subr.bf16.mxu0 0
          %2486 = vmatpush1.bf16.msra.mxu0 0
          %2487 = vmatprep.mubr.bf16.mxu0 0
          %2488 = vmatmul.mubr.bf16.gmra.mrb[0].mxu0 %v2450
          %v2489 = vpop.f32.mrb[0].mxu0
          %v2490 = vadd.f32 0.0, %v2489
          %v2491 = vpop.f32.mrb[0].mxu0
          %v2492 = vpop.f32.mrb[0].mxu0
          %v2493 = vpop.f32.mrb[0].mxu0
          %2494 = vdwg.mxu0
          %v2495 = vrot.slane %v1621, 4
          %v2497 = vsel %vm540, %v673, 0
          %v2500 = vsel %vm565, %v2495, 0
          %2502 = vmatprep.subr.bf16.mxu0 0
          %2503 = vmatpush1.bf16.msra.mxu0 %v2500
          %2504 = vmatprep.subr.bf16.mxu0 0
          %2505 = vmatpush1.bf16.msra.mxu0 0
          %2506 = vmatprep.subr.bf16.mxu0 0
          %2507 = vmatpush1.bf16.msra.mxu0 0
          %2508 = vmatprep.subr.bf16.mxu0 0
          %2509 = vmatpush1.bf16.msra.mxu0 0
          %2510 = vmatprep.subr.bf16.mxu0 0
          %2511 = vmatpush1.bf16.msra.mxu0 0
          %2512 = vmatprep.subr.bf16.mxu0 0
          %2513 = vmatpush1.bf16.msra.mxu0 0
          %2514 = vmatprep.subr.bf16.mxu0 0
          %2515 = vmatpush1.bf16.msra.mxu0 0
          %2516 = vmatprep.subr.bf16.mxu0 0
          %2517 = vmatpush1.bf16.msra.mxu0 0
          %2518 = vmatprep.subr.bf16.mxu0 0
          %2519 = vmatpush1.bf16.msra.mxu0 0
          %2520 = vmatprep.subr.bf16.mxu0 0
          %2521 = vmatpush1.bf16.msra.mxu0 0
          %2522 = vmatprep.subr.bf16.mxu0 0
          %2523 = vmatpush1.bf16.msra.mxu0 0
          %2524 = vmatprep.subr.bf16.mxu0 0
          %2525 = vmatpush1.bf16.msra.mxu0 0
          %2526 = vmatprep.subr.bf16.mxu0 0
          %2527 = vmatpush1.bf16.msra.mxu0 0
          %2528 = vmatprep.subr.bf16.mxu0 0
          %2529 = vmatpush1.bf16.msra.mxu0 0
          %2530 = vmatprep.subr.bf16.mxu0 0
          %2531 = vmatpush1.bf16.msra.mxu0 0
          %2532 = vmatprep.subr.bf16.mxu0 0
          %2533 = vmatpush1.bf16.msra.mxu0 0
          %2534 = vmatprep.mubr.bf16.mxu0 0
          %2535 = vmatmul.mubr.bf16.gmra.mrb[0].mxu0 %v2497
          %v2536 = vpop.f32.mrb[0].mxu0
          %v2537 = vadd.f32 0.0, %v2536
          %v2538 = vpop.f32.mrb[0].mxu0
          %v2539 = vpop.f32.mrb[0].mxu0
          %v2540 = vpop.f32.mrb[0].mxu0
          %2541 = vdwg.mxu0
          %v2542 = vrot.slane %v1623, 4
          %v2544 = vsel %vm540, %v676, 0
          %v2547 = vsel %vm565, %v2542, 0
          %2549 = vmatprep.subr.bf16.mxu0 0
          %2550 = vmatpush1.bf16.msra.mxu0 %v2547
          %2551 = vmatprep.subr.bf16.mxu0 0
          %2552 = vmatpush1.bf16.msra.mxu0 0
          %2553 = vmatprep.subr.bf16.mxu0 0
          %2554 = vmatpush1.bf16.msra.mxu0 0
          %2555 = vmatprep.subr.bf16.mxu0 0
          %2556 = vmatpush1.bf16.msra.mxu0 0
          %2557 = vmatprep.subr.bf16.mxu0 0
          %2558 = vmatpush1.bf16.msra.mxu0 0
          %2559 = vmatprep.subr.bf16.mxu0 0
          %2560 = vmatpush1.bf16.msra.mxu0 0
          %2561 = vmatprep.subr.bf16.mxu0 0
          %2562 = vmatpush1.bf16.msra.mxu0 0
          %2563 = vmatprep.subr.bf16.mxu0 0
          %2564 = vmatpush1.bf16.msra.mxu0 0
          %2565 = vmatprep.subr.bf16.mxu0 0
          %2566 = vmatpush1.bf16.msra.mxu0 0
          %2567 = vmatprep.subr.bf16.mxu0 0
          %2568 = vmatpush1.bf16.msra.mxu0 0
          %2569 = vmatprep.subr.bf16.mxu0 0
          %2570 = vmatpush1.bf16.msra.mxu0 0
          %2571 = vmatprep.subr.bf16.mxu0 0
          %2572 = vmatpush1.bf16.msra.mxu0 0
          %2573 = vmatprep.subr.bf16.mxu0 0
          %2574 = vmatpush1.bf16.msra.mxu0 0
          %2575 = vmatprep.subr.bf16.mxu0 0
          %2576 = vmatpush1.bf16.msra.mxu0 0
          %2577 = vmatprep.subr.bf16.mxu0 0
          %2578 = vmatpush1.bf16.msra.mxu0 0
          %2579 = vmatprep.subr.bf16.mxu0 0
          %2580 = vmatpush1.bf16.msra.mxu0 0
          %2581 = vmatprep.mubr.bf16.mxu0 0
          %2582 = vmatmul.mubr.bf16.gmra.mrb[0].mxu0 %v2544
          %v2583 = vpop.f32.mrb[0].mxu0
          %v2584 = vadd.f32 0.0, %v2583
          %v2585 = vpop.f32.mrb[0].mxu0
          %v2586 = vpop.f32.mrb[0].mxu0
          %v2587 = vpop.f32.mrb[0].mxu0
          %2588 = vdwg.mxu0
          %v2589 = vrot.slane %v1625, 4
          %v2591 = vsel %vm540, %v679, 0
          %v2594 = vsel %vm565, %v2589, 0
          %2596 = vmatprep.subr.bf16.mxu0 0
          %2597 = vmatpush1.bf16.msra.mxu0 %v2594
          %2598 = vmatprep.subr.bf16.mxu0 0
          %2599 = vmatpush1.bf16.msra.mxu0 0
          %2600 = vmatprep.subr.bf16.mxu0 0
          %2601 = vmatpush1.bf16.msra.mxu0 0
          %2602 = vmatprep.subr.bf16.mxu0 0
          %2603 = vmatpush1.bf16.msra.mxu0 0
          %2604 = vmatprep.subr.bf16.mxu0 0
          %2605 = vmatpush1.bf16.msra.mxu0 0
          %2606 = vmatprep.subr.bf16.mxu0 0
          %2607 = vmatpush1.bf16.msra.mxu0 0
          %2608 = vmatprep.subr.bf16.mxu0 0
          %2609 = vmatpush1.bf16.msra.mxu0 0
          %2610 = vmatprep.subr.bf16.mxu0 0
          %2611 = vmatpush1.bf16.msra.mxu0 0
          %2612 = vmatprep.subr.bf16.mxu0 0
          %2613 = vmatpush1.bf16.msra.mxu0 0
          %2614 = vmatprep.subr.bf16.mxu0 0
          %2615 = vmatpush1.bf16.msra.mxu0 0
          %2616 = vmatprep.subr.bf16.mxu0 0
          %2617 = vmatpush1.bf16.msra.mxu0 0
          %2618 = vmatprep.subr.bf16.mxu0 0
          %2619 = vmatpush1.bf16.msra.mxu0 0
          %2620 = vmatprep.subr.bf16.mxu0 0
          %2621 = vmatpush1.bf16.msra.mxu0 0
          %2622 = vmatprep.subr.bf16.mxu0 0
          %2623 = vmatpush1.bf16.msra.mxu0 0
          %2624 = vmatprep.subr.bf16.mxu0 0
          %2625 = vmatpush1.bf16.msra.mxu0 0
          %2626 = vmatprep.subr.bf16.mxu0 0
          %2627 = vmatpush1.bf16.msra.mxu0 0
          %2628 = vmatprep.mubr.bf16.mxu0 0
          %2629 = vmatmul.mubr.bf16.gmra.mrb[0].mxu0 %v2591
          %v2630 = vpop.f32.mrb[0].mxu0
          %v2631 = vadd.f32 0.0, %v2630
          %v2632 = vpop.f32.mrb[0].mxu0
          %v2633 = vpop.f32.mrb[0].mxu0
          %v2634 = vpop.f32.mrb[0].mxu0
          %2635 = vdwg.mxu0
          %v2636 = vrot.slane %v1627, 4
          %v2638 = vsel %vm540, %v682, 0
          %v2641 = vsel %vm565, %v2636, 0
          %2643 = vmatprep.subr.bf16.mxu0 0
          %2644 = vmatpush1.bf16.msra.mxu0 %v2641
          %2645 = vmatprep.subr.bf16.mxu0 0
          %2646 = vmatpush1.bf16.msra.mxu0 0
          %2647 = vmatprep.subr.bf16.mxu0 0
          %2648 = vmatpush1.bf16.msra.mxu0 0
          %2649 = vmatprep.subr.bf16.mxu0 0
          %2650 = vmatpush1.bf16.msra.mxu0 0
          %2651 = vmatprep.subr.bf16.mxu0 0
          %2652 = vmatpush1.bf16.msra.mxu0 0
          %2653 = vmatprep.subr.bf16.mxu0 0
          %2654 = vmatpush1.bf16.msra.mxu0 0
          %2655 = vmatprep.subr.bf16.mxu0 0
          %2656 = vmatpush1.bf16.msra.mxu0 0
          %2657 = vmatprep.subr.bf16.mxu0 0
          %2658 = vmatpush1.bf16.msra.mxu0 0
          %2659 = vmatprep.subr.bf16.mxu0 0
          %2660 = vmatpush1.bf16.msra.mxu0 0
          %2661 = vmatprep.subr.bf16.mxu0 0
          %2662 = vmatpush1.bf16.msra.mxu0 0
          %2663 = vmatprep.subr.bf16.mxu0 0
          %2664 = vmatpush1.bf16.msra.mxu0 0
          %2665 = vmatprep.subr.bf16.mxu0 0
          %2666 = vmatpush1.bf16.msra.mxu0 0
          %2667 = vmatprep.subr.bf16.mxu0 0
          %2668 = vmatpush1.bf16.msra.mxu0 0
          %2669 = vmatprep.subr.bf16.mxu0 0
          %2670 = vmatpush1.bf16.msra.mxu0 0
          %2671 = vmatprep.subr.bf16.mxu0 0
          %2672 = vmatpush1.bf16.msra.mxu0 0
          %2673 = vmatprep.subr.bf16.mxu0 0
          %2674 = vmatpush1.bf16.msra.mxu0 0
          %2675 = vmatprep.mubr.bf16.mxu0 0
          %2676 = vmatmul.mubr.bf16.gmra.mrb[0].mxu0 %v2638
          %v2677 = vpop.f32.mrb[0].mxu0
          %v2678 = vadd.f32 0.0, %v2677
          %v2679 = vpop.f32.mrb[0].mxu0
          %v2680 = vpop.f32.mrb[0].mxu0
          %v2681 = vpop.f32.mrb[0].mxu0
          %2682 = vdwg.mxu0
          %v2683 = vrot.slane %v1629, 4
          %v2685 = vsel %vm540, %v685, 0
          %v2688 = vsel %vm565, %v2683, 0
          %2690 = vmatprep.subr.bf16.mxu0 0
          %2691 = vmatpush1.bf16.msra.mxu0 %v2688
          %2692 = vmatprep.subr.bf16.mxu0 0
          %2693 = vmatpush1.bf16.msra.mxu0 0
          %2694 = vmatprep.subr.bf16.mxu0 0
          %2695 = vmatpush1.bf16.msra.mxu0 0
          %2696 = vmatprep.subr.bf16.mxu0 0
          %2697 = vmatpush1.bf16.msra.mxu0 0
          %2698 = vmatprep.subr.bf16.mxu0 0
          %2699 = vmatpush1.bf16.msra.mxu0 0
          %2700 = vmatprep.subr.bf16.mxu0 0
          %2701 = vmatpush1.bf16.msra.mxu0 0
          %2702 = vmatprep.subr.bf16.mxu0 0
          %2703 = vmatpush1.bf16.msra.mxu0 0
          %2704 = vmatprep.subr.bf16.mxu0 0
          %2705 = vmatpush1.bf16.msra.mxu0 0
          %2706 = vmatprep.subr.bf16.mxu0 0
          %2707 = vmatpush1.bf16.msra.mxu0 0
          %2708 = vmatprep.subr.bf16.mxu0 0
          %2709 = vmatpush1.bf16.msra.mxu0 0
          %2710 = vmatprep.subr.bf16.mxu0 0
          %2711 = vmatpush1.bf16.msra.mxu0 0
          %2712 = vmatprep.subr.bf16.mxu0 0
          %2713 = vmatpush1.bf16.msra.mxu0 0
          %2714 = vmatprep.subr.bf16.mxu0 0
          %2715 = vmatpush1.bf16.msra.mxu0 0
          %2716 = vmatprep.subr.bf16.mxu0 0
          %2717 = vmatpush1.bf16.msra.mxu0 0
          %2718 = vmatprep.subr.bf16.mxu0 0
          %2719 = vmatpush1.bf16.msra.mxu0 0
          %2720 = vmatprep.subr.bf16.mxu0 0
          %2721 = vmatpush1.bf16.msra.mxu0 0
          %2722 = vmatprep.mubr.bf16.mxu0 0
          %2723 = vmatmul.mubr.bf16.gmra.mrb[0].mxu0 %v2685
          %v2724 = vpop.f32.mrb[0].mxu0
          %v2725 = vadd.f32 0.0, %v2724
          %v2726 = vpop.f32.mrb[0].mxu0
          %v2727 = vpop.f32.mrb[0].mxu0
          %v2728 = vpop.f32.mrb[0].mxu0
          %2729 = vdwg.mxu0
          %v2730 = vrot.slane %v1631, 4
          %v2732 = vsel %vm540, %v688, 0
          %v2735 = vsel %vm565, %v2730, 0
          %2737 = vmatprep.subr.bf16.mxu0 0
          %2738 = vmatpush1.bf16.msra.mxu0 %v2735
          %2739 = vmatprep.subr.bf16.mxu0 0
          %2740 = vmatpush1.bf16.msra.mxu0 0
          %2741 = vmatprep.subr.bf16.mxu0 0
          %2742 = vmatpush1.bf16.msra.mxu0 0
          %2743 = vmatprep.subr.bf16.mxu0 0
          %2744 = vmatpush1.bf16.msra.mxu0 0
          %2745 = vmatprep.subr.bf16.mxu0 0
          %2746 = vmatpush1.bf16.msra.mxu0 0
          %2747 = vmatprep.subr.bf16.mxu0 0
          %2748 = vmatpush1.bf16.msra.mxu0 0
          %2749 = vmatprep.subr.bf16.mxu0 0
          %2750 = vmatpush1.bf16.msra.mxu0 0
          %2751 = vmatprep.subr.bf16.mxu0 0
          %2752 = vmatpush1.bf16.msra.mxu0 0
          %2753 = vmatprep.subr.bf16.mxu0 0
          %2754 = vmatpush1.bf16.msra.mxu0 0
          %2755 = vmatprep.subr.bf16.mxu0 0
          %2756 = vmatpush1.bf16.msra.mxu0 0
          %2757 = vmatprep.subr.bf16.mxu0 0
          %2758 = vmatpush1.bf16.msra.mxu0 0
          %2759 = vmatprep.subr.bf16.mxu0 0
          %2760 = vmatpush1.bf16.msra.mxu0 0
          %2761 = vmatprep.subr.bf16.mxu0 0
          %2762 = vmatpush1.bf16.msra.mxu0 0
          %2763 = vmatprep.subr.bf16.mxu0 0
          %2764 = vmatpush1.bf16.msra.mxu0 0
          %2765 = vmatprep.subr.bf16.mxu0 0
          %2766 = vmatpush1.bf16.msra.mxu0 0
          %2767 = vmatprep.subr.bf16.mxu0 0
          %2768 = vmatpush1.bf16.msra.mxu0 0
          %2769 = vmatprep.mubr.bf16.mxu0 0
          %2770 = vmatmul.mubr.bf16.gmra.mrb[0].mxu0 %v2732
          %v2771 = vpop.f32.mrb[0].mxu0
          %v2772 = vadd.f32 0.0, %v2771
          %v2773 = vpop.f32.mrb[0].mxu0
          %v2774 = vpop.f32.mrb[0].mxu0
          %v2775 = vpop.f32.mrb[0].mxu0
          %2776 = vdwg.mxu0
          %v2777 = vrot.slane %v1633, 4
          %v2779 = vsel %vm540, %v691, 0
          %v2782 = vsel %vm565, %v2777, 0
          %2784 = vmatprep.subr.bf16.mxu0 0
          %2785 = vmatpush1.bf16.msra.mxu0 %v2782
          %2786 = vmatprep.subr.bf16.mxu0 0
          %2787 = vmatpush1.bf16.msra.mxu0 0
          %2788 = vmatprep.subr.bf16.mxu0 0
          %2789 = vmatpush1.bf16.msra.mxu0 0
          %2790 = vmatprep.subr.bf16.mxu0 0
          %2791 = vmatpush1.bf16.msra.mxu0 0
          %2792 = vmatprep.subr.bf16.mxu0 0
          %2793 = vmatpush1.bf16.msra.mxu0 0
          %2794 = vmatprep.subr.bf16.mxu0 0
          %2795 = vmatpush1.bf16.msra.mxu0 0
          %2796 = vmatprep.subr.bf16.mxu0 0
          %2797 = vmatpush1.bf16.msra.mxu0 0
          %2798 = vmatprep.subr.bf16.mxu0 0
          %2799 = vmatpush1.bf16.msra.mxu0 0
          %2800 = vmatprep.subr.bf16.mxu0 0
          %2801 = vmatpush1.bf16.msra.mxu0 0
          %2802 = vmatprep.subr.bf16.mxu0 0
          %2803 = vmatpush1.bf16.msra.mxu0 0
          %2804 = vmatprep.subr.bf16.mxu0 0
          %2805 = vmatpush1.bf16.msra.mxu0 0
          %2806 = vmatprep.subr.bf16.mxu0 0
          %2807 = vmatpush1.bf16.msra.mxu0 0
          %2808 = vmatprep.subr.bf16.mxu0 0
          %2809 = vmatpush1.bf16.msra.mxu0 0
          %2810 = vmatprep.subr.bf16.mxu0 0
          %2811 = vmatpush1.bf16.msra.mxu0 0
          %2812 = vmatprep.subr.bf16.mxu0 0
          %2813 = vmatpush1.bf16.msra.mxu0 0
          %2814 = vmatprep.subr.bf16.mxu0 0
          %2815 = vmatpush1.bf16.msra.mxu0 0
          %2816 = vmatprep.mubr.bf16.mxu0 0
          %2817 = vmatmul.mubr.bf16.gmra.mrb[0].mxu0 %v2779
          %v2818 = vpop.f32.mrb[0].mxu0
          %v2819 = vadd.f32 0.0, %v2818
          %v2820 = vpop.f32.mrb[0].mxu0
          %v2821 = vpop.f32.mrb[0].mxu0
          %v2822 = vpop.f32.mrb[0].mxu0
          %2823 = vdwg.mxu0
          %v2824 = vrot.slane %v1635, 4
          %v2826 = vsel %vm540, %v694, 0
          %v2829 = vsel %vm565, %v2824, 0
          %2831 = vmatprep.subr.bf16.mxu0 0
          %2832 = vmatpush1.bf16.msra.mxu0 %v2829
          %2833 = vmatprep.subr.bf16.mxu0 0
          %2834 = vmatpush1.bf16.msra.mxu0 0
          %2835 = vmatprep.subr.bf16.mxu0 0
          %2836 = vmatpush1.bf16.msra.mxu0 0
          %2837 = vmatprep.subr.bf16.mxu0 0
          %2838 = vmatpush1.bf16.msra.mxu0 0
          %2839 = vmatprep.subr.bf16.mxu0 0
          %2840 = vmatpush1.bf16.msra.mxu0 0
          %2841 = vmatprep.subr.bf16.mxu0 0
          %2842 = vmatpush1.bf16.msra.mxu0 0
          %2843 = vmatprep.subr.bf16.mxu0 0
          %2844 = vmatpush1.bf16.msra.mxu0 0
          %2845 = vmatprep.subr.bf16.mxu0 0
          %2846 = vmatpush1.bf16.msra.mxu0 0
          %2847 = vmatprep.subr.bf16.mxu0 0
          %2848 = vmatpush1.bf16.msra.mxu0 0
          %2849 = vmatprep.subr.bf16.mxu0 0
          %2850 = vmatpush1.bf16.msra.mxu0 0
          %2851 = vmatprep.subr.bf16.mxu0 0
          %2852 = vmatpush1.bf16.msra.mxu0 0
          %2853 = vmatprep.subr.bf16.mxu0 0
          %2854 = vmatpush1.bf16.msra.mxu0 0
          %2855 = vmatprep.subr.bf16.mxu0 0
          %2856 = vmatpush1.bf16.msra.mxu0 0
          %2857 = vmatprep.subr.bf16.mxu0 0
          %2858 = vmatpush1.bf16.msra.mxu0 0
          %2859 = vmatprep.subr.bf16.mxu0 0
          %2860 = vmatpush1.bf16.msra.mxu0 0
          %2861 = vmatprep.subr.bf16.mxu0 0
          %2862 = vmatpush1.bf16.msra.mxu0 0
          %2863 = vmatprep.mubr.bf16.mxu0 0
          %2864 = vmatmul.mubr.bf16.gmra.mrb[0].mxu0 %v2826
          %v2865 = vpop.f32.mrb[0].mxu0
          %v2866 = vadd.f32 0.0, %v2865
          %v2867 = vpop.f32.mrb[0].mxu0
          %v2868 = vpop.f32.mrb[0].mxu0
          %v2869 = vpop.f32.mrb[0].mxu0
          %2870 = vdwg.mxu0
          %v2871 = vrot.slane %v1637, 4
          %v2873 = vsel %vm540, %v697, 0
          %v2876 = vsel %vm565, %v2871, 0
          %2878 = vmatprep.subr.bf16.mxu0 0
          %2879 = vmatpush1.bf16.msra.mxu0 %v2876
          %2880 = vmatprep.subr.bf16.mxu0 0
          %2881 = vmatpush1.bf16.msra.mxu0 0
          %2882 = vmatprep.subr.bf16.mxu0 0
          %2883 = vmatpush1.bf16.msra.mxu0 0
          %2884 = vmatprep.subr.bf16.mxu0 0
          %2885 = vmatpush1.bf16.msra.mxu0 0
          %2886 = vmatprep.subr.bf16.mxu0 0
          %2887 = vmatpush1.bf16.msra.mxu0 0
          %2888 = vmatprep.subr.bf16.mxu0 0
          %2889 = vmatpush1.bf16.msra.mxu0 0
          %2890 = vmatprep.subr.bf16.mxu0 0
          %2891 = vmatpush1.bf16.msra.mxu0 0
          %2892 = vmatprep.subr.bf16.mxu0 0
          %2893 = vmatpush1.bf16.msra.mxu0 0
          %2894 = vmatprep.subr.bf16.mxu0 0
          %2895 = vmatpush1.bf16.msra.mxu0 0
          %2896 = vmatprep.subr.bf16.mxu0 0
          %2897 = vmatpush1.bf16.msra.mxu0 0
          %2898 = vmatprep.subr.bf16.mxu0 0
          %2899 = vmatpush1.bf16.msra.mxu0 0
          %2900 = vmatprep.subr.bf16.mxu0 0
          %2901 = vmatpush1.bf16.msra.mxu0 0
          %2902 = vmatprep.subr.bf16.mxu0 0
          %2903 = vmatpush1.bf16.msra.mxu0 0
          %2904 = vmatprep.subr.bf16.mxu0 0
          %2905 = vmatpush1.bf16.msra.mxu0 0
          %2906 = vmatprep.subr.bf16.mxu0 0
          %2907 = vmatpush1.bf16.msra.mxu0 0
          %2908 = vmatprep.subr.bf16.mxu0 0
          %2909 = vmatpush1.bf16.msra.mxu0 0
          %2910 = vmatprep.mubr.bf16.mxu0 0
          %2911 = vmatmul.mubr.bf16.gmra.mrb[0].mxu0 %v2873
          %v2912 = vpop.f32.mrb[0].mxu0
          %v2913 = vadd.f32 0.0, %v2912
          %v2914 = vpop.f32.mrb[0].mxu0
          %v2915 = vpop.f32.mrb[0].mxu0
          %v2916 = vpop.f32.mrb[0].mxu0
          %2917 = vdwg.mxu0
          %v2918 = vrot.slane %v1639, 4
          %v2920 = vsel %vm540, %v700, 0
          %v2923 = vsel %vm565, %v2918, 0
          %2925 = vmatprep.subr.bf16.mxu0 0
          %2926 = vmatpush1.bf16.msra.mxu0 %v2923
          %2927 = vmatprep.subr.bf16.mxu0 0
          %2928 = vmatpush1.bf16.msra.mxu0 0
          %2929 = vmatprep.subr.bf16.mxu0 0
          %2930 = vmatpush1.bf16.msra.mxu0 0
          %2931 = vmatprep.subr.bf16.mxu0 0
          %2932 = vmatpush1.bf16.msra.mxu0 0
          %2933 = vmatprep.subr.bf16.mxu0 0
          %2934 = vmatpush1.bf16.msra.mxu0 0
          %2935 = vmatprep.subr.bf16.mxu0 0
          %2936 = vmatpush1.bf16.msra.mxu0 0
          %2937 = vmatprep.subr.bf16.mxu0 0
          %2938 = vmatpush1.bf16.msra.mxu0 0
          %2939 = vmatprep.subr.bf16.mxu0 0
          %2940 = vmatpush1.bf16.msra.mxu0 0
          %2941 = vmatprep.subr.bf16.mxu0 0
          %2942 = vmatpush1.bf16.msra.mxu0 0
          %2943 = vmatprep.subr.bf16.mxu0 0
          %2944 = vmatpush1.bf16.msra.mxu0 0
          %2945 = vmatprep.subr.bf16.mxu0 0
          %2946 = vmatpush1.bf16.msra.mxu0 0
          %2947 = vmatprep.subr.bf16.mxu0 0
          %2948 = vmatpush1.bf16.msra.mxu0 0
          %2949 = vmatprep.subr.bf16.mxu0 0
          %2950 = vmatpush1.bf16.msra.mxu0 0
          %2951 = vmatprep.subr.bf16.mxu0 0
          %2952 = vmatpush1.bf16.msra.mxu0 0
          %2953 = vmatprep.subr.bf16.mxu0 0
          %2954 = vmatpush1.bf16.msra.mxu0 0
          %2955 = vmatprep.subr.bf16.mxu0 0
          %2956 = vmatpush1.bf16.msra.mxu0 0
          %2957 = vmatprep.mubr.bf16.mxu0 0
          %2958 = vmatmul.mubr.bf16.gmra.mrb[0].mxu0 %v2920
          %v2959 = vpop.f32.mrb[0].mxu0
          %v2960 = vadd.f32 0.0, %v2959
          %v2961 = vpop.f32.mrb[0].mxu0
          %v2962 = vpop.f32.mrb[0].mxu0
          %v2963 = vpop.f32.mrb[0].mxu0
          %2964 = vdwg.mxu0
          %v2965 = vrot.slane %v1641, 4
          %v2967 = vsel %vm540, %v703, 0
          %v2970 = vsel %vm565, %v2965, 0
          %2972 = vmatprep.subr.bf16.mxu0 0
          %2973 = vmatpush1.bf16.msra.mxu0 %v2970
          %2974 = vmatprep.subr.bf16.mxu0 0
          %2975 = vmatpush1.bf16.msra.mxu0 0
          %2976 = vmatprep.subr.bf16.mxu0 0
          %2977 = vmatpush1.bf16.msra.mxu0 0
          %2978 = vmatprep.subr.bf16.mxu0 0
          %2979 = vmatpush1.bf16.msra.mxu0 0
          %2980 = vmatprep.subr.bf16.mxu0 0
          %2981 = vmatpush1.bf16.msra.mxu0 0
          %2982 = vmatprep.subr.bf16.mxu0 0
          %2983 = vmatpush1.bf16.msra.mxu0 0
          %2984 = vmatprep.subr.bf16.mxu0 0
          %2985 = vmatpush1.bf16.msra.mxu0 0
          %2986 = vmatprep.subr.bf16.mxu0 0
          %2987 = vmatpush1.bf16.msra.mxu0 0
          %2988 = vmatprep.subr.bf16.mxu0 0
          %2989 = vmatpush1.bf16.msra.mxu0 0
          %2990 = vmatprep.subr.bf16.mxu0 0
          %2991 = vmatpush1.bf16.msra.mxu0 0
          %2992 = vmatprep.subr.bf16.mxu0 0
          %2993 = vmatpush1.bf16.msra.mxu0 0
          %2994 = vmatprep.subr.bf16.mxu0 0
          %2995 = vmatpush1.bf16.msra.mxu0 0
          %2996 = vmatprep.subr.bf16.mxu0 0
          %2997 = vmatpush1.bf16.msra.mxu0 0
          %2998 = vmatprep.subr.bf16.mxu0 0
          %2999 = vmatpush1.bf16.msra.mxu0 0
          %3000 = vmatprep.subr.bf16.mxu0 0
          %3001 = vmatpush1.bf16.msra.mxu0 0
          %3002 = vmatprep.subr.bf16.mxu0 0
          %3003 = vmatpush1.bf16.msra.mxu0 0
          %3004 = vmatprep.mubr.bf16.mxu0 0
          %3005 = vmatmul.mubr.bf16.gmra.mrb[0].mxu0 %v2967
          %v3006 = vpop.f32.mrb[0].mxu0
          %v3007 = vadd.f32 0.0, %v3006
          %v3008 = vpop.f32.mrb[0].mxu0
          %v3009 = vpop.f32.mrb[0].mxu0
          %v3010 = vpop.f32.mrb[0].mxu0
          %3011 = vdwg.mxu0
          %v3012 = vrot.slane %v1643, 4
          %v3014 = vsel %vm540, %v706, 0
          %v3017 = vsel %vm565, %v3012, 0
          %3019 = vmatprep.subr.bf16.mxu0 0
          %3020 = vmatpush1.bf16.msra.mxu0 %v3017
          %3021 = vmatprep.subr.bf16.mxu0 0
          %3022 = vmatpush1.bf16.msra.mxu0 0
          %3023 = vmatprep.subr.bf16.mxu0 0
          %3024 = vmatpush1.bf16.msra.mxu0 0
          %3025 = vmatprep.subr.bf16.mxu0 0
          %3026 = vmatpush1.bf16.msra.mxu0 0
          %3027 = vmatprep.subr.bf16.mxu0 0
          %3028 = vmatpush1.bf16.msra.mxu0 0
          %3029 = vmatprep.subr.bf16.mxu0 0
          %3030 = vmatpush1.bf16.msra.mxu0 0
          %3031 = vmatprep.subr.bf16.mxu0 0
          %3032 = vmatpush1.bf16.msra.mxu0 0
          %3033 = vmatprep.subr.bf16.mxu0 0
          %3034 = vmatpush1.bf16.msra.mxu0 0
          %3035 = vmatprep.subr.bf16.mxu0 0
          %3036 = vmatpush1.bf16.msra.mxu0 0
          %3037 = vmatprep.subr.bf16.mxu0 0
          %3038 = vmatpush1.bf16.msra.mxu0 0
          %3039 = vmatprep.subr.bf16.mxu0 0
          %3040 = vmatpush1.bf16.msra.mxu0 0
          %3041 = vmatprep.subr.bf16.mxu0 0
          %3042 = vmatpush1.bf16.msra.mxu0 0
          %3043 = vmatprep.subr.bf16.mxu0 0
          %3044 = vmatpush1.bf16.msra.mxu0 0
          %3045 = vmatprep.subr.bf16.mxu0 0
          %3046 = vmatpush1.bf16.msra.mxu0 0
          %3047 = vmatprep.subr.bf16.mxu0 0
          %3048 = vmatpush1.bf16.msra.mxu0 0
          %3049 = vmatprep.subr.bf16.mxu0 0
          %3050 = vmatpush1.bf16.msra.mxu0 0
          %3051 = vmatprep.mubr.bf16.mxu0 0
          %3052 = vmatmul.mubr.bf16.gmra.mrb[0].mxu0 %v3014
          %v3053 = vpop.f32.mrb[0].mxu0
          %v3054 = vadd.f32 0.0, %v3053
          %v3055 = vpop.f32.mrb[0].mxu0
          %v3056 = vpop.f32.mrb[0].mxu0
          %v3057 = vpop.f32.mrb[0].mxu0
          %3058 = vdwg.mxu0
          %v3059 = vrot.slane %v1645, 4
          %v3061 = vsel %vm540, %v709, 0
          %v3064 = vsel %vm565, %v3059, 0
          %3066 = vmatprep.subr.bf16.mxu0 0
          %3067 = vmatpush1.bf16.msra.mxu0 %v3064
          %3068 = vmatprep.subr.bf16.mxu0 0
          %3069 = vmatpush1.bf16.msra.mxu0 0
          %3070 = vmatprep.subr.bf16.mxu0 0
          %3071 = vmatpush1.bf16.msra.mxu0 0
          %3072 = vmatprep.subr.bf16.mxu0 0
          %3073 = vmatpush1.bf16.msra.mxu0 0
          %3074 = vmatprep.subr.bf16.mxu0 0
          %3075 = vmatpush1.bf16.msra.mxu0 0
          %3076 = vmatprep.subr.bf16.mxu0 0
          %3077 = vmatpush1.bf16.msra.mxu0 0
          %3078 = vmatprep.subr.bf16.mxu0 0
          %3079 = vmatpush1.bf16.msra.mxu0 0
          %3080 = vmatprep.subr.bf16.mxu0 0
          %3081 = vmatpush1.bf16.msra.mxu0 0
          %3082 = vmatprep.subr.bf16.mxu0 0
          %3083 = vmatpush1.bf16.msra.mxu0 0
          %3084 = vmatprep.subr.bf16.mxu0 0
          %3085 = vmatpush1.bf16.msra.mxu0 0
          %3086 = vmatprep.subr.bf16.mxu0 0
          %3087 = vmatpush1.bf16.msra.mxu0 0
          %3088 = vmatprep.subr.bf16.mxu0 0
          %3089 = vmatpush1.bf16.msra.mxu0 0
          %3090 = vmatprep.subr.bf16.mxu0 0
          %3091 = vmatpush1.bf16.msra.mxu0 0
          %3092 = vmatprep.subr.bf16.mxu0 0
          %3093 = vmatpush1.bf16.msra.mxu0 0
          %3094 = vmatprep.subr.bf16.mxu0 0
          %3095 = vmatpush1.bf16.msra.mxu0 0
          %3096 = vmatprep.subr.bf16.mxu0 0
          %3097 = vmatpush1.bf16.msra.mxu0 0
          %3098 = vmatprep.mubr.bf16.mxu0 0
          %3099 = vmatmul.mubr.bf16.gmra.mrb[0].mxu0 %v3061
          %v3100 = vpop.f32.mrb[0].mxu0
          %v3101 = vadd.f32 0.0, %v3100
          %v3102 = vpop.f32.mrb[0].mxu0
          %v3103 = vpop.f32.mrb[0].mxu0
          %v3104 = vpop.f32.mrb[0].mxu0
          %3105 = vdwg.mxu0
          %v3106 = vrot.slane %v1647, 4
          %v3108 = vsel %vm540, %v712, 0
          %v3111 = vsel %vm565, %v3106, 0
          %3113 = vmatprep.subr.bf16.mxu0 0
          %3114 = vmatpush1.bf16.msra.mxu0 %v3111
          %3115 = vmatprep.subr.bf16.mxu0 0
          %3116 = vmatpush1.bf16.msra.mxu0 0
          %3117 = vmatprep.subr.bf16.mxu0 0
          %3118 = vmatpush1.bf16.msra.mxu0 0
          %3119 = vmatprep.subr.bf16.mxu0 0
          %3120 = vmatpush1.bf16.msra.mxu0 0
          %3121 = vmatprep.subr.bf16.mxu0 0
          %3122 = vmatpush1.bf16.msra.mxu0 0
          %3123 = vmatprep.subr.bf16.mxu0 0
          %3124 = vmatpush1.bf16.msra.mxu0 0
          %3125 = vmatprep.subr.bf16.mxu0 0
          %3126 = vmatpush1.bf16.msra.mxu0 0
          %3127 = vmatprep.subr.bf16.mxu0 0
          %3128 = vmatpush1.bf16.msra.mxu0 0
          %3129 = vmatprep.subr.bf16.mxu0 0
          %3130 = vmatpush1.bf16.msra.mxu0 0
          %3131 = vmatprep.subr.bf16.mxu0 0
          %3132 = vmatpush1.bf16.msra.mxu0 0
          %3133 = vmatprep.subr.bf16.mxu0 0
          %3134 = vmatpush1.bf16.msra.mxu0 0
          %3135 = vmatprep.subr.bf16.mxu0 0
          %3136 = vmatpush1.bf16.msra.mxu0 0
          %3137 = vmatprep.subr.bf16.mxu0 0
          %3138 = vmatpush1.bf16.msra.mxu0 0
          %3139 = vmatprep.subr.bf16.mxu0 0
          %3140 = vmatpush1.bf16.msra.mxu0 0
          %3141 = vmatprep.subr.bf16.mxu0 0
          %3142 = vmatpush1.bf16.msra.mxu0 0
          %3143 = vmatprep.subr.bf16.mxu0 0
          %3144 = vmatpush1.bf16.msra.mxu0 0
          %3145 = vmatprep.mubr.bf16.mxu0 0
          %3146 = vmatmul.mubr.bf16.gmra.mrb[0].mxu0 %v3108
          %v3147 = vpop.f32.mrb[0].mxu0
          %v3148 = vadd.f32 0.0, %v3147
          %v3149 = vpop.f32.mrb[0].mxu0
          %v3150 = vpop.f32.mrb[0].mxu0
          %v3151 = vpop.f32.mrb[0].mxu0
          %3152 = vdwg.mxu0
          %v3153 = vadd.f32 %v2385, %v2443
          %v3154 = vadd.f32 %v2386, %v2490
          %v3155 = vadd.f32 %v2387, %v2537
          %v3156 = vadd.f32 %v2388, %v2584
          %v3157 = vadd.f32 %v2389, %v2631
          %v3158 = vadd.f32 %v2390, %v2678
          %v3159 = vadd.f32 %v2391, %v2725
          %v3160 = vadd.f32 %v2392, %v2772
          %v3161 = vadd.f32 %v2393, %v2819
          %v3162 = vadd.f32 %v2394, %v2866
          %v3163 = vadd.f32 %v2395, %v2913
          %v3164 = vadd.f32 %v2396, %v2960
          %v3165 = vadd.f32 %v2397, %v3007
          %v3166 = vadd.f32 %v2398, %v3054
          %v3167 = vadd.f32 %v2399, %v3101
          %v3168 = vadd.f32 %v2400, %v3148
          %v3170 = vsel %vm540, %v668, 0
          %v3173 = vsel %vm565, %v1618, 0
          %3175 = vmatprep.subr.bf16.mxu0 0
          %3176 = vmatpush1.bf16.msra.mxu0 %v3173
          %3177 = vmatprep.subr.bf16.mxu0 0
          %3178 = vmatpush1.bf16.msra.mxu0 0
          %3179 = vmatprep.subr.bf16.mxu0 0
          %3180 = vmatpush1.bf16.msra.mxu0 0
          %3181 = vmatprep.subr.bf16.mxu0 0
          %3182 = vmatpush1.bf16.msra.mxu0 0
          %3183 = vmatprep.subr.bf16.mxu0 0
          %3184 = vmatpush1.bf16.msra.mxu0 0
          %3185 = vmatprep.subr.bf16.mxu0 0
          %3186 = vmatpush1.bf16.msra.mxu0 0
          %3187 = vmatprep.subr.bf16.mxu0 0
          %3188 = vmatpush1.bf16.msra.mxu0 0
          %3189 = vmatprep.subr.bf16.mxu0 0
          %3190 = vmatpush1.bf16.msra.mxu0 0
          %3191 = vmatprep.subr.bf16.mxu0 0
          %3192 = vmatpush1.bf16.msra.mxu0 0
          %3193 = vmatprep.subr.bf16.mxu0 0
          %3194 = vmatpush1.bf16.msra.mxu0 0
          %3195 = vmatprep.subr.bf16.mxu0 0
          %3196 = vmatpush1.bf16.msra.mxu0 0
          %3197 = vmatprep.subr.bf16.mxu0 0
          %3198 = vmatpush1.bf16.msra.mxu0 0
          %3199 = vmatprep.subr.bf16.mxu0 0
          %3200 = vmatpush1.bf16.msra.mxu0 0
          %3201 = vmatprep.subr.bf16.mxu0 0
          %3202 = vmatpush1.bf16.msra.mxu0 0
          %3203 = vmatprep.subr.bf16.mxu0 0
          %3204 = vmatpush1.bf16.msra.mxu0 0
          %3205 = vmatprep.subr.bf16.mxu0 0
          %3206 = vmatpush1.bf16.msra.mxu0 0
          %3207 = vmatprep.mubr.bf16.mxu0 0
          %3208 = vmatmul.mubr.bf16.gmra.mrb[0].mxu0 %v3170
          %v3209 = vpop.f32.mrb[0].mxu0
          %v3210 = vadd.f32 0.0, %v3209
          %v3211 = vpop.f32.mrb[0].mxu0
          %v3212 = vpop.f32.mrb[0].mxu0
          %v3213 = vpop.f32.mrb[0].mxu0
          %3214 = vdwg.mxu0
          %v3216 = vsel %vm540, %v671, 0
          %v3219 = vsel %vm565, %v1620, 0
          %3221 = vmatprep.subr.bf16.mxu0 0
          %3222 = vmatpush1.bf16.msra.mxu0 %v3219
          %3223 = vmatprep.subr.bf16.mxu0 0
          %3224 = vmatpush1.bf16.msra.mxu0 0
          %3225 = vmatprep.subr.bf16.mxu0 0
          %3226 = vmatpush1.bf16.msra.mxu0 0
          %3227 = vmatprep.subr.bf16.mxu0 0
          %3228 = vmatpush1.bf16.msra.mxu0 0
          %3229 = vmatprep.subr.bf16.mxu0 0
          %3230 = vmatpush1.bf16.msra.mxu0 0
          %3231 = vmatprep.subr.bf16.mxu0 0
          %3232 = vmatpush1.bf16.msra.mxu0 0
          %3233 = vmatprep.subr.bf16.mxu0 0
          %3234 = vmatpush1.bf16.msra.mxu0 0
          %3235 = vmatprep.subr.bf16.mxu0 0
          %3236 = vmatpush1.bf16.msra.mxu0 0
          %3237 = vmatprep.subr.bf16.mxu0 0
          %3238 = vmatpush1.bf16.msra.mxu0 0
          %3239 = vmatprep.subr.bf16.mxu0 0
          %3240 = vmatpush1.bf16.msra.mxu0 0
          %3241 = vmatprep.subr.bf16.mxu0 0
          %3242 = vmatpush1.bf16.msra.mxu0 0
          %3243 = vmatprep.subr.bf16.mxu0 0
          %3244 = vmatpush1.bf16.msra.mxu0 0
          %3245 = vmatprep.subr.bf16.mxu0 0
          %3246 = vmatpush1.bf16.msra.mxu0 0
          %3247 = vmatprep.subr.bf16.mxu0 0
          %3248 = vmatpush1.bf16.msra.mxu0 0
          %3249 = vmatprep.subr.bf16.mxu0 0
          %3250 = vmatpush1.bf16.msra.mxu0 0
          %3251 = vmatprep.subr.bf16.mxu0 0
          %3252 = vmatpush1.bf16.msra.mxu0 0
          %3253 = vmatprep.mubr.bf16.mxu0 0
          %3254 = vmatmul.mubr.bf16.gmra.mrb[0].mxu0 %v3216
          %v3255 = vpop.f32.mrb[0].mxu0
          %v3256 = vadd.f32 0.0, %v3255
          %v3257 = vpop.f32.mrb[0].mxu0
          %v3258 = vpop.f32.mrb[0].mxu0
          %v3259 = vpop.f32.mrb[0].mxu0
          %3260 = vdwg.mxu0
          %v3262 = vsel %vm540, %v674, 0
          %v3265 = vsel %vm565, %v1622, 0
          %3267 = vmatprep.subr.bf16.mxu0 0
          %3268 = vmatpush1.bf16.msra.mxu0 %v3265
          %3269 = vmatprep.subr.bf16.mxu0 0
          %3270 = vmatpush1.bf16.msra.mxu0 0
          %3271 = vmatprep.subr.bf16.mxu0 0
          %3272 = vmatpush1.bf16.msra.mxu0 0
          %3273 = vmatprep.subr.bf16.mxu0 0
          %3274 = vmatpush1.bf16.msra.mxu0 0
          %3275 = vmatprep.subr.bf16.mxu0 0
          %3276 = vmatpush1.bf16.msra.mxu0 0
          %3277 = vmatprep.subr.bf16.mxu0 0
          %3278 = vmatpush1.bf16.msra.mxu0 0
          %3279 = vmatprep.subr.bf16.mxu0 0
          %3280 = vmatpush1.bf16.msra.mxu0 0
          %3281 = vmatprep.subr.bf16.mxu0 0
          %3282 = vmatpush1.bf16.msra.mxu0 0
          %3283 = vmatprep.subr.bf16.mxu0 0
          %3284 = vmatpush1.bf16.msra.mxu0 0
          %3285 = vmatprep.subr.bf16.mxu0 0
          %3286 = vmatpush1.bf16.msra.mxu0 0
          %3287 = vmatprep.subr.bf16.mxu0 0
          %3288 = vmatpush1.bf16.msra.mxu0 0
          %3289 = vmatprep.subr.bf16.mxu0 0
          %3290 = vmatpush1.bf16.msra.mxu0 0
          %3291 = vmatprep.subr.bf16.mxu0 0
          %3292 = vmatpush1.bf16.msra.mxu0 0
          %3293 = vmatprep.subr.bf16.mxu0 0
          %3294 = vmatpush1.bf16.msra.mxu0 0
          %3295 = vmatprep.subr.bf16.mxu0 0
          %3296 = vmatpush1.bf16.msra.mxu0 0
          %3297 = vmatprep.subr.bf16.mxu0 0
          %3298 = vmatpush1.bf16.msra.mxu0 0
          %3299 = vmatprep.mubr.bf16.mxu0 0
          %3300 = vmatmul.mubr.bf16.gmra.mrb[0].mxu0 %v3262
          %v3301 = vpop.f32.mrb[0].mxu0
          %v3302 = vadd.f32 0.0, %v3301
          %v3303 = vpop.f32.mrb[0].mxu0
          %v3304 = vpop.f32.mrb[0].mxu0
          %v3305 = vpop.f32.mrb[0].mxu0
          %3306 = vdwg.mxu0
          %v3308 = vsel %vm540, %v677, 0
          %v3311 = vsel %vm565, %v1624, 0
          %3313 = vmatprep.subr.bf16.mxu0 0
          %3314 = vmatpush1.bf16.msra.mxu0 %v3311
          %3315 = vmatprep.subr.bf16.mxu0 0
          %3316 = vmatpush1.bf16.msra.mxu0 0
          %3317 = vmatprep.subr.bf16.mxu0 0
          %3318 = vmatpush1.bf16.msra.mxu0 0
          %3319 = vmatprep.subr.bf16.mxu0 0
          %3320 = vmatpush1.bf16.msra.mxu0 0
          %3321 = vmatprep.subr.bf16.mxu0 0
          %3322 = vmatpush1.bf16.msra.mxu0 0
          %3323 = vmatprep.subr.bf16.mxu0 0
          %3324 = vmatpush1.bf16.msra.mxu0 0
          %3325 = vmatprep.subr.bf16.mxu0 0
          %3326 = vmatpush1.bf16.msra.mxu0 0
          %3327 = vmatprep.subr.bf16.mxu0 0
          %3328 = vmatpush1.bf16.msra.mxu0 0
          %3329 = vmatprep.subr.bf16.mxu0 0
          %3330 = vmatpush1.bf16.msra.mxu0 0
          %3331 = vmatprep.subr.bf16.mxu0 0
          %3332 = vmatpush1.bf16.msra.mxu0 0
          %3333 = vmatprep.subr.bf16.mxu0 0
          %3334 = vmatpush1.bf16.msra.mxu0 0
          %3335 = vmatprep.subr.bf16.mxu0 0
          %3336 = vmatpush1.bf16.msra.mxu0 0
          %3337 = vmatprep.subr.bf16.mxu0 0
          %3338 = vmatpush1.bf16.msra.mxu0 0
          %3339 = vmatprep.subr.bf16.mxu0 0
          %3340 = vmatpush1.bf16.msra.mxu0 0
          %3341 = vmatprep.subr.bf16.mxu0 0
          %3342 = vmatpush1.bf16.msra.mxu0 0
          %3343 = vmatprep.subr.bf16.mxu0 0
          %3344 = vmatpush1.bf16.msra.mxu0 0
          %3345 = vmatprep.mubr.bf16.mxu0 0
          %3346 = vmatmul.mubr.bf16.gmra.mrb[0].mxu0 %v3308
          %v3347 = vpop.f32.mrb[0].mxu0
          %v3348 = vadd.f32 0.0, %v3347
          %v3349 = vpop.f32.mrb[0].mxu0
          %v3350 = vpop.f32.mrb[0].mxu0
          %v3351 = vpop.f32.mrb[0].mxu0
          %3352 = vdwg.mxu0
          %v3354 = vsel %vm540, %v680, 0
          %v3357 = vsel %vm565, %v1626, 0
          %3359 = vmatprep.subr.bf16.mxu0 0
          %3360 = vmatpush1.bf16.msra.mxu0 %v3357
          %3361 = vmatprep.subr.bf16.mxu0 0
          %3362 = vmatpush1.bf16.msra.mxu0 0
          %3363 = vmatprep.subr.bf16.mxu0 0
          %3364 = vmatpush1.bf16.msra.mxu0 0
          %3365 = vmatprep.subr.bf16.mxu0 0
          %3366 = vmatpush1.bf16.msra.mxu0 0
          %3367 = vmatprep.subr.bf16.mxu0 0
          %3368 = vmatpush1.bf16.msra.mxu0 0
          %3369 = vmatprep.subr.bf16.mxu0 0
          %3370 = vmatpush1.bf16.msra.mxu0 0
          %3371 = vmatprep.subr.bf16.mxu0 0
          %3372 = vmatpush1.bf16.msra.mxu0 0
          %3373 = vmatprep.subr.bf16.mxu0 0
          %3374 = vmatpush1.bf16.msra.mxu0 0
          %3375 = vmatprep.subr.bf16.mxu0 0
          %3376 = vmatpush1.bf16.msra.mxu0 0
          %3377 = vmatprep.subr.bf16.mxu0 0
          %3378 = vmatpush1.bf16.msra.mxu0 0
          %3379 = vmatprep.subr.bf16.mxu0 0
          %3380 = vmatpush1.bf16.msra.mxu0 0
          %3381 = vmatprep.subr.bf16.mxu0 0
          %3382 = vmatpush1.bf16.msra.mxu0 0
          %3383 = vmatprep.subr.bf16.mxu0 0
          %3384 = vmatpush1.bf16.msra.mxu0 0
          %3385 = vmatprep.subr.bf16.mxu0 0
          %3386 = vmatpush1.bf16.msra.mxu0 0
          %3387 = vmatprep.subr.bf16.mxu0 0
          %3388 = vmatpush1.bf16.msra.mxu0 0
          %3389 = vmatprep.subr.bf16.mxu0 0
          %3390 = vmatpush1.bf16.msra.mxu0 0
          %3391 = vmatprep.mubr.bf16.mxu0 0
          %3392 = vmatmul.mubr.bf16.gmra.mrb[0].mxu0 %v3354
          %v3393 = vpop.f32.mrb[0].mxu0
          %v3394 = vadd.f32 0.0, %v3393
          %v3395 = vpop.f32.mrb[0].mxu0
          %v3396 = vpop.f32.mrb[0].mxu0
          %v3397 = vpop.f32.mrb[0].mxu0
          %3398 = vdwg.mxu0
          %v3400 = vsel %vm540, %v683, 0
          %v3403 = vsel %vm565, %v1628, 0
          %3405 = vmatprep.subr.bf16.mxu0 0
          %3406 = vmatpush1.bf16.msra.mxu0 %v3403
          %3407 = vmatprep.subr.bf16.mxu0 0
          %3408 = vmatpush1.bf16.msra.mxu0 0
          %3409 = vmatprep.subr.bf16.mxu0 0
          %3410 = vmatpush1.bf16.msra.mxu0 0
          %3411 = vmatprep.subr.bf16.mxu0 0
          %3412 = vmatpush1.bf16.msra.mxu0 0
          %3413 = vmatprep.subr.bf16.mxu0 0
          %3414 = vmatpush1.bf16.msra.mxu0 0
          %3415 = vmatprep.subr.bf16.mxu0 0
          %3416 = vmatpush1.bf16.msra.mxu0 0
          %3417 = vmatprep.subr.bf16.mxu0 0
          %3418 = vmatpush1.bf16.msra.mxu0 0
          %3419 = vmatprep.subr.bf16.mxu0 0
          %3420 = vmatpush1.bf16.msra.mxu0 0
          %3421 = vmatprep.subr.bf16.mxu0 0
          %3422 = vmatpush1.bf16.msra.mxu0 0
          %3423 = vmatprep.subr.bf16.mxu0 0
          %3424 = vmatpush1.bf16.msra.mxu0 0
          %3425 = vmatprep.subr.bf16.mxu0 0
          %3426 = vmatpush1.bf16.msra.mxu0 0
          %3427 = vmatprep.subr.bf16.mxu0 0
          %3428 = vmatpush1.bf16.msra.mxu0 0
          %3429 = vmatprep.subr.bf16.mxu0 0
          %3430 = vmatpush1.bf16.msra.mxu0 0
          %3431 = vmatprep.subr.bf16.mxu0 0
          %3432 = vmatpush1.bf16.msra.mxu0 0
          %3433 = vmatprep.subr.bf16.mxu0 0
          %3434 = vmatpush1.bf16.msra.mxu0 0
          %3435 = vmatprep.subr.bf16.mxu0 0
          %3436 = vmatpush1.bf16.msra.mxu0 0
          %3437 = vmatprep.mubr.bf16.mxu0 0
          %3438 = vmatmul.mubr.bf16.gmra.mrb[0].mxu0 %v3400
          %v3439 = vpop.f32.mrb[0].mxu0
          %v3440 = vadd.f32 0.0, %v3439
          %v3441 = vpop.f32.mrb[0].mxu0
          %v3442 = vpop.f32.mrb[0].mxu0
          %v3443 = vpop.f32.mrb[0].mxu0
          %3444 = vdwg.mxu0
          %v3446 = vsel %vm540, %v686, 0
          %v3449 = vsel %vm565, %v1630, 0
          %3451 = vmatprep.subr.bf16.mxu0 0
          %3452 = vmatpush1.bf16.msra.mxu0 %v3449
          %3453 = vmatprep.subr.bf16.mxu0 0
          %3454 = vmatpush1.bf16.msra.mxu0 0
          %3455 = vmatprep.subr.bf16.mxu0 0
          %3456 = vmatpush1.bf16.msra.mxu0 0
          %3457 = vmatprep.subr.bf16.mxu0 0
          %3458 = vmatpush1.bf16.msra.mxu0 0
          %3459 = vmatprep.subr.bf16.mxu0 0
          %3460 = vmatpush1.bf16.msra.mxu0 0
          %3461 = vmatprep.subr.bf16.mxu0 0
          %3462 = vmatpush1.bf16.msra.mxu0 0
          %3463 = vmatprep.subr.bf16.mxu0 0
          %3464 = vmatpush1.bf16.msra.mxu0 0
          %3465 = vmatprep.subr.bf16.mxu0 0
          %3466 = vmatpush1.bf16.msra.mxu0 0
          %3467 = vmatprep.subr.bf16.mxu0 0
          %3468 = vmatpush1.bf16.msra.mxu0 0
          %3469 = vmatprep.subr.bf16.mxu0 0
          %3470 = vmatpush1.bf16.msra.mxu0 0
          %3471 = vmatprep.subr.bf16.mxu0 0
          %3472 = vmatpush1.bf16.msra.mxu0 0
          %3473 = vmatprep.subr.bf16.mxu0 0
          %3474 = vmatpush1.bf16.msra.mxu0 0
          %3475 = vmatprep.subr.bf16.mxu0 0
          %3476 = vmatpush1.bf16.msra.mxu0 0
          %3477 = vmatprep.subr.bf16.mxu0 0
          %3478 = vmatpush1.bf16.msra.mxu0 0
          %3479 = vmatprep.subr.bf16.mxu0 0
          %3480 = vmatpush1.bf16.msra.mxu0 0
          %3481 = vmatprep.subr.bf16.mxu0 0
          %3482 = vmatpush1.bf16.msra.mxu0 0
          %3483 = vmatprep.mubr.bf16.mxu0 0
          %3484 = vmatmul.mubr.bf16.gmra.mrb[0].mxu0 %v3446
          %v3485 = vpop.f32.mrb[0].mxu0
          %v3486 = vadd.f32 0.0, %v3485
          %v3487 = vpop.f32.mrb[0].mxu0
          %v3488 = vpop.f32.mrb[0].mxu0
          %v3489 = vpop.f32.mrb[0].mxu0
          %3490 = vdwg.mxu0
          %v3492 = vsel %vm540, %v689, 0
          %v3495 = vsel %vm565, %v1632, 0
          %3497 = vmatprep.subr.bf16.mxu0 0
          %3498 = vmatpush1.bf16.msra.mxu0 %v3495
          %3499 = vmatprep.subr.bf16.mxu0 0
          %3500 = vmatpush1.bf16.msra.mxu0 0
          %3501 = vmatprep.subr.bf16.mxu0 0
          %3502 = vmatpush1.bf16.msra.mxu0 0
          %3503 = vmatprep.subr.bf16.mxu0 0
          %3504 = vmatpush1.bf16.msra.mxu0 0
          %3505 = vmatprep.subr.bf16.mxu0 0
          %3506 = vmatpush1.bf16.msra.mxu0 0
          %3507 = vmatprep.subr.bf16.mxu0 0
          %3508 = vmatpush1.bf16.msra.mxu0 0
          %3509 = vmatprep.subr.bf16.mxu0 0
          %3510 = vmatpush1.bf16.msra.mxu0 0
          %3511 = vmatprep.subr.bf16.mxu0 0
          %3512 = vmatpush1.bf16.msra.mxu0 0
          %3513 = vmatprep.subr.bf16.mxu0 0
          %3514 = vmatpush1.bf16.msra.mxu0 0
          %3515 = vmatprep.subr.bf16.mxu0 0
          %3516 = vmatpush1.bf16.msra.mxu0 0
          %3517 = vmatprep.subr.bf16.mxu0 0
          %3518 = vmatpush1.bf16.msra.mxu0 0
          %3519 = vmatprep.subr.bf16.mxu0 0
          %3520 = vmatpush1.bf16.msra.mxu0 0
          %3521 = vmatprep.subr.bf16.mxu0 0
          %3522 = vmatpush1.bf16.msra.mxu0 0
          %3523 = vmatprep.subr.bf16.mxu0 0
          %3524 = vmatpush1.bf16.msra.mxu0 0
          %3525 = vmatprep.subr.bf16.mxu0 0
          %3526 = vmatpush1.bf16.msra.mxu0 0
          %3527 = vmatprep.subr.bf16.mxu0 0
          %3528 = vmatpush1.bf16.msra.mxu0 0
          %3529 = vmatprep.mubr.bf16.mxu0 0
          %3530 = vmatmul.mubr.bf16.gmra.mrb[0].mxu0 %v3492
          %v3531 = vpop.f32.mrb[0].mxu0
          %v3532 = vadd.f32 0.0, %v3531
          %v3533 = vpop.f32.mrb[0].mxu0
          %v3534 = vpop.f32.mrb[0].mxu0
          %v3535 = vpop.f32.mrb[0].mxu0
          %3536 = vdwg.mxu0
          %v3538 = vsel %vm540, %v692, 0
          %v3541 = vsel %vm565, %v1634, 0
          %3543 = vmatprep.subr.bf16.mxu0 0
          %3544 = vmatpush1.bf16.msra.mxu0 %v3541
          %3545 = vmatprep.subr.bf16.mxu0 0
          %3546 = vmatpush1.bf16.msra.mxu0 0
          %3547 = vmatprep.subr.bf16.mxu0 0
          %3548 = vmatpush1.bf16.msra.mxu0 0
          %3549 = vmatprep.subr.bf16.mxu0 0
          %3550 = vmatpush1.bf16.msra.mxu0 0
          %3551 = vmatprep.subr.bf16.mxu0 0
          %3552 = vmatpush1.bf16.msra.mxu0 0
          %3553 = vmatprep.subr.bf16.mxu0 0
          %3554 = vmatpush1.bf16.msra.mxu0 0
          %3555 = vmatprep.subr.bf16.mxu0 0
          %3556 = vmatpush1.bf16.msra.mxu0 0
          %3557 = vmatprep.subr.bf16.mxu0 0
          %3558 = vmatpush1.bf16.msra.mxu0 0
          %3559 = vmatprep.subr.bf16.mxu0 0
          %3560 = vmatpush1.bf16.msra.mxu0 0
          %3561 = vmatprep.subr.bf16.mxu0 0
          %3562 = vmatpush1.bf16.msra.mxu0 0
          %3563 = vmatprep.subr.bf16.mxu0 0
          %3564 = vmatpush1.bf16.msra.mxu0 0
          %3565 = vmatprep.subr.bf16.mxu0 0
          %3566 = vmatpush1.bf16.msra.mxu0 0
          %3567 = vmatprep.subr.bf16.mxu0 0
          %3568 = vmatpush1.bf16.msra.mxu0 0
          %3569 = vmatprep.subr.bf16.mxu0 0
          %3570 = vmatpush1.bf16.msra.mxu0 0
          %3571 = vmatprep.subr.bf16.mxu0 0
          %3572 = vmatpush1.bf16.msra.mxu0 0
          %3573 = vmatprep.subr.bf16.mxu0 0
          %3574 = vmatpush1.bf16.msra.mxu0 0
          %3575 = vmatprep.mubr.bf16.mxu0 0
          %3576 = vmatmul.mubr.bf16.gmra.mrb[0].mxu0 %v3538
          %v3577 = vpop.f32.mrb[0].mxu0
          %v3578 = vadd.f32 0.0, %v3577
          %v3579 = vpop.f32.mrb[0].mxu0
          %v3580 = vpop.f32.mrb[0].mxu0
          %v3581 = vpop.f32.mrb[0].mxu0
          %3582 = vdwg.mxu0
          %v3584 = vsel %vm540, %v695, 0
          %v3587 = vsel %vm565, %v1636, 0
          %3589 = vmatprep.subr.bf16.mxu0 0
          %3590 = vmatpush1.bf16.msra.mxu0 %v3587
          %3591 = vmatprep.subr.bf16.mxu0 0
          %3592 = vmatpush1.bf16.msra.mxu0 0
          %3593 = vmatprep.subr.bf16.mxu0 0
          %3594 = vmatpush1.bf16.msra.mxu0 0
          %3595 = vmatprep.subr.bf16.mxu0 0
          %3596 = vmatpush1.bf16.msra.mxu0 0
          %3597 = vmatprep.subr.bf16.mxu0 0
          %3598 = vmatpush1.bf16.msra.mxu0 0
          %3599 = vmatprep.subr.bf16.mxu0 0
          %3600 = vmatpush1.bf16.msra.mxu0 0
          %3601 = vmatprep.subr.bf16.mxu0 0
          %3602 = vmatpush1.bf16.msra.mxu0 0
          %3603 = vmatprep.subr.bf16.mxu0 0
          %3604 = vmatpush1.bf16.msra.mxu0 0
          %3605 = vmatprep.subr.bf16.mxu0 0
          %3606 = vmatpush1.bf16.msra.mxu0 0
          %3607 = vmatprep.subr.bf16.mxu0 0
          %3608 = vmatpush1.bf16.msra.mxu0 0
          %3609 = vmatprep.subr.bf16.mxu0 0
          %3610 = vmatpush1.bf16.msra.mxu0 0
          %3611 = vmatprep.subr.bf16.mxu0 0
          %3612 = vmatpush1.bf16.msra.mxu0 0
          %3613 = vmatprep.subr.bf16.mxu0 0
          %3614 = vmatpush1.bf16.msra.mxu0 0
          %3615 = vmatprep.subr.bf16.mxu0 0
          %3616 = vmatpush1.bf16.msra.mxu0 0
          %3617 = vmatprep.subr.bf16.mxu0 0
          %3618 = vmatpush1.bf16.msra.mxu0 0
          %3619 = vmatprep.subr.bf16.mxu0 0
          %3620 = vmatpush1.bf16.msra.mxu0 0
          %3621 = vmatprep.mubr.bf16.mxu0 0
          %3622 = vmatmul.mubr.bf16.gmra.mrb[0].mxu0 %v3584
          %v3623 = vpop.f32.mrb[0].mxu0
          %v3624 = vadd.f32 0.0, %v3623
          %v3625 = vpop.f32.mrb[0].mxu0
          %v3626 = vpop.f32.mrb[0].mxu0
          %v3627 = vpop.f32.mrb[0].mxu0
          %3628 = vdwg.mxu0
          %v3630 = vsel %vm540, %v698, 0
          %v3633 = vsel %vm565, %v1638, 0
          %3635 = vmatprep.subr.bf16.mxu0 0
          %3636 = vmatpush1.bf16.msra.mxu0 %v3633
          %3637 = vmatprep.subr.bf16.mxu0 0
          %3638 = vmatpush1.bf16.msra.mxu0 0
          %3639 = vmatprep.subr.bf16.mxu0 0
          %3640 = vmatpush1.bf16.msra.mxu0 0
          %3641 = vmatprep.subr.bf16.mxu0 0
          %3642 = vmatpush1.bf16.msra.mxu0 0
          %3643 = vmatprep.subr.bf16.mxu0 0
          %3644 = vmatpush1.bf16.msra.mxu0 0
          %3645 = vmatprep.subr.bf16.mxu0 0
          %3646 = vmatpush1.bf16.msra.mxu0 0
          %3647 = vmatprep.subr.bf16.mxu0 0
          %3648 = vmatpush1.bf16.msra.mxu0 0
          %3649 = vmatprep.subr.bf16.mxu0 0
          %3650 = vmatpush1.bf16.msra.mxu0 0
          %3651 = vmatprep.subr.bf16.mxu0 0
          %3652 = vmatpush1.bf16.msra.mxu0 0
          %3653 = vmatprep.subr.bf16.mxu0 0
          %3654 = vmatpush1.bf16.msra.mxu0 0
          %3655 = vmatprep.subr.bf16.mxu0 0
          %3656 = vmatpush1.bf16.msra.mxu0 0
          %3657 = vmatprep.subr.bf16.mxu0 0
          %3658 = vmatpush1.bf16.msra.mxu0 0
          %3659 = vmatprep.subr.bf16.mxu0 0
          %3660 = vmatpush1.bf16.msra.mxu0 0
          %3661 = vmatprep.subr.bf16.mxu0 0
          %3662 = vmatpush1.bf16.msra.mxu0 0
          %3663 = vmatprep.subr.bf16.mxu0 0
          %3664 = vmatpush1.bf16.msra.mxu0 0
          %3665 = vmatprep.subr.bf16.mxu0 0
          %3666 = vmatpush1.bf16.msra.mxu0 0
          %3667 = vmatprep.mubr.bf16.mxu0 0
          %3668 = vmatmul.mubr.bf16.gmra.mrb[0].mxu0 %v3630
          %v3669 = vpop.f32.mrb[0].mxu0
          %v3670 = vadd.f32 0.0, %v3669
          %v3671 = vpop.f32.mrb[0].mxu0
          %v3672 = vpop.f32.mrb[0].mxu0
          %v3673 = vpop.f32.mrb[0].mxu0
          %3674 = vdwg.mxu0
          %v3676 = vsel %vm540, %v701, 0
          %v3679 = vsel %vm565, %v1640, 0
          %3681 = vmatprep.subr.bf16.mxu0 0
          %3682 = vmatpush1.bf16.msra.mxu0 %v3679
          %3683 = vmatprep.subr.bf16.mxu0 0
          %3684 = vmatpush1.bf16.msra.mxu0 0
          %3685 = vmatprep.subr.bf16.mxu0 0
          %3686 = vmatpush1.bf16.msra.mxu0 0
          %3687 = vmatprep.subr.bf16.mxu0 0
          %3688 = vmatpush1.bf16.msra.mxu0 0
          %3689 = vmatprep.subr.bf16.mxu0 0
          %3690 = vmatpush1.bf16.msra.mxu0 0
          %3691 = vmatprep.subr.bf16.mxu0 0
          %3692 = vmatpush1.bf16.msra.mxu0 0
          %3693 = vmatprep.subr.bf16.mxu0 0
          %3694 = vmatpush1.bf16.msra.mxu0 0
          %3695 = vmatprep.subr.bf16.mxu0 0
          %3696 = vmatpush1.bf16.msra.mxu0 0
          %3697 = vmatprep.subr.bf16.mxu0 0
          %3698 = vmatpush1.bf16.msra.mxu0 0
          %3699 = vmatprep.subr.bf16.mxu0 0
          %3700 = vmatpush1.bf16.msra.mxu0 0
          %3701 = vmatprep.subr.bf16.mxu0 0
          %3702 = vmatpush1.bf16.msra.mxu0 0
          %3703 = vmatprep.subr.bf16.mxu0 0
          %3704 = vmatpush1.bf16.msra.mxu0 0
          %3705 = vmatprep.subr.bf16.mxu0 0
          %3706 = vmatpush1.bf16.msra.mxu0 0
          %3707 = vmatprep.subr.bf16.mxu0 0
          %3708 = vmatpush1.bf16.msra.mxu0 0
          %3709 = vmatprep.subr.bf16.mxu0 0
          %3710 = vmatpush1.bf16.msra.mxu0 0
          %3711 = vmatprep.subr.bf16.mxu0 0
          %3712 = vmatpush1.bf16.msra.mxu0 0
          %3713 = vmatprep.mubr.bf16.mxu0 0
          %3714 = vmatmul.mubr.bf16.gmra.mrb[0].mxu0 %v3676
          %v3715 = vpop.f32.mrb[0].mxu0
          %v3716 = vadd.f32 0.0, %v3715
          %v3717 = vpop.f32.mrb[0].mxu0
          %v3718 = vpop.f32.mrb[0].mxu0
          %v3719 = vpop.f32.mrb[0].mxu0
          %3720 = vdwg.mxu0
          %v3722 = vsel %vm540, %v704, 0
          %v3725 = vsel %vm565, %v1642, 0
          %3727 = vmatprep.subr.bf16.mxu0 0
          %3728 = vmatpush1.bf16.msra.mxu0 %v3725
          %3729 = vmatprep.subr.bf16.mxu0 0
          %3730 = vmatpush1.bf16.msra.mxu0 0
          %3731 = vmatprep.subr.bf16.mxu0 0
          %3732 = vmatpush1.bf16.msra.mxu0 0
          %3733 = vmatprep.subr.bf16.mxu0 0
          %3734 = vmatpush1.bf16.msra.mxu0 0
          %3735 = vmatprep.subr.bf16.mxu0 0
          %3736 = vmatpush1.bf16.msra.mxu0 0
          %3737 = vmatprep.subr.bf16.mxu0 0
          %3738 = vmatpush1.bf16.msra.mxu0 0
          %3739 = vmatprep.subr.bf16.mxu0 0
          %3740 = vmatpush1.bf16.msra.mxu0 0
          %3741 = vmatprep.subr.bf16.mxu0 0
          %3742 = vmatpush1.bf16.msra.mxu0 0
          %3743 = vmatprep.subr.bf16.mxu0 0
          %3744 = vmatpush1.bf16.msra.mxu0 0
          %3745 = vmatprep.subr.bf16.mxu0 0
          %3746 = vmatpush1.bf16.msra.mxu0 0
          %3747 = vmatprep.subr.bf16.mxu0 0
          %3748 = vmatpush1.bf16.msra.mxu0 0
          %3749 = vmatprep.subr.bf16.mxu0 0
          %3750 = vmatpush1.bf16.msra.mxu0 0
          %3751 = vmatprep.subr.bf16.mxu0 0
          %3752 = vmatpush1.bf16.msra.mxu0 0
          %3753 = vmatprep.subr.bf16.mxu0 0
          %3754 = vmatpush1.bf16.msra.mxu0 0
          %3755 = vmatprep.subr.bf16.mxu0 0
          %3756 = vmatpush1.bf16.msra.mxu0 0
          %3757 = vmatprep.subr.bf16.mxu0 0
          %3758 = vmatpush1.bf16.msra.mxu0 0
          %3759 = vmatprep.mubr.bf16.mxu0 0
          %3760 = vmatmul.mubr.bf16.gmra.mrb[0].mxu0 %v3722
          %v3761 = vpop.f32.mrb[0].mxu0
          %v3762 = vadd.f32 0.0, %v3761
          %v3763 = vpop.f32.mrb[0].mxu0
          %v3764 = vpop.f32.mrb[0].mxu0
          %v3765 = vpop.f32.mrb[0].mxu0
          %3766 = vdwg.mxu0
          %v3768 = vsel %vm540, %v707, 0
          %v3771 = vsel %vm565, %v1644, 0
          %3773 = vmatprep.subr.bf16.mxu0 0
          %3774 = vmatpush1.bf16.msra.mxu0 %v3771
          %3775 = vmatprep.subr.bf16.mxu0 0
          %3776 = vmatpush1.bf16.msra.mxu0 0
          %3777 = vmatprep.subr.bf16.mxu0 0
          %3778 = vmatpush1.bf16.msra.mxu0 0
          %3779 = vmatprep.subr.bf16.mxu0 0
          %3780 = vmatpush1.bf16.msra.mxu0 0
          %3781 = vmatprep.subr.bf16.mxu0 0
          %3782 = vmatpush1.bf16.msra.mxu0 0
          %3783 = vmatprep.subr.bf16.mxu0 0
          %3784 = vmatpush1.bf16.msra.mxu0 0
          %3785 = vmatprep.subr.bf16.mxu0 0
          %3786 = vmatpush1.bf16.msra.mxu0 0
          %3787 = vmatprep.subr.bf16.mxu0 0
          %3788 = vmatpush1.bf16.msra.mxu0 0
          %3789 = vmatprep.subr.bf16.mxu0 0
          %3790 = vmatpush1.bf16.msra.mxu0 0
          %3791 = vmatprep.subr.bf16.mxu0 0
          %3792 = vmatpush1.bf16.msra.mxu0 0
          %3793 = vmatprep.subr.bf16.mxu0 0
          %3794 = vmatpush1.bf16.msra.mxu0 0
          %3795 = vmatprep.subr.bf16.mxu0 0
          %3796 = vmatpush1.bf16.msra.mxu0 0
          %3797 = vmatprep.subr.bf16.mxu0 0
          %3798 = vmatpush1.bf16.msra.mxu0 0
          %3799 = vmatprep.subr.bf16.mxu0 0
          %3800 = vmatpush1.bf16.msra.mxu0 0
          %3801 = vmatprep.subr.bf16.mxu0 0
          %3802 = vmatpush1.bf16.msra.mxu0 0
          %3803 = vmatprep.subr.bf16.mxu0 0
          %3804 = vmatpush1.bf16.msra.mxu0 0
          %3805 = vmatprep.mubr.bf16.mxu0 0
          %3806 = vmatmul.mubr.bf16.gmra.mrb[0].mxu0 %v3768
          %v3807 = vpop.f32.mrb[0].mxu0
          %v3808 = vadd.f32 0.0, %v3807
          %v3809 = vpop.f32.mrb[0].mxu0
          %v3810 = vpop.f32.mrb[0].mxu0
          %v3811 = vpop.f32.mrb[0].mxu0
          %3812 = vdwg.mxu0
          %v3814 = vsel %vm540, %v710, 0
          %v3817 = vsel %vm565, %v1646, 0
          %3819 = vmatprep.subr.bf16.mxu0 0
          %3820 = vmatpush1.bf16.msra.mxu0 %v3817
          %3821 = vmatprep.subr.bf16.mxu0 0
          %3822 = vmatpush1.bf16.msra.mxu0 0
          %3823 = vmatprep.subr.bf16.mxu0 0
          %3824 = vmatpush1.bf16.msra.mxu0 0
          %3825 = vmatprep.subr.bf16.mxu0 0
          %3826 = vmatpush1.bf16.msra.mxu0 0
          %3827 = vmatprep.subr.bf16.mxu0 0
          %3828 = vmatpush1.bf16.msra.mxu0 0
          %3829 = vmatprep.subr.bf16.mxu0 0
          %3830 = vmatpush1.bf16.msra.mxu0 0
          %3831 = vmatprep.subr.bf16.mxu0 0
          %3832 = vmatpush1.bf16.msra.mxu0 0
          %3833 = vmatprep.subr.bf16.mxu0 0
          %3834 = vmatpush1.bf16.msra.mxu0 0
          %3835 = vmatprep.subr.bf16.mxu0 0
          %3836 = vmatpush1.bf16.msra.mxu0 0
          %3837 = vmatprep.subr.bf16.mxu0 0
          %3838 = vmatpush1.bf16.msra.mxu0 0
          %3839 = vmatprep.subr.bf16.mxu0 0
          %3840 = vmatpush1.bf16.msra.mxu0 0
          %3841 = vmatprep.subr.bf16.mxu0 0
          %3842 = vmatpush1.bf16.msra.mxu0 0
          %3843 = vmatprep.subr.bf16.mxu0 0
          %3844 = vmatpush1.bf16.msra.mxu0 0
          %3845 = vmatprep.subr.bf16.mxu0 0
          %3846 = vmatpush1.bf16.msra.mxu0 0
          %3847 = vmatprep.subr.bf16.mxu0 0
          %3848 = vmatpush1.bf16.msra.mxu0 0
          %3849 = vmatprep.subr.bf16.mxu0 0
          %3850 = vmatpush1.bf16.msra.mxu0 0
          %3851 = vmatprep.mubr.bf16.mxu0 0
          %3852 = vmatmul.mubr.bf16.gmra.mrb[0].mxu0 %v3814
          %v3853 = vpop.f32.mrb[0].mxu0
          %v3854 = vadd.f32 0.0, %v3853
          %v3855 = vpop.f32.mrb[0].mxu0
          %v3856 = vpop.f32.mrb[0].mxu0
          %v3857 = vpop.f32.mrb[0].mxu0
          %3858 = vdwg.mxu0
          %v3860 = vsel %vm540, %v713, 0
          %v3863 = vsel %vm565, %v1648, 0
          %3865 = vmatprep.subr.bf16.mxu0 0
          %3866 = vmatpush1.bf16.msra.mxu0 %v3863
          %3867 = vmatprep.subr.bf16.mxu0 0
          %3868 = vmatpush1.bf16.msra.mxu0 0
          %3869 = vmatprep.subr.bf16.mxu0 0
          %3870 = vmatpush1.bf16.msra.mxu0 0
          %3871 = vmatprep.subr.bf16.mxu0 0
          %3872 = vmatpush1.bf16.msra.mxu0 0
          %3873 = vmatprep.subr.bf16.mxu0 0
          %3874 = vmatpush1.bf16.msra.mxu0 0
          %3875 = vmatprep.subr.bf16.mxu0 0
          %3876 = vmatpush1.bf16.msra.mxu0 0
          %3877 = vmatprep.subr.bf16.mxu0 0
          %3878 = vmatpush1.bf16.msra.mxu0 0
          %3879 = vmatprep.subr.bf16.mxu0 0
          %3880 = vmatpush1.bf16.msra.mxu0 0
          %3881 = vmatprep.subr.bf16.mxu0 0
          %3882 = vmatpush1.bf16.msra.mxu0 0
          %3883 = vmatprep.subr.bf16.mxu0 0
          %3884 = vmatpush1.bf16.msra.mxu0 0
          %3885 = vmatprep.subr.bf16.mxu0 0
          %3886 = vmatpush1.bf16.msra.mxu0 0
          %3887 = vmatprep.subr.bf16.mxu0 0
          %3888 = vmatpush1.bf16.msra.mxu0 0
          %3889 = vmatprep.subr.bf16.mxu0 0
          %3890 = vmatpush1.bf16.msra.mxu0 0
          %3891 = vmatprep.subr.bf16.mxu0 0
          %3892 = vmatpush1.bf16.msra.mxu0 0
          %3893 = vmatprep.subr.bf16.mxu0 0
          %3894 = vmatpush1.bf16.msra.mxu0 0
          %3895 = vmatprep.subr.bf16.mxu0 0
          %3896 = vmatpush1.bf16.msra.mxu0 0
          %3897 = vmatprep.mubr.bf16.mxu0 0
          %3898 = vmatmul.mubr.bf16.gmra.mrb[0].mxu0 %v3860
          %v3899 = vpop.f32.mrb[0].mxu0
          %v3900 = vadd.f32 0.0, %v3899
          %v3901 = vpop.f32.mrb[0].mxu0
          %v3902 = vpop.f32.mrb[0].mxu0
          %v3903 = vpop.f32.mrb[0].mxu0
          %3904 = vdwg.mxu0
          %v3905 = vadd.f32 %v3153, %v3210
          %v3906 = vadd.f32 %v3154, %v3256
          %v3907 = vadd.f32 %v3155, %v3302
          %v3908 = vadd.f32 %v3156, %v3348
          %v3909 = vadd.f32 %v3157, %v3394
          %v3910 = vadd.f32 %v3158, %v3440
          %v3911 = vadd.f32 %v3159, %v3486
          %v3912 = vadd.f32 %v3160, %v3532
          %v3913 = vadd.f32 %v3161, %v3578
          %v3914 = vadd.f32 %v3162, %v3624
          %v3915 = vadd.f32 %v3163, %v3670
          %v3916 = vadd.f32 %v3164, %v3716
          %v3917 = vadd.f32 %v3165, %v3762
          %v3918 = vadd.f32 %v3166, %v3808
          %v3919 = vadd.f32 %v3167, %v3854
          %v3920 = vadd.f32 %v3168, %v3900
          %v3921 = vpack.c.bf16 %v3906, %v3905
          %v3922 = vpack.c.bf16 %v3908, %v3907
          %v3923 = vpack.c.bf16 %v3910, %v3909
          %v3924 = vpack.c.bf16 %v3912, %v3911
          %v3925 = vpack.c.bf16 %v3914, %v3913
          %v3926 = vpack.c.bf16 %v3916, %v3915
          %v3927 = vpack.c.bf16 %v3918, %v3917
          %v3928 = vpack.c.bf16 %v3920, %v3919
          %v3961 = vunpack.c.l.b16 %v1089
          %v3962 = vunpack.c.h.b16 %v1089
          %v3963 = vunpack.c.l.b16 %v1090
          %v3964 = vunpack.c.l.b16 %v1091
          %v3965 = vunpack.c.h.b16 %v1091
          %v3966 = vunpack.c.l.b16 %v1092
          %v3967 = vunpack.c.l.b16 %v1093
          %v3968 = vunpack.c.h.b16 %v1093
          %v3969 = vunpack.c.l.b16 %v1094
          %v3970 = vunpack.c.l.b16 %v1095
          %v3971 = vunpack.c.h.b16 %v1095
          %v3972 = vunpack.c.l.b16 %v1096
          %v3973 = vunpack.c.l.b16 %v1097
          %v3974 = vunpack.c.h.b16 %v1097
          %v3975 = vunpack.c.l.b16 %v1098
          %v3976 = vunpack.c.l.b16 %v1099
          %v3977 = vunpack.c.h.b16 %v1099
          %v3978 = vunpack.c.l.b16 %v1100
          %v3979 = vunpack.c.l.b16 %v1101
          %v3980 = vunpack.c.h.b16 %v1101
          %v3981 = vunpack.c.l.b16 %v1102
          %v3982 = vunpack.c.l.b16 %v1103
          %v3983 = vunpack.c.h.b16 %v1103
          %v3984 = vunpack.c.l.b16 %v1104
          %v3985 = vunpack.c.l.b16 %v1105
          %v3986 = vunpack.c.h.b16 %v1105
          %v3987 = vunpack.c.l.b16 %v1106
          %v3988 = vunpack.c.l.b16 %v1107
          %v3989 = vunpack.c.h.b16 %v1107
          %v3990 = vunpack.c.l.b16 %v1108
          %v3991 = vunpack.c.l.b16 %v1109
          %v3992 = vunpack.c.h.b16 %v1109
          %v3993 = vunpack.c.l.b16 %v1110
          %v3994 = vunpack.c.l.b16 %v1111
          %v3995 = vunpack.c.h.b16 %v1111
          %v3996 = vunpack.c.l.b16 %v1112
          %v3997 = vunpack.c.l.b16 %v1113
          %v3998 = vunpack.c.h.b16 %v1113
          %v3999 = vunpack.c.l.b16 %v1114
          %v4000 = vunpack.c.l.b16 %v1115
          %v4001 = vunpack.c.h.b16 %v1115
          %v4002 = vunpack.c.l.b16 %v1116
          %v4003 = vunpack.c.l.b16 %v1117
          %v4004 = vunpack.c.h.b16 %v1117
          %v4005 = vunpack.c.l.b16 %v1118
          %v4006 = vunpack.c.l.b16 %v1119
          %v4007 = vunpack.c.h.b16 %v1119
          %v4008 = vunpack.c.l.b16 %v1120
          %v4009 = vpack.c.b16 %v3964, %v3961
          %v4010 = vpack.c.b16 %v3965, %v3962
          %v4011 = vpack.c.b16 %v3966, %v3963
          %v4012 = vpack.c.b16 %v3970, %v3967
          %v4013 = vpack.c.b16 %v3971, %v3968
          %v4014 = vpack.c.b16 %v3972, %v3969
          %v4015 = vpack.c.b16 %v3976, %v3973
          %v4016 = vpack.c.b16 %v3977, %v3974
          %v4017 = vpack.c.b16 %v3978, %v3975
          %v4018 = vpack.c.b16 %v3982, %v3979
          %v4019 = vpack.c.b16 %v3983, %v3980
          %v4020 = vpack.c.b16 %v3984, %v3981
          %v4021 = vpack.c.b16 %v3988, %v3985
          %v4022 = vpack.c.b16 %v3989, %v3986
          %v4023 = vpack.c.b16 %v3990, %v3987
          %v4024 = vpack.c.b16 %v3994, %v3991
          %v4025 = vpack.c.b16 %v3995, %v3992
          %v4026 = vpack.c.b16 %v3996, %v3993
          %v4027 = vpack.c.b16 %v4000, %v3997
          %v4028 = vpack.c.b16 %v4001, %v3998
          %v4029 = vpack.c.b16 %v4002, %v3999
          %v4030 = vpack.c.b16 %v4006, %v4003
          %v4031 = vpack.c.b16 %v4007, %v4004
          %v4032 = vpack.c.b16 %v4008, %v4005
          %4057 = vmatprep.subr.bf16.mxu0 %v4010
          %4058 = vmatpush1.bf16.msra.mxu0 %v4009
          %4059 = vmatprep.subr.bf16.mxu0 %v4013
          %4060 = vmatpush1.bf16.msra.mxu0 %v4012
          %4061 = vmatprep.subr.bf16.mxu0 %v4016
          %4062 = vmatpush1.bf16.msra.mxu0 %v4015
          %4063 = vmatprep.subr.bf16.mxu0 %v4019
          %4064 = vmatpush1.bf16.msra.mxu0 %v4018
          %4065 = vmatprep.subr.bf16.mxu0 %v4022
          %4066 = vmatpush1.bf16.msra.mxu0 %v4021
          %4067 = vmatprep.subr.bf16.mxu0 %v4025
          %4068 = vmatpush1.bf16.msra.mxu0 %v4024
          %4069 = vmatprep.subr.bf16.mxu0 %v4028
          %4070 = vmatpush1.bf16.msra.mxu0 %v4027
          %4071 = vmatprep.subr.bf16.mxu0 %v4031
          %4072 = vmatpush1.bf16.msra.mxu0 %v4030
          %4073 = vmatprep.subr.bf16.mxu0 0
          %4074 = vmatpush1.bf16.msra.mxu0 0
          %4075 = vmatprep.subr.bf16.mxu0 0
          %4076 = vmatpush1.bf16.msra.mxu0 0
          %4077 = vmatprep.subr.bf16.mxu0 0
          %4078 = vmatpush1.bf16.msra.mxu0 0
          %4079 = vmatprep.subr.bf16.mxu0 0
          %4080 = vmatpush1.bf16.msra.mxu0 0
          %4081 = vmatprep.subr.bf16.mxu0 0
          %4082 = vmatpush1.bf16.msra.mxu0 0
          %4083 = vmatprep.subr.bf16.mxu0 0
          %4084 = vmatpush1.bf16.msra.mxu0 0
          %4085 = vmatprep.subr.bf16.mxu0 0
          %4086 = vmatpush1.bf16.msra.mxu0 0
          %4087 = vmatprep.subr.bf16.mxu0 0
          %4088 = vmatpush1.bf16.msra.mxu0 0
          %4089 = vmatprep.mubr.bf16.mxu0 0
          %4090 = vmatmul.mubr.bf16.gmra.mrb[0].mxu0 %v3921
          %v4091 = vpop.f32.mrb[0].mxu0
          %v4092 = vadd.f32 %v1028, %v4091
          %v4093 = vpop.f32.mrb[0].mxu0
          %v4094 = vadd.f32 %v1032, %v4093
          %v4095 = vpop.f32.mrb[0].mxu0
          %v4096 = vadd.f32 %v1028, %v4095
          %v4097 = vpop.f32.mrb[0].mxu0
          %v4098 = vadd.f32 %v1032, %v4097
          %4099 = vmatprep.mubr.bf16.mxu0 0
          %4100 = vmatmul.mubr.bf16.gmra.mrb[0].mxu0 %v3922
          %v4101 = vpop.f32.mrb[0].mxu0
          %v4102 = vadd.f32 %v1028, %v4101
          %v4103 = vpop.f32.mrb[0].mxu0
          %v4104 = vadd.f32 %v1032, %v4103
          %v4105 = vpop.f32.mrb[0].mxu0
          %v4106 = vadd.f32 %v1028, %v4105
          %v4107 = vpop.f32.mrb[0].mxu0
          %v4108 = vadd.f32 %v1032, %v4107
          %4109 = vmatprep.mubr.bf16.mxu0 0
          %4110 = vmatmul.mubr.bf16.gmra.mrb[0].mxu0 %v3923
          %v4111 = vpop.f32.mrb[0].mxu0
          %v4112 = vadd.f32 %v1028, %v4111
          %v4113 = vpop.f32.mrb[0].mxu0
          %v4114 = vadd.f32 %v1032, %v4113
          %v4115 = vpop.f32.mrb[0].mxu0
          %v4116 = vadd.f32 %v1028, %v4115
          %v4117 = vpop.f32.mrb[0].mxu0
          %v4118 = vadd.f32 %v1032, %v4117
          %4119 = vmatprep.mubr.bf16.mxu0 0
          %4120 = vmatmul.mubr.bf16.gmra.mrb[0].mxu0 %v3924
          %v4121 = vpop.f32.mrb[0].mxu0
          %v4122 = vadd.f32 %v1028, %v4121
          %v4123 = vpop.f32.mrb[0].mxu0
          %v4124 = vadd.f32 %v1032, %v4123
          %v4125 = vpop.f32.mrb[0].mxu0
          %v4126 = vadd.f32 %v1028, %v4125
          %v4127 = vpop.f32.mrb[0].mxu0
          %v4128 = vadd.f32 %v1032, %v4127
          %4129 = vmatprep.mubr.bf16.mxu0 0
          %4130 = vmatmul.mubr.bf16.gmra.mrb[0].mxu0 %v3925
          %v4131 = vpop.f32.mrb[0].mxu0
          %v4132 = vadd.f32 %v1028, %v4131
          %v4133 = vpop.f32.mrb[0].mxu0
          %v4134 = vadd.f32 %v1032, %v4133
          %v4135 = vpop.f32.mrb[0].mxu0
          %v4136 = vadd.f32 %v1028, %v4135
          %v4137 = vpop.f32.mrb[0].mxu0
          %v4138 = vadd.f32 %v1032, %v4137
          %4139 = vmatprep.mubr.bf16.mxu0 0
          %4140 = vmatmul.mubr.bf16.gmra.mrb[0].mxu0 %v3926
          %v4141 = vpop.f32.mrb[0].mxu0
          %v4142 = vadd.f32 %v1028, %v4141
          %v4143 = vpop.f32.mrb[0].mxu0
          %v4144 = vadd.f32 %v1032, %v4143
          %v4145 = vpop.f32.mrb[0].mxu0
          %v4146 = vadd.f32 %v1028, %v4145
          %v4147 = vpop.f32.mrb[0].mxu0
          %v4148 = vadd.f32 %v1032, %v4147
          %4149 = vmatprep.mubr.bf16.mxu0 0
          %4150 = vmatmul.mubr.bf16.gmra.mrb[0].mxu0 %v3927
          %v4151 = vpop.f32.mrb[0].mxu0
          %v4152 = vadd.f32 %v1028, %v4151
          %v4153 = vpop.f32.mrb[0].mxu0
          %v4154 = vadd.f32 %v1032, %v4153
          %v4155 = vpop.f32.mrb[0].mxu0
          %v4156 = vadd.f32 %v1028, %v4155
          %v4157 = vpop.f32.mrb[0].mxu0
          %v4158 = vadd.f32 %v1032, %v4157
          %4159 = vmatprep.mubr.bf16.mxu0 0
          %4160 = vmatmul.mubr.bf16.gmra.mrb[0].mxu0 %v3928
          %v4161 = vpop.f32.mrb[0].mxu0
          %v4162 = vadd.f32 %v1028, %v4161
          %v4163 = vpop.f32.mrb[0].mxu0
          %v4164 = vadd.f32 %v1032, %v4163
          %v4165 = vpop.f32.mrb[0].mxu0
          %v4166 = vadd.f32 %v1028, %v4165
          %v4167 = vpop.f32.mrb[0].mxu0
          %v4168 = vadd.f32 %v1032, %v4167
          %4169 = vdwg.mxu0
          %4170 = vmatprep.subr.bf16.mxu0 0
          %4171 = vmatpush1.bf16.msra.mxu0 %v4011
          %4172 = vmatprep.subr.bf16.mxu0 0
          %4173 = vmatpush1.bf16.msra.mxu0 %v4014
          %4174 = vmatprep.subr.bf16.mxu0 0
          %4175 = vmatpush1.bf16.msra.mxu0 %v4017
          %4176 = vmatprep.subr.bf16.mxu0 0
          %4177 = vmatpush1.bf16.msra.mxu0 %v4020
          %4178 = vmatprep.subr.bf16.mxu0 0
          %4179 = vmatpush1.bf16.msra.mxu0 %v4023
          %4180 = vmatprep.subr.bf16.mxu0 0
          %4181 = vmatpush1.bf16.msra.mxu0 %v4026
          %4182 = vmatprep.subr.bf16.mxu0 0
          %4183 = vmatpush1.bf16.msra.mxu0 %v4029
          %4184 = vmatprep.subr.bf16.mxu0 0
          %4185 = vmatpush1.bf16.msra.mxu0 %v4032
          %4186 = vmatprep.subr.bf16.mxu0 0
          %4187 = vmatpush1.bf16.msra.mxu0 0
          %4188 = vmatprep.subr.bf16.mxu0 0
          %4189 = vmatpush1.bf16.msra.mxu0 0
          %4190 = vmatprep.subr.bf16.mxu0 0
          %4191 = vmatpush1.bf16.msra.mxu0 0
          %4192 = vmatprep.subr.bf16.mxu0 0
          %4193 = vmatpush1.bf16.msra.mxu0 0
          %4194 = vmatprep.subr.bf16.mxu0 0
          %4195 = vmatpush1.bf16.msra.mxu0 0
          %4196 = vmatprep.subr.bf16.mxu0 0
          %4197 = vmatpush1.bf16.msra.mxu0 0
          %4198 = vmatprep.subr.bf16.mxu0 0
          %4199 = vmatpush1.bf16.msra.mxu0 0
          %4200 = vmatprep.subr.bf16.mxu0 0
          %4201 = vmatpush1.bf16.msra.mxu0 0
          %4202 = vmatprep.mubr.bf16.mxu0 0
          %4203 = vmatmul.mubr.bf16.gmra.mrb[0].mxu0 %v3921
          %v4204 = vpop.f32.mrb[0].mxu0
          %v4205 = vadd.f32 %v1036, %v4204
          %v4206 = vpop.f32.mrb[0].mxu0
          %v4207 = vpop.f32.mrb[0].mxu0
          %v4208 = vadd.f32 %v1036, %v4207
          %v4209 = vpop.f32.mrb[0].mxu0
          %4210 = vmatprep.mubr.bf16.mxu0 0
          %4211 = vmatmul.mubr.bf16.gmra.mrb[0].mxu0 %v3922
          %v4212 = vpop.f32.mrb[0].mxu0
          %v4213 = vadd.f32 %v1036, %v4212
          %v4214 = vpop.f32.mrb[0].mxu0
          %v4215 = vpop.f32.mrb[0].mxu0
          %v4216 = vadd.f32 %v1036, %v4215
          %v4217 = vpop.f32.mrb[0].mxu0
          %4218 = vmatprep.mubr.bf16.mxu0 0
          %4219 = vmatmul.mubr.bf16.gmra.mrb[0].mxu0 %v3923
          %v4220 = vpop.f32.mrb[0].mxu0
          %v4221 = vadd.f32 %v1036, %v4220
          %v4222 = vpop.f32.mrb[0].mxu0
          %v4223 = vpop.f32.mrb[0].mxu0
          %v4224 = vadd.f32 %v1036, %v4223
          %v4225 = vpop.f32.mrb[0].mxu0
          %4226 = vmatprep.mubr.bf16.mxu0 0
          %4227 = vmatmul.mubr.bf16.gmra.mrb[0].mxu0 %v3924
          %v4228 = vpop.f32.mrb[0].mxu0
          %v4229 = vadd.f32 %v1036, %v4228
          %v4230 = vpop.f32.mrb[0].mxu0
          %v4231 = vpop.f32.mrb[0].mxu0
          %v4232 = vadd.f32 %v1036, %v4231
          %v4233 = vpop.f32.mrb[0].mxu0
          %4234 = vmatprep.mubr.bf16.mxu0 0
          %4235 = vmatmul.mubr.bf16.gmra.mrb[0].mxu0 %v3925
          %v4236 = vpop.f32.mrb[0].mxu0
          %v4237 = vadd.f32 %v1036, %v4236
          %v4238 = vpop.f32.mrb[0].mxu0
          %v4239 = vpop.f32.mrb[0].mxu0
          %v4240 = vadd.f32 %v1036, %v4239
          %v4241 = vpop.f32.mrb[0].mxu0
          %4242 = vmatprep.mubr.bf16.mxu0 0
          %4243 = vmatmul.mubr.bf16.gmra.mrb[0].mxu0 %v3926
          %v4244 = vpop.f32.mrb[0].mxu0
          %v4245 = vadd.f32 %v1036, %v4244
          %v4246 = vpop.f32.mrb[0].mxu0
          %v4247 = vpop.f32.mrb[0].mxu0
          %v4248 = vadd.f32 %v1036, %v4247
          %v4249 = vpop.f32.mrb[0].mxu0
          %4250 = vmatprep.mubr.bf16.mxu0 0
          %4251 = vmatmul.mubr.bf16.gmra.mrb[0].mxu0 %v3927
          %v4252 = vpop.f32.mrb[0].mxu0
          %v4253 = vadd.f32 %v1036, %v4252
          %v4254 = vpop.f32.mrb[0].mxu0
          %v4255 = vpop.f32.mrb[0].mxu0
          %v4256 = vadd.f32 %v1036, %v4255
          %v4257 = vpop.f32.mrb[0].mxu0
          %4258 = vmatprep.mubr.bf16.mxu0 0
          %4259 = vmatmul.mubr.bf16.gmra.mrb[0].mxu0 %v3928
          %v4260 = vpop.f32.mrb[0].mxu0
          %v4261 = vadd.f32 %v1036, %v4260
          %v4262 = vpop.f32.mrb[0].mxu0
          %v4263 = vpop.f32.mrb[0].mxu0
          %v4264 = vadd.f32 %v1036, %v4263
          %v4265 = vpop.f32.mrb[0].mxu0
          %4266 = vdwg.mxu0
          %v4299 = vunpack.c.l.b16 %v1121
          %v4300 = vunpack.c.h.b16 %v1121
          %v4301 = vunpack.c.l.b16 %v1122
          %v4302 = vunpack.c.l.b16 %v1123
          %v4303 = vunpack.c.h.b16 %v1123
          %v4304 = vunpack.c.l.b16 %v1124
          %v4305 = vunpack.c.l.b16 %v1125
          %v4306 = vunpack.c.h.b16 %v1125
          %v4307 = vunpack.c.l.b16 %v1126
          %v4308 = vunpack.c.l.b16 %v1127
          %v4309 = vunpack.c.h.b16 %v1127
          %v4310 = vunpack.c.l.b16 %v1128
          %v4311 = vunpack.c.l.b16 %v1129
          %v4312 = vunpack.c.h.b16 %v1129
          %v4313 = vunpack.c.l.b16 %v1130
          %v4314 = vunpack.c.l.b16 %v1131
          %v4315 = vunpack.c.h.b16 %v1131
          %v4316 = vunpack.c.l.b16 %v1132
          %v4317 = vunpack.c.l.b16 %v1133
          %v4318 = vunpack.c.h.b16 %v1133
          %v4319 = vunpack.c.l.b16 %v1134
          %v4320 = vunpack.c.l.b16 %v1135
          %v4321 = vunpack.c.h.b16 %v1135
          %v4322 = vunpack.c.l.b16 %v1136
          %v4323 = vunpack.c.l.b16 %v1137
          %v4324 = vunpack.c.h.b16 %v1137
          %v4325 = vunpack.c.l.b16 %v1138
          %v4326 = vunpack.c.l.b16 %v1139
          %v4327 = vunpack.c.h.b16 %v1139
          %v4328 = vunpack.c.l.b16 %v1140
          %v4329 = vunpack.c.l.b16 %v1141
          %v4330 = vunpack.c.h.b16 %v1141
          %v4331 = vunpack.c.l.b16 %v1142
          %v4332 = vunpack.c.l.b16 %v1143
          %v4333 = vunpack.c.h.b16 %v1143
          %v4334 = vunpack.c.l.b16 %v1144
          %v4335 = vunpack.c.l.b16 %v1145
          %v4336 = vunpack.c.h.b16 %v1145
          %v4337 = vunpack.c.l.b16 %v1146
          %v4338 = vunpack.c.l.b16 %v1147
          %v4339 = vunpack.c.h.b16 %v1147
          %v4340 = vunpack.c.l.b16 %v1148
          %v4341 = vunpack.c.l.b16 %v1149
          %v4342 = vunpack.c.h.b16 %v1149
          %v4343 = vunpack.c.l.b16 %v1150
          %v4344 = vunpack.c.l.b16 %v1151
          %v4345 = vunpack.c.h.b16 %v1151
          %v4346 = vunpack.c.l.b16 %v1152
          %v4347 = vpack.c.b16 %v4302, %v4299
          %v4348 = vpack.c.b16 %v4303, %v4300
          %v4349 = vpack.c.b16 %v4304, %v4301
          %v4350 = vpack.c.b16 %v4308, %v4305
          %v4351 = vpack.c.b16 %v4309, %v4306
          %v4352 = vpack.c.b16 %v4310, %v4307
          %v4353 = vpack.c.b16 %v4314, %v4311
          %v4354 = vpack.c.b16 %v4315, %v4312
          %v4355 = vpack.c.b16 %v4316, %v4313
          %v4356 = vpack.c.b16 %v4320, %v4317
          %v4357 = vpack.c.b16 %v4321, %v4318
          %v4358 = vpack.c.b16 %v4322, %v4319
          %v4359 = vpack.c.b16 %v4326, %v4323
          %v4360 = vpack.c.b16 %v4327, %v4324
          %v4361 = vpack.c.b16 %v4328, %v4325
          %v4362 = vpack.c.b16 %v4332, %v4329
          %v4363 = vpack.c.b16 %v4333, %v4330
          %v4364 = vpack.c.b16 %v4334, %v4331
          %v4365 = vpack.c.b16 %v4338, %v4335
          %v4366 = vpack.c.b16 %v4339, %v4336
          %v4367 = vpack.c.b16 %v4340, %v4337
          %v4368 = vpack.c.b16 %v4344, %v4341
          %v4369 = vpack.c.b16 %v4345, %v4342
          %v4370 = vpack.c.b16 %v4346, %v4343
          %4395 = vmatprep.subr.bf16.mxu0 %v4348
          %4396 = vmatpush1.bf16.msra.mxu0 %v4347
          %4397 = vmatprep.subr.bf16.mxu0 %v4351
          %4398 = vmatpush1.bf16.msra.mxu0 %v4350
          %4399 = vmatprep.subr.bf16.mxu0 %v4354
          %4400 = vmatpush1.bf16.msra.mxu0 %v4353
          %4401 = vmatprep.subr.bf16.mxu0 %v4357
          %4402 = vmatpush1.bf16.msra.mxu0 %v4356
          %4403 = vmatprep.subr.bf16.mxu0 %v4360
          %4404 = vmatpush1.bf16.msra.mxu0 %v4359
          %4405 = vmatprep.subr.bf16.mxu0 %v4363
          %4406 = vmatpush1.bf16.msra.mxu0 %v4362
          %4407 = vmatprep.subr.bf16.mxu0 %v4366
          %4408 = vmatpush1.bf16.msra.mxu0 %v4365
          %4409 = vmatprep.subr.bf16.mxu0 %v4369
          %4410 = vmatpush1.bf16.msra.mxu0 %v4368
          %4411 = vmatprep.subr.bf16.mxu0 0
          %4412 = vmatpush1.bf16.msra.mxu0 0
          %4413 = vmatprep.subr.bf16.mxu0 0
          %4414 = vmatpush1.bf16.msra.mxu0 0
          %4415 = vmatprep.subr.bf16.mxu0 0
          %4416 = vmatpush1.bf16.msra.mxu0 0
          %4417 = vmatprep.subr.bf16.mxu0 0
          %4418 = vmatpush1.bf16.msra.mxu0 0
          %4419 = vmatprep.subr.bf16.mxu0 0
          %4420 = vmatpush1.bf16.msra.mxu0 0
          %4421 = vmatprep.subr.bf16.mxu0 0
          %4422 = vmatpush1.bf16.msra.mxu0 0
          %4423 = vmatprep.subr.bf16.mxu0 0
          %4424 = vmatpush1.bf16.msra.mxu0 0
          %4425 = vmatprep.subr.bf16.mxu0 0
          %4426 = vmatpush1.bf16.msra.mxu0 0
          %4427 = vmatprep.mubr.bf16.mxu0 0
          %4428 = vmatmul.mubr.bf16.gmra.mrb[0].mxu0 %v1175
          %v4429 = vpop.f32.mrb[0].mxu0
          %v4430 = vadd.f32 %v1045, %v4429
          %v4431 = vpop.f32.mrb[0].mxu0
          %v4432 = vadd.f32 %v1049, %v4431
          %v4433 = vpop.f32.mrb[0].mxu0
          %v4434 = vadd.f32 %v1045, %v4433
          %v4435 = vpop.f32.mrb[0].mxu0
          %v4436 = vadd.f32 %v1049, %v4435
          %4437 = vmatprep.mubr.bf16.mxu0 0
          %4438 = vmatmul.mubr.bf16.gmra.mrb[0].mxu0 %v1176
          %v4439 = vpop.f32.mrb[0].mxu0
          %v4440 = vadd.f32 %v1045, %v4439
          %v4441 = vpop.f32.mrb[0].mxu0
          %v4442 = vadd.f32 %v1049, %v4441
          %v4443 = vpop.f32.mrb[0].mxu0
          %v4444 = vadd.f32 %v1045, %v4443
          %v4445 = vpop.f32.mrb[0].mxu0
          %v4446 = vadd.f32 %v1049, %v4445
          %4447 = vmatprep.mubr.bf16.mxu0 0
          %4448 = vmatmul.mubr.bf16.gmra.mrb[0].mxu0 %v1177
          %v4449 = vpop.f32.mrb[0].mxu0
          %v4450 = vadd.f32 %v1045, %v4449
          %v4451 = vpop.f32.mrb[0].mxu0
          %v4452 = vadd.f32 %v1049, %v4451
          %v4453 = vpop.f32.mrb[0].mxu0
          %v4454 = vadd.f32 %v1045, %v4453
          %v4455 = vpop.f32.mrb[0].mxu0
          %v4456 = vadd.f32 %v1049, %v4455
          %4457 = vmatprep.mubr.bf16.mxu0 0
          %4458 = vmatmul.mubr.bf16.gmra.mrb[0].mxu0 %v1178
          %v4459 = vpop.f32.mrb[0].mxu0
          %v4460 = vadd.f32 %v1045, %v4459
          %v4461 = vpop.f32.mrb[0].mxu0
          %v4462 = vadd.f32 %v1049, %v4461
          %v4463 = vpop.f32.mrb[0].mxu0
          %v4464 = vadd.f32 %v1045, %v4463
          %v4465 = vpop.f32.mrb[0].mxu0
          %v4466 = vadd.f32 %v1049, %v4465
          %4467 = vmatprep.mubr.bf16.mxu0 0
          %4468 = vmatmul.mubr.bf16.gmra.mrb[0].mxu0 %v1179
          %v4469 = vpop.f32.mrb[0].mxu0
          %v4470 = vadd.f32 %v1045, %v4469
          %v4471 = vpop.f32.mrb[0].mxu0
          %v4472 = vadd.f32 %v1049, %v4471
          %v4473 = vpop.f32.mrb[0].mxu0
          %v4474 = vadd.f32 %v1045, %v4473
          %v4475 = vpop.f32.mrb[0].mxu0
          %v4476 = vadd.f32 %v1049, %v4475
          %4477 = vmatprep.mubr.bf16.mxu0 0
          %4478 = vmatmul.mubr.bf16.gmra.mrb[0].mxu0 %v1180
          %v4479 = vpop.f32.mrb[0].mxu0
          %v4480 = vadd.f32 %v1045, %v4479
          %v4481 = vpop.f32.mrb[0].mxu0
          %v4482 = vadd.f32 %v1049, %v4481
          %v4483 = vpop.f32.mrb[0].mxu0
          %v4484 = vadd.f32 %v1045, %v4483
          %v4485 = vpop.f32.mrb[0].mxu0
          %v4486 = vadd.f32 %v1049, %v4485
          %4487 = vmatprep.mubr.bf16.mxu0 0
          %4488 = vmatmul.mubr.bf16.gmra.mrb[0].mxu0 %v1181
          %v4489 = vpop.f32.mrb[0].mxu0
          %v4490 = vadd.f32 %v1045, %v4489
          %v4491 = vpop.f32.mrb[0].mxu0
          %v4492 = vadd.f32 %v1049, %v4491
          %v4493 = vpop.f32.mrb[0].mxu0
          %v4494 = vadd.f32 %v1045, %v4493
          %v4495 = vpop.f32.mrb[0].mxu0
          %v4496 = vadd.f32 %v1049, %v4495
          %4497 = vmatprep.mubr.bf16.mxu0 0
          %4498 = vmatmul.mubr.bf16.gmra.mrb[0].mxu0 %v1182
          %v4499 = vpop.f32.mrb[0].mxu0
          %v4500 = vadd.f32 %v1045, %v4499
          %v4501 = vpop.f32.mrb[0].mxu0
          %v4502 = vadd.f32 %v1049, %v4501
          %v4503 = vpop.f32.mrb[0].mxu0
          %v4504 = vadd.f32 %v1045, %v4503
          %v4505 = vpop.f32.mrb[0].mxu0
          %v4506 = vadd.f32 %v1049, %v4505
          %4507 = vdwg.mxu0
          %4508 = vmatprep.subr.bf16.mxu0 0
          %4509 = vmatpush1.bf16.msra.mxu0 %v4349
          %4510 = vmatprep.subr.bf16.mxu0 0
          %4511 = vmatpush1.bf16.msra.mxu0 %v4352
          %4512 = vmatprep.subr.bf16.mxu0 0
          %4513 = vmatpush1.bf16.msra.mxu0 %v4355
          %4514 = vmatprep.subr.bf16.mxu0 0
          %4515 = vmatpush1.bf16.msra.mxu0 %v4358
          %4516 = vmatprep.subr.bf16.mxu0 0
          %4517 = vmatpush1.bf16.msra.mxu0 %v4361
          %4518 = vmatprep.subr.bf16.mxu0 0
          %4519 = vmatpush1.bf16.msra.mxu0 %v4364
          %4520 = vmatprep.subr.bf16.mxu0 0
          %4521 = vmatpush1.bf16.msra.mxu0 %v4367
          %4522 = vmatprep.subr.bf16.mxu0 0
          %4523 = vmatpush1.bf16.msra.mxu0 %v4370
          %4524 = vmatprep.subr.bf16.mxu0 0
          %4525 = vmatpush1.bf16.msra.mxu0 0
          %4526 = vmatprep.subr.bf16.mxu0 0
          %4527 = vmatpush1.bf16.msra.mxu0 0
          %4528 = vmatprep.subr.bf16.mxu0 0
          %4529 = vmatpush1.bf16.msra.mxu0 0
          %4530 = vmatprep.subr.bf16.mxu0 0
          %4531 = vmatpush1.bf16.msra.mxu0 0
          %4532 = vmatprep.subr.bf16.mxu0 0
          %4533 = vmatpush1.bf16.msra.mxu0 0
          %4534 = vmatprep.subr.bf16.mxu0 0
          %4535 = vmatpush1.bf16.msra.mxu0 0
          %4536 = vmatprep.subr.bf16.mxu0 0
          %4537 = vmatpush1.bf16.msra.mxu0 0
          %4538 = vmatprep.subr.bf16.mxu0 0
          %4539 = vmatpush1.bf16.msra.mxu0 0
          %4540 = vmatprep.mubr.bf16.mxu0 0
          %4541 = vmatmul.mubr.bf16.gmra.mrb[0].mxu0 %v1175
          %v4542 = vpop.f32.mrb[0].mxu0
          %v4543 = vadd.f32 %v1053, %v4542
          %v4544 = vpop.f32.mrb[0].mxu0
          %v4545 = vpop.f32.mrb[0].mxu0
          %v4546 = vadd.f32 %v1053, %v4545
          %v4547 = vpop.f32.mrb[0].mxu0
          %4548 = vmatprep.mubr.bf16.mxu0 0
          %4549 = vmatmul.mubr.bf16.gmra.mrb[0].mxu0 %v1176
          %v4550 = vpop.f32.mrb[0].mxu0
          %v4551 = vadd.f32 %v1053, %v4550
          %v4552 = vpop.f32.mrb[0].mxu0
          %v4553 = vpop.f32.mrb[0].mxu0
          %v4554 = vadd.f32 %v1053, %v4553
          %v4555 = vpop.f32.mrb[0].mxu0
          %4556 = vmatprep.mubr.bf16.mxu0 0
          %4557 = vmatmul.mubr.bf16.gmra.mrb[0].mxu0 %v1177
          %v4558 = vpop.f32.mrb[0].mxu0
          %v4559 = vadd.f32 %v1053, %v4558
          %v4560 = vpop.f32.mrb[0].mxu0
          %v4561 = vpop.f32.mrb[0].mxu0
          %v4562 = vadd.f32 %v1053, %v4561
          %v4563 = vpop.f32.mrb[0].mxu0
          %4564 = vmatprep.mubr.bf16.mxu0 0
          %4565 = vmatmul.mubr.bf16.gmra.mrb[0].mxu0 %v1178
          %v4566 = vpop.f32.mrb[0].mxu0
          %v4567 = vadd.f32 %v1053, %v4566
          %v4568 = vpop.f32.mrb[0].mxu0
          %v4569 = vpop.f32.mrb[0].mxu0
          %v4570 = vadd.f32 %v1053, %v4569
          %v4571 = vpop.f32.mrb[0].mxu0
          %4572 = vmatprep.mubr.bf16.mxu0 0
          %4573 = vmatmul.mubr.bf16.gmra.mrb[0].mxu0 %v1179
          %v4574 = vpop.f32.mrb[0].mxu0
          %v4575 = vadd.f32 %v1053, %v4574
          %v4576 = vpop.f32.mrb[0].mxu0
          %v4577 = vpop.f32.mrb[0].mxu0
          %v4578 = vadd.f32 %v1053, %v4577
          %v4579 = vpop.f32.mrb[0].mxu0
          %4580 = vmatprep.mubr.bf16.mxu0 0
          %4581 = vmatmul.mubr.bf16.gmra.mrb[0].mxu0 %v1180
          %v4582 = vpop.f32.mrb[0].mxu0
          %v4583 = vadd.f32 %v1053, %v4582
          %v4584 = vpop.f32.mrb[0].mxu0
          %v4585 = vpop.f32.mrb[0].mxu0
          %v4586 = vadd.f32 %v1053, %v4585
          %v4587 = vpop.f32.mrb[0].mxu0
          %4588 = vmatprep.mubr.bf16.mxu0 0
          %4589 = vmatmul.mubr.bf16.gmra.mrb[0].mxu0 %v1181
          %v4590 = vpop.f32.mrb[0].mxu0
          %v4591 = vadd.f32 %v1053, %v4590
          %v4592 = vpop.f32.mrb[0].mxu0
          %v4593 = vpop.f32.mrb[0].mxu0
          %v4594 = vadd.f32 %v1053, %v4593
          %v4595 = vpop.f32.mrb[0].mxu0
          %4596 = vmatprep.mubr.bf16.mxu0 0
          %4597 = vmatmul.mubr.bf16.gmra.mrb[0].mxu0 %v1182
          %v4598 = vpop.f32.mrb[0].mxu0
          %v4599 = vadd.f32 %v1053, %v4598
          %v4600 = vpop.f32.mrb[0].mxu0
          %v4601 = vpop.f32.mrb[0].mxu0
          %v4602 = vadd.f32 %v1053, %v4601
          %v4603 = vpop.f32.mrb[0].mxu0
          %4604 = vdwg.mxu0
          %v4605 = vadd.f32 %v4092, %v4430
          %v4606 = vadd.f32 %v4096, %v4434
          %v4607 = vadd.f32 %v4102, %v4440
          %v4608 = vadd.f32 %v4106, %v4444
          %v4609 = vadd.f32 %v4112, %v4450
          %v4610 = vadd.f32 %v4116, %v4454
          %v4611 = vadd.f32 %v4122, %v4460
          %v4612 = vadd.f32 %v4126, %v4464
          %v4613 = vadd.f32 %v4132, %v4470
          %v4614 = vadd.f32 %v4136, %v4474
          %v4615 = vadd.f32 %v4142, %v4480
          %v4616 = vadd.f32 %v4146, %v4484
          %v4617 = vadd.f32 %v4152, %v4490
          %v4618 = vadd.f32 %v4156, %v4494
          %v4619 = vadd.f32 %v4162, %v4500
          %v4620 = vadd.f32 %v4166, %v4504
          %v4621 = vxor.u32 %v4605, 2147483648
          %v4622 = vxor.u32 %v4606, 2147483648
          %v4623 = vxor.u32 %v4607, 2147483648
          %v4624 = vxor.u32 %v4608, 2147483648
          %v4625 = vxor.u32 %v4609, 2147483648
          %v4626 = vxor.u32 %v4610, 2147483648
          %v4627 = vxor.u32 %v4611, 2147483648
          %v4628 = vxor.u32 %v4612, 2147483648
          %v4629 = vxor.u32 %v4613, 2147483648
          %v4630 = vxor.u32 %v4614, 2147483648
          %v4631 = vxor.u32 %v4615, 2147483648
          %v4632 = vxor.u32 %v4616, 2147483648
          %v4633 = vxor.u32 %v4617, 2147483648
          %v4634 = vxor.u32 %v4618, 2147483648
          %v4635 = vxor.u32 %v4619, 2147483648
          %v4636 = vxor.u32 %v4620, 2147483648
          %v4637 = vmul.f32 %v4621, 1.442695
          %v4638 = vpow.pop %v4637
          %v4639 = vmul.f32 %v4622, 1.442695
          %v4640 = vpow.pop %v4639
          %v4641 = vmul.f32 %v4623, 1.442695
          %v4642 = vpow.pop %v4641
          %v4643 = vmul.f32 %v4624, 1.442695
          %v4644 = vpow.pop %v4643
          %v4645 = vmul.f32 %v4625, 1.442695
          %v4646 = vpow.pop %v4645
          %v4647 = vmul.f32 %v4626, 1.442695
          %v4648 = vpow.pop %v4647
          %v4649 = vmul.f32 %v4627, 1.442695
          %v4650 = vpow.pop %v4649
          %v4651 = vmul.f32 %v4628, 1.442695
          %v4652 = vpow.pop %v4651
          %v4653 = vmul.f32 %v4629, 1.442695
          %v4654 = vpow.pop %v4653
          %v4655 = vmul.f32 %v4630, 1.442695
          %v4656 = vpow.pop %v4655
          %v4657 = vmul.f32 %v4631, 1.442695
          %v4658 = vpow.pop %v4657
          %v4659 = vmul.f32 %v4632, 1.442695
          %v4660 = vpow.pop %v4659
          %v4661 = vmul.f32 %v4633, 1.442695
          %v4662 = vpow.pop %v4661
          %v4663 = vmul.f32 %v4634, 1.442695
          %v4664 = vpow.pop %v4663
          %v4665 = vmul.f32 %v4635, 1.442695
          %v4666 = vpow.pop %v4665
          %v4667 = vmul.f32 %v4636, 1.442695
          %v4668 = vpow.pop %v4667
          %v4669 = vadd.f32 %v4638, 1.0
          %v4670 = vadd.f32 %v4640, 1.0
          %v4671 = vadd.f32 %v4642, 1.0
          %v4672 = vadd.f32 %v4644, 1.0
          %v4673 = vadd.f32 %v4646, 1.0
          %v4674 = vadd.f32 %v4648, 1.0
          %v4675 = vadd.f32 %v4650, 1.0
          %v4676 = vadd.f32 %v4652, 1.0
          %v4677 = vadd.f32 %v4654, 1.0
          %v4678 = vadd.f32 %v4656, 1.0
          %v4679 = vadd.f32 %v4658, 1.0
          %v4680 = vadd.f32 %v4660, 1.0
          %v4681 = vadd.f32 %v4662, 1.0
          %v4682 = vadd.f32 %v4664, 1.0
          %v4683 = vadd.f32 %v4666, 1.0
          %v4684 = vadd.f32 %v4668, 1.0
          %v4685 = vrcp.pop %v4669
          %v4686 = vmul.f32 1.0, %v4685
          %v4687 = vrcp.pop %v4670
          %v4688 = vmul.f32 1.0, %v4687
          %v4689 = vrcp.pop %v4671
          %v4690 = vmul.f32 1.0, %v4689
          %v4691 = vrcp.pop %v4672
          %v4692 = vmul.f32 1.0, %v4691
          %v4693 = vrcp.pop %v4673
          %v4694 = vmul.f32 1.0, %v4693
          %v4695 = vrcp.pop %v4674
          %v4696 = vmul.f32 1.0, %v4695
          %v4697 = vrcp.pop %v4675
          %v4698 = vmul.f32 1.0, %v4697
          %v4699 = vrcp.pop %v4676
          %v4700 = vmul.f32 1.0, %v4699
          %v4701 = vrcp.pop %v4677
          %v4702 = vmul.f32 1.0, %v4701
          %v4703 = vrcp.pop %v4678
          %v4704 = vmul.f32 1.0, %v4703
          %v4705 = vrcp.pop %v4679
          %v4706 = vmul.f32 1.0, %v4705
          %v4707 = vrcp.pop %v4680
          %v4708 = vmul.f32 1.0, %v4707
          %v4709 = vrcp.pop %v4681
          %v4710 = vmul.f32 1.0, %v4709
          %v4711 = vrcp.pop %v4682
          %v4712 = vmul.f32 1.0, %v4711
          %v4713 = vrcp.pop %v4683
          %v4714 = vmul.f32 1.0, %v4713
          %v4715 = vrcp.pop %v4684
          %v4716 = vmul.f32 1.0, %v4715
          %v4717 = vadd.f32 %v4094, %v4432
          %v4718 = vadd.f32 %v4098, %v4436
          %v4719 = vadd.f32 %v4104, %v4442
          %v4720 = vadd.f32 %v4108, %v4446
          %v4721 = vadd.f32 %v4114, %v4452
          %v4722 = vadd.f32 %v4118, %v4456
          %v4723 = vadd.f32 %v4124, %v4462
          %v4724 = vadd.f32 %v4128, %v4466
          %v4725 = vadd.f32 %v4134, %v4472
          %v4726 = vadd.f32 %v4138, %v4476
          %v4727 = vadd.f32 %v4144, %v4482
          %v4728 = vadd.f32 %v4148, %v4486
          %v4729 = vadd.f32 %v4154, %v4492
          %v4730 = vadd.f32 %v4158, %v4496
          %v4731 = vadd.f32 %v4164, %v4502
          %v4732 = vadd.f32 %v4168, %v4506
          %v4733 = vxor.u32 %v4717, 2147483648
          %v4734 = vxor.u32 %v4718, 2147483648
          %v4735 = vxor.u32 %v4719, 2147483648
          %v4736 = vxor.u32 %v4720, 2147483648
          %v4737 = vxor.u32 %v4721, 2147483648
          %v4738 = vxor.u32 %v4722, 2147483648
          %v4739 = vxor.u32 %v4723, 2147483648
          %v4740 = vxor.u32 %v4724, 2147483648
          %v4741 = vxor.u32 %v4725, 2147483648
          %v4742 = vxor.u32 %v4726, 2147483648
          %v4743 = vxor.u32 %v4727, 2147483648
          %v4744 = vxor.u32 %v4728, 2147483648
          %v4745 = vxor.u32 %v4729, 2147483648
          %v4746 = vxor.u32 %v4730, 2147483648
          %v4747 = vxor.u32 %v4731, 2147483648
          %v4748 = vxor.u32 %v4732, 2147483648
          %v4749 = vmul.f32 %v4733, 1.442695
          %v4750 = vpow.pop %v4749
          %v4751 = vmul.f32 %v4734, 1.442695
          %v4752 = vpow.pop %v4751
          %v4753 = vmul.f32 %v4735, 1.442695
          %v4754 = vpow.pop %v4753
          %v4755 = vmul.f32 %v4736, 1.442695
          %v4756 = vpow.pop %v4755
          %v4757 = vmul.f32 %v4737, 1.442695
          %v4758 = vpow.pop %v4757
          %v4759 = vmul.f32 %v4738, 1.442695
          %v4760 = vpow.pop %v4759
          %v4761 = vmul.f32 %v4739, 1.442695
          %v4762 = vpow.pop %v4761
          %v4763 = vmul.f32 %v4740, 1.442695
          %v4764 = vpow.pop %v4763
          %v4765 = vmul.f32 %v4741, 1.442695
          %v4766 = vpow.pop %v4765
          %v4767 = vmul.f32 %v4742, 1.442695
          %v4768 = vpow.pop %v4767
          %v4769 = vmul.f32 %v4743, 1.442695
          %v4770 = vpow.pop %v4769
          %v4771 = vmul.f32 %v4744, 1.442695
          %v4772 = vpow.pop %v4771
          %v4773 = vmul.f32 %v4745, 1.442695
          %v4774 = vpow.pop %v4773
          %v4775 = vmul.f32 %v4746, 1.442695
          %v4776 = vpow.pop %v4775
          %v4777 = vmul.f32 %v4747, 1.442695
          %v4778 = vpow.pop %v4777
          %v4779 = vmul.f32 %v4748, 1.442695
          %v4780 = vpow.pop %v4779
          %v4781 = vadd.f32 %v4750, 1.0
          %v4782 = vadd.f32 %v4752, 1.0
          %v4783 = vadd.f32 %v4754, 1.0
          %v4784 = vadd.f32 %v4756, 1.0
          %v4785 = vadd.f32 %v4758, 1.0
          %v4786 = vadd.f32 %v4760, 1.0
          %v4787 = vadd.f32 %v4762, 1.0
          %v4788 = vadd.f32 %v4764, 1.0
          %v4789 = vadd.f32 %v4766, 1.0
          %v4790 = vadd.f32 %v4768, 1.0
          %v4791 = vadd.f32 %v4770, 1.0
          %v4792 = vadd.f32 %v4772, 1.0
          %v4793 = vadd.f32 %v4774, 1.0
          %v4794 = vadd.f32 %v4776, 1.0
          %v4795 = vadd.f32 %v4778, 1.0
          %v4796 = vadd.f32 %v4780, 1.0
          %v4797 = vrcp.pop %v4781
          %v4798 = vmul.f32 1.0, %v4797
          %v4799 = vrcp.pop %v4782
          %v4800 = vmul.f32 1.0, %v4799
          %v4801 = vrcp.pop %v4783
          %v4802 = vmul.f32 1.0, %v4801
          %v4803 = vrcp.pop %v4784
          %v4804 = vmul.f32 1.0, %v4803
          %v4805 = vrcp.pop %v4785
          %v4806 = vmul.f32 1.0, %v4805
          %v4807 = vrcp.pop %v4786
          %v4808 = vmul.f32 1.0, %v4807
          %v4809 = vrcp.pop %v4787
          %v4810 = vmul.f32 1.0, %v4809
          %v4811 = vrcp.pop %v4788
          %v4812 = vmul.f32 1.0, %v4811
          %v4813 = vrcp.pop %v4789
          %v4814 = vmul.f32 1.0, %v4813
          %v4815 = vrcp.pop %v4790
          %v4816 = vmul.f32 1.0, %v4815
          %v4817 = vrcp.pop %v4791
          %v4818 = vmul.f32 1.0, %v4817
          %v4819 = vrcp.pop %v4792
          %v4820 = vmul.f32 1.0, %v4819
          %v4821 = vrcp.pop %v4793
          %v4822 = vmul.f32 1.0, %v4821
          %v4823 = vrcp.pop %v4794
          %v4824 = vmul.f32 1.0, %v4823
          %v4825 = vrcp.pop %v4795
          %v4826 = vmul.f32 1.0, %v4825
          %v4827 = vrcp.pop %v4796
          %v4828 = vmul.f32 1.0, %v4827
          %v4829 = vmul.f32 %v4686, %v4543
          %v4830 = vmul.f32 %v4688, %v4546
          %v4831 = vmul.f32 %v4690, %v4551
          %v4832 = vmul.f32 %v4692, %v4554
          %v4833 = vmul.f32 %v4694, %v4559
          %v4834 = vmul.f32 %v4696, %v4562
          %v4835 = vmul.f32 %v4698, %v4567
          %v4836 = vmul.f32 %v4700, %v4570
          %v4837 = vmul.f32 %v4702, %v4575
          %v4838 = vmul.f32 %v4704, %v4578
          %v4839 = vmul.f32 %v4706, %v4583
          %v4840 = vmul.f32 %v4708, %v4586
          %v4841 = vmul.f32 %v4710, %v4591
          %v4842 = vmul.f32 %v4712, %v4594
          %v4843 = vmul.f32 %v4714, %v4599
          %v4844 = vmul.f32 %v4716, %v4602
          %v4845 = vadd.f32 %v4205, %v4829
          %v4846 = vadd.f32 %v4208, %v4830
          %v4847 = vadd.f32 %v4213, %v4831
          %v4848 = vadd.f32 %v4216, %v4832
          %v4849 = vadd.f32 %v4221, %v4833
          %v4850 = vadd.f32 %v4224, %v4834
          %v4851 = vadd.f32 %v4229, %v4835
          %v4852 = vadd.f32 %v4232, %v4836
          %v4853 = vadd.f32 %v4237, %v4837
          %v4854 = vadd.f32 %v4240, %v4838
          %v4855 = vadd.f32 %v4245, %v4839
          %v4856 = vadd.f32 %v4248, %v4840
          %v4857 = vadd.f32 %v4253, %v4841
          %v4858 = vadd.f32 %v4256, %v4842
          %v4859 = vadd.f32 %v4261, %v4843
          %v4860 = vadd.f32 %v4264, %v4844
          %v4861 = vtanh.pop %v4845
          %v4862 = vtanh.pop %v4846
          %v4863 = vtanh.pop %v4847
          %v4864 = vtanh.pop %v4848
          %v4865 = vtanh.pop %v4849
          %v4866 = vtanh.pop %v4850
          %v4867 = vtanh.pop %v4851
          %v4868 = vtanh.pop %v4852
          %v4869 = vtanh.pop %v4853
          %v4870 = vtanh.pop %v4854
          %v4871 = vtanh.pop %v4855
          %v4872 = vtanh.pop %v4856
          %v4873 = vtanh.pop %v4857
          %v4874 = vtanh.pop %v4858
          %v4875 = vtanh.pop %v4859
          %v4876 = vtanh.pop %v4860
          %v4877 = vsub.f32 1.0, %v4798
          %v4878 = vsub.f32 1.0, %v4800
          %v4879 = vsub.f32 1.0, %v4802
          %v4880 = vsub.f32 1.0, %v4804
          %v4881 = vsub.f32 1.0, %v4806
          %v4882 = vsub.f32 1.0, %v4808
          %v4883 = vsub.f32 1.0, %v4810
          %v4884 = vsub.f32 1.0, %v4812
          %v4885 = vsub.f32 1.0, %v4814
          %v4886 = vsub.f32 1.0, %v4816
          %v4887 = vsub.f32 1.0, %v4818
          %v4888 = vsub.f32 1.0, %v4820
          %v4889 = vsub.f32 1.0, %v4822
          %v4890 = vsub.f32 1.0, %v4824
          %v4891 = vsub.f32 1.0, %v4826
          %v4892 = vsub.f32 1.0, %v4828
          %v4893 = vmul.f32 %v4877, %v4861
          %v4894 = vmul.f32 %v4878, %v4862
          %v4895 = vmul.f32 %v4879, %v4863
          %v4896 = vmul.f32 %v4880, %v4864
          %v4897 = vmul.f32 %v4881, %v4865
          %v4898 = vmul.f32 %v4882, %v4866
          %v4899 = vmul.f32 %v4883, %v4867
          %v4900 = vmul.f32 %v4884, %v4868
          %v4901 = vmul.f32 %v4885, %v4869
          %v4902 = vmul.f32 %v4886, %v4870
          %v4903 = vmul.f32 %v4887, %v4871
          %v4904 = vmul.f32 %v4888, %v4872
          %v4905 = vmul.f32 %v4889, %v4873
          %v4906 = vmul.f32 %v4890, %v4874
          %v4907 = vmul.f32 %v4891, %v4875
          %v4908 = vmul.f32 %v4892, %v4876
          %v4909 = vmul.f32 %v4798, %v1159
          %v4910 = vmul.f32 %v4800, %v1160
          %v4911 = vmul.f32 %v4802, %v1161
          %v4912 = vmul.f32 %v4804, %v1162
          %v4913 = vmul.f32 %v4806, %v1163
          %v4914 = vmul.f32 %v4808, %v1164
          %v4915 = vmul.f32 %v4810, %v1165
          %v4916 = vmul.f32 %v4812, %v1166
          %v4917 = vmul.f32 %v4814, %v1167
          %v4918 = vmul.f32 %v4816, %v1168
          %v4919 = vmul.f32 %v4818, %v1169
          %v4920 = vmul.f32 %v4820, %v1170
          %v4921 = vmul.f32 %v4822, %v1171
          %v4922 = vmul.f32 %v4824, %v1172
          %v4923 = vmul.f32 %v4826, %v1173
          %v4924 = vmul.f32 %v4828, %v1174
          %v4925 = vadd.f32 %v4893, %v4909
          %v4926 = vadd.f32 %v4894, %v4910
          %v4927 = vadd.f32 %v4895, %v4911
          %v4928 = vadd.f32 %v4896, %v4912
          %v4929 = vadd.f32 %v4897, %v4913
          %v4930 = vadd.f32 %v4898, %v4914
          %v4931 = vadd.f32 %v4899, %v4915
          %v4932 = vadd.f32 %v4900, %v4916
          %v4933 = vadd.f32 %v4901, %v4917
          %v4934 = vadd.f32 %v4902, %v4918
          %v4935 = vadd.f32 %v4903, %v4919
          %v4936 = vadd.f32 %v4904, %v4920
          %v4937 = vadd.f32 %v4905, %v4921
          %v4938 = vadd.f32 %v4906, %v4922
          %v4939 = vadd.f32 %v4907, %v4923
          %v4940 = vadd.f32 %v4908, %v4924
        $region85: #{tpu_custom_call.1} parent=75 // loop_footer
          %s1158 = sadd.s32 1, %s1154
        $region86: #{tpu_custom_call.1} parent=75 // loop_footer_branch
          %1153 = sbr.rel target = $region82
        $region87: #{tpu_custom_call.1} parent=75 // loop_exit
          _
        %v4941 = vrot.slane %v1159, 4
        %v4942 = vadd.f32 %v1159, %v4941
        %v4943 = vrot.slane %v4942, 2
        %v4944 = vadd.f32 %v4942, %v4943
        %v4945 = vrot.slane %v4944, 1
        %v4946 = vadd.f32 %v4944, %v4945
        %v4947 = vrot.slane %v1160, 4
        %v4948 = vadd.f32 %v1160, %v4947
        %v4949 = vrot.slane %v4948, 2
        %v4950 = vadd.f32 %v4948, %v4949
        %v4951 = vrot.slane %v4950, 1
        %v4952 = vadd.f32 %v4950, %v4951
        %v4953 = vrot.slane %v1161, 4
        %v4954 = vadd.f32 %v1161, %v4953
        %v4955 = vrot.slane %v4954, 2
        %v4956 = vadd.f32 %v4954, %v4955
        %v4957 = vrot.slane %v4956, 1
        %v4958 = vadd.f32 %v4956, %v4957
        %v4959 = vrot.slane %v1162, 4
        %v4960 = vadd.f32 %v1162, %v4959
        %v4961 = vrot.slane %v4960, 2
        %v4962 = vadd.f32 %v4960, %v4961
        %v4963 = vrot.slane %v4962, 1
        %v4964 = vadd.f32 %v4962, %v4963
        %v4965 = vrot.slane %v1163, 4
        %v4966 = vadd.f32 %v1163, %v4965
        %v4967 = vrot.slane %v4966, 2
        %v4968 = vadd.f32 %v4966, %v4967
        %v4969 = vrot.slane %v4968, 1
        %v4970 = vadd.f32 %v4968, %v4969
        %v4971 = vrot.slane %v1164, 4
        %v4972 = vadd.f32 %v1164, %v4971
        %v4973 = vrot.slane %v4972, 2
        %v4974 = vadd.f32 %v4972, %v4973
        %v4975 = vrot.slane %v4974, 1
        %v4976 = vadd.f32 %v4974, %v4975
        %v4977 = vrot.slane %v1165, 4
        %v4978 = vadd.f32 %v1165, %v4977
        %v4979 = vrot.slane %v4978, 2
        %v4980 = vadd.f32 %v4978, %v4979
        %v4981 = vrot.slane %v4980, 1
        %v4982 = vadd.f32 %v4980, %v4981
        %v4983 = vrot.slane %v1166, 4
        %v4984 = vadd.f32 %v1166, %v4983
        %v4985 = vrot.slane %v4984, 2
        %v4986 = vadd.f32 %v4984, %v4985
        %v4987 = vrot.slane %v4986, 1
        %v4988 = vadd.f32 %v4986, %v4987
        %v4989 = vrot.slane %v1167, 4
        %v4990 = vadd.f32 %v1167, %v4989
        %v4991 = vrot.slane %v4990, 2
        %v4992 = vadd.f32 %v4990, %v4991
        %v4993 = vrot.slane %v4992, 1
        %v4994 = vadd.f32 %v4992, %v4993
        %v4995 = vrot.slane %v1168, 4
        %v4996 = vadd.f32 %v1168, %v4995
        %v4997 = vrot.slane %v4996, 2
        %v4998 = vadd.f32 %v4996, %v4997
        %v4999 = vrot.slane %v4998, 1
        %v5000 = vadd.f32 %v4998, %v4999
        %v5001 = vrot.slane %v1169, 4
        %v5002 = vadd.f32 %v1169, %v5001
        %v5003 = vrot.slane %v5002, 2
        %v5004 = vadd.f32 %v5002, %v5003
        %v5005 = vrot.slane %v5004, 1
        %v5006 = vadd.f32 %v5004, %v5005
        %v5007 = vrot.slane %v1170, 4
        %v5008 = vadd.f32 %v1170, %v5007
        %v5009 = vrot.slane %v5008, 2
        %v5010 = vadd.f32 %v5008, %v5009
        %v5011 = vrot.slane %v5010, 1
        %v5012 = vadd.f32 %v5010, %v5011
        %v5013 = vrot.slane %v1171, 4
        %v5014 = vadd.f32 %v1171, %v5013
        %v5015 = vrot.slane %v5014, 2
        %v5016 = vadd.f32 %v5014, %v5015
        %v5017 = vrot.slane %v5016, 1
        %v5018 = vadd.f32 %v5016, %v5017
        %v5019 = vrot.slane %v1172, 4
        %v5020 = vadd.f32 %v1172, %v5019
        %v5021 = vrot.slane %v5020, 2
        %v5022 = vadd.f32 %v5020, %v5021
        %v5023 = vrot.slane %v5022, 1
        %v5024 = vadd.f32 %v5022, %v5023
        %v5025 = vrot.slane %v1173, 4
        %v5026 = vadd.f32 %v1173, %v5025
        %v5027 = vrot.slane %v5026, 2
        %v5028 = vadd.f32 %v5026, %v5027
        %v5029 = vrot.slane %v5028, 1
        %v5030 = vadd.f32 %v5028, %v5029
        %v5031 = vrot.slane %v1174, 4
        %v5032 = vadd.f32 %v1174, %v5031
        %v5033 = vrot.slane %v5032, 2
        %v5034 = vadd.f32 %v5032, %v5033
        %v5035 = vrot.slane %v5034, 1
        %v5036 = vadd.f32 %v5034, %v5035
        %v5037 = vrcp.pop 8.0
        %v5038 = vmul.f32 %v4946, %v5037
        %v5039 = vmul.f32 %v4952, %v5037
        %v5040 = vmul.f32 %v4958, %v5037
        %v5041 = vmul.f32 %v4964, %v5037
        %v5042 = vmul.f32 %v4970, %v5037
        %v5043 = vmul.f32 %v4976, %v5037
        %v5044 = vmul.f32 %v4982, %v5037
        %v5045 = vmul.f32 %v4988, %v5037
        %v5046 = vmul.f32 %v4994, %v5037
        %v5047 = vmul.f32 %v5000, %v5037
        %v5048 = vmul.f32 %v5006, %v5037
        %v5049 = vmul.f32 %v5012, %v5037
        %v5050 = vmul.f32 %v5018, %v5037
        %v5051 = vmul.f32 %v5024, %v5037
        %v5052 = vmul.f32 %v5030, %v5037
        %v5053 = vmul.f32 %v5036, %v5037
        %v5054 = vpack.c.bf16 %v5038, %v5038
        %v5055 = vpack.c.bf16 %v5039, %v5039
        %v5056 = vpack.c.bf16 %v5040, %v5040
        %v5057 = vpack.c.bf16 %v5041, %v5041
        %v5058 = vpack.c.bf16 %v5042, %v5042
        %v5059 = vpack.c.bf16 %v5043, %v5043
        %v5060 = vpack.c.bf16 %v5044, %v5044
        %v5061 = vpack.c.bf16 %v5045, %v5045
        %v5062 = vpack.c.bf16 %v5046, %v5046
        %v5063 = vpack.c.bf16 %v5047, %v5047
        %v5064 = vpack.c.bf16 %v5048, %v5048
        %v5065 = vpack.c.bf16 %v5049, %v5049
        %v5066 = vpack.c.bf16 %v5050, %v5050
        %v5067 = vpack.c.bf16 %v5051, %v5051
        %v5068 = vpack.c.bf16 %v5052, %v5052
        %v5069 = vpack.c.bf16 %v5053, %v5053
        %v5070 = vld [vmem:[%s10] sm:$0xf]
        %v5071 = vld [vmem:[%s10 + $0x4] sm:$0xf]
        %v5072 = vld [vmem:[%s10 + $0x8] sm:$0xf]
        %v5073 = vld [vmem:[%s10 + $0xc] sm:$0xf]
        %v5074 = vld [vmem:[%s10 + $0x10] sm:$0xf]
        %v5075 = vld [vmem:[%s10 + $0x14] sm:$0xf]
        %v5076 = vld [vmem:[%s10 + $0x18] sm:$0xf]
        %v5077 = vld [vmem:[%s10 + $0x1c] sm:$0xf]
        %v5078 = vld [vmem:[%s10 + $0x20] sm:$0xf]
        %v5079 = vld [vmem:[%s10 + $0x24] sm:$0xf]
        %v5080 = vld [vmem:[%s10 + $0x28] sm:$0xf]
        %v5081 = vld [vmem:[%s10 + $0x2c] sm:$0xf]
        %v5082 = vld [vmem:[%s10 + $0x30] sm:$0xf]
        %v5083 = vld [vmem:[%s10 + $0x34] sm:$0xf]
        %v5084 = vld [vmem:[%s10 + $0x38] sm:$0xf]
        %v5085 = vld [vmem:[%s10 + $0x3c] sm:$0xf]
        %v5086 = vld [vmem:[%s11] sm:$0x1]
        %v5088 = vlaneseq
        %v5089 = vshrl.u32 %v5088, 7
        %v5090 = vsub.s32 0, %v5089
        %v5091 = vrot.slane %v5086, %v5090
        %v5109 = vunpack.c.l.b16 %v5054
        %v5110 = vunpack.c.l.b16 %v5055
        %v5111 = vunpack.c.l.b16 %v5056
        %v5112 = vunpack.c.l.b16 %v5057
        %v5113 = vunpack.c.l.b16 %v5058
        %v5114 = vunpack.c.l.b16 %v5059
        %v5115 = vunpack.c.l.b16 %v5060
        %v5116 = vunpack.c.l.b16 %v5061
        %v5117 = vunpack.c.l.b16 %v5062
        %v5118 = vunpack.c.l.b16 %v5063
        %v5119 = vunpack.c.l.b16 %v5064
        %v5120 = vunpack.c.l.b16 %v5065
        %v5121 = vunpack.c.l.b16 %v5066
        %v5122 = vunpack.c.l.b16 %v5067
        %v5123 = vunpack.c.l.b16 %v5068
        %v5124 = vunpack.c.l.b16 %v5069
        %vm5125 = vcmask 1041409
        %v5126 = vsel %vm5125, %v5110, %v5109
        %vm5127 = vcmask 1042434
        %v5128 = vsel %vm5127, %v5111, %v5126
        %vm5129 = vcmask 1043459
        %v5130 = vsel %vm5129, %v5112, %v5128
        %vm5131 = vcmask 1044484
        %v5132 = vsel %vm5131, %v5113, %v5130
        %vm5133 = vcmask 1045509
        %v5134 = vsel %vm5133, %v5114, %v5132
        %vm5135 = vcmask 1046534
        %v5136 = vsel %vm5135, %v5115, %v5134
        %vm5137 = vcmask 1047559
        %v5138 = vsel %vm5137, %v5116, %v5136
        %v5139 = vsel %vm5125, %v5118, %v5117
        %v5140 = vsel %vm5127, %v5119, %v5139
        %v5141 = vsel %vm5129, %v5120, %v5140
        %v5142 = vsel %vm5131, %v5121, %v5141
        %v5143 = vsel %vm5133, %v5122, %v5142
        %v5144 = vsel %vm5135, %v5123, %v5143
        %v5145 = vsel %vm5137, %v5124, %v5144
        %v5146 = vpack.c.b16 %v5145, %v5138
        %v5164 = vunpack.c.l.b16 %v5070
        %v5165 = vunpack.c.l.b16 %v5071
        %v5166 = vunpack.c.l.b16 %v5072
        %v5167 = vunpack.c.l.b16 %v5073
        %v5168 = vunpack.c.l.b16 %v5074
        %v5169 = vunpack.c.l.b16 %v5075
        %v5170 = vunpack.c.l.b16 %v5076
        %v5171 = vunpack.c.l.b16 %v5077
        %v5172 = vunpack.c.l.b16 %v5078
        %v5173 = vunpack.c.l.b16 %v5079
        %v5174 = vunpack.c.l.b16 %v5080
        %v5175 = vunpack.c.l.b16 %v5081
        %v5176 = vunpack.c.l.b16 %v5082
        %v5177 = vunpack.c.l.b16 %v5083
        %v5178 = vunpack.c.l.b16 %v5084
        %v5179 = vunpack.c.l.b16 %v5085
        %v5180 = vpack.c.b16 %v5165, %v5164
        %v5181 = vpack.c.b16 %v5167, %v5166
        %v5182 = vpack.c.b16 %v5169, %v5168
        %v5183 = vpack.c.b16 %v5171, %v5170
        %v5184 = vpack.c.b16 %v5173, %v5172
        %v5185 = vpack.c.b16 %v5175, %v5174
        %v5186 = vpack.c.b16 %v5177, %v5176
        %v5187 = vpack.c.b16 %v5179, %v5178
        %5196 = vmatprep.subr.bf16.mxu0 0
        %5197 = vmatpush1.bf16.msra.mxu0 %v5180
        %5198 = vmatprep.subr.bf16.mxu0 0
        %5199 = vmatpush1.bf16.msra.mxu0 %v5181
        %5200 = vmatprep.subr.bf16.mxu0 0
        %5201 = vmatpush1.bf16.msra.mxu0 %v5182
        %5202 = vmatprep.subr.bf16.mxu0 0
        %5203 = vmatpush1.bf16.msra.mxu0 %v5183
        %5204 = vmatprep.subr.bf16.mxu0 0
        %5205 = vmatpush1.bf16.msra.mxu0 %v5184
        %5206 = vmatprep.subr.bf16.mxu0 0
        %5207 = vmatpush1.bf16.msra.mxu0 %v5185
        %5208 = vmatprep.subr.bf16.mxu0 0
        %5209 = vmatpush1.bf16.msra.mxu0 %v5186
        %5210 = vmatprep.subr.bf16.mxu0 0
        %5211 = vmatpush1.bf16.msra.mxu0 %v5187
        %5212 = vmatprep.subr.bf16.mxu0 0
        %5213 = vmatpush1.bf16.msra.mxu0 0
        %5214 = vmatprep.subr.bf16.mxu0 0
        %5215 = vmatpush1.bf16.msra.mxu0 0
        %5216 = vmatprep.subr.bf16.mxu0 0
        %5217 = vmatpush1.bf16.msra.mxu0 0
        %5218 = vmatprep.subr.bf16.mxu0 0
        %5219 = vmatpush1.bf16.msra.mxu0 0
        %5220 = vmatprep.subr.bf16.mxu0 0
        %5221 = vmatpush1.bf16.msra.mxu0 0
        %5222 = vmatprep.subr.bf16.mxu0 0
        %5223 = vmatpush1.bf16.msra.mxu0 0
        %5224 = vmatprep.subr.bf16.mxu0 0
        %5225 = vmatpush1.bf16.msra.mxu0 0
        %5226 = vmatprep.subr.bf16.mxu0 0
        %5227 = vmatpush1.bf16.msra.mxu0 0
        %5228 = vmatprep.mubr.bf16.mxu0 0
        %5229 = vmatmul.mubr.bf16.gmra.mrb[0].mxu0 %v5146
        %v5230 = vpop.f32.mrb[0].mxu0
        %v5231 = vadd.f32 %v5091, %v5230
        %v5232 = vpop.f32.mrb[0].mxu0
        %v5233 = vpop.f32.mrb[0].mxu0
        %v5234 = vadd.f32 %v5091, %v5233
        %v5235 = vpop.f32.mrb[0].mxu0
        %5236 = vdwg.mxu0
        %v5237 = vmax.f32 %v5231, 0.0
        %v5238 = vmax.f32 %v5234, 0.0
        %v5239 = vpack.c.bf16 %v5238, %v5237
        %v5240 = vld [vmem:[%s12] sm:$0xf]
        %v5241 = vld [vmem:[%s12 + $0x4] sm:$0xf]
        %v5242 = vld [vmem:[%s12 + $0x8] sm:$0xf]
        %v5243 = vld [vmem:[%s12 + $0xc] sm:$0xf]
        %v5244 = vld [vmem:[%s12 + $0x10] sm:$0xf]
        %v5245 = vld [vmem:[%s12 + $0x14] sm:$0xf]
        %v5246 = vld [vmem:[%s12 + $0x18] sm:$0xf]
        %v5247 = vld [vmem:[%s12 + $0x1c] sm:$0xf]
        %v5248 = vld [vmem:[%s12 + $0x20] sm:$0xf]
        %v5249 = vld [vmem:[%s12 + $0x24] sm:$0xf]
        %v5250 = vld [vmem:[%s12 + $0x28] sm:$0xf]
        %v5251 = vld [vmem:[%s12 + $0x2c] sm:$0xf]
        %v5252 = vld [vmem:[%s12 + $0x30] sm:$0xf]
        %v5253 = vld [vmem:[%s12 + $0x34] sm:$0xf]
        %v5254 = vld [vmem:[%s12 + $0x38] sm:$0xf]
        %v5255 = vld [vmem:[%s12 + $0x3c] sm:$0xf]
        %v5256 = vld [vmem:[%s13] sm:$0x1]
        %v5258 = vlaneseq
        %v5259 = vshrl.u32 %v5258, 7
        %v5260 = vsub.s32 0, %v5259
        %v5261 = vrot.slane %v5256, %v5260
        %v5279 = vunpack.c.l.b16 %v5240
        %v5280 = vunpack.c.l.b16 %v5241
        %v5281 = vunpack.c.l.b16 %v5242
        %v5282 = vunpack.c.l.b16 %v5243
        %v5283 = vunpack.c.l.b16 %v5244
        %v5284 = vunpack.c.l.b16 %v5245
        %v5285 = vunpack.c.l.b16 %v5246
        %v5286 = vunpack.c.l.b16 %v5247
        %v5287 = vunpack.c.l.b16 %v5248
        %v5288 = vunpack.c.l.b16 %v5249
        %v5289 = vunpack.c.l.b16 %v5250
        %v5290 = vunpack.c.l.b16 %v5251
        %v5291 = vunpack.c.l.b16 %v5252
        %v5292 = vunpack.c.l.b16 %v5253
        %v5293 = vunpack.c.l.b16 %v5254
        %v5294 = vunpack.c.l.b16 %v5255
        %v5295 = vpack.c.b16 %v5280, %v5279
        %v5296 = vpack.c.b16 %v5282, %v5281
        %v5297 = vpack.c.b16 %v5284, %v5283
        %v5298 = vpack.c.b16 %v5286, %v5285
        %v5299 = vpack.c.b16 %v5288, %v5287
        %v5300 = vpack.c.b16 %v5290, %v5289
        %v5301 = vpack.c.b16 %v5292, %v5291
        %v5302 = vpack.c.b16 %v5294, %v5293
        %5311 = vmatprep.subr.bf16.mxu0 0
        %5312 = vmatpush1.bf16.msra.mxu0 %v5295
        %5313 = vmatprep.subr.bf16.mxu0 0
        %5314 = vmatpush1.bf16.msra.mxu0 %v5296
        %5315 = vmatprep.subr.bf16.mxu0 0
        %5316 = vmatpush1.bf16.msra.mxu0 %v5297
        %5317 = vmatprep.subr.bf16.mxu0 0
        %5318 = vmatpush1.bf16.msra.mxu0 %v5298
        %5319 = vmatprep.subr.bf16.mxu0 0
        %5320 = vmatpush1.bf16.msra.mxu0 %v5299
        %5321 = vmatprep.subr.bf16.mxu0 0
        %5322 = vmatpush1.bf16.msra.mxu0 %v5300
        %5323 = vmatprep.subr.bf16.mxu0 0
        %5324 = vmatpush1.bf16.msra.mxu0 %v5301
        %5325 = vmatprep.subr.bf16.mxu0 0
        %5326 = vmatpush1.bf16.msra.mxu0 %v5302
        %5327 = vmatprep.subr.bf16.mxu0 0
        %5328 = vmatpush1.bf16.msra.mxu0 0
        %5329 = vmatprep.subr.bf16.mxu0 0
        %5330 = vmatpush1.bf16.msra.mxu0 0
        %5331 = vmatprep.subr.bf16.mxu0 0
        %5332 = vmatpush1.bf16.msra.mxu0 0
        %5333 = vmatprep.subr.bf16.mxu0 0
        %5334 = vmatpush1.bf16.msra.mxu0 0
        %5335 = vmatprep.subr.bf16.mxu0 0
        %5336 = vmatpush1.bf16.msra.mxu0 0
        %5337 = vmatprep.subr.bf16.mxu0 0
        %5338 = vmatpush1.bf16.msra.mxu0 0
        %5339 = vmatprep.subr.bf16.mxu0 0
        %5340 = vmatpush1.bf16.msra.mxu0 0
        %5341 = vmatprep.subr.bf16.mxu0 0
        %5342 = vmatpush1.bf16.msra.mxu0 0
        %5343 = vmatprep.mubr.bf16.mxu0 0
        %5344 = vmatmul.mubr.bf16.gmra.mrb[0].mxu0 %v5239
        %v5345 = vpop.f32.mrb[0].mxu0
        %v5346 = vadd.f32 %v5261, %v5345
        %v5347 = vpop.f32.mrb[0].mxu0
        %v5348 = vpop.f32.mrb[0].mxu0
        %v5349 = vadd.f32 %v5261, %v5348
        %v5350 = vpop.f32.mrb[0].mxu0
        %5351 = vdwg.mxu0
        %5352 = vst [vmem:[%s492] sm:$0xff] %v5346
        %5353 = vst [vmem:[%s492 + $0x8] sm:$0xff] %v5349
        %s5354 = sand.u32 %s341, 1
        %s5355 = scalar_lea.sflag [#allocation4], %s5354
        %s5356 = sand.u32 %s341, 1
        %s5357 = smul.addr %s5356, 16
        %s5358 = scalar_lea.vmem [#allocation5], %s5357
        // Predicated region
        $region88: #{tpu_custom_call.1} parent=75 // pred_check
          %p5359 = pneg %p351
        $region89: #{tpu_custom_call.1} parent=75 // pred_check_branch
          %5361 = sbr.rel (%p5359) target = $region91
        $region90: #{tpu_custom_call.1} parent=75 // pred_region
          %s5362 = smul.u32 2, %s29
          %s5364 = ssub.s32 256, 256
          %5365 = vsyncadd %s5355, %s5364
          %s5366 = smul.addr %s5362, 128
          %s5367 = scalar_lea.hbm %s14, %s5366
          %s5368 = sshll.u32 %s5358, 4
          %s5369 = int_to_ptr.vmem [resolvable:$true] %s5368
          %5374 = dma.vmem_to_hbm [thread:$0]  %s5369, 256, %s5367, %s5355, 128, 128, 8
        $region91: #{tpu_custom_call.1} parent=75 // pred_fallthru
          _
      $region76: #{tpu_custom_call.1} parent=5 // pred_fallthru
        _
      %p5375 = scmp.le.s32.totalorder 2, %s24
      // Predicated region
      $region92: #{tpu_custom_call.1} parent=5 // pred_check
        %p5376 = pneg %p5375
      $region93: #{tpu_custom_call.1} parent=5 // pred_check_branch
        %5378 = sbr.rel (%p5376) target = $region95
      $region94: #{tpu_custom_call.1} parent=5 // pred_region
        %s5379 = ssub.s32 %s24, 2
        // Predicated region
        $region96: #{tpu_custom_call.1} parent=94 // pred_check
          %p5380 = pneg %p357
        $region97: #{tpu_custom_call.1} parent=94 // pred_check_branch
          %5382 = sbr.rel (%p5380) target = $region99
        $region98: #{tpu_custom_call.1} parent=94 // pred_region
          %s5383 = sand.u32 %s342, 1
          %s5384 = scalar_lea.sflag [#allocation4], %s5383
          %s5385 = sand.u32 %s342, 1
          %s5386 = smul.addr %s5385, 16
          %s5387 = scalar_lea.vmem [#allocation5], %s5386
          %5388 = dma.done %s5384, 256
        $region99: #{tpu_custom_call.1} parent=94 // pred_fallthru
          _
      $region95: #{tpu_custom_call.1} parent=5 // pred_fallthru
        _
    $region6: #{tpu_custom_call.1} parent=1 // loop_footer
      %s28 = sadd.s32 1, %s24
    $region7: #{tpu_custom_call.1} parent=1 // loop_footer_branch
      %23 = sbr.rel target = $region3
    $region8: #{tpu_custom_call.1} parent=1 // loop_exit
      _
    %5389 = vsyncpa [#allocation3], 1
    %s5390 = scalar_lea.sflag [#allocation3], 1
    %5391 = vsyncpa %s5390, 1
    %5392 = vsyncpa [#allocation4], 1
    %s5393 = scalar_lea.sflag [#allocation4], 1
    %5394 = vsyncpa %s5393, 1

</llo_original>
